<compile_context>
chip_gen: v7x
topology: tpu7x:2x2x1
jax: 0.10.0
libtpu: 0.0.40
codegen_flags: <defaults>
</compile_context>

<pallas_src>
import math
import jax
import jax.numpy as jnp
from jax.experimental import pallas as pl
from jax.experimental.pallas import tpu as pltpu


# ----------------------------------------------------------------------------
# Fused Pallas kernel: projection + MLP + 3x BiLSTM + final concat
# ----------------------------------------------------------------------------
def _encoder_fused_kernel(
        x_ref, lens_ref, awdf_ref, awdr_ref,
        w1_ref, b1_ref, w2_ref, b2_ref,
        wpf_ref, wpr_ref,
        wih0x_ref, wih0h_ref, wih0p_ref, whh0_ref, bg0_ref,
        wih1_ref, whh1_ref, bg1_ref,
        wih2_ref, whh2_ref, bg2_ref,
        out_ref):
    """Everything is tiny; all data lives in VMEM / vregs.

    x_ref:     (T*B, F)    time-major flattened dense input features
    lens_ref:  (B, 1)      int32 sequence lengths (packed-sequence semantics)
    awd*_ref:  (T*B, 320)  time-major flattened bi-AWD last-layer states
    wp*_ref:   (320, 300)  projection weight split along K (fwd / rev halves)
    wih0*_ref: (*, 8H)     layer-0 input weight split along K (x / mlp / proj)
    wih{1,2}:  (2H, 8H)    input weights, gate-interleaved columns
    whh*_ref:  (2H, 8H)    block-structured recurrent weights (fwd/bwd)
    bg*_ref:   (1, 8H)     b_ih + b_hh per direction, gate-interleaved
    out_ref:   (T, B, 2H + 300)  time-major output (batch-first transpose done
                                 by the caller; it is ~23 KB)

    Fused gate/column layout (H-wide blocks): [i_f i_b f_f f_b g_f g_b o_f o_b]
    Joint state layout: [h_fwd | h_bwd], [c_fwd | c_bwd]  (each H wide).
    """
    T, B, _ = out_ref.shape
    H = w2_ref.shape[1]
    G2, G4, G6, G8 = 2 * H, 4 * H, 6 * H, 8 * H
    f32 = jnp.float32

    # Static lane-pattern selectors, built once and hoisted out of all loops.
    lane8 = jax.lax.broadcasted_iota(jnp.int32, (B, G8), 1)
    sel_fwd8 = (lane8 % G2) < H                                  # fwd gate lanes
    lane2 = jax.lax.broadcasted_iota(jnp.int32, (B, G2), 1)
    sel_fwd2 = lane2 < H                                         # fwd state lanes

    # ---- bi-AWD projection: cat(fwd, rev) @ Wproj as split-K matmuls ----
    bi_proj = (jnp.dot(awdf_ref[...], wpf_ref[...], preferred_element_type=f32)
               + jnp.dot(awdr_ref[...], wpr_ref[...], preferred_element_type=f32))

    # ---- dense MLP: relu(relu(x W1 + b1) W2 + b2) ----
    x_in = x_ref[...]
    h1 = jnp.maximum(
        jnp.dot(x_in, w1_ref[...], preferred_element_type=f32) + b1_ref[...], 0.0)
    h2 = jnp.maximum(
        jnp.dot(h1, w2_ref[...], preferred_element_type=f32) + b2_ref[...], 0.0)

    # ---- packed-sequence masks, built once and reused by all three layers ----
    lens = lens_ref[...]                                         # (B, 1) int32
    mb_rows = []
    for s in range(T):
        # lanes < H belong to the forward direction (time s), the rest to the
        # backward direction (time T-1-s)
        t_sched = jnp.where(sel_fwd2, s, T - 1 - s)              # (B, 2H) int32
        mb_rows.append(t_sched < lens)                           # (B, 2H) bool
    bi_rows = [bi_proj[t * B:(t + 1) * B, :] for t in range(T)]

    def bidir_layer(gates_rows, whh_big):
        """One bidirectional LSTM layer; both directions advance jointly."""
        hc = jnp.zeros((B, G2), f32)                             # [h_f | h_b]
        cc = jnp.zeros((B, G2), f32)                             # [c_f | c_b]
        step_out = [None] * T
        for s in range(T):                                       # fully unrolled
            tf, tb = s, T - 1 - s
            # forward gate lanes come from time tf, backward lanes from tb
            g_in = jnp.where(sel_fwd8, gates_rows[tf], gates_rows[tb])
            # ONE recurrent matmul for BOTH directions (block-structured W_hh)
            g = g_in + jnp.dot(hc, whh_big, preferred_element_type=f32)
            sig_if = jax.nn.sigmoid(g[:, :G4])                   # [i_f i_b f_f f_b]
            g_cand = jnp.tanh(g[:, G4:G6])                       # [g_f g_b]
            o_g = jax.nn.sigmoid(g[:, G6:])                      # [o_f o_b]
            i_g = sig_if[:, :G2]
            f_g = sig_if[:, G2:]
            cc_new = f_g * cc + i_g * g_cand
            hc_new = o_g * jnp.tanh(cc_new)
            mb = mb_rows[s]
            # packed-sequence semantics: freeze state / zero output at padding
            cc = jnp.where(mb, cc_new, cc)
            hc = jnp.where(mb, hc_new, hc)
            step_out[s] = jnp.where(mb, hc_new, 0.0)
        # re-pair per time step: [fwd from step t | bwd from step T-1-t]
        return [jnp.where(sel_fwd2, step_out[t], step_out[T - 1 - t])
                for t in range(T)]

    # ---- layer 0: input-to-gate matmuls hoisted over the whole sequence ----
    gates0 = (jnp.dot(x_in, wih0x_ref[...], preferred_element_type=f32)
              + jnp.dot(h2, wih0h_ref[...], preferred_element_type=f32)
              + jnp.dot(bi_proj, wih0p_ref[...], preferred_element_type=f32)
              + bg0_ref[...])                                    # (T*B, 8H)
    gates0_rows = [gates0[t * B:(t + 1) * B, :] for t in range(T)]
    outs = bidir_layer(gates0_rows, whh0_ref[...])

    # ---- layers 1 & 2 (input = previous layer's per-time joint outputs) ----
    for wih_ref, whh_ref, bg_ref in ((wih1_ref, whh1_ref, bg1_ref),
                                     (wih2_ref, whh2_ref, bg2_ref)):
        wih = wih_ref[...]
        bg = bg_ref[...]
        gates_rows = [jnp.dot(outs[t], wih, preferred_element_type=f32) + bg
                      for t in range(T)]
        outs = bidir_layer(gates_rows, whh_ref[...])

    # ---- final output: cat(lstm_out, bi_proj) per timestep (arch 'both') ----
    for t in range(T):
        out_ref[t] = jnp.concatenate([outs[t], bi_rows[t]], axis=1)


# ----------------------------------------------------------------------------
# Single pallas_call wrapper (one grid step, full-array VMEM blocks)
# ----------------------------------------------------------------------------
def _full_spec(shape):
    ndim = len(shape)
    return pl.BlockSpec(shape, lambda i, _n=ndim: (0,) * _n)


def encoder_forward(inp, bi_awd_hid, bi_awd_hid_rev, seq_lengths, params):
    """
    inp:            (B, T, n_features2)          float32
    bi_awd_hid:     (T, B, 320)  last-layer forward LM states (synthetic)
    bi_awd_hid_rev: (T, B, 320)  last-layer reverse LM states (synthetic)
    seq_lengths:    (B,) int32, sorted descending, max == T
    returns:        (B, T, 2*n_hid2 + 300)
    """
    B, T, F = inp.shape
    H = params["w2"].shape[1]
    P = params["wp_f"].shape[1]
    out_d = 2 * H + P

    # Tiny layout glue only; all heavy data paths stay inside the fused kernel.
    x_tm = jnp.transpose(inp, (1, 0, 2)).reshape(T * B, F)        # time-major
    awd_f = bi_awd_hid.reshape(T * B, bi_awd_hid.shape[-1])       # free reshape
    awd_r = bi_awd_hid_rev.reshape(T * B, bi_awd_hid_rev.shape[-1])
    lens = seq_lengths.astype(jnp.int32).reshape(B, 1)

    wih0x, wih0h, wih0p, whh0, bg0 = params["lstm0"]
    (wih1, whh1, bg1), (wih2, whh2, bg2) = params["lstm12"]
    operands = (x_tm, lens, awd_f, awd_r,
                params["w1"], params["b1"], params["w2"], params["b2"],
                params["wp_f"], params["wp_r"],
                wih0x, wih0h, wih0p, whh0, bg0,
                wih1, whh1, bg1, wih2, whh2, bg2)

    out_tm = pl.pallas_call(
        _encoder_fused_kernel,
        out_shape=jax.ShapeDtypeStruct((T, B, out_d), jnp.float32),
        grid=(1,),
        in_specs=[_full_spec(o.shape) for o in operands],
        out_specs=_full_spec((T, B, out_d)),
        compiler_params=pltpu.CompilerParams(
            dimension_semantics=("arbitrary",)),
    )(*operands)
    return jnp.transpose(out_tm, (1, 0, 2))                       # batch-first


# ----------------------------------------------------------------------------
# Parameter construction (deterministic; fused layouts built once here)
# ----------------------------------------------------------------------------
def build_params(key, n_features2, n_hid2, bi_awd_dim, proj_dim):
    H = n_hid2
    keys = jax.random.split(key, 32)
    ki = iter(range(32))

    def xavier(k, fan_in, fan_out):
        bound = math.sqrt(6.0 / (fan_in + fan_out))
        return jax.random.uniform(k, (fan_in, fan_out), jnp.float32, -bound, bound)

    def uni(k, shape, bound):
        return jax.random.uniform(k, shape, jnp.float32, -bound, bound)

    def fuse_gate_cols(mat_f, mat_b):
        # PyTorch gate order (i, f, g, o); interleave directions per gate so the
        # kernel can slice joint [fwd|bwd] gate blocks without lane concats.
        cols = []
        for g in range(4):
            cols.append(mat_f[:, g * H:(g + 1) * H])
            cols.append(mat_b[:, g * H:(g + 1) * H])
        return jnp.concatenate(cols, axis=1)                       # (rows, 8H)

    def fuse_recurrent(whh_f, whh_b):
        z = jnp.zeros((H, H), jnp.float32)
        cols = []
        for g in range(4):
            cols.append(jnp.concatenate([whh_f[:, g * H:(g + 1) * H], z], axis=0))
            cols.append(jnp.concatenate([z, whh_b[:, g * H:(g + 1) * H]], axis=0))
        return jnp.concatenate(cols, axis=1)                       # (2H, 8H)

    params = {}
    # densel1 / densel2: xavier_uniform weights, zero biases (init_weights)
    params["w1"] = xavier(keys[next(ki)], n_features2, H)
    params["b1"] = jnp.zeros((1, H), jnp.float32)
    params["w2"] = xavier(keys[next(ki)], H, H)
    params["b2"] = jnp.zeros((1, H), jnp.float32)
    # project: Linear(2*320, 300, bias=False), split along K for the kernel
    pb = 1.0 / math.sqrt(bi_awd_dim)
    w_proj = uni(keys[next(ki)], (bi_awd_dim, proj_dim), pb)
    params["wp_f"] = w_proj[:bi_awd_dim // 2]
    params["wp_r"] = w_proj[bi_awd_dim // 2:]

    # 3-layer bidirectional LSTM, PyTorch default uniform(-1/sqrt(H), 1/sqrt(H))
    rnn_in = n_features2 + H + proj_dim      # architecture in ('before', 'both')
    bound = 1.0 / math.sqrt(H)
    fused_layers = []
    for layer in range(3):
        din = rnn_in if layer == 0 else 2 * H
        per_dir = []
        for _direction in range(2):
            wih = uni(keys[next(ki)], (din, 4 * H), bound)
            whh = uni(keys[next(ki)], (H, 4 * H), bound)
            b = (uni(keys[next(ki)], (1, 4 * H), bound)
                 + uni(keys[next(ki)], (1, 4 * H), bound))   # b_ih + b_hh combined
            per_dir.append((wih, whh, b))
        (wih_f, whh_f, b_f), (wih_b, whh_b, b_b) = per_dir
        fused_layers.append((fuse_gate_cols(wih_f, wih_b),
                             fuse_recurrent(whh_f, whh_b),
                             fuse_gate_cols(b_f, b_b)))

    # split layer-0 input weight along K (x / mlp / projection rows) so the
    # kernel never builds the concatenated RNN input
    wih0, whh0, bg0 = fused_layers[0]
    F = n_features2
    params["lstm0"] = (wih0[:F], wih0[F:F + H], wih0[F + H:], whh0, bg0)
    params["lstm12"] = fused_layers[1:]
    return params


# ----------------------------------------------------------------------------
if __name__ == "__main__":
    B, T = 2, 8
    N_FEATURES2, N_HID2 = 32, 32
    BI_AWD_DIM, PROJ_DIM = 2 * 320, 300   # bi_awd_layer == 'last'

    key = jax.random.PRNGKey(0)
    k_inp, k_fwd, k_rev, k_par = jax.random.split(key, 4)

    inp = jax.random.normal(k_inp, (B, T, N_FEATURES2), jnp.float32)
    bi_awd_hid = jax.random.normal(k_fwd, (T, B, 320), jnp.float32)
    bi_awd_hid_rev = jax.random.normal(k_rev, (T, B, 320), jnp.float32)
    seq_lengths = jnp.array([8, 5], dtype=jnp.int32)  # sorted descending

    params = build_params(k_par, N_FEATURES2, N_HID2, BI_AWD_DIM, PROJ_DIM)

    fwd = jax.jit(encoder_forward)
    out = fwd(inp, bi_awd_hid, bi_awd_hid_rev, seq_lengths, params)
    out = jax.block_until_ready(out)

    assert out.shape == (B, T, 2 * N_HID2 + PROJ_DIM), out.shape
    assert bool(jnp.all(jnp.isfinite(out)))
    # packed-sequence semantics: LSTM part is exactly zero past each seq end
    assert bool(jnp.all(out[1, 5:, :2 * N_HID2] == 0.0))
    # the appended bi-AWD projection must match a plain-JAX reference
    w_proj_full = jnp.concatenate([params["wp_f"], params["wp_r"]], axis=0)
    bi_cat = jnp.concatenate([bi_awd_hid, bi_awd_hid_rev], axis=-1)
    ref_proj = jnp.transpose(jnp.einsum("tbd,dp->tbp", bi_cat, w_proj_full),
                             (1, 0, 2))
    assert bool(jnp.allclose(out[:, :, 2 * N_HID2:], ref_proj,
                             atol=1e-2, rtol=1e-2))
    print("KERNEL_OK")
</pallas_src>

<mosaic_0001>
module attributes {stable_mosaic.version = 11 : i64} {
  func.func @_encoder_fused_kernel(%arg0: i32, %arg1: memref<16x32xf32, #tpu.memory_space<vmem>>, %arg2: memref<2x1xi32, #tpu.memory_space<vmem>>, %arg3: memref<16x320xf32, #tpu.memory_space<vmem>>, %arg4: memref<16x320xf32, #tpu.memory_space<vmem>>, %arg5: memref<32x32xf32, #tpu.memory_space<vmem>>, %arg6: memref<1x32xf32, #tpu.memory_space<vmem>>, %arg7: memref<32x32xf32, #tpu.memory_space<vmem>>, %arg8: memref<1x32xf32, #tpu.memory_space<vmem>>, %arg9: memref<320x300xf32, #tpu.memory_space<vmem>>, %arg10: memref<320x300xf32, #tpu.memory_space<vmem>>, %arg11: memref<32x256xf32, #tpu.memory_space<vmem>>, %arg12: memref<32x256xf32, #tpu.memory_space<vmem>>, %arg13: memref<300x256xf32, #tpu.memory_space<vmem>>, %arg14: memref<64x256xf32, #tpu.memory_space<vmem>>, %arg15: memref<1x256xf32, #tpu.memory_space<vmem>>, %arg16: memref<64x256xf32, #tpu.memory_space<vmem>>, %arg17: memref<64x256xf32, #tpu.memory_space<vmem>>, %arg18: memref<1x256xf32, #tpu.memory_space<vmem>>, %arg19: memref<64x256xf32, #tpu.memory_space<vmem>>, %arg20: memref<64x256xf32, #tpu.memory_space<vmem>>, %arg21: memref<1x256xf32, #tpu.memory_space<vmem>>, %arg22: memref<8x2x364xf32, #tpu.memory_space<vmem>>) attributes {dimension_semantics = [#tpu.dimension_semantics<arbitrary>], iteration_bounds = array<i64: 1>, scalar_prefetch = 0 : i64, scratch_operands = 0 : i64, tpu.core_type = #tpu.core_type<tc>, window_params = [{pipeline_mode = #tpu.pipeline_mode<synchronous>, transform_indices = @transform_0, window_bounds = array<i64: 16, 32>}, {pipeline_mode = #tpu.pipeline_mode<synchronous>, transform_indices = @transform_1, window_bounds = array<i64: 2, 1>}, {pipeline_mode = #tpu.pipeline_mode<synchronous>, transform_indices = @transform_2, window_bounds = array<i64: 16, 320>}, {pipeline_mode = #tpu.pipeline_mode<synchronous>, transform_indices = @transform_3, window_bounds = array<i64: 16, 320>}, {pipeline_mode = #tpu.pipeline_mode<synchronous>, transform_indices = @transform_4, window_bounds = array<i64: 32, 32>}, {pipeline_mode = #tpu.pipeline_mode<synchronous>, transform_indices = @transform_5, window_bounds = array<i64: 1, 32>}, {pipeline_mode = #tpu.pipeline_mode<synchronous>, transform_indices = @transform_6, window_bounds = array<i64: 32, 32>}, {pipeline_mode = #tpu.pipeline_mode<synchronous>, transform_indices = @transform_7, window_bounds = array<i64: 1, 32>}, {pipeline_mode = #tpu.pipeline_mode<synchronous>, transform_indices = @transform_8, window_bounds = array<i64: 320, 300>}, {pipeline_mode = #tpu.pipeline_mode<synchronous>, transform_indices = @transform_9, window_bounds = array<i64: 320, 300>}, {pipeline_mode = #tpu.pipeline_mode<synchronous>, transform_indices = @transform_10, window_bounds = array<i64: 32, 256>}, {pipeline_mode = #tpu.pipeline_mode<synchronous>, transform_indices = @transform_11, window_bounds = array<i64: 32, 256>}, {pipeline_mode = #tpu.pipeline_mode<synchronous>, transform_indices = @transform_12, window_bounds = array<i64: 300, 256>}, {pipeline_mode = #tpu.pipeline_mode<synchronous>, transform_indices = @transform_13, window_bounds = array<i64: 64, 256>}, {pipeline_mode = #tpu.pipeline_mode<synchronous>, transform_indices = @transform_14, window_bounds = array<i64: 1, 256>}, {pipeline_mode = #tpu.pipeline_mode<synchronous>, transform_indices = @transform_15, window_bounds = array<i64: 64, 256>}, {pipeline_mode = #tpu.pipeline_mode<synchronous>, transform_indices = @transform_16, window_bounds = array<i64: 64, 256>}, {pipeline_mode = #tpu.pipeline_mode<synchronous>, transform_indices = @transform_17, window_bounds = array<i64: 1, 256>}, {pipeline_mode = #tpu.pipeline_mode<synchronous>, transform_indices = @transform_18, window_bounds = array<i64: 64, 256>}, {pipeline_mode = #tpu.pipeline_mode<synchronous>, transform_indices = @transform_19, window_bounds = array<i64: 64, 256>}, {pipeline_mode = #tpu.pipeline_mode<synchronous>, transform_indices = @transform_20, window_bounds = array<i64: 1, 256>}, {pipeline_mode = #tpu.pipeline_mode<synchronous>, transform_indices = @transform_21, window_bounds = array<i64: 8, 2, 364>}]} {
    %0 = tpu.iota {dimensions = array<i32: 1>} : vector<2x256xi32>
    %c64_i32 = arith.constant 64 : i32
    %c0_i32 = arith.constant 0 : i32
    %1 = arith.cmpi eq, %c64_i32, %c0_i32 : i32
    %c1_i32 = arith.constant 1 : i32
    %2 = arith.select %1, %c1_i32, %c64_i32 : i32
    %3 = vector.broadcast %2 : i32 to vector<2x256xi32>
    %4 = arith.remsi %0, %3 : vector<2x256xi32>
    %c0_i32_0 = arith.constant 0 : i32
    %5 = vector.broadcast %c0_i32_0 : i32 to vector<2x256xi32>
    %6 = arith.cmpi ne, %4, %5 : vector<2x256xi32>
    %c0_i32_1 = arith.constant 0 : i32
    %7 = vector.broadcast %c0_i32_1 : i32 to vector<2x256xi32>
    %8 = arith.cmpi slt, %4, %7 : vector<2x256xi32>
    %c0_i32_2 = arith.constant 0 : i32
    %9 = arith.cmpi slt, %2, %c0_i32_2 : i32
    %10 = vector.broadcast %9 : i1 to vector<2x256xi1>
    %11 = vector.broadcast %10 : vector<2x256xi1> to vector<2x256xi1>
    %12 = arith.xori %8, %11 : vector<2x256xi1>
    %13 = arith.andi %12, %6 : vector<2x256xi1>
    %14 = vector.broadcast %2 : i32 to vector<2x256xi32>
    %15 = arith.addi %4, %14 : vector<2x256xi32>
    %16 = arith.select %13, %15, %4 : vector<2x256xi1>, vector<2x256xi32>
    %c32_i32 = arith.constant 32 : i32
    %17 = vector.broadcast %c32_i32 : i32 to vector<2x256xi32>
    %18 = arith.cmpi slt, %16, %17 : vector<2x256xi32>
    %19 = tpu.iota {dimensions = array<i32: 1>} : vector<2x64xi32>
    %c32_i32_3 = arith.constant 32 : i32
    %20 = vector.broadcast %c32_i32_3 : i32 to vector<2x64xi32>
    %21 = arith.cmpi slt, %19, %20 : vector<2x64xi32>
    %c0 = arith.constant 0 : index
    %c0_4 = arith.constant 0 : index
    %22 = vector.load %arg3[%c0, %c0_4] : memref<16x320xf32, #tpu.memory_space<vmem>>, vector<16x320xf32>
    %c0_5 = arith.constant 0 : index
    %c0_6 = arith.constant 0 : index
    %23 = vector.load %arg9[%c0_5, %c0_6] : memref<320x300xf32, #tpu.memory_space<vmem>>, vector<320x300xf32>
    %cst = arith.constant dense<0.000000e+00> : vector<16x300xf32>
    %24 = tpu.matmul %22, %23, %cst {dimension_numbers = #tpu.dot_dimension_numbers<[1], [0], [0], [1], [0, 0, 1, 1], [], []>} : vector<16x320xf32>, vector<320x300xf32>, vector<16x300xf32> -> vector<16x300xf32>
    %c0_7 = arith.constant 0 : index
    %c0_8 = arith.constant 0 : index
    %25 = vector.load %arg4[%c0_7, %c0_8] : memref<16x320xf32, #tpu.memory_space<vmem>>, vector<16x320xf32>
    %c0_9 = arith.constant 0 : index
    %c0_10 = arith.constant 0 : index
    %26 = vector.load %arg10[%c0_9, %c0_10] : memref<320x300xf32, #tpu.memory_space<vmem>>, vector<320x300xf32>
    %cst_11 = arith.constant dense<0.000000e+00> : vector<16x300xf32>
    %27 = tpu.matmul %25, %26, %cst_11 {dimension_numbers = #tpu.dot_dimension_numbers<[1], [0], [0], [1], [0, 0, 1, 1], [], []>} : vector<16x320xf32>, vector<320x300xf32>, vector<16x300xf32> -> vector<16x300xf32>
    %28 = arith.addf %24, %27 : vector<16x300xf32>
    %c0_12 = arith.constant 0 : index
    %c0_13 = arith.constant 0 : index
    %29 = vector.load %arg1[%c0_12, %c0_13] : memref<16x32xf32, #tpu.memory_space<vmem>>, vector<16x32xf32>
    %c0_14 = arith.constant 0 : index
    %c0_15 = arith.constant 0 : index
    %30 = vector.load %arg5[%c0_14, %c0_15] : memref<32x32xf32, #tpu.memory_space<vmem>>, vector<32x32xf32>
    %cst_16 = arith.constant dense<0.000000e+00> : vector<16x32xf32>
    %31 = tpu.matmul %29, %30, %cst_16 {dimension_numbers = #tpu.dot_dimension_numbers<[1], [0], [0], [1], [0, 0, 1, 1], [], []>} : vector<16x32xf32>, vector<32x32xf32>, vector<16x32xf32> -> vector<16x32xf32>
    %c0_17 = arith.constant 0 : index
    %c0_18 = arith.constant 0 : index
    %32 = vector.load %arg6[%c0_17, %c0_18] : memref<1x32xf32, #tpu.memory_space<vmem>>, vector<1x32xf32>
    %33 = vector.broadcast %32 : vector<1x32xf32> to vector<16x32xf32>
    %34 = arith.addf %31, %33 : vector<16x32xf32>
    %cst_19 = arith.constant 0.000000e+00 : f32
    %35 = vector.broadcast %cst_19 : f32 to vector<16x32xf32>
    %36 = arith.maximumf %34, %35 : vector<16x32xf32>
    %c0_20 = arith.constant 0 : index
    %c0_21 = arith.constant 0 : index
    %37 = vector.load %arg7[%c0_20, %c0_21] : memref<32x32xf32, #tpu.memory_space<vmem>>, vector<32x32xf32>
    %cst_22 = arith.constant dense<0.000000e+00> : vector<16x32xf32>
    %38 = tpu.matmul %36, %37, %cst_22 {dimension_numbers = #tpu.dot_dimension_numbers<[1], [0], [0], [1], [0, 0, 1, 1], [], []>} : vector<16x32xf32>, vector<32x32xf32>, vector<16x32xf32> -> vector<16x32xf32>
    %c0_23 = arith.constant 0 : index
    %c0_24 = arith.constant 0 : index
    %39 = vector.load %arg8[%c0_23, %c0_24] : memref<1x32xf32, #tpu.memory_space<vmem>>, vector<1x32xf32>
    %40 = vector.broadcast %39 : vector<1x32xf32> to vector<16x32xf32>
    %41 = arith.addf %38, %40 : vector<16x32xf32>
    %cst_25 = arith.constant 0.000000e+00 : f32
    %42 = vector.broadcast %cst_25 : f32 to vector<16x32xf32>
    %43 = arith.maximumf %41, %42 : vector<16x32xf32>
    %c0_26 = arith.constant 0 : index
    %c0_27 = arith.constant 0 : index
    %44 = vector.load %arg2[%c0_26, %c0_27] : memref<2x1xi32, #tpu.memory_space<vmem>>, vector<2x1xi32>
    %c0_i32_28 = arith.constant 0 : i32
    %c7_i32 = arith.constant 7 : i32
    %45 = vector.broadcast %c0_i32_28 : i32 to vector<2x64xi32>
    %46 = vector.broadcast %c7_i32 : i32 to vector<2x64xi32>
    %47 = arith.select %21, %45, %46 : vector<2x64xi1>, vector<2x64xi32>
    %48 = vector.broadcast %44 : vector<2x1xi32> to vector<2x64xi32>
    %49 = arith.cmpi slt, %47, %48 : vector<2x64xi32>
    %c1_i32_29 = arith.constant 1 : i32
    %c6_i32 = arith.constant 6 : i32
    %50 = vector.broadcast %c1_i32_29 : i32 to vector<2x64xi32>
    %51 = vector.broadcast %c6_i32 : i32 to vector<2x64xi32>
    %52 = arith.select %21, %50, %51 : vector<2x64xi1>, vector<2x64xi32>
    %53 = vector.broadcast %44 : vector<2x1xi32> to vector<2x64xi32>
    %54 = arith.cmpi slt, %52, %53 : vector<2x64xi32>
    %c2_i32 = arith.constant 2 : i32
    %c5_i32 = arith.constant 5 : i32
    %55 = vector.broadcast %c2_i32 : i32 to vector<2x64xi32>
    %56 = vector.broadcast %c5_i32 : i32 to vector<2x64xi32>
    %57 = arith.select %21, %55, %56 : vector<2x64xi1>, vector<2x64xi32>
    %58 = vector.broadcast %44 : vector<2x1xi32> to vector<2x64xi32>
    %59 = arith.cmpi slt, %57, %58 : vector<2x64xi32>
    %c3_i32 = arith.constant 3 : i32
    %c4_i32 = arith.constant 4 : i32
    %60 = vector.broadcast %c3_i32 : i32 to vector<2x64xi32>
    %61 = vector.broadcast %c4_i32 : i32 to vector<2x64xi32>
    %62 = arith.select %21, %60, %61 : vector<2x64xi1>, vector<2x64xi32>
    %63 = vector.broadcast %44 : vector<2x1xi32> to vector<2x64xi32>
    %64 = arith.cmpi slt, %62, %63 : vector<2x64xi32>
    %c4_i32_30 = arith.constant 4 : i32
    %c3_i32_31 = arith.constant 3 : i32
    %65 = vector.broadcast %c4_i32_30 : i32 to vector<2x64xi32>
    %66 = vector.broadcast %c3_i32_31 : i32 to vector<2x64xi32>
    %67 = arith.select %21, %65, %66 : vector<2x64xi1>, vector<2x64xi32>
    %68 = vector.broadcast %44 : vector<2x1xi32> to vector<2x64xi32>
    %69 = arith.cmpi slt, %67, %68 : vector<2x64xi32>
    %c5_i32_32 = arith.constant 5 : i32
    %c2_i32_33 = arith.constant 2 : i32
    %70 = vector.broadcast %c5_i32_32 : i32 to vector<2x64xi32>
    %71 = vector.broadcast %c2_i32_33 : i32 to vector<2x64xi32>
    %72 = arith.select %21, %70, %71 : vector<2x64xi1>, vector<2x64xi32>
    %73 = vector.broadcast %44 : vector<2x1xi32> to vector<2x64xi32>
    %74 = arith.cmpi slt, %72, %73 : vector<2x64xi32>
    %c6_i32_34 = arith.constant 6 : i32
    %c1_i32_35 = arith.constant 1 : i32
    %75 = vector.broadcast %c6_i32_34 : i32 to vector<2x64xi32>
    %76 = vector.broadcast %c1_i32_35 : i32 to vector<2x64xi32>
    %77 = arith.select %21, %75, %76 : vector<2x64xi1>, vector<2x64xi32>
    %78 = vector.broadcast %44 : vector<2x1xi32> to vector<2x64xi32>
    %79 = arith.cmpi slt, %77, %78 : vector<2x64xi32>
    %c7_i32_36 = arith.constant 7 : i32
    %c0_i32_37 = arith.constant 0 : i32
    %80 = vector.broadcast %c7_i32_36 : i32 to vector<2x64xi32>
    %81 = vector.broadcast %c0_i32_37 : i32 to vector<2x64xi32>
    %82 = arith.select %21, %80, %81 : vector<2x64xi1>, vector<2x64xi32>
    %83 = vector.broadcast %44 : vector<2x1xi32> to vector<2x64xi32>
    %84 = arith.cmpi slt, %82, %83 : vector<2x64xi32>
    %85 = vector.extract_strided_slice %28 {offsets = [0, 0], sizes = [2, 300], strides = [1, 1]} : vector<16x300xf32> to vector<2x300xf32>
    %86 = vector.extract_strided_slice %28 {offsets = [2, 0], sizes = [2, 300], strides = [1, 1]} : vector<16x300xf32> to vector<2x300xf32>
    %87 = vector.extract_strided_slice %28 {offsets = [4, 0], sizes = [2, 300], strides = [1, 1]} : vector<16x300xf32> to vector<2x300xf32>
    %88 = vector.extract_strided_slice %28 {offsets = [6, 0], sizes = [2, 300], strides = [1, 1]} : vector<16x300xf32> to vector<2x300xf32>
    %89 = vector.extract_strided_slice %28 {offsets = [8, 0], sizes = [2, 300], strides = [1, 1]} : vector<16x300xf32> to vector<2x300xf32>
    %90 = vector.extract_strided_slice %28 {offsets = [10, 0], sizes = [2, 300], strides = [1, 1]} : vector<16x300xf32> to vector<2x300xf32>
    %91 = vector.extract_strided_slice %28 {offsets = [12, 0], sizes = [2, 300], strides = [1, 1]} : vector<16x300xf32> to vector<2x300xf32>
    %92 = vector.extract_strided_slice %28 {offsets = [14, 0], sizes = [2, 300], strides = [1, 1]} : vector<16x300xf32> to vector<2x300xf32>
    %c0_38 = arith.constant 0 : index
    %c0_39 = arith.constant 0 : index
    %93 = vector.load %arg11[%c0_38, %c0_39] : memref<32x256xf32, #tpu.memory_space<vmem>>, vector<32x256xf32>
    %cst_40 = arith.constant dense<0.000000e+00> : vector<16x256xf32>
    %94 = tpu.matmul %29, %93, %cst_40 {dimension_numbers = #tpu.dot_dimension_numbers<[1], [0], [0], [1], [0, 0, 1, 1], [], []>} : vector<16x32xf32>, vector<32x256xf32>, vector<16x256xf32> -> vector<16x256xf32>
    %c0_41 = arith.constant 0 : index
    %c0_42 = arith.constant 0 : index
    %95 = vector.load %arg12[%c0_41, %c0_42] : memref<32x256xf32, #tpu.memory_space<vmem>>, vector<32x256xf32>
    %cst_43 = arith.constant dense<0.000000e+00> : vector<16x256xf32>
    %96 = tpu.matmul %43, %95, %cst_43 {dimension_numbers = #tpu.dot_dimension_numbers<[1], [0], [0], [1], [0, 0, 1, 1], [], []>} : vector<16x32xf32>, vector<32x256xf32>, vector<16x256xf32> -> vector<16x256xf32>
    %97 = arith.addf %94, %96 : vector<16x256xf32>
    %c0_44 = arith.constant 0 : index
    %c0_45 = arith.constant 0 : index
    %98 = vector.load %arg13[%c0_44, %c0_45] : memref<300x256xf32, #tpu.memory_space<vmem>>, vector<300x256xf32>
    %cst_46 = arith.constant dense<0.000000e+00> : vector<16x256xf32>
    %99 = tpu.matmul %28, %98, %cst_46 {dimension_numbers = #tpu.dot_dimension_numbers<[1], [0], [0], [1], [0, 0, 1, 1], [], []>} : vector<16x300xf32>, vector<300x256xf32>, vector<16x256xf32> -> vector<16x256xf32>
    %100 = arith.addf %97, %99 : vector<16x256xf32>
    %c0_47 = arith.constant 0 : index
    %c0_48 = arith.constant 0 : index
    %101 = vector.load %arg15[%c0_47, %c0_48] : memref<1x256xf32, #tpu.memory_space<vmem>>, vector<1x256xf32>
    %102 = vector.broadcast %101 : vector<1x256xf32> to vector<16x256xf32>
    %103 = arith.addf %100, %102 : vector<16x256xf32>
    %104 = vector.extract_strided_slice %103 {offsets = [0, 0], sizes = [2, 256], strides = [1, 1]} : vector<16x256xf32> to vector<2x256xf32>
    %105 = vector.extract_strided_slice %103 {offsets = [2, 0], sizes = [2, 256], strides = [1, 1]} : vector<16x256xf32> to vector<2x256xf32>
    %106 = vector.extract_strided_slice %103 {offsets = [4, 0], sizes = [2, 256], strides = [1, 1]} : vector<16x256xf32> to vector<2x256xf32>
    %107 = vector.extract_strided_slice %103 {offsets = [6, 0], sizes = [2, 256], strides = [1, 1]} : vector<16x256xf32> to vector<2x256xf32>
    %108 = vector.extract_strided_slice %103 {offsets = [8, 0], sizes = [2, 256], strides = [1, 1]} : vector<16x256xf32> to vector<2x256xf32>
    %109 = vector.extract_strided_slice %103 {offsets = [10, 0], sizes = [2, 256], strides = [1, 1]} : vector<16x256xf32> to vector<2x256xf32>
    %110 = vector.extract_strided_slice %103 {offsets = [12, 0], sizes = [2, 256], strides = [1, 1]} : vector<16x256xf32> to vector<2x256xf32>
    %111 = vector.extract_strided_slice %103 {offsets = [14, 0], sizes = [2, 256], strides = [1, 1]} : vector<16x256xf32> to vector<2x256xf32>
    %c0_49 = arith.constant 0 : index
    %c0_50 = arith.constant 0 : index
    %112 = vector.load %arg14[%c0_49, %c0_50] : memref<64x256xf32, #tpu.memory_space<vmem>>, vector<64x256xf32>
    %cst_51 = arith.constant 0.000000e+00 : f32
    %113 = vector.broadcast %cst_51 : f32 to vector<2x64xf32>
    %cst_52 = arith.constant 0.000000e+00 : f32
    %114 = vector.broadcast %cst_52 : f32 to vector<2x64xf32>
    %115 = arith.select %18, %104, %111 : vector<2x256xi1>, vector<2x256xf32>
    %cst_53 = arith.constant dense<0.000000e+00> : vector<2x256xf32>
    %116 = tpu.matmul %113, %112, %cst_53 {dimension_numbers = #tpu.dot_dimension_numbers<[1], [0], [0], [1], [0, 0, 1, 1], [], []>} : vector<2x64xf32>, vector<64x256xf32>, vector<2x256xf32> -> vector<2x256xf32>
    %117 = arith.addf %115, %116 : vector<2x256xf32>
    %118 = vector.extract_strided_slice %117 {offsets = [0, 0], sizes = [2, 128], strides = [1, 1]} : vector<2x256xf32> to vector<2x128xf32>
    %119 = arith.negf %118 : vector<2x128xf32>
    %120 = math.exp %119 : vector<2x128xf32>
    %cst_54 = arith.constant 1.000000e+00 : f32
    %121 = vector.broadcast %cst_54 : f32 to vector<2x128xf32>
    %122 = arith.addf %121, %120 : vector<2x128xf32>
    %123 = arith.divf %121, %122 : vector<2x128xf32>
    %124 = vector.extract_strided_slice %117 {offsets = [0, 128], sizes = [2, 64], strides = [1, 1]} : vector<2x256xf32> to vector<2x64xf32>
    %125 = math.tanh %124 : vector<2x64xf32>
    %126 = vector.extract_strided_slice %117 {offsets = [0, 192], sizes = [2, 64], strides = [1, 1]} : vector<2x256xf32> to vector<2x64xf32>
    %127 = arith.negf %126 : vector<2x64xf32>
    %128 = math.exp %127 : vector<2x64xf32>
    %cst_55 = arith.constant 1.000000e+00 : f32
    %129 = vector.broadcast %cst_55 : f32 to vector<2x64xf32>
    %130 = arith.addf %129, %128 : vector<2x64xf32>
    %131 = arith.divf %129, %130 : vector<2x64xf32>
    %132 = vector.extract_strided_slice %123 {offsets = [0, 0], sizes = [2, 64], strides = [1, 1]} : vector<2x128xf32> to vector<2x64xf32>
    %133 = vector.extract_strided_slice %123 {offsets = [0, 64], sizes = [2, 64], strides = [1, 1]} : vector<2x128xf32> to vector<2x64xf32>
    %134 = arith.mulf %133, %114 : vector<2x64xf32>
    %135 = arith.mulf %132, %125 : vector<2x64xf32>
    %136 = arith.addf %134, %135 : vector<2x64xf32>
    %137 = math.tanh %136 : vector<2x64xf32>
    %138 = arith.mulf %131, %137 : vector<2x64xf32>
    %139 = arith.select %49, %136, %114 : vector<2x64xi1>, vector<2x64xf32>
    %140 = arith.select %49, %138, %113 : vector<2x64xi1>, vector<2x64xf32>
    %cst_56 = arith.constant 0.000000e+00 : f32
    %141 = vector.broadcast %cst_56 : f32 to vector<2x64xf32>
    %142 = arith.select %49, %138, %141 : vector<2x64xi1>, vector<2x64xf32>
    %143 = arith.select %18, %105, %110 : vector<2x256xi1>, vector<2x256xf32>
    %cst_57 = arith.constant dense<0.000000e+00> : vector<2x256xf32>
    %144 = tpu.matmul %140, %112, %cst_57 {dimension_numbers = #tpu.dot_dimension_numbers<[1], [0], [0], [1], [0, 0, 1, 1], [], []>} : vector<2x64xf32>, vector<64x256xf32>, vector<2x256xf32> -> vector<2x256xf32>
    %145 = arith.addf %143, %144 : vector<2x256xf32>
    %146 = vector.extract_strided_slice %145 {offsets = [0, 0], sizes = [2, 128], strides = [1, 1]} : vector<2x256xf32> to vector<2x128xf32>
    %147 = arith.negf %146 : vector<2x128xf32>
    %148 = math.exp %147 : vector<2x128xf32>
    %cst_58 = arith.constant 1.000000e+00 : f32
    %149 = vector.broadcast %cst_58 : f32 to vector<2x128xf32>
    %150 = arith.addf %149, %148 : vector<2x128xf32>
    %151 = arith.divf %149, %150 : vector<2x128xf32>
    %152 = vector.extract_strided_slice %145 {offsets = [0, 128], sizes = [2, 64], strides = [1, 1]} : vector<2x256xf32> to vector<2x64xf32>
    %153 = math.tanh %152 : vector<2x64xf32>
    %154 = vector.extract_strided_slice %145 {offsets = [0, 192], sizes = [2, 64], strides = [1, 1]} : vector<2x256xf32> to vector<2x64xf32>
    %155 = arith.negf %154 : vector<2x64xf32>
    %156 = math.exp %155 : vector<2x64xf32>
    %cst_59 = arith.constant 1.000000e+00 : f32
    %157 = vector.broadcast %cst_59 : f32 to vector<2x64xf32>
    %158 = arith.addf %157, %156 : vector<2x64xf32>
    %159 = arith.divf %157, %158 : vector<2x64xf32>
    %160 = vector.extract_strided_slice %151 {offsets = [0, 0], sizes = [2, 64], strides = [1, 1]} : vector<2x128xf32> to vector<2x64xf32>
    %161 = vector.extract_strided_slice %151 {offsets = [0, 64], sizes = [2, 64], strides = [1, 1]} : vector<2x128xf32> to vector<2x64xf32>
    %162 = arith.mulf %161, %139 : vector<2x64xf32>
    %163 = arith.mulf %160, %153 : vector<2x64xf32>
    %164 = arith.addf %162, %163 : vector<2x64xf32>
    %165 = math.tanh %164 : vector<2x64xf32>
    %166 = arith.mulf %159, %165 : vector<2x64xf32>
    %167 = arith.select %54, %164, %139 : vector<2x64xi1>, vector<2x64xf32>
    %168 = arith.select %54, %166, %140 : vector<2x64xi1>, vector<2x64xf32>
    %cst_60 = arith.constant 0.000000e+00 : f32
    %169 = vector.broadcast %cst_60 : f32 to vector<2x64xf32>
    %170 = arith.select %54, %166, %169 : vector<2x64xi1>, vector<2x64xf32>
    %171 = arith.select %18, %106, %109 : vector<2x256xi1>, vector<2x256xf32>
    %cst_61 = arith.constant dense<0.000000e+00> : vector<2x256xf32>
    %172 = tpu.matmul %168, %112, %cst_61 {dimension_numbers = #tpu.dot_dimension_numbers<[1], [0], [0], [1], [0, 0, 1, 1], [], []>} : vector<2x64xf32>, vector<64x256xf32>, vector<2x256xf32> -> vector<2x256xf32>
    %173 = arith.addf %171, %172 : vector<2x256xf32>
    %174 = vector.extract_strided_slice %173 {offsets = [0, 0], sizes = [2, 128], strides = [1, 1]} : vector<2x256xf32> to vector<2x128xf32>
    %175 = arith.negf %174 : vector<2x128xf32>
    %176 = math.exp %175 : vector<2x128xf32>
    %cst_62 = arith.constant 1.000000e+00 : f32
    %177 = vector.broadcast %cst_62 : f32 to vector<2x128xf32>
    %178 = arith.addf %177, %176 : vector<2x128xf32>
    %179 = arith.divf %177, %178 : vector<2x128xf32>
    %180 = vector.extract_strided_slice %173 {offsets = [0, 128], sizes = [2, 64], strides = [1, 1]} : vector<2x256xf32> to vector<2x64xf32>
    %181 = math.tanh %180 : vector<2x64xf32>
    %182 = vector.extract_strided_slice %173 {offsets = [0, 192], sizes = [2, 64], strides = [1, 1]} : vector<2x256xf32> to vector<2x64xf32>
    %183 = arith.negf %182 : vector<2x64xf32>
    %184 = math.exp %183 : vector<2x64xf32>
    %cst_63 = arith.constant 1.000000e+00 : f32
    %185 = vector.broadcast %cst_63 : f32 to vector<2x64xf32>
    %186 = arith.addf %185, %184 : vector<2x64xf32>
    %187 = arith.divf %185, %186 : vector<2x64xf32>
    %188 = vector.extract_strided_slice %179 {offsets = [0, 0], sizes = [2, 64], strides = [1, 1]} : vector<2x128xf32> to vector<2x64xf32>
    %189 = vector.extract_strided_slice %179 {offsets = [0, 64], sizes = [2, 64], strides = [1, 1]} : vector<2x128xf32> to vector<2x64xf32>
    %190 = arith.mulf %189, %167 : vector<2x64xf32>
    %191 = arith.mulf %188, %181 : vector<2x64xf32>
    %192 = arith.addf %190, %191 : vector<2x64xf32>
    %193 = math.tanh %192 : vector<2x64xf32>
    %194 = arith.mulf %187, %193 : vector<2x64xf32>
    %195 = arith.select %59, %192, %167 : vector<2x64xi1>, vector<2x64xf32>
    %196 = arith.select %59, %194, %168 : vector<2x64xi1>, vector<2x64xf32>
    %cst_64 = arith.constant 0.000000e+00 : f32
    %197 = vector.broadcast %cst_64 : f32 to vector<2x64xf32>
    %198 = arith.select %59, %194, %197 : vector<2x64xi1>, vector<2x64xf32>
    %199 = arith.select %18, %107, %108 : vector<2x256xi1>, vector<2x256xf32>
    %cst_65 = arith.constant dense<0.000000e+00> : vector<2x256xf32>
    %200 = tpu.matmul %196, %112, %cst_65 {dimension_numbers = #tpu.dot_dimension_numbers<[1], [0], [0], [1], [0, 0, 1, 1], [], []>} : vector<2x64xf32>, vector<64x256xf32>, vector<2x256xf32> -> vector<2x256xf32>
    %201 = arith.addf %199, %200 : vector<2x256xf32>
    %202 = vector.extract_strided_slice %201 {offsets = [0, 0], sizes = [2, 128], strides = [1, 1]} : vector<2x256xf32> to vector<2x128xf32>
    %203 = arith.negf %202 : vector<2x128xf32>
    %204 = math.exp %203 : vector<2x128xf32>
    %cst_66 = arith.constant 1.000000e+00 : f32
    %205 = vector.broadcast %cst_66 : f32 to vector<2x128xf32>
    %206 = arith.addf %205, %204 : vector<2x128xf32>
    %207 = arith.divf %205, %206 : vector<2x128xf32>
    %208 = vector.extract_strided_slice %201 {offsets = [0, 128], sizes = [2, 64], strides = [1, 1]} : vector<2x256xf32> to vector<2x64xf32>
    %209 = math.tanh %208 : vector<2x64xf32>
    %210 = vector.extract_strided_slice %201 {offsets = [0, 192], sizes = [2, 64], strides = [1, 1]} : vector<2x256xf32> to vector<2x64xf32>
    %211 = arith.negf %210 : vector<2x64xf32>
    %212 = math.exp %211 : vector<2x64xf32>
    %cst_67 = arith.constant 1.000000e+00 : f32
    %213 = vector.broadcast %cst_67 : f32 to vector<2x64xf32>
    %214 = arith.addf %213, %212 : vector<2x64xf32>
    %215 = arith.divf %213, %214 : vector<2x64xf32>
    %216 = vector.extract_strided_slice %207 {offsets = [0, 0], sizes = [2, 64], strides = [1, 1]} : vector<2x128xf32> to vector<2x64xf32>
    %217 = vector.extract_strided_slice %207 {offsets = [0, 64], sizes = [2, 64], strides = [1, 1]} : vector<2x128xf32> to vector<2x64xf32>
    %218 = arith.mulf %217, %195 : vector<2x64xf32>
    %219 = arith.mulf %216, %209 : vector<2x64xf32>
    %220 = arith.addf %218, %219 : vector<2x64xf32>
    %221 = math.tanh %220 : vector<2x64xf32>
    %222 = arith.mulf %215, %221 : vector<2x64xf32>
    %223 = arith.select %64, %220, %195 : vector<2x64xi1>, vector<2x64xf32>
    %224 = arith.select %64, %222, %196 : vector<2x64xi1>, vector<2x64xf32>
    %cst_68 = arith.constant 0.000000e+00 : f32
    %225 = vector.broadcast %cst_68 : f32 to vector<2x64xf32>
    %226 = arith.select %64, %222, %225 : vector<2x64xi1>, vector<2x64xf32>
    %227 = arith.select %18, %108, %107 : vector<2x256xi1>, vector<2x256xf32>
    %cst_69 = arith.constant dense<0.000000e+00> : vector<2x256xf32>
    %228 = tpu.matmul %224, %112, %cst_69 {dimension_numbers = #tpu.dot_dimension_numbers<[1], [0], [0], [1], [0, 0, 1, 1], [], []>} : vector<2x64xf32>, vector<64x256xf32>, vector<2x256xf32> -> vector<2x256xf32>
    %229 = arith.addf %227, %228 : vector<2x256xf32>
    %230 = vector.extract_strided_slice %229 {offsets = [0, 0], sizes = [2, 128], strides = [1, 1]} : vector<2x256xf32> to vector<2x128xf32>
    %231 = arith.negf %230 : vector<2x128xf32>
    %232 = math.exp %231 : vector<2x128xf32>
    %cst_70 = arith.constant 1.000000e+00 : f32
    %233 = vector.broadcast %cst_70 : f32 to vector<2x128xf32>
    %234 = arith.addf %233, %232 : vector<2x128xf32>
    %235 = arith.divf %233, %234 : vector<2x128xf32>
    %236 = vector.extract_strided_slice %229 {offsets = [0, 128], sizes = [2, 64], strides = [1, 1]} : vector<2x256xf32> to vector<2x64xf32>
    %237 = math.tanh %236 : vector<2x64xf32>
    %238 = vector.extract_strided_slice %229 {offsets = [0, 192], sizes = [2, 64], strides = [1, 1]} : vector<2x256xf32> to vector<2x64xf32>
    %239 = arith.negf %238 : vector<2x64xf32>
    %240 = math.exp %239 : vector<2x64xf32>
    %cst_71 = arith.constant 1.000000e+00 : f32
    %241 = vector.broadcast %cst_71 : f32 to vector<2x64xf32>
    %242 = arith.addf %241, %240 : vector<2x64xf32>
    %243 = arith.divf %241, %242 : vector<2x64xf32>
    %244 = vector.extract_strided_slice %235 {offsets = [0, 0], sizes = [2, 64], strides = [1, 1]} : vector<2x128xf32> to vector<2x64xf32>
    %245 = vector.extract_strided_slice %235 {offsets = [0, 64], sizes = [2, 64], strides = [1, 1]} : vector<2x128xf32> to vector<2x64xf32>
    %246 = arith.mulf %245, %223 : vector<2x64xf32>
    %247 = arith.mulf %244, %237 : vector<2x64xf32>
    %248 = arith.addf %246, %247 : vector<2x64xf32>
    %249 = math.tanh %248 : vector<2x64xf32>
    %250 = arith.mulf %243, %249 : vector<2x64xf32>
    %251 = arith.select %69, %248, %223 : vector<2x64xi1>, vector<2x64xf32>
    %252 = arith.select %69, %250, %224 : vector<2x64xi1>, vector<2x64xf32>
    %cst_72 = arith.constant 0.000000e+00 : f32
    %253 = vector.broadcast %cst_72 : f32 to vector<2x64xf32>
    %254 = arith.select %69, %250, %253 : vector<2x64xi1>, vector<2x64xf32>
    %255 = arith.select %18, %109, %106 : vector<2x256xi1>, vector<2x256xf32>
    %cst_73 = arith.constant dense<0.000000e+00> : vector<2x256xf32>
    %256 = tpu.matmul %252, %112, %cst_73 {dimension_numbers = #tpu.dot_dimension_numbers<[1], [0], [0], [1], [0, 0, 1, 1], [], []>} : vector<2x64xf32>, vector<64x256xf32>, vector<2x256xf32> -> vector<2x256xf32>
    %257 = arith.addf %255, %256 : vector<2x256xf32>
    %258 = vector.extract_strided_slice %257 {offsets = [0, 0], sizes = [2, 128], strides = [1, 1]} : vector<2x256xf32> to vector<2x128xf32>
    %259 = arith.negf %258 : vector<2x128xf32>
    %260 = math.exp %259 : vector<2x128xf32>
    %cst_74 = arith.constant 1.000000e+00 : f32
    %261 = vector.broadcast %cst_74 : f32 to vector<2x128xf32>
    %262 = arith.addf %261, %260 : vector<2x128xf32>
    %263 = arith.divf %261, %262 : vector<2x128xf32>
    %264 = vector.extract_strided_slice %257 {offsets = [0, 128], sizes = [2, 64], strides = [1, 1]} : vector<2x256xf32> to vector<2x64xf32>
    %265 = math.tanh %264 : vector<2x64xf32>
    %266 = vector.extract_strided_slice %257 {offsets = [0, 192], sizes = [2, 64], strides = [1, 1]} : vector<2x256xf32> to vector<2x64xf32>
    %267 = arith.negf %266 : vector<2x64xf32>
    %268 = math.exp %267 : vector<2x64xf32>
    %cst_75 = arith.constant 1.000000e+00 : f32
    %269 = vector.broadcast %cst_75 : f32 to vector<2x64xf32>
    %270 = arith.addf %269, %268 : vector<2x64xf32>
    %271 = arith.divf %269, %270 : vector<2x64xf32>
    %272 = vector.extract_strided_slice %263 {offsets = [0, 0], sizes = [2, 64], strides = [1, 1]} : vector<2x128xf32> to vector<2x64xf32>
    %273 = vector.extract_strided_slice %263 {offsets = [0, 64], sizes = [2, 64], strides = [1, 1]} : vector<2x128xf32> to vector<2x64xf32>
    %274 = arith.mulf %273, %251 : vector<2x64xf32>
    %275 = arith.mulf %272, %265 : vector<2x64xf32>
    %276 = arith.addf %274, %275 : vector<2x64xf32>
    %277 = math.tanh %276 : vector<2x64xf32>
    %278 = arith.mulf %271, %277 : vector<2x64xf32>
    %279 = arith.select %74, %276, %251 : vector<2x64xi1>, vector<2x64xf32>
    %280 = arith.select %74, %278, %252 : vector<2x64xi1>, vector<2x64xf32>
    %cst_76 = arith.constant 0.000000e+00 : f32
    %281 = vector.broadcast %cst_76 : f32 to vector<2x64xf32>
    %282 = arith.select %74, %278, %281 : vector<2x64xi1>, vector<2x64xf32>
    %283 = arith.select %18, %110, %105 : vector<2x256xi1>, vector<2x256xf32>
    %cst_77 = arith.constant dense<0.000000e+00> : vector<2x256xf32>
    %284 = tpu.matmul %280, %112, %cst_77 {dimension_numbers = #tpu.dot_dimension_numbers<[1], [0], [0], [1], [0, 0, 1, 1], [], []>} : vector<2x64xf32>, vector<64x256xf32>, vector<2x256xf32> -> vector<2x256xf32>
    %285 = arith.addf %283, %284 : vector<2x256xf32>
    %286 = vector.extract_strided_slice %285 {offsets = [0, 0], sizes = [2, 128], strides = [1, 1]} : vector<2x256xf32> to vector<2x128xf32>
    %287 = arith.negf %286 : vector<2x128xf32>
    %288 = math.exp %287 : vector<2x128xf32>
    %cst_78 = arith.constant 1.000000e+00 : f32
    %289 = vector.broadcast %cst_78 : f32 to vector<2x128xf32>
    %290 = arith.addf %289, %288 : vector<2x128xf32>
    %291 = arith.divf %289, %290 : vector<2x128xf32>
    %292 = vector.extract_strided_slice %285 {offsets = [0, 128], sizes = [2, 64], strides = [1, 1]} : vector<2x256xf32> to vector<2x64xf32>
    %293 = math.tanh %292 : vector<2x64xf32>
    %294 = vector.extract_strided_slice %285 {offsets = [0, 192], sizes = [2, 64], strides = [1, 1]} : vector<2x256xf32> to vector<2x64xf32>
    %295 = arith.negf %294 : vector<2x64xf32>
    %296 = math.exp %295 : vector<2x64xf32>
    %cst_79 = arith.constant 1.000000e+00 : f32
    %297 = vector.broadcast %cst_79 : f32 to vector<2x64xf32>
    %298 = arith.addf %297, %296 : vector<2x64xf32>
    %299 = arith.divf %297, %298 : vector<2x64xf32>
    %300 = vector.extract_strided_slice %291 {offsets = [0, 0], sizes = [2, 64], strides = [1, 1]} : vector<2x128xf32> to vector<2x64xf32>
    %301 = vector.extract_strided_slice %291 {offsets = [0, 64], sizes = [2, 64], strides = [1, 1]} : vector<2x128xf32> to vector<2x64xf32>
    %302 = arith.mulf %301, %279 : vector<2x64xf32>
    %303 = arith.mulf %300, %293 : vector<2x64xf32>
    %304 = arith.addf %302, %303 : vector<2x64xf32>
    %305 = math.tanh %304 : vector<2x64xf32>
    %306 = arith.mulf %299, %305 : vector<2x64xf32>
    %307 = arith.select %79, %304, %279 : vector<2x64xi1>, vector<2x64xf32>
    %308 = arith.select %79, %306, %280 : vector<2x64xi1>, vector<2x64xf32>
    %cst_80 = arith.constant 0.000000e+00 : f32
    %309 = vector.broadcast %cst_80 : f32 to vector<2x64xf32>
    %310 = arith.select %79, %306, %309 : vector<2x64xi1>, vector<2x64xf32>
    %311 = arith.select %18, %111, %104 : vector<2x256xi1>, vector<2x256xf32>
    %cst_81 = arith.constant dense<0.000000e+00> : vector<2x256xf32>
    %312 = tpu.matmul %308, %112, %cst_81 {dimension_numbers = #tpu.dot_dimension_numbers<[1], [0], [0], [1], [0, 0, 1, 1], [], []>} : vector<2x64xf32>, vector<64x256xf32>, vector<2x256xf32> -> vector<2x256xf32>
    %313 = arith.addf %311, %312 : vector<2x256xf32>
    %314 = vector.extract_strided_slice %313 {offsets = [0, 0], sizes = [2, 128], strides = [1, 1]} : vector<2x256xf32> to vector<2x128xf32>
    %315 = arith.negf %314 : vector<2x128xf32>
    %316 = math.exp %315 : vector<2x128xf32>
    %cst_82 = arith.constant 1.000000e+00 : f32
    %317 = vector.broadcast %cst_82 : f32 to vector<2x128xf32>
    %318 = arith.addf %317, %316 : vector<2x128xf32>
    %319 = arith.divf %317, %318 : vector<2x128xf32>
    %320 = vector.extract_strided_slice %313 {offsets = [0, 128], sizes = [2, 64], strides = [1, 1]} : vector<2x256xf32> to vector<2x64xf32>
    %321 = math.tanh %320 : vector<2x64xf32>
    %322 = vector.extract_strided_slice %313 {offsets = [0, 192], sizes = [2, 64], strides = [1, 1]} : vector<2x256xf32> to vector<2x64xf32>
    %323 = arith.negf %322 : vector<2x64xf32>
    %324 = math.exp %323 : vector<2x64xf32>
    %cst_83 = arith.constant 1.000000e+00 : f32
    %325 = vector.broadcast %cst_83 : f32 to vector<2x64xf32>
    %326 = arith.addf %325, %324 : vector<2x64xf32>
    %327 = arith.divf %325, %326 : vector<2x64xf32>
    %328 = vector.extract_strided_slice %319 {offsets = [0, 0], sizes = [2, 64], strides = [1, 1]} : vector<2x128xf32> to vector<2x64xf32>
    %329 = vector.extract_strided_slice %319 {offsets = [0, 64], sizes = [2, 64], strides = [1, 1]} : vector<2x128xf32> to vector<2x64xf32>
    %330 = arith.mulf %329, %307 : vector<2x64xf32>
    %331 = arith.mulf %328, %321 : vector<2x64xf32>
    %332 = arith.addf %330, %331 : vector<2x64xf32>
    %333 = math.tanh %332 : vector<2x64xf32>
    %334 = arith.mulf %327, %333 : vector<2x64xf32>
    %cst_84 = arith.constant 0.000000e+00 : f32
    %335 = vector.broadcast %cst_84 : f32 to vector<2x64xf32>
    %336 = arith.select %84, %334, %335 : vector<2x64xi1>, vector<2x64xf32>
    %337 = arith.select %21, %142, %336 : vector<2x64xi1>, vector<2x64xf32>
    %338 = arith.select %21, %170, %310 : vector<2x64xi1>, vector<2x64xf32>
    %339 = arith.select %21, %198, %282 : vector<2x64xi1>, vector<2x64xf32>
    %340 = arith.select %21, %226, %254 : vector<2x64xi1>, vector<2x64xf32>
    %341 = arith.select %21, %254, %226 : vector<2x64xi1>, vector<2x64xf32>
    %342 = arith.select %21, %282, %198 : vector<2x64xi1>, vector<2x64xf32>
    %343 = arith.select %21, %310, %170 : vector<2x64xi1>, vector<2x64xf32>
    %344 = arith.select %21, %336, %142 : vector<2x64xi1>, vector<2x64xf32>
    %c0_85 = arith.constant 0 : index
    %c0_86 = arith.constant 0 : index
    %345 = vector.load %arg16[%c0_85, %c0_86] : memref<64x256xf32, #tpu.memory_space<vmem>>, vector<64x256xf32>
    %c0_87 = arith.constant 0 : index
    %c0_88 = arith.constant 0 : index
    %346 = vector.load %arg18[%c0_87, %c0_88] : memref<1x256xf32, #tpu.memory_space<vmem>>, vector<1x256xf32>
    %cst_89 = arith.constant dense<0.000000e+00> : vector<2x256xf32>
    %347 = tpu.matmul %337, %345, %cst_89 {dimension_numbers = #tpu.dot_dimension_numbers<[1], [0], [0], [1], [0, 0, 1, 1], [], []>} : vector<2x64xf32>, vector<64x256xf32>, vector<2x256xf32> -> vector<2x256xf32>
    %348 = vector.broadcast %346 : vector<1x256xf32> to vector<2x256xf32>
    %349 = arith.addf %347, %348 : vector<2x256xf32>
    %cst_90 = arith.constant dense<0.000000e+00> : vector<2x256xf32>
    %350 = tpu.matmul %338, %345, %cst_90 {dimension_numbers = #tpu.dot_dimension_numbers<[1], [0], [0], [1], [0, 0, 1, 1], [], []>} : vector<2x64xf32>, vector<64x256xf32>, vector<2x256xf32> -> vector<2x256xf32>
    %351 = vector.broadcast %346 : vector<1x256xf32> to vector<2x256xf32>
    %352 = arith.addf %350, %351 : vector<2x256xf32>
    %cst_91 = arith.constant dense<0.000000e+00> : vector<2x256xf32>
    %353 = tpu.matmul %339, %345, %cst_91 {dimension_numbers = #tpu.dot_dimension_numbers<[1], [0], [0], [1], [0, 0, 1, 1], [], []>} : vector<2x64xf32>, vector<64x256xf32>, vector<2x256xf32> -> vector<2x256xf32>
    %354 = vector.broadcast %346 : vector<1x256xf32> to vector<2x256xf32>
    %355 = arith.addf %353, %354 : vector<2x256xf32>
    %cst_92 = arith.constant dense<0.000000e+00> : vector<2x256xf32>
    %356 = tpu.matmul %340, %345, %cst_92 {dimension_numbers = #tpu.dot_dimension_numbers<[1], [0], [0], [1], [0, 0, 1, 1], [], []>} : vector<2x64xf32>, vector<64x256xf32>, vector<2x256xf32> -> vector<2x256xf32>
    %357 = vector.broadcast %346 : vector<1x256xf32> to vector<2x256xf32>
    %358 = arith.addf %356, %357 : vector<2x256xf32>
    %cst_93 = arith.constant dense<0.000000e+00> : vector<2x256xf32>
    %359 = tpu.matmul %341, %345, %cst_93 {dimension_numbers = #tpu.dot_dimension_numbers<[1], [0], [0], [1], [0, 0, 1, 1], [], []>} : vector<2x64xf32>, vector<64x256xf32>, vector<2x256xf32> -> vector<2x256xf32>
    %360 = vector.broadcast %346 : vector<1x256xf32> to vector<2x256xf32>
    %361 = arith.addf %359, %360 : vector<2x256xf32>
    %cst_94 = arith.constant dense<0.000000e+00> : vector<2x256xf32>
    %362 = tpu.matmul %342, %345, %cst_94 {dimension_numbers = #tpu.dot_dimension_numbers<[1], [0], [0], [1], [0, 0, 1, 1], [], []>} : vector<2x64xf32>, vector<64x256xf32>, vector<2x256xf32> -> vector<2x256xf32>
    %363 = vector.broadcast %346 : vector<1x256xf32> to vector<2x256xf32>
    %364 = arith.addf %362, %363 : vector<2x256xf32>
    %cst_95 = arith.constant dense<0.000000e+00> : vector<2x256xf32>
    %365 = tpu.matmul %343, %345, %cst_95 {dimension_numbers = #tpu.dot_dimension_numbers<[1], [0], [0], [1], [0, 0, 1, 1], [], []>} : vector<2x64xf32>, vector<64x256xf32>, vector<2x256xf32> -> vector<2x256xf32>
    %366 = vector.broadcast %346 : vector<1x256xf32> to vector<2x256xf32>
    %367 = arith.addf %365, %366 : vector<2x256xf32>
    %cst_96 = arith.constant dense<0.000000e+00> : vector<2x256xf32>
    %368 = tpu.matmul %344, %345, %cst_96 {dimension_numbers = #tpu.dot_dimension_numbers<[1], [0], [0], [1], [0, 0, 1, 1], [], []>} : vector<2x64xf32>, vector<64x256xf32>, vector<2x256xf32> -> vector<2x256xf32>
    %369 = vector.broadcast %346 : vector<1x256xf32> to vector<2x256xf32>
    %370 = arith.addf %368, %369 : vector<2x256xf32>
    %c0_97 = arith.constant 0 : index
    %c0_98 = arith.constant 0 : index
    %371 = vector.load %arg17[%c0_97, %c0_98] : memref<64x256xf32, #tpu.memory_space<vmem>>, vector<64x256xf32>
    %cst_99 = arith.constant 0.000000e+00 : f32
    %372 = vector.broadcast %cst_99 : f32 to vector<2x64xf32>
    %cst_100 = arith.constant 0.000000e+00 : f32
    %373 = vector.broadcast %cst_100 : f32 to vector<2x64xf32>
    %374 = arith.select %18, %349, %370 : vector<2x256xi1>, vector<2x256xf32>
    %cst_101 = arith.constant dense<0.000000e+00> : vector<2x256xf32>
    %375 = tpu.matmul %372, %371, %cst_101 {dimension_numbers = #tpu.dot_dimension_numbers<[1], [0], [0], [1], [0, 0, 1, 1], [], []>} : vector<2x64xf32>, vector<64x256xf32>, vector<2x256xf32> -> vector<2x256xf32>
    %376 = arith.addf %374, %375 : vector<2x256xf32>
    %377 = vector.extract_strided_slice %376 {offsets = [0, 0], sizes = [2, 128], strides = [1, 1]} : vector<2x256xf32> to vector<2x128xf32>
    %378 = arith.negf %377 : vector<2x128xf32>
    %379 = math.exp %378 : vector<2x128xf32>
    %cst_102 = arith.constant 1.000000e+00 : f32
    %380 = vector.broadcast %cst_102 : f32 to vector<2x128xf32>
    %381 = arith.addf %380, %379 : vector<2x128xf32>
    %382 = arith.divf %380, %381 : vector<2x128xf32>
    %383 = vector.extract_strided_slice %376 {offsets = [0, 128], sizes = [2, 64], strides = [1, 1]} : vector<2x256xf32> to vector<2x64xf32>
    %384 = math.tanh %383 : vector<2x64xf32>
    %385 = vector.extract_strided_slice %376 {offsets = [0, 192], sizes = [2, 64], strides = [1, 1]} : vector<2x256xf32> to vector<2x64xf32>
    %386 = arith.negf %385 : vector<2x64xf32>
    %387 = math.exp %386 : vector<2x64xf32>
    %cst_103 = arith.constant 1.000000e+00 : f32
    %388 = vector.broadcast %cst_103 : f32 to vector<2x64xf32>
    %389 = arith.addf %388, %387 : vector<2x64xf32>
    %390 = arith.divf %388, %389 : vector<2x64xf32>
    %391 = vector.extract_strided_slice %382 {offsets = [0, 0], sizes = [2, 64], strides = [1, 1]} : vector<2x128xf32> to vector<2x64xf32>
    %392 = vector.extract_strided_slice %382 {offsets = [0, 64], sizes = [2, 64], strides = [1, 1]} : vector<2x128xf32> to vector<2x64xf32>
    %393 = arith.mulf %392, %373 : vector<2x64xf32>
    %394 = arith.mulf %391, %384 : vector<2x64xf32>
    %395 = arith.addf %393, %394 : vector<2x64xf32>
    %396 = math.tanh %395 : vector<2x64xf32>
    %397 = arith.mulf %390, %396 : vector<2x64xf32>
    %398 = arith.select %49, %395, %373 : vector<2x64xi1>, vector<2x64xf32>
    %399 = arith.select %49, %397, %372 : vector<2x64xi1>, vector<2x64xf32>
    %cst_104 = arith.constant 0.000000e+00 : f32
    %400 = vector.broadcast %cst_104 : f32 to vector<2x64xf32>
    %401 = arith.select %49, %397, %400 : vector<2x64xi1>, vector<2x64xf32>
    %402 = arith.select %18, %352, %367 : vector<2x256xi1>, vector<2x256xf32>
    %cst_105 = arith.constant dense<0.000000e+00> : vector<2x256xf32>
    %403 = tpu.matmul %399, %371, %cst_105 {dimension_numbers = #tpu.dot_dimension_numbers<[1], [0], [0], [1], [0, 0, 1, 1], [], []>} : vector<2x64xf32>, vector<64x256xf32>, vector<2x256xf32> -> vector<2x256xf32>
    %404 = arith.addf %402, %403 : vector<2x256xf32>
    %405 = vector.extract_strided_slice %404 {offsets = [0, 0], sizes = [2, 128], strides = [1, 1]} : vector<2x256xf32> to vector<2x128xf32>
    %406 = arith.negf %405 : vector<2x128xf32>
    %407 = math.exp %406 : vector<2x128xf32>
    %cst_106 = arith.constant 1.000000e+00 : f32
    %408 = vector.broadcast %cst_106 : f32 to vector<2x128xf32>
    %409 = arith.addf %408, %407 : vector<2x128xf32>
    %410 = arith.divf %408, %409 : vector<2x128xf32>
    %411 = vector.extract_strided_slice %404 {offsets = [0, 128], sizes = [2, 64], strides = [1, 1]} : vector<2x256xf32> to vector<2x64xf32>
    %412 = math.tanh %411 : vector<2x64xf32>
    %413 = vector.extract_strided_slice %404 {offsets = [0, 192], sizes = [2, 64], strides = [1, 1]} : vector<2x256xf32> to vector<2x64xf32>
    %414 = arith.negf %413 : vector<2x64xf32>
    %415 = math.exp %414 : vector<2x64xf32>
    %cst_107 = arith.constant 1.000000e+00 : f32
    %416 = vector.broadcast %cst_107 : f32 to vector<2x64xf32>
    %417 = arith.addf %416, %415 : vector<2x64xf32>
    %418 = arith.divf %416, %417 : vector<2x64xf32>
    %419 = vector.extract_strided_slice %410 {offsets = [0, 0], sizes = [2, 64], strides = [1, 1]} : vector<2x128xf32> to vector<2x64xf32>
    %420 = vector.extract_strided_slice %410 {offsets = [0, 64], sizes = [2, 64], strides = [1, 1]} : vector<2x128xf32> to vector<2x64xf32>
    %421 = arith.mulf %420, %398 : vector<2x64xf32>
    %422 = arith.mulf %419, %412 : vector<2x64xf32>
    %423 = arith.addf %421, %422 : vector<2x64xf32>
    %424 = math.tanh %423 : vector<2x64xf32>
    %425 = arith.mulf %418, %424 : vector<2x64xf32>
    %426 = arith.select %54, %423, %398 : vector<2x64xi1>, vector<2x64xf32>
    %427 = arith.select %54, %425, %399 : vector<2x64xi1>, vector<2x64xf32>
    %cst_108 = arith.constant 0.000000e+00 : f32
    %428 = vector.broadcast %cst_108 : f32 to vector<2x64xf32>
    %429 = arith.select %54, %425, %428 : vector<2x64xi1>, vector<2x64xf32>
    %430 = arith.select %18, %355, %364 : vector<2x256xi1>, vector<2x256xf32>
    %cst_109 = arith.constant dense<0.000000e+00> : vector<2x256xf32>
    %431 = tpu.matmul %427, %371, %cst_109 {dimension_numbers = #tpu.dot_dimension_numbers<[1], [0], [0], [1], [0, 0, 1, 1], [], []>} : vector<2x64xf32>, vector<64x256xf32>, vector<2x256xf32> -> vector<2x256xf32>
    %432 = arith.addf %430, %431 : vector<2x256xf32>
    %433 = vector.extract_strided_slice %432 {offsets = [0, 0], sizes = [2, 128], strides = [1, 1]} : vector<2x256xf32> to vector<2x128xf32>
    %434 = arith.negf %433 : vector<2x128xf32>
    %435 = math.exp %434 : vector<2x128xf32>
    %cst_110 = arith.constant 1.000000e+00 : f32
    %436 = vector.broadcast %cst_110 : f32 to vector<2x128xf32>
    %437 = arith.addf %436, %435 : vector<2x128xf32>
    %438 = arith.divf %436, %437 : vector<2x128xf32>
    %439 = vector.extract_strided_slice %432 {offsets = [0, 128], sizes = [2, 64], strides = [1, 1]} : vector<2x256xf32> to vector<2x64xf32>
    %440 = math.tanh %439 : vector<2x64xf32>
    %441 = vector.extract_strided_slice %432 {offsets = [0, 192], sizes = [2, 64], strides = [1, 1]} : vector<2x256xf32> to vector<2x64xf32>
    %442 = arith.negf %441 : vector<2x64xf32>
    %443 = math.exp %442 : vector<2x64xf32>
    %cst_111 = arith.constant 1.000000e+00 : f32
    %444 = vector.broadcast %cst_111 : f32 to vector<2x64xf32>
    %445 = arith.addf %444, %443 : vector<2x64xf32>
    %446 = arith.divf %444, %445 : vector<2x64xf32>
    %447 = vector.extract_strided_slice %438 {offsets = [0, 0], sizes = [2, 64], strides = [1, 1]} : vector<2x128xf32> to vector<2x64xf32>
    %448 = vector.extract_strided_slice %438 {offsets = [0, 64], sizes = [2, 64], strides = [1, 1]} : vector<2x128xf32> to vector<2x64xf32>
    %449 = arith.mulf %448, %426 : vector<2x64xf32>
    %450 = arith.mulf %447, %440 : vector<2x64xf32>
    %451 = arith.addf %449, %450 : vector<2x64xf32>
    %452 = math.tanh %451 : vector<2x64xf32>
    %453 = arith.mulf %446, %452 : vector<2x64xf32>
    %454 = arith.select %59, %451, %426 : vector<2x64xi1>, vector<2x64xf32>
    %455 = arith.select %59, %453, %427 : vector<2x64xi1>, vector<2x64xf32>
    %cst_112 = arith.constant 0.000000e+00 : f32
    %456 = vector.broadcast %cst_112 : f32 to vector<2x64xf32>
    %457 = arith.select %59, %453, %456 : vector<2x64xi1>, vector<2x64xf32>
    %458 = arith.select %18, %358, %361 : vector<2x256xi1>, vector<2x256xf32>
    %cst_113 = arith.constant dense<0.000000e+00> : vector<2x256xf32>
    %459 = tpu.matmul %455, %371, %cst_113 {dimension_numbers = #tpu.dot_dimension_numbers<[1], [0], [0], [1], [0, 0, 1, 1], [], []>} : vector<2x64xf32>, vector<64x256xf32>, vector<2x256xf32> -> vector<2x256xf32>
    %460 = arith.addf %458, %459 : vector<2x256xf32>
    %461 = vector.extract_strided_slice %460 {offsets = [0, 0], sizes = [2, 128], strides = [1, 1]} : vector<2x256xf32> to vector<2x128xf32>
    %462 = arith.negf %461 : vector<2x128xf32>
    %463 = math.exp %462 : vector<2x128xf32>
    %cst_114 = arith.constant 1.000000e+00 : f32
    %464 = vector.broadcast %cst_114 : f32 to vector<2x128xf32>
    %465 = arith.addf %464, %463 : vector<2x128xf32>
    %466 = arith.divf %464, %465 : vector<2x128xf32>
    %467 = vector.extract_strided_slice %460 {offsets = [0, 128], sizes = [2, 64], strides = [1, 1]} : vector<2x256xf32> to vector<2x64xf32>
    %468 = math.tanh %467 : vector<2x64xf32>
    %469 = vector.extract_strided_slice %460 {offsets = [0, 192], sizes = [2, 64], strides = [1, 1]} : vector<2x256xf32> to vector<2x64xf32>
    %470 = arith.negf %469 : vector<2x64xf32>
    %471 = math.exp %470 : vector<2x64xf32>
    %cst_115 = arith.constant 1.000000e+00 : f32
    %472 = vector.broadcast %cst_115 : f32 to vector<2x64xf32>
    %473 = arith.addf %472, %471 : vector<2x64xf32>
    %474 = arith.divf %472, %473 : vector<2x64xf32>
    %475 = vector.extract_strided_slice %466 {offsets = [0, 0], sizes = [2, 64], strides = [1, 1]} : vector<2x128xf32> to vector<2x64xf32>
    %476 = vector.extract_strided_slice %466 {offsets = [0, 64], sizes = [2, 64], strides = [1, 1]} : vector<2x128xf32> to vector<2x64xf32>
    %477 = arith.mulf %476, %454 : vector<2x64xf32>
    %478 = arith.mulf %475, %468 : vector<2x64xf32>
    %479 = arith.addf %477, %478 : vector<2x64xf32>
    %480 = math.tanh %479 : vector<2x64xf32>
    %481 = arith.mulf %474, %480 : vector<2x64xf32>
    %482 = arith.select %64, %479, %454 : vector<2x64xi1>, vector<2x64xf32>
    %483 = arith.select %64, %481, %455 : vector<2x64xi1>, vector<2x64xf32>
    %cst_116 = arith.constant 0.000000e+00 : f32
    %484 = vector.broadcast %cst_116 : f32 to vector<2x64xf32>
    %485 = arith.select %64, %481, %484 : vector<2x64xi1>, vector<2x64xf32>
    %486 = arith.select %18, %361, %358 : vector<2x256xi1>, vector<2x256xf32>
    %cst_117 = arith.constant dense<0.000000e+00> : vector<2x256xf32>
    %487 = tpu.matmul %483, %371, %cst_117 {dimension_numbers = #tpu.dot_dimension_numbers<[1], [0], [0], [1], [0, 0, 1, 1], [], []>} : vector<2x64xf32>, vector<64x256xf32>, vector<2x256xf32> -> vector<2x256xf32>
    %488 = arith.addf %486, %487 : vector<2x256xf32>
    %489 = vector.extract_strided_slice %488 {offsets = [0, 0], sizes = [2, 128], strides = [1, 1]} : vector<2x256xf32> to vector<2x128xf32>
    %490 = arith.negf %489 : vector<2x128xf32>
    %491 = math.exp %490 : vector<2x128xf32>
    %cst_118 = arith.constant 1.000000e+00 : f32
    %492 = vector.broadcast %cst_118 : f32 to vector<2x128xf32>
    %493 = arith.addf %492, %491 : vector<2x128xf32>
    %494 = arith.divf %492, %493 : vector<2x128xf32>
    %495 = vector.extract_strided_slice %488 {offsets = [0, 128], sizes = [2, 64], strides = [1, 1]} : vector<2x256xf32> to vector<2x64xf32>
    %496 = math.tanh %495 : vector<2x64xf32>
    %497 = vector.extract_strided_slice %488 {offsets = [0, 192], sizes = [2, 64], strides = [1, 1]} : vector<2x256xf32> to vector<2x64xf32>
    %498 = arith.negf %497 : vector<2x64xf32>
    %499 = math.exp %498 : vector<2x64xf32>
    %cst_119 = arith.constant 1.000000e+00 : f32
    %500 = vector.broadcast %cst_119 : f32 to vector<2x64xf32>
    %501 = arith.addf %500, %499 : vector<2x64xf32>
    %502 = arith.divf %500, %501 : vector<2x64xf32>
    %503 = vector.extract_strided_slice %494 {offsets = [0, 0], sizes = [2, 64], strides = [1, 1]} : vector<2x128xf32> to vector<2x64xf32>
    %504 = vector.extract_strided_slice %494 {offsets = [0, 64], sizes = [2, 64], strides = [1, 1]} : vector<2x128xf32> to vector<2x64xf32>
    %505 = arith.mulf %504, %482 : vector<2x64xf32>
    %506 = arith.mulf %503, %496 : vector<2x64xf32>
    %507 = arith.addf %505, %506 : vector<2x64xf32>
    %508 = math.tanh %507 : vector<2x64xf32>
    %509 = arith.mulf %502, %508 : vector<2x64xf32>
    %510 = arith.select %69, %507, %482 : vector<2x64xi1>, vector<2x64xf32>
    %511 = arith.select %69, %509, %483 : vector<2x64xi1>, vector<2x64xf32>
    %cst_120 = arith.constant 0.000000e+00 : f32
    %512 = vector.broadcast %cst_120 : f32 to vector<2x64xf32>
    %513 = arith.select %69, %509, %512 : vector<2x64xi1>, vector<2x64xf32>
    %514 = arith.select %18, %364, %355 : vector<2x256xi1>, vector<2x256xf32>
    %cst_121 = arith.constant dense<0.000000e+00> : vector<2x256xf32>
    %515 = tpu.matmul %511, %371, %cst_121 {dimension_numbers = #tpu.dot_dimension_numbers<[1], [0], [0], [1], [0, 0, 1, 1], [], []>} : vector<2x64xf32>, vector<64x256xf32>, vector<2x256xf32> -> vector<2x256xf32>
    %516 = arith.addf %514, %515 : vector<2x256xf32>
    %517 = vector.extract_strided_slice %516 {offsets = [0, 0], sizes = [2, 128], strides = [1, 1]} : vector<2x256xf32> to vector<2x128xf32>
    %518 = arith.negf %517 : vector<2x128xf32>
    %519 = math.exp %518 : vector<2x128xf32>
    %cst_122 = arith.constant 1.000000e+00 : f32
    %520 = vector.broadcast %cst_122 : f32 to vector<2x128xf32>
    %521 = arith.addf %520, %519 : vector<2x128xf32>
    %522 = arith.divf %520, %521 : vector<2x128xf32>
    %523 = vector.extract_strided_slice %516 {offsets = [0, 128], sizes = [2, 64], strides = [1, 1]} : vector<2x256xf32> to vector<2x64xf32>
    %524 = math.tanh %523 : vector<2x64xf32>
    %525 = vector.extract_strided_slice %516 {offsets = [0, 192], sizes = [2, 64], strides = [1, 1]} : vector<2x256xf32> to vector<2x64xf32>
    %526 = arith.negf %525 : vector<2x64xf32>
    %527 = math.exp %526 : vector<2x64xf32>
    %cst_123 = arith.constant 1.000000e+00 : f32
    %528 = vector.broadcast %cst_123 : f32 to vector<2x64xf32>
    %529 = arith.addf %528, %527 : vector<2x64xf32>
    %530 = arith.divf %528, %529 : vector<2x64xf32>
    %531 = vector.extract_strided_slice %522 {offsets = [0, 0], sizes = [2, 64], strides = [1, 1]} : vector<2x128xf32> to vector<2x64xf32>
    %532 = vector.extract_strided_slice %522 {offsets = [0, 64], sizes = [2, 64], strides = [1, 1]} : vector<2x128xf32> to vector<2x64xf32>
    %533 = arith.mulf %532, %510 : vector<2x64xf32>
    %534 = arith.mulf %531, %524 : vector<2x64xf32>
    %535 = arith.addf %533, %534 : vector<2x64xf32>
    %536 = math.tanh %535 : vector<2x64xf32>
    %537 = arith.mulf %530, %536 : vector<2x64xf32>
    %538 = arith.select %74, %535, %510 : vector<2x64xi1>, vector<2x64xf32>
    %539 = arith.select %74, %537, %511 : vector<2x64xi1>, vector<2x64xf32>
    %cst_124 = arith.constant 0.000000e+00 : f32
    %540 = vector.broadcast %cst_124 : f32 to vector<2x64xf32>
    %541 = arith.select %74, %537, %540 : vector<2x64xi1>, vector<2x64xf32>
    %542 = arith.select %18, %367, %352 : vector<2x256xi1>, vector<2x256xf32>
    %cst_125 = arith.constant dense<0.000000e+00> : vector<2x256xf32>
    %543 = tpu.matmul %539, %371, %cst_125 {dimension_numbers = #tpu.dot_dimension_numbers<[1], [0], [0], [1], [0, 0, 1, 1], [], []>} : vector<2x64xf32>, vector<64x256xf32>, vector<2x256xf32> -> vector<2x256xf32>
    %544 = arith.addf %542, %543 : vector<2x256xf32>
    %545 = vector.extract_strided_slice %544 {offsets = [0, 0], sizes = [2, 128], strides = [1, 1]} : vector<2x256xf32> to vector<2x128xf32>
    %546 = arith.negf %545 : vector<2x128xf32>
    %547 = math.exp %546 : vector<2x128xf32>
    %cst_126 = arith.constant 1.000000e+00 : f32
    %548 = vector.broadcast %cst_126 : f32 to vector<2x128xf32>
    %549 = arith.addf %548, %547 : vector<2x128xf32>
    %550 = arith.divf %548, %549 : vector<2x128xf32>
    %551 = vector.extract_strided_slice %544 {offsets = [0, 128], sizes = [2, 64], strides = [1, 1]} : vector<2x256xf32> to vector<2x64xf32>
    %552 = math.tanh %551 : vector<2x64xf32>
    %553 = vector.extract_strided_slice %544 {offsets = [0, 192], sizes = [2, 64], strides = [1, 1]} : vector<2x256xf32> to vector<2x64xf32>
    %554 = arith.negf %553 : vector<2x64xf32>
    %555 = math.exp %554 : vector<2x64xf32>
    %cst_127 = arith.constant 1.000000e+00 : f32
    %556 = vector.broadcast %cst_127 : f32 to vector<2x64xf32>
    %557 = arith.addf %556, %555 : vector<2x64xf32>
    %558 = arith.divf %556, %557 : vector<2x64xf32>
    %559 = vector.extract_strided_slice %550 {offsets = [0, 0], sizes = [2, 64], strides = [1, 1]} : vector<2x128xf32> to vector<2x64xf32>
    %560 = vector.extract_strided_slice %550 {offsets = [0, 64], sizes = [2, 64], strides = [1, 1]} : vector<2x128xf32> to vector<2x64xf32>
    %561 = arith.mulf %560, %538 : vector<2x64xf32>
    %562 = arith.mulf %559, %552 : vector<2x64xf32>
    %563 = arith.addf %561, %562 : vector<2x64xf32>
    %564 = math.tanh %563 : vector<2x64xf32>
    %565 = arith.mulf %558, %564 : vector<2x64xf32>
    %566 = arith.select %79, %563, %538 : vector<2x64xi1>, vector<2x64xf32>
    %567 = arith.select %79, %565, %539 : vector<2x64xi1>, vector<2x64xf32>
    %cst_128 = arith.constant 0.000000e+00 : f32
    %568 = vector.broadcast %cst_128 : f32 to vector<2x64xf32>
    %569 = arith.select %79, %565, %568 : vector<2x64xi1>, vector<2x64xf32>
    %570 = arith.select %18, %370, %349 : vector<2x256xi1>, vector<2x256xf32>
    %cst_129 = arith.constant dense<0.000000e+00> : vector<2x256xf32>
    %571 = tpu.matmul %567, %371, %cst_129 {dimension_numbers = #tpu.dot_dimension_numbers<[1], [0], [0], [1], [0, 0, 1, 1], [], []>} : vector<2x64xf32>, vector<64x256xf32>, vector<2x256xf32> -> vector<2x256xf32>
    %572 = arith.addf %570, %571 : vector<2x256xf32>
    %573 = vector.extract_strided_slice %572 {offsets = [0, 0], sizes = [2, 128], strides = [1, 1]} : vector<2x256xf32> to vector<2x128xf32>
    %574 = arith.negf %573 : vector<2x128xf32>
    %575 = math.exp %574 : vector<2x128xf32>
    %cst_130 = arith.constant 1.000000e+00 : f32
    %576 = vector.broadcast %cst_130 : f32 to vector<2x128xf32>
    %577 = arith.addf %576, %575 : vector<2x128xf32>
    %578 = arith.divf %576, %577 : vector<2x128xf32>
    %579 = vector.extract_strided_slice %572 {offsets = [0, 128], sizes = [2, 64], strides = [1, 1]} : vector<2x256xf32> to vector<2x64xf32>
    %580 = math.tanh %579 : vector<2x64xf32>
    %581 = vector.extract_strided_slice %572 {offsets = [0, 192], sizes = [2, 64], strides = [1, 1]} : vector<2x256xf32> to vector<2x64xf32>
    %582 = arith.negf %581 : vector<2x64xf32>
    %583 = math.exp %582 : vector<2x64xf32>
    %cst_131 = arith.constant 1.000000e+00 : f32
    %584 = vector.broadcast %cst_131 : f32 to vector<2x64xf32>
    %585 = arith.addf %584, %583 : vector<2x64xf32>
    %586 = arith.divf %584, %585 : vector<2x64xf32>
    %587 = vector.extract_strided_slice %578 {offsets = [0, 0], sizes = [2, 64], strides = [1, 1]} : vector<2x128xf32> to vector<2x64xf32>
    %588 = vector.extract_strided_slice %578 {offsets = [0, 64], sizes = [2, 64], strides = [1, 1]} : vector<2x128xf32> to vector<2x64xf32>
    %589 = arith.mulf %588, %566 : vector<2x64xf32>
    %590 = arith.mulf %587, %580 : vector<2x64xf32>
    %591 = arith.addf %589, %590 : vector<2x64xf32>
    %592 = math.tanh %591 : vector<2x64xf32>
    %593 = arith.mulf %586, %592 : vector<2x64xf32>
    %cst_132 = arith.constant 0.000000e+00 : f32
    %594 = vector.broadcast %cst_132 : f32 to vector<2x64xf32>
    %595 = arith.select %84, %593, %594 : vector<2x64xi1>, vector<2x64xf32>
    %596 = arith.select %21, %401, %595 : vector<2x64xi1>, vector<2x64xf32>
    %597 = arith.select %21, %429, %569 : vector<2x64xi1>, vector<2x64xf32>
    %598 = arith.select %21, %457, %541 : vector<2x64xi1>, vector<2x64xf32>
    %599 = arith.select %21, %485, %513 : vector<2x64xi1>, vector<2x64xf32>
    %600 = arith.select %21, %513, %485 : vector<2x64xi1>, vector<2x64xf32>
    %601 = arith.select %21, %541, %457 : vector<2x64xi1>, vector<2x64xf32>
    %602 = arith.select %21, %569, %429 : vector<2x64xi1>, vector<2x64xf32>
    %603 = arith.select %21, %595, %401 : vector<2x64xi1>, vector<2x64xf32>
    %c0_133 = arith.constant 0 : index
    %c0_134 = arith.constant 0 : index
    %604 = vector.load %arg19[%c0_133, %c0_134] : memref<64x256xf32, #tpu.memory_space<vmem>>, vector<64x256xf32>
    %c0_135 = arith.constant 0 : index
    %c0_136 = arith.constant 0 : index
    %605 = vector.load %arg21[%c0_135, %c0_136] : memref<1x256xf32, #tpu.memory_space<vmem>>, vector<1x256xf32>
    %cst_137 = arith.constant dense<0.000000e+00> : vector<2x256xf32>
    %606 = tpu.matmul %596, %604, %cst_137 {dimension_numbers = #tpu.dot_dimension_numbers<[1], [0], [0], [1], [0, 0, 1, 1], [], []>} : vector<2x64xf32>, vector<64x256xf32>, vector<2x256xf32> -> vector<2x256xf32>
    %607 = vector.broadcast %605 : vector<1x256xf32> to vector<2x256xf32>
    %608 = arith.addf %606, %607 : vector<2x256xf32>
    %cst_138 = arith.constant dense<0.000000e+00> : vector<2x256xf32>
    %609 = tpu.matmul %597, %604, %cst_138 {dimension_numbers = #tpu.dot_dimension_numbers<[1], [0], [0], [1], [0, 0, 1, 1], [], []>} : vector<2x64xf32>, vector<64x256xf32>, vector<2x256xf32> -> vector<2x256xf32>
    %610 = vector.broadcast %605 : vector<1x256xf32> to vector<2x256xf32>
    %611 = arith.addf %609, %610 : vector<2x256xf32>
    %cst_139 = arith.constant dense<0.000000e+00> : vector<2x256xf32>
    %612 = tpu.matmul %598, %604, %cst_139 {dimension_numbers = #tpu.dot_dimension_numbers<[1], [0], [0], [1], [0, 0, 1, 1], [], []>} : vector<2x64xf32>, vector<64x256xf32>, vector<2x256xf32> -> vector<2x256xf32>
    %613 = vector.broadcast %605 : vector<1x256xf32> to vector<2x256xf32>
    %614 = arith.addf %612, %613 : vector<2x256xf32>
    %cst_140 = arith.constant dense<0.000000e+00> : vector<2x256xf32>
    %615 = tpu.matmul %599, %604, %cst_140 {dimension_numbers = #tpu.dot_dimension_numbers<[1], [0], [0], [1], [0, 0, 1, 1], [], []>} : vector<2x64xf32>, vector<64x256xf32>, vector<2x256xf32> -> vector<2x256xf32>
    %616 = vector.broadcast %605 : vector<1x256xf32> to vector<2x256xf32>
    %617 = arith.addf %615, %616 : vector<2x256xf32>
    %cst_141 = arith.constant dense<0.000000e+00> : vector<2x256xf32>
    %618 = tpu.matmul %600, %604, %cst_141 {dimension_numbers = #tpu.dot_dimension_numbers<[1], [0], [0], [1], [0, 0, 1, 1], [], []>} : vector<2x64xf32>, vector<64x256xf32>, vector<2x256xf32> -> vector<2x256xf32>
    %619 = vector.broadcast %605 : vector<1x256xf32> to vector<2x256xf32>
    %620 = arith.addf %618, %619 : vector<2x256xf32>
    %cst_142 = arith.constant dense<0.000000e+00> : vector<2x256xf32>
    %621 = tpu.matmul %601, %604, %cst_142 {dimension_numbers = #tpu.dot_dimension_numbers<[1], [0], [0], [1], [0, 0, 1, 1], [], []>} : vector<2x64xf32>, vector<64x256xf32>, vector<2x256xf32> -> vector<2x256xf32>
    %622 = vector.broadcast %605 : vector<1x256xf32> to vector<2x256xf32>
    %623 = arith.addf %621, %622 : vector<2x256xf32>
    %cst_143 = arith.constant dense<0.000000e+00> : vector<2x256xf32>
    %624 = tpu.matmul %602, %604, %cst_143 {dimension_numbers = #tpu.dot_dimension_numbers<[1], [0], [0], [1], [0, 0, 1, 1], [], []>} : vector<2x64xf32>, vector<64x256xf32>, vector<2x256xf32> -> vector<2x256xf32>
    %625 = vector.broadcast %605 : vector<1x256xf32> to vector<2x256xf32>
    %626 = arith.addf %624, %625 : vector<2x256xf32>
    %cst_144 = arith.constant dense<0.000000e+00> : vector<2x256xf32>
    %627 = tpu.matmul %603, %604, %cst_144 {dimension_numbers = #tpu.dot_dimension_numbers<[1], [0], [0], [1], [0, 0, 1, 1], [], []>} : vector<2x64xf32>, vector<64x256xf32>, vector<2x256xf32> -> vector<2x256xf32>
    %628 = vector.broadcast %605 : vector<1x256xf32> to vector<2x256xf32>
    %629 = arith.addf %627, %628 : vector<2x256xf32>
    %c0_145 = arith.constant 0 : index
    %c0_146 = arith.constant 0 : index
    %630 = vector.load %arg20[%c0_145, %c0_146] : memref<64x256xf32, #tpu.memory_space<vmem>>, vector<64x256xf32>
    %cst_147 = arith.constant 0.000000e+00 : f32
    %631 = vector.broadcast %cst_147 : f32 to vector<2x64xf32>
    %cst_148 = arith.constant 0.000000e+00 : f32
    %632 = vector.broadcast %cst_148 : f32 to vector<2x64xf32>
    %633 = arith.select %18, %608, %629 : vector<2x256xi1>, vector<2x256xf32>
    %cst_149 = arith.constant dense<0.000000e+00> : vector<2x256xf32>
    %634 = tpu.matmul %631, %630, %cst_149 {dimension_numbers = #tpu.dot_dimension_numbers<[1], [0], [0], [1], [0, 0, 1, 1], [], []>} : vector<2x64xf32>, vector<64x256xf32>, vector<2x256xf32> -> vector<2x256xf32>
    %635 = arith.addf %633, %634 : vector<2x256xf32>
    %636 = vector.extract_strided_slice %635 {offsets = [0, 0], sizes = [2, 128], strides = [1, 1]} : vector<2x256xf32> to vector<2x128xf32>
    %637 = arith.negf %636 : vector<2x128xf32>
    %638 = math.exp %637 : vector<2x128xf32>
    %cst_150 = arith.constant 1.000000e+00 : f32
    %639 = vector.broadcast %cst_150 : f32 to vector<2x128xf32>
    %640 = arith.addf %639, %638 : vector<2x128xf32>
    %641 = arith.divf %639, %640 : vector<2x128xf32>
    %642 = vector.extract_strided_slice %635 {offsets = [0, 128], sizes = [2, 64], strides = [1, 1]} : vector<2x256xf32> to vector<2x64xf32>
    %643 = math.tanh %642 : vector<2x64xf32>
    %644 = vector.extract_strided_slice %635 {offsets = [0, 192], sizes = [2, 64], strides = [1, 1]} : vector<2x256xf32> to vector<2x64xf32>
    %645 = arith.negf %644 : vector<2x64xf32>
    %646 = math.exp %645 : vector<2x64xf32>
    %cst_151 = arith.constant 1.000000e+00 : f32
    %647 = vector.broadcast %cst_151 : f32 to vector<2x64xf32>
    %648 = arith.addf %647, %646 : vector<2x64xf32>
    %649 = arith.divf %647, %648 : vector<2x64xf32>
    %650 = vector.extract_strided_slice %641 {offsets = [0, 0], sizes = [2, 64], strides = [1, 1]} : vector<2x128xf32> to vector<2x64xf32>
    %651 = vector.extract_strided_slice %641 {offsets = [0, 64], sizes = [2, 64], strides = [1, 1]} : vector<2x128xf32> to vector<2x64xf32>
    %652 = arith.mulf %651, %632 : vector<2x64xf32>
    %653 = arith.mulf %650, %643 : vector<2x64xf32>
    %654 = arith.addf %652, %653 : vector<2x64xf32>
    %655 = math.tanh %654 : vector<2x64xf32>
    %656 = arith.mulf %649, %655 : vector<2x64xf32>
    %657 = arith.select %49, %654, %632 : vector<2x64xi1>, vector<2x64xf32>
    %658 = arith.select %49, %656, %631 : vector<2x64xi1>, vector<2x64xf32>
    %cst_152 = arith.constant 0.000000e+00 : f32
    %659 = vector.broadcast %cst_152 : f32 to vector<2x64xf32>
    %660 = arith.select %49, %656, %659 : vector<2x64xi1>, vector<2x64xf32>
    %661 = arith.select %18, %611, %626 : vector<2x256xi1>, vector<2x256xf32>
    %cst_153 = arith.constant dense<0.000000e+00> : vector<2x256xf32>
    %662 = tpu.matmul %658, %630, %cst_153 {dimension_numbers = #tpu.dot_dimension_numbers<[1], [0], [0], [1], [0, 0, 1, 1], [], []>} : vector<2x64xf32>, vector<64x256xf32>, vector<2x256xf32> -> vector<2x256xf32>
    %663 = arith.addf %661, %662 : vector<2x256xf32>
    %664 = vector.extract_strided_slice %663 {offsets = [0, 0], sizes = [2, 128], strides = [1, 1]} : vector<2x256xf32> to vector<2x128xf32>
    %665 = arith.negf %664 : vector<2x128xf32>
    %666 = math.exp %665 : vector<2x128xf32>
    %cst_154 = arith.constant 1.000000e+00 : f32
    %667 = vector.broadcast %cst_154 : f32 to vector<2x128xf32>
    %668 = arith.addf %667, %666 : vector<2x128xf32>
    %669 = arith.divf %667, %668 : vector<2x128xf32>
    %670 = vector.extract_strided_slice %663 {offsets = [0, 128], sizes = [2, 64], strides = [1, 1]} : vector<2x256xf32> to vector<2x64xf32>
    %671 = math.tanh %670 : vector<2x64xf32>
    %672 = vector.extract_strided_slice %663 {offsets = [0, 192], sizes = [2, 64], strides = [1, 1]} : vector<2x256xf32> to vector<2x64xf32>
    %673 = arith.negf %672 : vector<2x64xf32>
    %674 = math.exp %673 : vector<2x64xf32>
    %cst_155 = arith.constant 1.000000e+00 : f32
    %675 = vector.broadcast %cst_155 : f32 to vector<2x64xf32>
    %676 = arith.addf %675, %674 : vector<2x64xf32>
    %677 = arith.divf %675, %676 : vector<2x64xf32>
    %678 = vector.extract_strided_slice %669 {offsets = [0, 0], sizes = [2, 64], strides = [1, 1]} : vector<2x128xf32> to vector<2x64xf32>
    %679 = vector.extract_strided_slice %669 {offsets = [0, 64], sizes = [2, 64], strides = [1, 1]} : vector<2x128xf32> to vector<2x64xf32>
    %680 = arith.mulf %679, %657 : vector<2x64xf32>
    %681 = arith.mulf %678, %671 : vector<2x64xf32>
    %682 = arith.addf %680, %681 : vector<2x64xf32>
    %683 = math.tanh %682 : vector<2x64xf32>
    %684 = arith.mulf %677, %683 : vector<2x64xf32>
    %685 = arith.select %54, %682, %657 : vector<2x64xi1>, vector<2x64xf32>
    %686 = arith.select %54, %684, %658 : vector<2x64xi1>, vector<2x64xf32>
    %cst_156 = arith.constant 0.000000e+00 : f32
    %687 = vector.broadcast %cst_156 : f32 to vector<2x64xf32>
    %688 = arith.select %54, %684, %687 : vector<2x64xi1>, vector<2x64xf32>
    %689 = arith.select %18, %614, %623 : vector<2x256xi1>, vector<2x256xf32>
    %cst_157 = arith.constant dense<0.000000e+00> : vector<2x256xf32>
    %690 = tpu.matmul %686, %630, %cst_157 {dimension_numbers = #tpu.dot_dimension_numbers<[1], [0], [0], [1], [0, 0, 1, 1], [], []>} : vector<2x64xf32>, vector<64x256xf32>, vector<2x256xf32> -> vector<2x256xf32>
    %691 = arith.addf %689, %690 : vector<2x256xf32>
    %692 = vector.extract_strided_slice %691 {offsets = [0, 0], sizes = [2, 128], strides = [1, 1]} : vector<2x256xf32> to vector<2x128xf32>
    %693 = arith.negf %692 : vector<2x128xf32>
    %694 = math.exp %693 : vector<2x128xf32>
    %cst_158 = arith.constant 1.000000e+00 : f32
    %695 = vector.broadcast %cst_158 : f32 to vector<2x128xf32>
    %696 = arith.addf %695, %694 : vector<2x128xf32>
    %697 = arith.divf %695, %696 : vector<2x128xf32>
    %698 = vector.extract_strided_slice %691 {offsets = [0, 128], sizes = [2, 64], strides = [1, 1]} : vector<2x256xf32> to vector<2x64xf32>
    %699 = math.tanh %698 : vector<2x64xf32>
    %700 = vector.extract_strided_slice %691 {offsets = [0, 192], sizes = [2, 64], strides = [1, 1]} : vector<2x256xf32> to vector<2x64xf32>
    %701 = arith.negf %700 : vector<2x64xf32>
    %702 = math.exp %701 : vector<2x64xf32>
    %cst_159 = arith.constant 1.000000e+00 : f32
    %703 = vector.broadcast %cst_159 : f32 to vector<2x64xf32>
    %704 = arith.addf %703, %702 : vector<2x64xf32>
    %705 = arith.divf %703, %704 : vector<2x64xf32>
    %706 = vector.extract_strided_slice %697 {offsets = [0, 0], sizes = [2, 64], strides = [1, 1]} : vector<2x128xf32> to vector<2x64xf32>
    %707 = vector.extract_strided_slice %697 {offsets = [0, 64], sizes = [2, 64], strides = [1, 1]} : vector<2x128xf32> to vector<2x64xf32>
    %708 = arith.mulf %707, %685 : vector<2x64xf32>
    %709 = arith.mulf %706, %699 : vector<2x64xf32>
    %710 = arith.addf %708, %709 : vector<2x64xf32>
    %711 = math.tanh %710 : vector<2x64xf32>
    %712 = arith.mulf %705, %711 : vector<2x64xf32>
    %713 = arith.select %59, %710, %685 : vector<2x64xi1>, vector<2x64xf32>
    %714 = arith.select %59, %712, %686 : vector<2x64xi1>, vector<2x64xf32>
    %cst_160 = arith.constant 0.000000e+00 : f32
    %715 = vector.broadcast %cst_160 : f32 to vector<2x64xf32>
    %716 = arith.select %59, %712, %715 : vector<2x64xi1>, vector<2x64xf32>
    %717 = arith.select %18, %617, %620 : vector<2x256xi1>, vector<2x256xf32>
    %cst_161 = arith.constant dense<0.000000e+00> : vector<2x256xf32>
    %718 = tpu.matmul %714, %630, %cst_161 {dimension_numbers = #tpu.dot_dimension_numbers<[1], [0], [0], [1], [0, 0, 1, 1], [], []>} : vector<2x64xf32>, vector<64x256xf32>, vector<2x256xf32> -> vector<2x256xf32>
    %719 = arith.addf %717, %718 : vector<2x256xf32>
    %720 = vector.extract_strided_slice %719 {offsets = [0, 0], sizes = [2, 128], strides = [1, 1]} : vector<2x256xf32> to vector<2x128xf32>
    %721 = arith.negf %720 : vector<2x128xf32>
    %722 = math.exp %721 : vector<2x128xf32>
    %cst_162 = arith.constant 1.000000e+00 : f32
    %723 = vector.broadcast %cst_162 : f32 to vector<2x128xf32>
    %724 = arith.addf %723, %722 : vector<2x128xf32>
    %725 = arith.divf %723, %724 : vector<2x128xf32>
    %726 = vector.extract_strided_slice %719 {offsets = [0, 128], sizes = [2, 64], strides = [1, 1]} : vector<2x256xf32> to vector<2x64xf32>
    %727 = math.tanh %726 : vector<2x64xf32>
    %728 = vector.extract_strided_slice %719 {offsets = [0, 192], sizes = [2, 64], strides = [1, 1]} : vector<2x256xf32> to vector<2x64xf32>
    %729 = arith.negf %728 : vector<2x64xf32>
    %730 = math.exp %729 : vector<2x64xf32>
    %cst_163 = arith.constant 1.000000e+00 : f32
    %731 = vector.broadcast %cst_163 : f32 to vector<2x64xf32>
    %732 = arith.addf %731, %730 : vector<2x64xf32>
    %733 = arith.divf %731, %732 : vector<2x64xf32>
    %734 = vector.extract_strided_slice %725 {offsets = [0, 0], sizes = [2, 64], strides = [1, 1]} : vector<2x128xf32> to vector<2x64xf32>
    %735 = vector.extract_strided_slice %725 {offsets = [0, 64], sizes = [2, 64], strides = [1, 1]} : vector<2x128xf32> to vector<2x64xf32>
    %736 = arith.mulf %735, %713 : vector<2x64xf32>
    %737 = arith.mulf %734, %727 : vector<2x64xf32>
    %738 = arith.addf %736, %737 : vector<2x64xf32>
    %739 = math.tanh %738 : vector<2x64xf32>
    %740 = arith.mulf %733, %739 : vector<2x64xf32>
    %741 = arith.select %64, %738, %713 : vector<2x64xi1>, vector<2x64xf32>
    %742 = arith.select %64, %740, %714 : vector<2x64xi1>, vector<2x64xf32>
    %cst_164 = arith.constant 0.000000e+00 : f32
    %743 = vector.broadcast %cst_164 : f32 to vector<2x64xf32>
    %744 = arith.select %64, %740, %743 : vector<2x64xi1>, vector<2x64xf32>
    %745 = arith.select %18, %620, %617 : vector<2x256xi1>, vector<2x256xf32>
    %cst_165 = arith.constant dense<0.000000e+00> : vector<2x256xf32>
    %746 = tpu.matmul %742, %630, %cst_165 {dimension_numbers = #tpu.dot_dimension_numbers<[1], [0], [0], [1], [0, 0, 1, 1], [], []>} : vector<2x64xf32>, vector<64x256xf32>, vector<2x256xf32> -> vector<2x256xf32>
    %747 = arith.addf %745, %746 : vector<2x256xf32>
    %748 = vector.extract_strided_slice %747 {offsets = [0, 0], sizes = [2, 128], strides = [1, 1]} : vector<2x256xf32> to vector<2x128xf32>
    %749 = arith.negf %748 : vector<2x128xf32>
    %750 = math.exp %749 : vector<2x128xf32>
    %cst_166 = arith.constant 1.000000e+00 : f32
    %751 = vector.broadcast %cst_166 : f32 to vector<2x128xf32>
    %752 = arith.addf %751, %750 : vector<2x128xf32>
    %753 = arith.divf %751, %752 : vector<2x128xf32>
    %754 = vector.extract_strided_slice %747 {offsets = [0, 128], sizes = [2, 64], strides = [1, 1]} : vector<2x256xf32> to vector<2x64xf32>
    %755 = math.tanh %754 : vector<2x64xf32>
    %756 = vector.extract_strided_slice %747 {offsets = [0, 192], sizes = [2, 64], strides = [1, 1]} : vector<2x256xf32> to vector<2x64xf32>
    %757 = arith.negf %756 : vector<2x64xf32>
    %758 = math.exp %757 : vector<2x64xf32>
    %cst_167 = arith.constant 1.000000e+00 : f32
    %759 = vector.broadcast %cst_167 : f32 to vector<2x64xf32>
    %760 = arith.addf %759, %758 : vector<2x64xf32>
    %761 = arith.divf %759, %760 : vector<2x64xf32>
    %762 = vector.extract_strided_slice %753 {offsets = [0, 0], sizes = [2, 64], strides = [1, 1]} : vector<2x128xf32> to vector<2x64xf32>
    %763 = vector.extract_strided_slice %753 {offsets = [0, 64], sizes = [2, 64], strides = [1, 1]} : vector<2x128xf32> to vector<2x64xf32>
    %764 = arith.mulf %763, %741 : vector<2x64xf32>
    %765 = arith.mulf %762, %755 : vector<2x64xf32>
    %766 = arith.addf %764, %765 : vector<2x64xf32>
    %767 = math.tanh %766 : vector<2x64xf32>
    %768 = arith.mulf %761, %767 : vector<2x64xf32>
    %769 = arith.select %69, %766, %741 : vector<2x64xi1>, vector<2x64xf32>
    %770 = arith.select %69, %768, %742 : vector<2x64xi1>, vector<2x64xf32>
    %cst_168 = arith.constant 0.000000e+00 : f32
    %771 = vector.broadcast %cst_168 : f32 to vector<2x64xf32>
    %772 = arith.select %69, %768, %771 : vector<2x64xi1>, vector<2x64xf32>
    %773 = arith.select %18, %623, %614 : vector<2x256xi1>, vector<2x256xf32>
    %cst_169 = arith.constant dense<0.000000e+00> : vector<2x256xf32>
    %774 = tpu.matmul %770, %630, %cst_169 {dimension_numbers = #tpu.dot_dimension_numbers<[1], [0], [0], [1], [0, 0, 1, 1], [], []>} : vector<2x64xf32>, vector<64x256xf32>, vector<2x256xf32> -> vector<2x256xf32>
    %775 = arith.addf %773, %774 : vector<2x256xf32>
    %776 = vector.extract_strided_slice %775 {offsets = [0, 0], sizes = [2, 128], strides = [1, 1]} : vector<2x256xf32> to vector<2x128xf32>
    %777 = arith.negf %776 : vector<2x128xf32>
    %778 = math.exp %777 : vector<2x128xf32>
    %cst_170 = arith.constant 1.000000e+00 : f32
    %779 = vector.broadcast %cst_170 : f32 to vector<2x128xf32>
    %780 = arith.addf %779, %778 : vector<2x128xf32>
    %781 = arith.divf %779, %780 : vector<2x128xf32>
    %782 = vector.extract_strided_slice %775 {offsets = [0, 128], sizes = [2, 64], strides = [1, 1]} : vector<2x256xf32> to vector<2x64xf32>
    %783 = math.tanh %782 : vector<2x64xf32>
    %784 = vector.extract_strided_slice %775 {offsets = [0, 192], sizes = [2, 64], strides = [1, 1]} : vector<2x256xf32> to vector<2x64xf32>
    %785 = arith.negf %784 : vector<2x64xf32>
    %786 = math.exp %785 : vector<2x64xf32>
    %cst_171 = arith.constant 1.000000e+00 : f32
    %787 = vector.broadcast %cst_171 : f32 to vector<2x64xf32>
    %788 = arith.addf %787, %786 : vector<2x64xf32>
    %789 = arith.divf %787, %788 : vector<2x64xf32>
    %790 = vector.extract_strided_slice %781 {offsets = [0, 0], sizes = [2, 64], strides = [1, 1]} : vector<2x128xf32> to vector<2x64xf32>
    %791 = vector.extract_strided_slice %781 {offsets = [0, 64], sizes = [2, 64], strides = [1, 1]} : vector<2x128xf32> to vector<2x64xf32>
    %792 = arith.mulf %791, %769 : vector<2x64xf32>
    %793 = arith.mulf %790, %783 : vector<2x64xf32>
    %794 = arith.addf %792, %793 : vector<2x64xf32>
    %795 = math.tanh %794 : vector<2x64xf32>
    %796 = arith.mulf %789, %795 : vector<2x64xf32>
    %797 = arith.select %74, %794, %769 : vector<2x64xi1>, vector<2x64xf32>
    %798 = arith.select %74, %796, %770 : vector<2x64xi1>, vector<2x64xf32>
    %cst_172 = arith.constant 0.000000e+00 : f32
    %799 = vector.broadcast %cst_172 : f32 to vector<2x64xf32>
    %800 = arith.select %74, %796, %799 : vector<2x64xi1>, vector<2x64xf32>
    %801 = arith.select %18, %626, %611 : vector<2x256xi1>, vector<2x256xf32>
    %cst_173 = arith.constant dense<0.000000e+00> : vector<2x256xf32>
    %802 = tpu.matmul %798, %630, %cst_173 {dimension_numbers = #tpu.dot_dimension_numbers<[1], [0], [0], [1], [0, 0, 1, 1], [], []>} : vector<2x64xf32>, vector<64x256xf32>, vector<2x256xf32> -> vector<2x256xf32>
    %803 = arith.addf %801, %802 : vector<2x256xf32>
    %804 = vector.extract_strided_slice %803 {offsets = [0, 0], sizes = [2, 128], strides = [1, 1]} : vector<2x256xf32> to vector<2x128xf32>
    %805 = arith.negf %804 : vector<2x128xf32>
    %806 = math.exp %805 : vector<2x128xf32>
    %cst_174 = arith.constant 1.000000e+00 : f32
    %807 = vector.broadcast %cst_174 : f32 to vector<2x128xf32>
    %808 = arith.addf %807, %806 : vector<2x128xf32>
    %809 = arith.divf %807, %808 : vector<2x128xf32>
    %810 = vector.extract_strided_slice %803 {offsets = [0, 128], sizes = [2, 64], strides = [1, 1]} : vector<2x256xf32> to vector<2x64xf32>
    %811 = math.tanh %810 : vector<2x64xf32>
    %812 = vector.extract_strided_slice %803 {offsets = [0, 192], sizes = [2, 64], strides = [1, 1]} : vector<2x256xf32> to vector<2x64xf32>
    %813 = arith.negf %812 : vector<2x64xf32>
    %814 = math.exp %813 : vector<2x64xf32>
    %cst_175 = arith.constant 1.000000e+00 : f32
    %815 = vector.broadcast %cst_175 : f32 to vector<2x64xf32>
    %816 = arith.addf %815, %814 : vector<2x64xf32>
    %817 = arith.divf %815, %816 : vector<2x64xf32>
    %818 = vector.extract_strided_slice %809 {offsets = [0, 0], sizes = [2, 64], strides = [1, 1]} : vector<2x128xf32> to vector<2x64xf32>
    %819 = vector.extract_strided_slice %809 {offsets = [0, 64], sizes = [2, 64], strides = [1, 1]} : vector<2x128xf32> to vector<2x64xf32>
    %820 = arith.mulf %819, %797 : vector<2x64xf32>
    %821 = arith.mulf %818, %811 : vector<2x64xf32>
    %822 = arith.addf %820, %821 : vector<2x64xf32>
    %823 = math.tanh %822 : vector<2x64xf32>
    %824 = arith.mulf %817, %823 : vector<2x64xf32>
    %825 = arith.select %79, %822, %797 : vector<2x64xi1>, vector<2x64xf32>
    %826 = arith.select %79, %824, %798 : vector<2x64xi1>, vector<2x64xf32>
    %cst_176 = arith.constant 0.000000e+00 : f32
    %827 = vector.broadcast %cst_176 : f32 to vector<2x64xf32>
    %828 = arith.select %79, %824, %827 : vector<2x64xi1>, vector<2x64xf32>
    %829 = arith.select %18, %629, %608 : vector<2x256xi1>, vector<2x256xf32>
    %cst_177 = arith.constant dense<0.000000e+00> : vector<2x256xf32>
    %830 = tpu.matmul %826, %630, %cst_177 {dimension_numbers = #tpu.dot_dimension_numbers<[1], [0], [0], [1], [0, 0, 1, 1], [], []>} : vector<2x64xf32>, vector<64x256xf32>, vector<2x256xf32> -> vector<2x256xf32>
    %831 = arith.addf %829, %830 : vector<2x256xf32>
    %832 = vector.extract_strided_slice %831 {offsets = [0, 0], sizes = [2, 128], strides = [1, 1]} : vector<2x256xf32> to vector<2x128xf32>
    %833 = arith.negf %832 : vector<2x128xf32>
    %834 = math.exp %833 : vector<2x128xf32>
    %cst_178 = arith.constant 1.000000e+00 : f32
    %835 = vector.broadcast %cst_178 : f32 to vector<2x128xf32>
    %836 = arith.addf %835, %834 : vector<2x128xf32>
    %837 = arith.divf %835, %836 : vector<2x128xf32>
    %838 = vector.extract_strided_slice %831 {offsets = [0, 128], sizes = [2, 64], strides = [1, 1]} : vector<2x256xf32> to vector<2x64xf32>
    %839 = math.tanh %838 : vector<2x64xf32>
    %840 = vector.extract_strided_slice %831 {offsets = [0, 192], sizes = [2, 64], strides = [1, 1]} : vector<2x256xf32> to vector<2x64xf32>
    %841 = arith.negf %840 : vector<2x64xf32>
    %842 = math.exp %841 : vector<2x64xf32>
    %cst_179 = arith.constant 1.000000e+00 : f32
    %843 = vector.broadcast %cst_179 : f32 to vector<2x64xf32>
    %844 = arith.addf %843, %842 : vector<2x64xf32>
    %845 = arith.divf %843, %844 : vector<2x64xf32>
    %846 = vector.extract_strided_slice %837 {offsets = [0, 0], sizes = [2, 64], strides = [1, 1]} : vector<2x128xf32> to vector<2x64xf32>
    %847 = vector.extract_strided_slice %837 {offsets = [0, 64], sizes = [2, 64], strides = [1, 1]} : vector<2x128xf32> to vector<2x64xf32>
    %848 = arith.mulf %847, %825 : vector<2x64xf32>
    %849 = arith.mulf %846, %839 : vector<2x64xf32>
    %850 = arith.addf %848, %849 : vector<2x64xf32>
    %851 = math.tanh %850 : vector<2x64xf32>
    %852 = arith.mulf %845, %851 : vector<2x64xf32>
    %cst_180 = arith.constant 0.000000e+00 : f32
    %853 = vector.broadcast %cst_180 : f32 to vector<2x64xf32>
    %854 = arith.select %84, %852, %853 : vector<2x64xi1>, vector<2x64xf32>
    %855 = arith.select %21, %660, %854 : vector<2x64xi1>, vector<2x64xf32>
    %856 = arith.select %21, %688, %828 : vector<2x64xi1>, vector<2x64xf32>
    %857 = arith.select %21, %716, %800 : vector<2x64xi1>, vector<2x64xf32>
    %858 = arith.select %21, %744, %772 : vector<2x64xi1>, vector<2x64xf32>
    %859 = arith.select %21, %772, %744 : vector<2x64xi1>, vector<2x64xf32>
    %860 = arith.select %21, %800, %716 : vector<2x64xi1>, vector<2x64xf32>
    %861 = arith.select %21, %828, %688 : vector<2x64xi1>, vector<2x64xf32>
    %862 = arith.select %21, %854, %660 : vector<2x64xi1>, vector<2x64xf32>
    %863 = tpu.concatenate %855, %85 in 1 : vector<2x64xf32>, vector<2x300xf32> -> vector<2x364xf32>
    %c0_181 = arith.constant 0 : index
    %c0_182 = arith.constant 0 : index
    %c0_183 = arith.constant 0 : index
    %864 = vector.load %arg22[%c0_181, %c0_182, %c0_183] : memref<8x2x364xf32, #tpu.memory_space<vmem>>, vector<1x2x364xf32>
    %865 = vector.shape_cast %864 : vector<1x2x364xf32> to vector<2x364xf32>
    %866 = vector.shape_cast %863 : vector<2x364xf32> to vector<1x2x364xf32>
    tpu.vector_store %arg22[%c0_181, %c0_182, %c0_183], %866 {strides = array<i32>} : memref<8x2x364xf32, #tpu.memory_space<vmem>>, vector<1x2x364xf32>,
    %867 = tpu.concatenate %856, %86 in 1 : vector<2x64xf32>, vector<2x300xf32> -> vector<2x364xf32>
    %c1 = arith.constant 1 : index
    %c0_184 = arith.constant 0 : index
    %c0_185 = arith.constant 0 : index
    %868 = vector.load %arg22[%c1, %c0_184, %c0_185] : memref<8x2x364xf32, #tpu.memory_space<vmem>>, vector<1x2x364xf32>
    %869 = vector.shape_cast %868 : vector<1x2x364xf32> to vector<2x364xf32>
    %870 = vector.shape_cast %867 : vector<2x364xf32> to vector<1x2x364xf32>
    tpu.vector_store %arg22[%c1, %c0_184, %c0_185], %870 {strides = array<i32>} : memref<8x2x364xf32, #tpu.memory_space<vmem>>, vector<1x2x364xf32>,
    %871 = tpu.concatenate %857, %87 in 1 : vector<2x64xf32>, vector<2x300xf32> -> vector<2x364xf32>
    %c2 = arith.constant 2 : index
    %c0_186 = arith.constant 0 : index
    %c0_187 = arith.constant 0 : index
    %872 = vector.load %arg22[%c2, %c0_186, %c0_187] : memref<8x2x364xf32, #tpu.memory_space<vmem>>, vector<1x2x364xf32>
    %873 = vector.shape_cast %872 : vector<1x2x364xf32> to vector<2x364xf32>
    %874 = vector.shape_cast %871 : vector<2x364xf32> to vector<1x2x364xf32>
    tpu.vector_store %arg22[%c2, %c0_186, %c0_187], %874 {strides = array<i32>} : memref<8x2x364xf32, #tpu.memory_space<vmem>>, vector<1x2x364xf32>,
    %875 = tpu.concatenate %858, %88 in 1 : vector<2x64xf32>, vector<2x300xf32> -> vector<2x364xf32>
    %c3 = arith.constant 3 : index
    %c0_188 = arith.constant 0 : index
    %c0_189 = arith.constant 0 : index
    %876 = vector.load %arg22[%c3, %c0_188, %c0_189] : memref<8x2x364xf32, #tpu.memory_space<vmem>>, vector<1x2x364xf32>
    %877 = vector.shape_cast %876 : vector<1x2x364xf32> to vector<2x364xf32>
    %878 = vector.shape_cast %875 : vector<2x364xf32> to vector<1x2x364xf32>
    tpu.vector_store %arg22[%c3, %c0_188, %c0_189], %878 {strides = array<i32>} : memref<8x2x364xf32, #tpu.memory_space<vmem>>, vector<1x2x364xf32>,
    %879 = tpu.concatenate %859, %89 in 1 : vector<2x64xf32>, vector<2x300xf32> -> vector<2x364xf32>
    %c4 = arith.constant 4 : index
    %c0_190 = arith.constant 0 : index
    %c0_191 = arith.constant 0 : index
    %880 = vector.load %arg22[%c4, %c0_190, %c0_191] : memref<8x2x364xf32, #tpu.memory_space<vmem>>, vector<1x2x364xf32>
    %881 = vector.shape_cast %880 : vector<1x2x364xf32> to vector<2x364xf32>
    %882 = vector.shape_cast %879 : vector<2x364xf32> to vector<1x2x364xf32>
    tpu.vector_store %arg22[%c4, %c0_190, %c0_191], %882 {strides = array<i32>} : memref<8x2x364xf32, #tpu.memory_space<vmem>>, vector<1x2x364xf32>,
    %883 = tpu.concatenate %860, %90 in 1 : vector<2x64xf32>, vector<2x300xf32> -> vector<2x364xf32>
    %c5 = arith.constant 5 : index
    %c0_192 = arith.constant 0 : index
    %c0_193 = arith.constant 0 : index
    %884 = vector.load %arg22[%c5, %c0_192, %c0_193] : memref<8x2x364xf32, #tpu.memory_space<vmem>>, vector<1x2x364xf32>
    %885 = vector.shape_cast %884 : vector<1x2x364xf32> to vector<2x364xf32>
    %886 = vector.shape_cast %883 : vector<2x364xf32> to vector<1x2x364xf32>
    tpu.vector_store %arg22[%c5, %c0_192, %c0_193], %886 {strides = array<i32>} : memref<8x2x364xf32, #tpu.memory_space<vmem>>, vector<1x2x364xf32>,
    %887 = tpu.concatenate %861, %91 in 1 : vector<2x64xf32>, vector<2x300xf32> -> vector<2x364xf32>
    %c6 = arith.constant 6 : index
    %c0_194 = arith.constant 0 : index
    %c0_195 = arith.constant 0 : index
    %888 = vector.load %arg22[%c6, %c0_194, %c0_195] : memref<8x2x364xf32, #tpu.memory_space<vmem>>, vector<1x2x364xf32>
    %889 = vector.shape_cast %888 : vector<1x2x364xf32> to vector<2x364xf32>
    %890 = vector.shape_cast %887 : vector<2x364xf32> to vector<1x2x364xf32>
    tpu.vector_store %arg22[%c6, %c0_194, %c0_195], %890 {strides = array<i32>} : memref<8x2x364xf32, #tpu.memory_space<vmem>>, vector<1x2x364xf32>,
    %891 = tpu.concatenate %862, %92 in 1 : vector<2x64xf32>, vector<2x300xf32> -> vector<2x364xf32>
    %c7 = arith.constant 7 : index
    %c0_196 = arith.constant 0 : index
    %c0_197 = arith.constant 0 : index
    %892 = vector.load %arg22[%c7, %c0_196, %c0_197] : memref<8x2x364xf32, #tpu.memory_space<vmem>>, vector<1x2x364xf32>
    %893 = vector.shape_cast %892 : vector<1x2x364xf32> to vector<2x364xf32>
    %894 = vector.shape_cast %891 : vector<2x364xf32> to vector<1x2x364xf32>
    tpu.vector_store %arg22[%c7, %c0_196, %c0_197], %894 {strides = array<i32>} : memref<8x2x364xf32, #tpu.memory_space<vmem>>, vector<1x2x364xf32>,
    return
  }
  func.func @transform_0(%arg0: i32) -> (i32, i32) {
    %c0_i32 = arith.constant 0 : i32
    %c0_i32_0 = arith.constant 0 : i32
    %c0_i32_1 = arith.constant 0 : i32
    return %c0_i32, %c0_i32_0 : i32, i32
  }
  func.func @transform_1(%arg0: i32) -> (i32, i32) {
    %c0_i32 = arith.constant 0 : i32
    %c0_i32_0 = arith.constant 0 : i32
    %c0_i32_1 = arith.constant 0 : i32
    return %c0_i32, %c0_i32_0 : i32, i32
  }
  func.func @transform_2(%arg0: i32) -> (i32, i32) {
    %c0_i32 = arith.constant 0 : i32
    %c0_i32_0 = arith.constant 0 : i32
    %c0_i32_1 = arith.constant 0 : i32
    return %c0_i32, %c0_i32_0 : i32, i32
  }
  func.func @transform_3(%arg0: i32) -> (i32, i32) {
    %c0_i32 = arith.constant 0 : i32
    %c0_i32_0 = arith.constant 0 : i32
    %c0_i32_1 = arith.constant 0 : i32
    return %c0_i32, %c0_i32_0 : i32, i32
  }
  func.func @transform_4(%arg0: i32) -> (i32, i32) {
    %c0_i32 = arith.constant 0 : i32
    %c0_i32_0 = arith.constant 0 : i32
    %c0_i32_1 = arith.constant 0 : i32
    return %c0_i32, %c0_i32_0 : i32, i32
  }
  func.func @transform_5(%arg0: i32) -> (i32, i32) {
    %c0_i32 = arith.constant 0 : i32
    %c0_i32_0 = arith.constant 0 : i32
    %c0_i32_1 = arith.constant 0 : i32
    return %c0_i32, %c0_i32_0 : i32, i32
  }
  func.func @transform_6(%arg0: i32) -> (i32, i32) {
    %c0_i32 = arith.constant 0 : i32
    %c0_i32_0 = arith.constant 0 : i32
    %c0_i32_1 = arith.constant 0 : i32
    return %c0_i32, %c0_i32_0 : i32, i32
  }
  func.func @transform_7(%arg0: i32) -> (i32, i32) {
    %c0_i32 = arith.constant 0 : i32
    %c0_i32_0 = arith.constant 0 : i32
    %c0_i32_1 = arith.constant 0 : i32
    return %c0_i32, %c0_i32_0 : i32, i32
  }
  func.func @transform_8(%arg0: i32) -> (i32, i32) {
    %c0_i32 = arith.constant 0 : i32
    %c0_i32_0 = arith.constant 0 : i32
    %c0_i32_1 = arith.constant 0 : i32
    return %c0_i32, %c0_i32_0 : i32, i32
  }
  func.func @transform_9(%arg0: i32) -> (i32, i32) {
    %c0_i32 = arith.constant 0 : i32
    %c0_i32_0 = arith.constant 0 : i32
    %c0_i32_1 = arith.constant 0 : i32
    return %c0_i32, %c0_i32_0 : i32, i32
  }
  func.func @transform_10(%arg0: i32) -> (i32, i32) {
    %c0_i32 = arith.constant 0 : i32
    %c0_i32_0 = arith.constant 0 : i32
    %c0_i32_1 = arith.constant 0 : i32
    return %c0_i32, %c0_i32_0 : i32, i32
  }
  func.func @transform_11(%arg0: i32) -> (i32, i32) {
    %c0_i32 = arith.constant 0 : i32
    %c0_i32_0 = arith.constant 0 : i32
    %c0_i32_1 = arith.constant 0 : i32
    return %c0_i32, %c0_i32_0 : i32, i32
  }
  func.func @transform_12(%arg0: i32) -> (i32, i32) {
    %c0_i32 = arith.constant 0 : i32
    %c0_i32_0 = arith.constant 0 : i32
    %c0_i32_1 = arith.constant 0 : i32
    return %c0_i32, %c0_i32_0 : i32, i32
  }
  func.func @transform_13(%arg0: i32) -> (i32, i32) {
    %c0_i32 = arith.constant 0 : i32
    %c0_i32_0 = arith.constant 0 : i32
    %c0_i32_1 = arith.constant 0 : i32
    return %c0_i32, %c0_i32_0 : i32, i32
  }
  func.func @transform_14(%arg0: i32) -> (i32, i32) {
    %c0_i32 = arith.constant 0 : i32
    %c0_i32_0 = arith.constant 0 : i32
    %c0_i32_1 = arith.constant 0 : i32
    return %c0_i32, %c0_i32_0 : i32, i32
  }
  func.func @transform_15(%arg0: i32) -> (i32, i32) {
    %c0_i32 = arith.constant 0 : i32
    %c0_i32_0 = arith.constant 0 : i32
    %c0_i32_1 = arith.constant 0 : i32
    return %c0_i32, %c0_i32_0 : i32, i32
  }
  func.func @transform_16(%arg0: i32) -> (i32, i32) {
    %c0_i32 = arith.constant 0 : i32
    %c0_i32_0 = arith.constant 0 : i32
    %c0_i32_1 = arith.constant 0 : i32
    return %c0_i32, %c0_i32_0 : i32, i32
  }
  func.func @transform_17(%arg0: i32) -> (i32, i32) {
    %c0_i32 = arith.constant 0 : i32
    %c0_i32_0 = arith.constant 0 : i32
    %c0_i32_1 = arith.constant 0 : i32
    return %c0_i32, %c0_i32_0 : i32, i32
  }
  func.func @transform_18(%arg0: i32) -> (i32, i32) {
    %c0_i32 = arith.constant 0 : i32
    %c0_i32_0 = arith.constant 0 : i32
    %c0_i32_1 = arith.constant 0 : i32
    return %c0_i32, %c0_i32_0 : i32, i32
  }
  func.func @transform_19(%arg0: i32) -> (i32, i32) {
    %c0_i32 = arith.constant 0 : i32
    %c0_i32_0 = arith.constant 0 : i32
    %c0_i32_1 = arith.constant 0 : i32
    return %c0_i32, %c0_i32_0 : i32, i32
  }
  func.func @transform_20(%arg0: i32) -> (i32, i32) {
    %c0_i32 = arith.constant 0 : i32
    %c0_i32_0 = arith.constant 0 : i32
    %c0_i32_1 = arith.constant 0 : i32
    return %c0_i32, %c0_i32_0 : i32, i32
  }
  func.func @transform_21(%arg0: i32) -> (i32, i32, i32) {
    %c0_i32 = arith.constant 0 : i32
    %c0_i32_0 = arith.constant 0 : i32
    %c0_i32_1 = arith.constant 0 : i32
    %c0_i32_2 = arith.constant 0 : i32
    return %c0_i32, %c0_i32_0, %c0_i32_1 : i32, i32, i32
  }
}

</mosaic_0001>

<llo_original>
// kernel: encoder_forward.1
$region0: #{encoder_forward.1}
  #allocation0 [shape = 'u32[]', space=smem, size = 0x4, offset = 0x4, fixed_abs, tag = 'smem constant byte address 0x4 - core index']
  #allocation1 [shape = 'u32[144,128]{1,0:T(1,128)}', space=vmem, size = 0x12000, scoped, tag = 'internal scratch']
  %s0 = inlined_call_operand.vmem [shape: f32[16,32], index: 0, kind: input, shape index: {}]
  %s1 = inlined_call_operand.vmem [shape: s32[2,1], index: 1, kind: input, shape index: {}]
  %s2 = inlined_call_operand.vmem [shape: f32[16,320], index: 2, kind: input, shape index: {}]
  %s3 = inlined_call_operand.vmem [shape: f32[16,320], index: 3, kind: input, shape index: {}]
  %s4 = inlined_call_operand.vmem [shape: f32[32,32], index: 4, kind: input, shape index: {}]
  %s5 = inlined_call_operand.vmem [shape: f32[1,32], index: 5, kind: input, shape index: {}]
  %s6 = inlined_call_operand.vmem [shape: f32[32,32], index: 6, kind: input, shape index: {}]
  %s7 = inlined_call_operand.vmem [shape: f32[1,32], index: 7, kind: input, shape index: {}]
  %s8 = inlined_call_operand.vmem [shape: f32[320,300], index: 8, kind: input, shape index: {}]
  %s9 = inlined_call_operand.vmem [shape: f32[320,300], index: 9, kind: input, shape index: {}]
  %s10 = inlined_call_operand.vmem [shape: f32[32,256], index: 10, kind: input, shape index: {}]
  %s11 = inlined_call_operand.vmem [shape: f32[32,256], index: 11, kind: input, shape index: {}]
  %s12 = inlined_call_operand.vmem [shape: f32[300,256], index: 12, kind: input, shape index: {}]
  %s13 = inlined_call_operand.vmem [shape: f32[64,256], index: 13, kind: input, shape index: {}]
  %s14 = inlined_call_operand.vmem [shape: f32[1,256], index: 14, kind: input, shape index: {}]
  %s15 = inlined_call_operand.vmem [shape: f32[64,256], index: 15, kind: input, shape index: {}]
  %s16 = inlined_call_operand.vmem [shape: f32[64,256], index: 16, kind: input, shape index: {}]
  %s17 = inlined_call_operand.vmem [shape: f32[1,256], index: 17, kind: input, shape index: {}]
  %s18 = inlined_call_operand.vmem [shape: f32[64,256], index: 18, kind: input, shape index: {}]
  %s19 = inlined_call_operand.vmem [shape: f32[64,256], index: 19, kind: input, shape index: {}]
  %s20 = inlined_call_operand.vmem [shape: f32[1,256], index: 20, kind: input, shape index: {}]
  %s21 = inlined_call_operand.vmem [shape: f32[8,2,364], index: 21, kind: output, shape index: {}]
  %s22 = sld [smem:[#allocation0]]
  $region94: #{encoder_forward.1} parent=0
    _
  %s24 = ssub.s32 1, %s22
  %s25 = scalar_select 0, %s24, %s22
  // Predicated region
  $region2: #{encoder_forward.1} parent=0 // pred_check
    _
  $region3: #{encoder_forward.1} parent=0 // pred_check_branch
    %27 = sbr.rel (0) target = $region5
  $region4: #{encoder_forward.1} parent=0 // pred_region
    _
  $region5: #{encoder_forward.1} parent=0 // pred_fallthru
    _
  // Predicated region
  $region6: #{encoder_forward.1} parent=0 // pred_check
    _
  $region7: #{encoder_forward.1} parent=0 // pred_check_branch
    %29 = sbr.rel (0) target = $region9
  $region8: #{encoder_forward.1} parent=0 // pred_region
    _
  $region9: #{encoder_forward.1} parent=0 // pred_fallthru
    _
  // Predicated region
  $region10: #{encoder_forward.1} parent=0 // pred_check
    _
  $region11: #{encoder_forward.1} parent=0 // pred_check_branch
    %31 = sbr.rel (0) target = $region13
  $region12: #{encoder_forward.1} parent=0 // pred_region
    _
  $region13: #{encoder_forward.1} parent=0 // pred_fallthru
    _
  // Predicated region
  $region14: #{encoder_forward.1} parent=0 // pred_check
    _
  $region15: #{encoder_forward.1} parent=0 // pred_check_branch
    %33 = sbr.rel (0) target = $region17
  $region16: #{encoder_forward.1} parent=0 // pred_region
    _
  $region17: #{encoder_forward.1} parent=0 // pred_fallthru
    _
  // Predicated region
  $region18: #{encoder_forward.1} parent=0 // pred_check
    _
  $region19: #{encoder_forward.1} parent=0 // pred_check_branch
    %35 = sbr.rel (0) target = $region21
  $region20: #{encoder_forward.1} parent=0 // pred_region
    _
  $region21: #{encoder_forward.1} parent=0 // pred_fallthru
    _
  // Predicated region
  $region22: #{encoder_forward.1} parent=0 // pred_check
    _
  $region23: #{encoder_forward.1} parent=0 // pred_check_branch
    %37 = sbr.rel (0) target = $region25
  $region24: #{encoder_forward.1} parent=0 // pred_region
    _
  $region25: #{encoder_forward.1} parent=0 // pred_fallthru
    _
  // Predicated region
  $region26: #{encoder_forward.1} parent=0 // pred_check
    _
  $region27: #{encoder_forward.1} parent=0 // pred_check_branch
    %39 = sbr.rel (0) target = $region29
  $region28: #{encoder_forward.1} parent=0 // pred_region
    _
  $region29: #{encoder_forward.1} parent=0 // pred_fallthru
    _
  // Predicated region
  $region30: #{encoder_forward.1} parent=0 // pred_check
    _
  $region31: #{encoder_forward.1} parent=0 // pred_check_branch
    %41 = sbr.rel (0) target = $region33
  $region32: #{encoder_forward.1} parent=0 // pred_region
    _
  $region33: #{encoder_forward.1} parent=0 // pred_fallthru
    _
  // Predicated region
  $region34: #{encoder_forward.1} parent=0 // pred_check
    _
  $region35: #{encoder_forward.1} parent=0 // pred_check_branch
    %43 = sbr.rel (0) target = $region37
  $region36: #{encoder_forward.1} parent=0 // pred_region
    _
  $region37: #{encoder_forward.1} parent=0 // pred_fallthru
    _
  // Predicated region
  $region38: #{encoder_forward.1} parent=0 // pred_check
    _
  $region39: #{encoder_forward.1} parent=0 // pred_check_branch
    %45 = sbr.rel (0) target = $region41
  $region40: #{encoder_forward.1} parent=0 // pred_region
    _
  $region41: #{encoder_forward.1} parent=0 // pred_fallthru
    _
  // Predicated region
  $region42: #{encoder_forward.1} parent=0 // pred_check
    _
  $region43: #{encoder_forward.1} parent=0 // pred_check_branch
    %47 = sbr.rel (0) target = $region45
  $region44: #{encoder_forward.1} parent=0 // pred_region
    _
  $region45: #{encoder_forward.1} parent=0 // pred_fallthru
    _
  // Predicated region
  $region46: #{encoder_forward.1} parent=0 // pred_check
    _
  $region47: #{encoder_forward.1} parent=0 // pred_check_branch
    %49 = sbr.rel (0) target = $region49
  $region48: #{encoder_forward.1} parent=0 // pred_region
    _
  $region49: #{encoder_forward.1} parent=0 // pred_fallthru
    _
  // Predicated region
  $region50: #{encoder_forward.1} parent=0 // pred_check
    _
  $region51: #{encoder_forward.1} parent=0 // pred_check_branch
    %51 = sbr.rel (0) target = $region53
  $region52: #{encoder_forward.1} parent=0 // pred_region
    _
  $region53: #{encoder_forward.1} parent=0 // pred_fallthru
    _
  // Predicated region
  $region54: #{encoder_forward.1} parent=0 // pred_check
    _
  $region55: #{encoder_forward.1} parent=0 // pred_check_branch
    %53 = sbr.rel (0) target = $region57
  $region56: #{encoder_forward.1} parent=0 // pred_region
    _
  $region57: #{encoder_forward.1} parent=0 // pred_fallthru
    _
  // Predicated region
  $region58: #{encoder_forward.1} parent=0 // pred_check
    _
  $region59: #{encoder_forward.1} parent=0 // pred_check_branch
    %55 = sbr.rel (0) target = $region61
  $region60: #{encoder_forward.1} parent=0 // pred_region
    _
  $region61: #{encoder_forward.1} parent=0 // pred_fallthru
    _
  // Predicated region
  $region62: #{encoder_forward.1} parent=0 // pred_check
    _
  $region63: #{encoder_forward.1} parent=0 // pred_check_branch
    %57 = sbr.rel (0) target = $region65
  $region64: #{encoder_forward.1} parent=0 // pred_region
    _
  $region65: #{encoder_forward.1} parent=0 // pred_fallthru
    _
  // Predicated region
  $region66: #{encoder_forward.1} parent=0 // pred_check
    _
  $region67: #{encoder_forward.1} parent=0 // pred_check_branch
    %59 = sbr.rel (0) target = $region69
  $region68: #{encoder_forward.1} parent=0 // pred_region
    _
  $region69: #{encoder_forward.1} parent=0 // pred_fallthru
    _
  // Predicated region
  $region70: #{encoder_forward.1} parent=0 // pred_check
    _
  $region71: #{encoder_forward.1} parent=0 // pred_check_branch
    %61 = sbr.rel (0) target = $region73
  $region72: #{encoder_forward.1} parent=0 // pred_region
    _
  $region73: #{encoder_forward.1} parent=0 // pred_fallthru
    _
  // Predicated region
  $region74: #{encoder_forward.1} parent=0 // pred_check
    _
  $region75: #{encoder_forward.1} parent=0 // pred_check_branch
    %63 = sbr.rel (0) target = $region77
  $region76: #{encoder_forward.1} parent=0 // pred_region
    _
  $region77: #{encoder_forward.1} parent=0 // pred_fallthru
    _
  // Predicated region
  $region78: #{encoder_forward.1} parent=0 // pred_check
    _
  $region79: #{encoder_forward.1} parent=0 // pred_check_branch
    %65 = sbr.rel (0) target = $region81
  $region80: #{encoder_forward.1} parent=0 // pred_region
    _
  $region81: #{encoder_forward.1} parent=0 // pred_fallthru
    _
  // Predicated region
  $region82: #{encoder_forward.1} parent=0 // pred_check
    _
  $region83: #{encoder_forward.1} parent=0 // pred_check_branch
    %67 = sbr.rel (0) target = $region85
  $region84: #{encoder_forward.1} parent=0 // pred_region
    _
  $region85: #{encoder_forward.1} parent=0 // pred_fallthru
    _
  %v68 = vlaneseq
  %v69 = vand.u32 %v68, 127
  %v70 = vadd.s32 %v69, 128
  %vm71 = vcmp.lt.s32.totalorder %v69, 0
  %v72 = vsub.s32 0, %v69
  %v73 = vsel %vm71, %v72, %v69
  %v74 = vshrl.u32 %v73, 6
  %v75 = vand.u32 %v73, 63
  %v76 = vsub.s32 0, %v75
  %v77 = vsel %vm71, %v76, %v75
  %vm78 = vcmp.lt.s32.totalorder %v70, 0
  %v79 = vsub.s32 0, %v70
  %v80 = vsel %vm78, %v79, %v70
  %v81 = vshrl.u32 %v80, 6
  %v82 = vand.u32 %v80, 63
  %v83 = vsub.s32 0, %v82
  %v84 = vsel %vm78, %v83, %v82
  %vm85 = vcmp.ne.s32.totalorder %v77, 0
  %vm86 = vcmp.ne.s32.totalorder %v84, 0
  %vm87 = vcmp.lt.s32.totalorder %v77, 0
  %vm88 = vcmp.lt.s32.totalorder %v84, 0
  %vm89 = vmand %vm87, %vm85
  %vm90 = vmand %vm88, %vm86
  %v91 = vadd.s32 %v77, 64
  %v92 = vadd.s32 %v84, 64
  %v93 = vsel %vm89, %v91, %v77
  %v94 = vsel %vm90, %v92, %v84
  %vm95 = vcmp.lt.s32.totalorder %v93, 32
  %vm96 = vcmp.lt.s32.totalorder %v94, 32
  %vm97 = vcmp.lt.s32.totalorder %v69, 32
  %v98 = vld [vmem:[%s2] sm:$0xff]
  %v99 = vld [vmem:[%s2 + $0x8] sm:$0xff]
  %v100 = vld [vmem:[%s2 + $0x10] sm:$0xff]
  %v101 = vld [vmem:[%s2 + $0x18] sm:$0xff]
  %v102 = vld [vmem:[%s2 + $0x20] sm:$0xff]
  %v103 = vld [vmem:[%s2 + $0x28] sm:$0xff]
  %v104 = vld [vmem:[%s8] sm:$0xff]
  %v105 = vld [vmem:[%s8 + $0x8] sm:$0xff]
  %v106 = vld [vmem:[%s8 + $0x10] sm:$0xff]
  %v107 = vld [vmem:[%s8 + $0x18] sm:$0xff]
  %v108 = vld [vmem:[%s8 + $0x20] sm:$0xff]
  %v109 = vld [vmem:[%s8 + $0x28] sm:$0xff]
  %v110 = vld [vmem:[%s8 + $0x30] sm:$0xff]
  %v111 = vld [vmem:[%s8 + $0x38] sm:$0xff]
  %v112 = vld [vmem:[%s8 + $0x40] sm:$0xff]
  %v113 = vld [vmem:[%s8 + $0x48] sm:$0xff]
  %v114 = vld [vmem:[%s8 + $0x50] sm:$0xff]
  %v115 = vld [vmem:[%s8 + $0x58] sm:$0xff]
  %v116 = vld [vmem:[%s8 + $0x60] sm:$0xff]
  %v117 = vld [vmem:[%s8 + $0x68] sm:$0xff]
  %v118 = vld [vmem:[%s8 + $0x70] sm:$0xff]
  %v119 = vld [vmem:[%s8 + $0x78] sm:$0xff]
  %v120 = vld [vmem:[%s8 + $0x80] sm:$0xff]
  %v121 = vld [vmem:[%s8 + $0x88] sm:$0xff]
  %v122 = vld [vmem:[%s8 + $0x90] sm:$0xff]
  %v123 = vld [vmem:[%s8 + $0x98] sm:$0xff]
  %v124 = vld [vmem:[%s8 + $0xa0] sm:$0xff]
  %v125 = vld [vmem:[%s8 + $0xa8] sm:$0xff]
  %v126 = vld [vmem:[%s8 + $0xb0] sm:$0xff]
  %v127 = vld [vmem:[%s8 + $0xb8] sm:$0xff]
  %v128 = vld [vmem:[%s8 + $0xc0] sm:$0xff]
  %v129 = vld [vmem:[%s8 + $0xc8] sm:$0xff]
  %v130 = vld [vmem:[%s8 + $0xd0] sm:$0xff]
  %v131 = vld [vmem:[%s8 + $0xd8] sm:$0xff]
  %v132 = vld [vmem:[%s8 + $0xe0] sm:$0xff]
  %v133 = vld [vmem:[%s8 + $0xe8] sm:$0xff]
  %v134 = vld [vmem:[%s8 + $0xf0] sm:$0xff]
  %v135 = vld [vmem:[%s8 + $0xf8] sm:$0xff]
  %v136 = vld [vmem:[%s8 + $0x100] sm:$0xff]
  %v137 = vld [vmem:[%s8 + $0x108] sm:$0xff]
  %v138 = vld [vmem:[%s8 + $0x110] sm:$0xff]
  %v139 = vld [vmem:[%s8 + $0x118] sm:$0xff]
  %v140 = vld [vmem:[%s8 + $0x120] sm:$0xff]
  %v141 = vld [vmem:[%s8 + $0x128] sm:$0xff]
  %v142 = vld [vmem:[%s8 + $0x130] sm:$0xff]
  %v143 = vld [vmem:[%s8 + $0x138] sm:$0xff]
  %v144 = vld [vmem:[%s8 + $0x140] sm:$0xff]
  %v145 = vld [vmem:[%s8 + $0x148] sm:$0xff]
  %v146 = vld [vmem:[%s8 + $0x150] sm:$0xff]
  %v147 = vld [vmem:[%s8 + $0x158] sm:$0xff]
  %v148 = vld [vmem:[%s8 + $0x160] sm:$0xff]
  %v149 = vld [vmem:[%s8 + $0x168] sm:$0xff]
  %v150 = vld [vmem:[%s8 + $0x170] sm:$0xff]
  %v151 = vld [vmem:[%s8 + $0x178] sm:$0xff]
  %v152 = vld [vmem:[%s8 + $0x180] sm:$0xff]
  %v153 = vld [vmem:[%s8 + $0x188] sm:$0xff]
  %v154 = vld [vmem:[%s8 + $0x190] sm:$0xff]
  %v155 = vld [vmem:[%s8 + $0x198] sm:$0xff]
  %v156 = vld [vmem:[%s8 + $0x1a0] sm:$0xff]
  %v157 = vld [vmem:[%s8 + $0x1a8] sm:$0xff]
  %v158 = vld [vmem:[%s8 + $0x1b0] sm:$0xff]
  %v159 = vld [vmem:[%s8 + $0x1b8] sm:$0xff]
  %v160 = vld [vmem:[%s8 + $0x1c0] sm:$0xff]
  %v161 = vld [vmem:[%s8 + $0x1c8] sm:$0xff]
  %v162 = vld [vmem:[%s8 + $0x1d0] sm:$0xff]
  %v163 = vld [vmem:[%s8 + $0x1d8] sm:$0xff]
  %v164 = vld [vmem:[%s8 + $0x1e0] sm:$0xff]
  %v165 = vld [vmem:[%s8 + $0x1e8] sm:$0xff]
  %v166 = vld [vmem:[%s8 + $0x1f0] sm:$0xff]
  %v167 = vld [vmem:[%s8 + $0x1f8] sm:$0xff]
  %v168 = vld [vmem:[%s8 + $0x200] sm:$0xff]
  %v169 = vld [vmem:[%s8 + $0x208] sm:$0xff]
  %v170 = vld [vmem:[%s8 + $0x210] sm:$0xff]
  %v171 = vld [vmem:[%s8 + $0x218] sm:$0xff]
  %v172 = vld [vmem:[%s8 + $0x220] sm:$0xff]
  %v173 = vld [vmem:[%s8 + $0x228] sm:$0xff]
  %v174 = vld [vmem:[%s8 + $0x230] sm:$0xff]
  %v175 = vld [vmem:[%s8 + $0x238] sm:$0xff]
  %v176 = vld [vmem:[%s8 + $0x240] sm:$0xff]
  %v177 = vld [vmem:[%s8 + $0x248] sm:$0xff]
  %v178 = vld [vmem:[%s8 + $0x250] sm:$0xff]
  %v179 = vld [vmem:[%s8 + $0x258] sm:$0xff]
  %v180 = vld [vmem:[%s8 + $0x260] sm:$0xff]
  %v181 = vld [vmem:[%s8 + $0x268] sm:$0xff]
  %v182 = vld [vmem:[%s8 + $0x270] sm:$0xff]
  %v183 = vld [vmem:[%s8 + $0x278] sm:$0xff]
  %v184 = vld [vmem:[%s8 + $0x280] sm:$0xff]
  %v185 = vld [vmem:[%s8 + $0x288] sm:$0xff]
  %v186 = vld [vmem:[%s8 + $0x290] sm:$0xff]
  %v187 = vld [vmem:[%s8 + $0x298] sm:$0xff]
  %v188 = vld [vmem:[%s8 + $0x2a0] sm:$0xff]
  %v189 = vld [vmem:[%s8 + $0x2a8] sm:$0xff]
  %v190 = vld [vmem:[%s8 + $0x2b0] sm:$0xff]
  %v191 = vld [vmem:[%s8 + $0x2b8] sm:$0xff]
  %v192 = vld [vmem:[%s8 + $0x2c0] sm:$0xff]
  %v193 = vld [vmem:[%s8 + $0x2c8] sm:$0xff]
  %v194 = vld [vmem:[%s8 + $0x2d0] sm:$0xff]
  %v195 = vld [vmem:[%s8 + $0x2d8] sm:$0xff]
  %v196 = vld [vmem:[%s8 + $0x2e0] sm:$0xff]
  %v197 = vld [vmem:[%s8 + $0x2e8] sm:$0xff]
  %v198 = vld [vmem:[%s8 + $0x2f0] sm:$0xff]
  %v199 = vld [vmem:[%s8 + $0x2f8] sm:$0xff]
  %v200 = vld [vmem:[%s8 + $0x300] sm:$0xff]
  %v201 = vld [vmem:[%s8 + $0x308] sm:$0xff]
  %v202 = vld [vmem:[%s8 + $0x310] sm:$0xff]
  %v203 = vld [vmem:[%s8 + $0x318] sm:$0xff]
  %v204 = vld [vmem:[%s8 + $0x320] sm:$0xff]
  %v205 = vld [vmem:[%s8 + $0x328] sm:$0xff]
  %v206 = vld [vmem:[%s8 + $0x330] sm:$0xff]
  %v207 = vld [vmem:[%s8 + $0x338] sm:$0xff]
  %v208 = vld [vmem:[%s8 + $0x340] sm:$0xff]
  %v209 = vld [vmem:[%s8 + $0x348] sm:$0xff]
  %v210 = vld [vmem:[%s8 + $0x350] sm:$0xff]
  %v211 = vld [vmem:[%s8 + $0x358] sm:$0xff]
  %v212 = vld [vmem:[%s8 + $0x360] sm:$0xff]
  %v213 = vld [vmem:[%s8 + $0x368] sm:$0xff]
  %v214 = vld [vmem:[%s8 + $0x370] sm:$0xff]
  %v215 = vld [vmem:[%s8 + $0x378] sm:$0xff]
  %v216 = vld [vmem:[%s8 + $0x380] sm:$0xff]
  %v217 = vld [vmem:[%s8 + $0x388] sm:$0xff]
  %v218 = vld [vmem:[%s8 + $0x390] sm:$0xff]
  %v219 = vld [vmem:[%s8 + $0x398] sm:$0xff]
  %v220 = vld [vmem:[%s8 + $0x3a0] sm:$0xff]
  %v221 = vld [vmem:[%s8 + $0x3a8] sm:$0xff]
  %v222 = vld [vmem:[%s8 + $0x3b0] sm:$0xff]
  %v223 = vld [vmem:[%s8 + $0x3b8] sm:$0xff]
  %v224 = vld [vmem:[%s3] sm:$0xff]
  %v225 = vld [vmem:[%s3 + $0x8] sm:$0xff]
  %v226 = vld [vmem:[%s3 + $0x10] sm:$0xff]
  %v227 = vld [vmem:[%s3 + $0x18] sm:$0xff]
  %v228 = vld [vmem:[%s3 + $0x20] sm:$0xff]
  %v229 = vld [vmem:[%s3 + $0x28] sm:$0xff]
  %v230 = vld [vmem:[%s9] sm:$0xff]
  %v231 = vld [vmem:[%s9 + $0x8] sm:$0xff]
  %v232 = vld [vmem:[%s9 + $0x10] sm:$0xff]
  %v233 = vld [vmem:[%s9 + $0x18] sm:$0xff]
  %v234 = vld [vmem:[%s9 + $0x20] sm:$0xff]
  %v235 = vld [vmem:[%s9 + $0x28] sm:$0xff]
  %v236 = vld [vmem:[%s9 + $0x30] sm:$0xff]
  %v237 = vld [vmem:[%s9 + $0x38] sm:$0xff]
  %v238 = vld [vmem:[%s9 + $0x40] sm:$0xff]
  %v239 = vld [vmem:[%s9 + $0x48] sm:$0xff]
  %v240 = vld [vmem:[%s9 + $0x50] sm:$0xff]
  %v241 = vld [vmem:[%s9 + $0x58] sm:$0xff]
  %v242 = vld [vmem:[%s9 + $0x60] sm:$0xff]
  %v243 = vld [vmem:[%s9 + $0x68] sm:$0xff]
  %v244 = vld [vmem:[%s9 + $0x70] sm:$0xff]
  %v245 = vld [vmem:[%s9 + $0x78] sm:$0xff]
  %v246 = vld [vmem:[%s9 + $0x80] sm:$0xff]
  %v247 = vld [vmem:[%s9 + $0x88] sm:$0xff]
  %v248 = vld [vmem:[%s9 + $0x90] sm:$0xff]
  %v249 = vld [vmem:[%s9 + $0x98] sm:$0xff]
  %v250 = vld [vmem:[%s9 + $0xa0] sm:$0xff]
  %v251 = vld [vmem:[%s9 + $0xa8] sm:$0xff]
  %v252 = vld [vmem:[%s9 + $0xb0] sm:$0xff]
  %v253 = vld [vmem:[%s9 + $0xb8] sm:$0xff]
  %v254 = vld [vmem:[%s9 + $0xc0] sm:$0xff]
  %v255 = vld [vmem:[%s9 + $0xc8] sm:$0xff]
  %v256 = vld [vmem:[%s9 + $0xd0] sm:$0xff]
  %v257 = vld [vmem:[%s9 + $0xd8] sm:$0xff]
  %v258 = vld [vmem:[%s9 + $0xe0] sm:$0xff]
  %v259 = vld [vmem:[%s9 + $0xe8] sm:$0xff]
  %v260 = vld [vmem:[%s9 + $0xf0] sm:$0xff]
  %v261 = vld [vmem:[%s9 + $0xf8] sm:$0xff]
  %v262 = vld [vmem:[%s9 + $0x100] sm:$0xff]
  %v263 = vld [vmem:[%s9 + $0x108] sm:$0xff]
  %v264 = vld [vmem:[%s9 + $0x110] sm:$0xff]
  %v265 = vld [vmem:[%s9 + $0x118] sm:$0xff]
  %v266 = vld [vmem:[%s9 + $0x120] sm:$0xff]
  %v267 = vld [vmem:[%s9 + $0x128] sm:$0xff]
  %v268 = vld [vmem:[%s9 + $0x130] sm:$0xff]
  %v269 = vld [vmem:[%s9 + $0x138] sm:$0xff]
  %v270 = vld [vmem:[%s9 + $0x140] sm:$0xff]
  %v271 = vld [vmem:[%s9 + $0x148] sm:$0xff]
  %v272 = vld [vmem:[%s9 + $0x150] sm:$0xff]
  %v273 = vld [vmem:[%s9 + $0x158] sm:$0xff]
  %v274 = vld [vmem:[%s9 + $0x160] sm:$0xff]
  %v275 = vld [vmem:[%s9 + $0x168] sm:$0xff]
  %v276 = vld [vmem:[%s9 + $0x170] sm:$0xff]
  %v277 = vld [vmem:[%s9 + $0x178] sm:$0xff]
  %v278 = vld [vmem:[%s9 + $0x180] sm:$0xff]
  %v279 = vld [vmem:[%s9 + $0x188] sm:$0xff]
  %v280 = vld [vmem:[%s9 + $0x190] sm:$0xff]
  %v281 = vld [vmem:[%s9 + $0x198] sm:$0xff]
  %v282 = vld [vmem:[%s9 + $0x1a0] sm:$0xff]
  %v283 = vld [vmem:[%s9 + $0x1a8] sm:$0xff]
  %v284 = vld [vmem:[%s9 + $0x1b0] sm:$0xff]
  %v285 = vld [vmem:[%s9 + $0x1b8] sm:$0xff]
  %v286 = vld [vmem:[%s9 + $0x1c0] sm:$0xff]
  %v287 = vld [vmem:[%s9 + $0x1c8] sm:$0xff]
  %v288 = vld [vmem:[%s9 + $0x1d0] sm:$0xff]
  %v289 = vld [vmem:[%s9 + $0x1d8] sm:$0xff]
  %v290 = vld [vmem:[%s9 + $0x1e0] sm:$0xff]
  %v291 = vld [vmem:[%s9 + $0x1e8] sm:$0xff]
  %v292 = vld [vmem:[%s9 + $0x1f0] sm:$0xff]
  %v293 = vld [vmem:[%s9 + $0x1f8] sm:$0xff]
  %v294 = vld [vmem:[%s9 + $0x200] sm:$0xff]
  %v295 = vld [vmem:[%s9 + $0x208] sm:$0xff]
  %v296 = vld [vmem:[%s9 + $0x210] sm:$0xff]
  %v297 = vld [vmem:[%s9 + $0x218] sm:$0xff]
  %v298 = vld [vmem:[%s9 + $0x220] sm:$0xff]
  %v299 = vld [vmem:[%s9 + $0x228] sm:$0xff]
  %v300 = vld [vmem:[%s9 + $0x230] sm:$0xff]
  %v301 = vld [vmem:[%s9 + $0x238] sm:$0xff]
  %v302 = vld [vmem:[%s9 + $0x240] sm:$0xff]
  %v303 = vld [vmem:[%s9 + $0x248] sm:$0xff]
  %v304 = vld [vmem:[%s9 + $0x250] sm:$0xff]
  %v305 = vld [vmem:[%s9 + $0x258] sm:$0xff]
  %v306 = vld [vmem:[%s9 + $0x260] sm:$0xff]
  %v307 = vld [vmem:[%s9 + $0x268] sm:$0xff]
  %v308 = vld [vmem:[%s9 + $0x270] sm:$0xff]
  %v309 = vld [vmem:[%s9 + $0x278] sm:$0xff]
  %v310 = vld [vmem:[%s9 + $0x280] sm:$0xff]
  %v311 = vld [vmem:[%s9 + $0x288] sm:$0xff]
  %v312 = vld [vmem:[%s9 + $0x290] sm:$0xff]
  %v313 = vld [vmem:[%s9 + $0x298] sm:$0xff]
  %v314 = vld [vmem:[%s9 + $0x2a0] sm:$0xff]
  %v315 = vld [vmem:[%s9 + $0x2a8] sm:$0xff]
  %v316 = vld [vmem:[%s9 + $0x2b0] sm:$0xff]
  %v317 = vld [vmem:[%s9 + $0x2b8] sm:$0xff]
  %v318 = vld [vmem:[%s9 + $0x2c0] sm:$0xff]
  %v319 = vld [vmem:[%s9 + $0x2c8] sm:$0xff]
  %v320 = vld [vmem:[%s9 + $0x2d0] sm:$0xff]
  %v321 = vld [vmem:[%s9 + $0x2d8] sm:$0xff]
  %v322 = vld [vmem:[%s9 + $0x2e0] sm:$0xff]
  %v323 = vld [vmem:[%s9 + $0x2e8] sm:$0xff]
  %v324 = vld [vmem:[%s9 + $0x2f0] sm:$0xff]
  %v325 = vld [vmem:[%s9 + $0x2f8] sm:$0xff]
  %v326 = vld [vmem:[%s9 + $0x300] sm:$0xff]
  %v327 = vld [vmem:[%s9 + $0x308] sm:$0xff]
  %v328 = vld [vmem:[%s9 + $0x310] sm:$0xff]
  %v329 = vld [vmem:[%s9 + $0x318] sm:$0xff]
  %v330 = vld [vmem:[%s9 + $0x320] sm:$0xff]
  %v331 = vld [vmem:[%s9 + $0x328] sm:$0xff]
  %v332 = vld [vmem:[%s9 + $0x330] sm:$0xff]
  %v333 = vld [vmem:[%s9 + $0x338] sm:$0xff]
  %v334 = vld [vmem:[%s9 + $0x340] sm:$0xff]
  %v335 = vld [vmem:[%s9 + $0x348] sm:$0xff]
  %v336 = vld [vmem:[%s9 + $0x350] sm:$0xff]
  %v337 = vld [vmem:[%s9 + $0x358] sm:$0xff]
  %v338 = vld [vmem:[%s9 + $0x360] sm:$0xff]
  %v339 = vld [vmem:[%s9 + $0x368] sm:$0xff]
  %v340 = vld [vmem:[%s9 + $0x370] sm:$0xff]
  %v341 = vld [vmem:[%s9 + $0x378] sm:$0xff]
  %v342 = vld [vmem:[%s9 + $0x380] sm:$0xff]
  %v343 = vld [vmem:[%s9 + $0x388] sm:$0xff]
  %v344 = vld [vmem:[%s9 + $0x390] sm:$0xff]
  %v345 = vld [vmem:[%s9 + $0x398] sm:$0xff]
  %v346 = vld [vmem:[%s9 + $0x3a0] sm:$0xff]
  %v347 = vld [vmem:[%s9 + $0x3a8] sm:$0xff]
  %v348 = vld [vmem:[%s9 + $0x3b0] sm:$0xff]
  %v349 = vld [vmem:[%s9 + $0x3b8] sm:$0xff]
  %vm350 = vcmask 523264
  %v352 = vsel %vm350, %v226, 0
  %v355 = vsel %vm350, %v229, 0
  %357 = vmatprep.subr.mxu0 %v231
  %358 = vmatpush1.msra.mxu0 %v230
  %359 = vmatprep.subr.mxu0 %v234
  %360 = vmatpush1.msra.mxu0 %v233
  %361 = vmatprep.subr.mxu0 %v237
  %362 = vmatpush1.msra.mxu0 %v236
  %363 = vmatprep.subr.mxu0 %v240
  %364 = vmatpush1.msra.mxu0 %v239
  %365 = vmatprep.subr.mxu0 %v243
  %366 = vmatpush1.msra.mxu0 %v242
  %367 = vmatprep.subr.mxu0 %v246
  %368 = vmatpush1.msra.mxu0 %v245
  %369 = vmatprep.subr.mxu0 %v249
  %370 = vmatpush1.msra.mxu0 %v248
  %371 = vmatprep.subr.mxu0 %v252
  %372 = vmatpush1.msra.mxu0 %v251
  %373 = vmatprep.subr.mxu0 %v255
  %374 = vmatpush1.msra.mxu0 %v254
  %375 = vmatprep.subr.mxu0 %v258
  %376 = vmatpush1.msra.mxu0 %v257
  %377 = vmatprep.subr.mxu0 %v261
  %378 = vmatpush1.msra.mxu0 %v260
  %379 = vmatprep.subr.mxu0 %v264
  %380 = vmatpush1.msra.mxu0 %v263
  %381 = vmatprep.subr.mxu0 %v267
  %382 = vmatpush1.msra.mxu0 %v266
  %383 = vmatprep.subr.mxu0 %v270
  %384 = vmatpush1.msra.mxu0 %v269
  %385 = vmatprep.subr.mxu0 %v273
  %386 = vmatpush1.msra.mxu0 %v272
  %387 = vmatprep.subr.mxu0 %v276
  %388 = vmatpush1.msra.mxu0 %v275
  %389 = vmatprep.subr.mxu0 %v279
  %390 = vmatpush1.msra.mxu0 %v278
  %391 = vmatprep.subr.mxu0 %v282
  %392 = vmatpush1.msra.mxu0 %v281
  %393 = vmatprep.subr.mxu0 %v285
  %394 = vmatpush1.msra.mxu0 %v284
  %395 = vmatprep.subr.mxu0 %v288
  %396 = vmatpush1.msra.mxu0 %v287
  %397 = vmatprep.subr.mxu0 %v291
  %398 = vmatpush1.msra.mxu0 %v290
  %399 = vmatprep.subr.mxu0 %v294
  %400 = vmatpush1.msra.mxu0 %v293
  %401 = vmatprep.subr.mxu0 %v297
  %402 = vmatpush1.msra.mxu0 %v296
  %403 = vmatprep.subr.mxu0 %v300
  %404 = vmatpush1.msra.mxu0 %v299
  %405 = vmatprep.subr.mxu0 %v303
  %406 = vmatpush1.msra.mxu0 %v302
  %407 = vmatprep.subr.mxu0 %v306
  %408 = vmatpush1.msra.mxu0 %v305
  %409 = vmatprep.subr.mxu0 %v309
  %410 = vmatpush1.msra.mxu0 %v308
  %411 = vmatprep.subr.mxu0 %v312
  %412 = vmatpush1.msra.mxu0 %v311
  %413 = vmatprep.subr.mxu0 %v315
  %414 = vmatpush1.msra.mxu0 %v314
  %415 = vmatprep.subr.mxu0 %v318
  %416 = vmatpush1.msra.mxu0 %v317
  %417 = vmatprep.subr.mxu0 %v321
  %418 = vmatpush1.msra.mxu0 %v320
  %419 = vmatprep.subr.mxu0 %v324
  %420 = vmatpush1.msra.mxu0 %v323
  %421 = vmatprep.mubr.f32.mxu0 %v225
  %422 = vmatmul.mubr.f32.gmra.mrb[0].mxu0 %v224
  %v423 = vpop.f32.mrb[0].mxu0
  %v424 = vadd.f32 0.0, %v423
  %v425 = vpop.f32.mrb[0].mxu0
  %v426 = vadd.f32 0.0, %v425
  %427 = vmatprep.mubr.f32.mxu0 %v228
  %428 = vmatmul.mubr.f32.gmra.mrb[0].mxu0 %v227
  %v429 = vpop.f32.mrb[0].mxu0
  %v430 = vadd.f32 0.0, %v429
  %v431 = vpop.f32.mrb[0].mxu0
  %v432 = vadd.f32 0.0, %v431
  %433 = vdwg.mxu0
  %434 = vmatprep.subr.mxu0 %v327
  %435 = vmatpush1.msra.mxu0 %v326
  %436 = vmatprep.subr.mxu0 %v330
  %437 = vmatpush1.msra.mxu0 %v329
  %438 = vmatprep.subr.mxu0 %v333
  %439 = vmatpush1.msra.mxu0 %v332
  %440 = vmatprep.subr.mxu0 %v336
  %441 = vmatpush1.msra.mxu0 %v335
  %442 = vmatprep.subr.mxu0 %v339
  %443 = vmatpush1.msra.mxu0 %v338
  %444 = vmatprep.subr.mxu0 %v342
  %445 = vmatpush1.msra.mxu0 %v341
  %446 = vmatprep.subr.mxu0 %v345
  %447 = vmatpush1.msra.mxu0 %v344
  %448 = vmatprep.subr.mxu0 %v348
  %449 = vmatpush1.msra.mxu0 %v347
  %450 = vmatprep.subr.mxu0 0.0
  %451 = vmatpush1.msra.mxu0 0.0
  %452 = vmatprep.subr.mxu0 0.0
  %453 = vmatpush1.msra.mxu0 0.0
  %454 = vmatprep.subr.mxu0 0.0
  %455 = vmatpush1.msra.mxu0 0.0
  %456 = vmatprep.subr.mxu0 0.0
  %457 = vmatpush1.msra.mxu0 0.0
  %458 = vmatprep.subr.mxu0 0.0
  %459 = vmatpush1.msra.mxu0 0.0
  %460 = vmatprep.subr.mxu0 0.0
  %461 = vmatpush1.msra.mxu0 0.0
  %462 = vmatprep.subr.mxu0 0.0
  %463 = vmatpush1.msra.mxu0 0.0
  %464 = vmatprep.subr.mxu0 0.0
  %465 = vmatpush1.msra.mxu0 0.0
  %466 = vmatprep.subr.mxu0 0.0
  %467 = vmatpush1.msra.mxu0 0.0
  %468 = vmatprep.subr.mxu0 0.0
  %469 = vmatpush1.msra.mxu0 0.0
  %470 = vmatprep.subr.mxu0 0.0
  %471 = vmatpush1.msra.mxu0 0.0
  %472 = vmatprep.subr.mxu0 0.0
  %473 = vmatpush1.msra.mxu0 0.0
  %474 = vmatprep.subr.mxu0 0.0
  %475 = vmatpush1.msra.mxu0 0.0
  %476 = vmatprep.subr.mxu0 0.0
  %477 = vmatpush1.msra.mxu0 0.0
  %478 = vmatprep.subr.mxu0 0.0
  %479 = vmatpush1.msra.mxu0 0.0
  %480 = vmatprep.subr.mxu0 0.0
  %481 = vmatpush1.msra.mxu0 0.0
  %482 = vmatprep.subr.mxu0 0.0
  %483 = vmatpush1.msra.mxu0 0.0
  %484 = vmatprep.subr.mxu0 0.0
  %485 = vmatpush1.msra.mxu0 0.0
  %486 = vmatprep.subr.mxu0 0.0
  %487 = vmatpush1.msra.mxu0 0.0
  %488 = vmatprep.subr.mxu0 0.0
  %489 = vmatpush1.msra.mxu0 0.0
  %490 = vmatprep.subr.mxu0 0.0
  %491 = vmatpush1.msra.mxu0 0.0
  %492 = vmatprep.subr.mxu0 0.0
  %493 = vmatpush1.msra.mxu0 0.0
  %494 = vmatprep.subr.mxu0 0.0
  %495 = vmatpush1.msra.mxu0 0.0
  %496 = vmatprep.subr.mxu0 0.0
  %497 = vmatpush1.msra.mxu0 0.0
  %498 = vmatprep.mubr.f32.mxu0 0.0
  %499 = vmatmul.mubr.f32.gmra.mrb[0].mxu0 %v352
  %v500 = vpop.f32.mrb[0].mxu0
  %v501 = vadd.f32 %v424, %v500
  %v502 = vpop.f32.mrb[0].mxu0
  %v503 = vadd.f32 %v426, %v502
  %504 = vmatprep.mubr.f32.mxu0 0.0
  %505 = vmatmul.mubr.f32.gmra.mrb[0].mxu0 %v355
  %v506 = vpop.f32.mrb[0].mxu0
  %v507 = vadd.f32 %v430, %v506
  %v508 = vpop.f32.mrb[0].mxu0
  %v509 = vadd.f32 %v432, %v508
  %510 = vdwg.mxu0
  %511 = vmatprep.subr.mxu0 0.0
  %512 = vmatpush1.msra.mxu0 %v232
  %513 = vmatprep.subr.mxu0 0.0
  %514 = vmatpush1.msra.mxu0 %v235
  %515 = vmatprep.subr.mxu0 0.0
  %516 = vmatpush1.msra.mxu0 %v238
  %517 = vmatprep.subr.mxu0 0.0
  %518 = vmatpush1.msra.mxu0 %v241
  %519 = vmatprep.subr.mxu0 0.0
  %520 = vmatpush1.msra.mxu0 %v244
  %521 = vmatprep.subr.mxu0 0.0
  %522 = vmatpush1.msra.mxu0 %v247
  %523 = vmatprep.subr.mxu0 0.0
  %524 = vmatpush1.msra.mxu0 %v250
  %525 = vmatprep.subr.mxu0 0.0
  %526 = vmatpush1.msra.mxu0 %v253
  %527 = vmatprep.subr.mxu0 0.0
  %528 = vmatpush1.msra.mxu0 %v256
  %529 = vmatprep.subr.mxu0 0.0
  %530 = vmatpush1.msra.mxu0 %v259
  %531 = vmatprep.subr.mxu0 0.0
  %532 = vmatpush1.msra.mxu0 %v262
  %533 = vmatprep.subr.mxu0 0.0
  %534 = vmatpush1.msra.mxu0 %v265
  %535 = vmatprep.subr.mxu0 0.0
  %536 = vmatpush1.msra.mxu0 %v268
  %537 = vmatprep.subr.mxu0 0.0
  %538 = vmatpush1.msra.mxu0 %v271
  %539 = vmatprep.subr.mxu0 0.0
  %540 = vmatpush1.msra.mxu0 %v274
  %541 = vmatprep.subr.mxu0 0.0
  %542 = vmatpush1.msra.mxu0 %v277
  %543 = vmatprep.subr.mxu0 0.0
  %544 = vmatpush1.msra.mxu0 %v280
  %545 = vmatprep.subr.mxu0 0.0
  %546 = vmatpush1.msra.mxu0 %v283
  %547 = vmatprep.subr.mxu0 0.0
  %548 = vmatpush1.msra.mxu0 %v286
  %549 = vmatprep.subr.mxu0 0.0
  %550 = vmatpush1.msra.mxu0 %v289
  %551 = vmatprep.subr.mxu0 0.0
  %552 = vmatpush1.msra.mxu0 %v292
  %553 = vmatprep.subr.mxu0 0.0
  %554 = vmatpush1.msra.mxu0 %v295
  %555 = vmatprep.subr.mxu0 0.0
  %556 = vmatpush1.msra.mxu0 %v298
  %557 = vmatprep.subr.mxu0 0.0
  %558 = vmatpush1.msra.mxu0 %v301
  %559 = vmatprep.subr.mxu0 0.0
  %560 = vmatpush1.msra.mxu0 %v304
  %561 = vmatprep.subr.mxu0 0.0
  %562 = vmatpush1.msra.mxu0 %v307
  %563 = vmatprep.subr.mxu0 0.0
  %564 = vmatpush1.msra.mxu0 %v310
  %565 = vmatprep.subr.mxu0 0.0
  %566 = vmatpush1.msra.mxu0 %v313
  %567 = vmatprep.subr.mxu0 0.0
  %568 = vmatpush1.msra.mxu0 %v316
  %569 = vmatprep.subr.mxu0 0.0
  %570 = vmatpush1.msra.mxu0 %v319
  %571 = vmatprep.subr.mxu0 0.0
  %572 = vmatpush1.msra.mxu0 %v322
  %573 = vmatprep.subr.mxu0 0.0
  %574 = vmatpush1.msra.mxu0 %v325
  %575 = vmatprep.mubr.f32.mxu0 %v225
  %576 = vmatmul.mubr.f32.gmra.mrb[0].mxu0 %v224
  %v577 = vpop.f32.mrb[0].mxu0
  %v578 = vadd.f32 0.0, %v577
  %v579 = vpop.f32.mrb[0].mxu0
  %580 = vmatprep.mubr.f32.mxu0 %v228
  %581 = vmatmul.mubr.f32.gmra.mrb[0].mxu0 %v227
  %v582 = vpop.f32.mrb[0].mxu0
  %v583 = vadd.f32 0.0, %v582
  %v584 = vpop.f32.mrb[0].mxu0
  %585 = vdwg.mxu0
  %586 = vmatprep.subr.mxu0 0.0
  %587 = vmatpush1.msra.mxu0 %v328
  %588 = vmatprep.subr.mxu0 0.0
  %589 = vmatpush1.msra.mxu0 %v331
  %590 = vmatprep.subr.mxu0 0.0
  %591 = vmatpush1.msra.mxu0 %v334
  %592 = vmatprep.subr.mxu0 0.0
  %593 = vmatpush1.msra.mxu0 %v337
  %594 = vmatprep.subr.mxu0 0.0
  %595 = vmatpush1.msra.mxu0 %v340
  %596 = vmatprep.subr.mxu0 0.0
  %597 = vmatpush1.msra.mxu0 %v343
  %598 = vmatprep.subr.mxu0 0.0
  %599 = vmatpush1.msra.mxu0 %v346
  %600 = vmatprep.subr.mxu0 0.0
  %601 = vmatpush1.msra.mxu0 %v349
  %602 = vmatprep.subr.mxu0 0.0
  %603 = vmatpush1.msra.mxu0 0.0
  %604 = vmatprep.subr.mxu0 0.0
  %605 = vmatpush1.msra.mxu0 0.0
  %606 = vmatprep.subr.mxu0 0.0
  %607 = vmatpush1.msra.mxu0 0.0
  %608 = vmatprep.subr.mxu0 0.0
  %609 = vmatpush1.msra.mxu0 0.0
  %610 = vmatprep.subr.mxu0 0.0
  %611 = vmatpush1.msra.mxu0 0.0
  %612 = vmatprep.subr.mxu0 0.0
  %613 = vmatpush1.msra.mxu0 0.0
  %614 = vmatprep.subr.mxu0 0.0
  %615 = vmatpush1.msra.mxu0 0.0
  %616 = vmatprep.subr.mxu0 0.0
  %617 = vmatpush1.msra.mxu0 0.0
  %618 = vmatprep.subr.mxu0 0.0
  %619 = vmatpush1.msra.mxu0 0.0
  %620 = vmatprep.subr.mxu0 0.0
  %621 = vmatpush1.msra.mxu0 0.0
  %622 = vmatprep.subr.mxu0 0.0
  %623 = vmatpush1.msra.mxu0 0.0
  %624 = vmatprep.subr.mxu0 0.0
  %625 = vmatpush1.msra.mxu0 0.0
  %626 = vmatprep.subr.mxu0 0.0
  %627 = vmatpush1.msra.mxu0 0.0
  %628 = vmatprep.subr.mxu0 0.0
  %629 = vmatpush1.msra.mxu0 0.0
  %630 = vmatprep.subr.mxu0 0.0
  %631 = vmatpush1.msra.mxu0 0.0
  %632 = vmatprep.subr.mxu0 0.0
  %633 = vmatpush1.msra.mxu0 0.0
  %634 = vmatprep.subr.mxu0 0.0
  %635 = vmatpush1.msra.mxu0 0.0
  %636 = vmatprep.subr.mxu0 0.0
  %637 = vmatpush1.msra.mxu0 0.0
  %638 = vmatprep.subr.mxu0 0.0
  %639 = vmatpush1.msra.mxu0 0.0
  %640 = vmatprep.subr.mxu0 0.0
  %641 = vmatpush1.msra.mxu0 0.0
  %642 = vmatprep.subr.mxu0 0.0
  %643 = vmatpush1.msra.mxu0 0.0
  %644 = vmatprep.subr.mxu0 0.0
  %645 = vmatpush1.msra.mxu0 0.0
  %646 = vmatprep.subr.mxu0 0.0
  %647 = vmatpush1.msra.mxu0 0.0
  %648 = vmatprep.subr.mxu0 0.0
  %649 = vmatpush1.msra.mxu0 0.0
  %650 = vmatprep.mubr.f32.mxu0 0.0
  %651 = vmatmul.mubr.f32.gmra.mrb[0].mxu0 %v352
  %v652 = vpop.f32.mrb[0].mxu0
  %v653 = vadd.f32 %v578, %v652
  %v654 = vpop.f32.mrb[0].mxu0
  %655 = vmatprep.mubr.f32.mxu0 0.0
  %656 = vmatmul.mubr.f32.gmra.mrb[0].mxu0 %v355
  %v657 = vpop.f32.mrb[0].mxu0
  %v658 = vadd.f32 %v583, %v657
  %v659 = vpop.f32.mrb[0].mxu0
  %660 = vdwg.mxu0
  %v662 = vsel %vm350, %v100, 0
  %v665 = vsel %vm350, %v103, 0
  %667 = vmatprep.subr.mxu0 %v105
  %668 = vmatpush1.msra.mxu0 %v104
  %669 = vmatprep.subr.mxu0 %v108
  %670 = vmatpush1.msra.mxu0 %v107
  %671 = vmatprep.subr.mxu0 %v111
  %672 = vmatpush1.msra.mxu0 %v110
  %673 = vmatprep.subr.mxu0 %v114
  %674 = vmatpush1.msra.mxu0 %v113
  %675 = vmatprep.subr.mxu0 %v117
  %676 = vmatpush1.msra.mxu0 %v116
  %677 = vmatprep.subr.mxu0 %v120
  %678 = vmatpush1.msra.mxu0 %v119
  %679 = vmatprep.subr.mxu0 %v123
  %680 = vmatpush1.msra.mxu0 %v122
  %681 = vmatprep.subr.mxu0 %v126
  %682 = vmatpush1.msra.mxu0 %v125
  %683 = vmatprep.subr.mxu0 %v129
  %684 = vmatpush1.msra.mxu0 %v128
  %685 = vmatprep.subr.mxu0 %v132
  %686 = vmatpush1.msra.mxu0 %v131
  %687 = vmatprep.subr.mxu0 %v135
  %688 = vmatpush1.msra.mxu0 %v134
  %689 = vmatprep.subr.mxu0 %v138
  %690 = vmatpush1.msra.mxu0 %v137
  %691 = vmatprep.subr.mxu0 %v141
  %692 = vmatpush1.msra.mxu0 %v140
  %693 = vmatprep.subr.mxu0 %v144
  %694 = vmatpush1.msra.mxu0 %v143
  %695 = vmatprep.subr.mxu0 %v147
  %696 = vmatpush1.msra.mxu0 %v146
  %697 = vmatprep.subr.mxu0 %v150
  %698 = vmatpush1.msra.mxu0 %v149
  %699 = vmatprep.subr.mxu0 %v153
  %700 = vmatpush1.msra.mxu0 %v152
  %701 = vmatprep.subr.mxu0 %v156
  %702 = vmatpush1.msra.mxu0 %v155
  %703 = vmatprep.subr.mxu0 %v159
  %704 = vmatpush1.msra.mxu0 %v158
  %705 = vmatprep.subr.mxu0 %v162
  %706 = vmatpush1.msra.mxu0 %v161
  %707 = vmatprep.subr.mxu0 %v165
  %708 = vmatpush1.msra.mxu0 %v164
  %709 = vmatprep.subr.mxu0 %v168
  %710 = vmatpush1.msra.mxu0 %v167
  %711 = vmatprep.subr.mxu0 %v171
  %712 = vmatpush1.msra.mxu0 %v170
  %713 = vmatprep.subr.mxu0 %v174
  %714 = vmatpush1.msra.mxu0 %v173
  %715 = vmatprep.subr.mxu0 %v177
  %716 = vmatpush1.msra.mxu0 %v176
  %717 = vmatprep.subr.mxu0 %v180
  %718 = vmatpush1.msra.mxu0 %v179
  %719 = vmatprep.subr.mxu0 %v183
  %720 = vmatpush1.msra.mxu0 %v182
  %721 = vmatprep.subr.mxu0 %v186
  %722 = vmatpush1.msra.mxu0 %v185
  %723 = vmatprep.subr.mxu0 %v189
  %724 = vmatpush1.msra.mxu0 %v188
  %725 = vmatprep.subr.mxu0 %v192
  %726 = vmatpush1.msra.mxu0 %v191
  %727 = vmatprep.subr.mxu0 %v195
  %728 = vmatpush1.msra.mxu0 %v194
  %729 = vmatprep.subr.mxu0 %v198
  %730 = vmatpush1.msra.mxu0 %v197
  %731 = vmatprep.mubr.f32.mxu0 %v99
  %732 = vmatmul.mubr.f32.gmra.mrb[0].mxu0 %v98
  %v733 = vpop.f32.mrb[0].mxu0
  %v734 = vadd.f32 %v501, %v733
  %v735 = vpop.f32.mrb[0].mxu0
  %v736 = vadd.f32 %v503, %v735
  %737 = vmatprep.mubr.f32.mxu0 %v102
  %738 = vmatmul.mubr.f32.gmra.mrb[0].mxu0 %v101
  %v739 = vpop.f32.mrb[0].mxu0
  %v740 = vadd.f32 %v507, %v739
  %v741 = vpop.f32.mrb[0].mxu0
  %v742 = vadd.f32 %v509, %v741
  %743 = vdwg.mxu0
  %744 = vmatprep.subr.mxu0 %v201
  %745 = vmatpush1.msra.mxu0 %v200
  %746 = vmatprep.subr.mxu0 %v204
  %747 = vmatpush1.msra.mxu0 %v203
  %748 = vmatprep.subr.mxu0 %v207
  %749 = vmatpush1.msra.mxu0 %v206
  %750 = vmatprep.subr.mxu0 %v210
  %751 = vmatpush1.msra.mxu0 %v209
  %752 = vmatprep.subr.mxu0 %v213
  %753 = vmatpush1.msra.mxu0 %v212
  %754 = vmatprep.subr.mxu0 %v216
  %755 = vmatpush1.msra.mxu0 %v215
  %756 = vmatprep.subr.mxu0 %v219
  %757 = vmatpush1.msra.mxu0 %v218
  %758 = vmatprep.subr.mxu0 %v222
  %759 = vmatpush1.msra.mxu0 %v221
  %760 = vmatprep.subr.mxu0 0.0
  %761 = vmatpush1.msra.mxu0 0.0
  %762 = vmatprep.subr.mxu0 0.0
  %763 = vmatpush1.msra.mxu0 0.0
  %764 = vmatprep.subr.mxu0 0.0
  %765 = vmatpush1.msra.mxu0 0.0
  %766 = vmatprep.subr.mxu0 0.0
  %767 = vmatpush1.msra.mxu0 0.0
  %768 = vmatprep.subr.mxu0 0.0
  %769 = vmatpush1.msra.mxu0 0.0
  %770 = vmatprep.subr.mxu0 0.0
  %771 = vmatpush1.msra.mxu0 0.0
  %772 = vmatprep.subr.mxu0 0.0
  %773 = vmatpush1.msra.mxu0 0.0
  %774 = vmatprep.subr.mxu0 0.0
  %775 = vmatpush1.msra.mxu0 0.0
  %776 = vmatprep.subr.mxu0 0.0
  %777 = vmatpush1.msra.mxu0 0.0
  %778 = vmatprep.subr.mxu0 0.0
  %779 = vmatpush1.msra.mxu0 0.0
  %780 = vmatprep.subr.mxu0 0.0
  %781 = vmatpush1.msra.mxu0 0.0
  %782 = vmatprep.subr.mxu0 0.0
  %783 = vmatpush1.msra.mxu0 0.0
  %784 = vmatprep.subr.mxu0 0.0
  %785 = vmatpush1.msra.mxu0 0.0
  %786 = vmatprep.subr.mxu0 0.0
  %787 = vmatpush1.msra.mxu0 0.0
  %788 = vmatprep.subr.mxu0 0.0
  %789 = vmatpush1.msra.mxu0 0.0
  %790 = vmatprep.subr.mxu0 0.0
  %791 = vmatpush1.msra.mxu0 0.0
  %792 = vmatprep.subr.mxu0 0.0
  %793 = vmatpush1.msra.mxu0 0.0
  %794 = vmatprep.subr.mxu0 0.0
  %795 = vmatpush1.msra.mxu0 0.0
  %796 = vmatprep.subr.mxu0 0.0
  %797 = vmatpush1.msra.mxu0 0.0
  %798 = vmatprep.subr.mxu0 0.0
  %799 = vmatpush1.msra.mxu0 0.0
  %800 = vmatprep.subr.mxu0 0.0
  %801 = vmatpush1.msra.mxu0 0.0
  %802 = vmatprep.subr.mxu0 0.0
  %803 = vmatpush1.msra.mxu0 0.0
  %804 = vmatprep.subr.mxu0 0.0
  %805 = vmatpush1.msra.mxu0 0.0
  %806 = vmatprep.subr.mxu0 0.0
  %807 = vmatpush1.msra.mxu0 0.0
  %808 = vmatprep.mubr.f32.mxu0 0.0
  %809 = vmatmul.mubr.f32.gmra.mrb[0].mxu0 %v662
  %v810 = vpop.f32.mrb[0].mxu0
  %v811 = vadd.f32 %v734, %v810
  %v812 = vpop.f32.mrb[0].mxu0
  %v813 = vadd.f32 %v736, %v812
  %814 = vmatprep.mubr.f32.mxu0 0.0
  %815 = vmatmul.mubr.f32.gmra.mrb[0].mxu0 %v665
  %v816 = vpop.f32.mrb[0].mxu0
  %v817 = vadd.f32 %v740, %v816
  %v818 = vpop.f32.mrb[0].mxu0
  %v819 = vadd.f32 %v742, %v818
  %820 = vdwg.mxu0
  %821 = vmatprep.subr.mxu0 0.0
  %822 = vmatpush1.msra.mxu0 %v106
  %823 = vmatprep.subr.mxu0 0.0
  %824 = vmatpush1.msra.mxu0 %v109
  %825 = vmatprep.subr.mxu0 0.0
  %826 = vmatpush1.msra.mxu0 %v112
  %827 = vmatprep.subr.mxu0 0.0
  %828 = vmatpush1.msra.mxu0 %v115
  %829 = vmatprep.subr.mxu0 0.0
  %830 = vmatpush1.msra.mxu0 %v118
  %831 = vmatprep.subr.mxu0 0.0
  %832 = vmatpush1.msra.mxu0 %v121
  %833 = vmatprep.subr.mxu0 0.0
  %834 = vmatpush1.msra.mxu0 %v124
  %835 = vmatprep.subr.mxu0 0.0
  %836 = vmatpush1.msra.mxu0 %v127
  %837 = vmatprep.subr.mxu0 0.0
  %838 = vmatpush1.msra.mxu0 %v130
  %839 = vmatprep.subr.mxu0 0.0
  %840 = vmatpush1.msra.mxu0 %v133
  %841 = vmatprep.subr.mxu0 0.0
  %842 = vmatpush1.msra.mxu0 %v136
  %843 = vmatprep.subr.mxu0 0.0
  %844 = vmatpush1.msra.mxu0 %v139
  %845 = vmatprep.subr.mxu0 0.0
  %846 = vmatpush1.msra.mxu0 %v142
  %847 = vmatprep.subr.mxu0 0.0
  %848 = vmatpush1.msra.mxu0 %v145
  %849 = vmatprep.subr.mxu0 0.0
  %850 = vmatpush1.msra.mxu0 %v148
  %851 = vmatprep.subr.mxu0 0.0
  %852 = vmatpush1.msra.mxu0 %v151
  %853 = vmatprep.subr.mxu0 0.0
  %854 = vmatpush1.msra.mxu0 %v154
  %855 = vmatprep.subr.mxu0 0.0
  %856 = vmatpush1.msra.mxu0 %v157
  %857 = vmatprep.subr.mxu0 0.0
  %858 = vmatpush1.msra.mxu0 %v160
  %859 = vmatprep.subr.mxu0 0.0
  %860 = vmatpush1.msra.mxu0 %v163
  %861 = vmatprep.subr.mxu0 0.0
  %862 = vmatpush1.msra.mxu0 %v166
  %863 = vmatprep.subr.mxu0 0.0
  %864 = vmatpush1.msra.mxu0 %v169
  %865 = vmatprep.subr.mxu0 0.0
  %866 = vmatpush1.msra.mxu0 %v172
  %867 = vmatprep.subr.mxu0 0.0
  %868 = vmatpush1.msra.mxu0 %v175
  %869 = vmatprep.subr.mxu0 0.0
  %870 = vmatpush1.msra.mxu0 %v178
  %871 = vmatprep.subr.mxu0 0.0
  %872 = vmatpush1.msra.mxu0 %v181
  %873 = vmatprep.subr.mxu0 0.0
  %874 = vmatpush1.msra.mxu0 %v184
  %875 = vmatprep.subr.mxu0 0.0
  %876 = vmatpush1.msra.mxu0 %v187
  %877 = vmatprep.subr.mxu0 0.0
  %878 = vmatpush1.msra.mxu0 %v190
  %879 = vmatprep.subr.mxu0 0.0
  %880 = vmatpush1.msra.mxu0 %v193
  %881 = vmatprep.subr.mxu0 0.0
  %882 = vmatpush1.msra.mxu0 %v196
  %883 = vmatprep.subr.mxu0 0.0
  %884 = vmatpush1.msra.mxu0 %v199
  %885 = vmatprep.mubr.f32.mxu0 %v99
  %886 = vmatmul.mubr.f32.gmra.mrb[0].mxu0 %v98
  %v887 = vpop.f32.mrb[0].mxu0
  %v888 = vadd.f32 %v653, %v887
  %v889 = vpop.f32.mrb[0].mxu0
  %890 = vmatprep.mubr.f32.mxu0 %v102
  %891 = vmatmul.mubr.f32.gmra.mrb[0].mxu0 %v101
  %v892 = vpop.f32.mrb[0].mxu0
  %v893 = vadd.f32 %v658, %v892
  %v894 = vpop.f32.mrb[0].mxu0
  %895 = vdwg.mxu0
  %896 = vmatprep.subr.mxu0 0.0
  %897 = vmatpush1.msra.mxu0 %v202
  %898 = vmatprep.subr.mxu0 0.0
  %899 = vmatpush1.msra.mxu0 %v205
  %900 = vmatprep.subr.mxu0 0.0
  %901 = vmatpush1.msra.mxu0 %v208
  %902 = vmatprep.subr.mxu0 0.0
  %903 = vmatpush1.msra.mxu0 %v211
  %904 = vmatprep.subr.mxu0 0.0
  %905 = vmatpush1.msra.mxu0 %v214
  %906 = vmatprep.subr.mxu0 0.0
  %907 = vmatpush1.msra.mxu0 %v217
  %908 = vmatprep.subr.mxu0 0.0
  %909 = vmatpush1.msra.mxu0 %v220
  %910 = vmatprep.subr.mxu0 0.0
  %911 = vmatpush1.msra.mxu0 %v223
  %912 = vmatprep.subr.mxu0 0.0
  %913 = vmatpush1.msra.mxu0 0.0
  %914 = vmatprep.subr.mxu0 0.0
  %915 = vmatpush1.msra.mxu0 0.0
  %916 = vmatprep.subr.mxu0 0.0
  %917 = vmatpush1.msra.mxu0 0.0
  %918 = vmatprep.subr.mxu0 0.0
  %919 = vmatpush1.msra.mxu0 0.0
  %920 = vmatprep.subr.mxu0 0.0
  %921 = vmatpush1.msra.mxu0 0.0
  %922 = vmatprep.subr.mxu0 0.0
  %923 = vmatpush1.msra.mxu0 0.0
  %924 = vmatprep.subr.mxu0 0.0
  %925 = vmatpush1.msra.mxu0 0.0
  %926 = vmatprep.subr.mxu0 0.0
  %927 = vmatpush1.msra.mxu0 0.0
  %928 = vmatprep.subr.mxu0 0.0
  %929 = vmatpush1.msra.mxu0 0.0
  %930 = vmatprep.subr.mxu0 0.0
  %931 = vmatpush1.msra.mxu0 0.0
  %932 = vmatprep.subr.mxu0 0.0
  %933 = vmatpush1.msra.mxu0 0.0
  %934 = vmatprep.subr.mxu0 0.0
  %935 = vmatpush1.msra.mxu0 0.0
  %936 = vmatprep.subr.mxu0 0.0
  %937 = vmatpush1.msra.mxu0 0.0
  %938 = vmatprep.subr.mxu0 0.0
  %939 = vmatpush1.msra.mxu0 0.0
  %940 = vmatprep.subr.mxu0 0.0
  %941 = vmatpush1.msra.mxu0 0.0
  %942 = vmatprep.subr.mxu0 0.0
  %943 = vmatpush1.msra.mxu0 0.0
  %944 = vmatprep.subr.mxu0 0.0
  %945 = vmatpush1.msra.mxu0 0.0
  %946 = vmatprep.subr.mxu0 0.0
  %947 = vmatpush1.msra.mxu0 0.0
  %948 = vmatprep.subr.mxu0 0.0
  %949 = vmatpush1.msra.mxu0 0.0
  %950 = vmatprep.subr.mxu0 0.0
  %951 = vmatpush1.msra.mxu0 0.0
  %952 = vmatprep.subr.mxu0 0.0
  %953 = vmatpush1.msra.mxu0 0.0
  %954 = vmatprep.subr.mxu0 0.0
  %955 = vmatpush1.msra.mxu0 0.0
  %956 = vmatprep.subr.mxu0 0.0
  %957 = vmatpush1.msra.mxu0 0.0
  %958 = vmatprep.subr.mxu0 0.0
  %959 = vmatpush1.msra.mxu0 0.0
  %960 = vmatprep.mubr.f32.mxu0 0.0
  %961 = vmatmul.mubr.f32.gmra.mrb[0].mxu0 %v662
  %v962 = vpop.f32.mrb[0].mxu0
  %v963 = vadd.f32 %v888, %v962
  %v964 = vpop.f32.mrb[0].mxu0
  %965 = vmatprep.mubr.f32.mxu0 0.0
  %966 = vmatmul.mubr.f32.gmra.mrb[0].mxu0 %v665
  %v967 = vpop.f32.mrb[0].mxu0
  %v968 = vadd.f32 %v893, %v967
  %v969 = vpop.f32.mrb[0].mxu0
  %970 = vdwg.mxu0
  %v971 = vld [vmem:[%s0] sm:$0xff]
  %v972 = vld [vmem:[%s0 + $0x8] sm:$0xff]
  %v973 = vld [vmem:[%s4] sm:$0xff]
  %v974 = vld [vmem:[%s4 + $0x8] sm:$0xff]
  %v975 = vld [vmem:[%s4 + $0x10] sm:$0xff]
  %v976 = vld [vmem:[%s4 + $0x18] sm:$0xff]
  %v977 = vld [vmem:[%s5] sm:$0x1]
  %v979 = vlaneseq
  %v980 = vshrl.u32 %v979, 7
  %v981 = vsub.s32 0, %v980
  %v982 = vrot.slane %v977, %v981
  %vm984 = vcmask 261120
  %v986 = vsel %vm984, %v971, 0
  %v989 = vsel %vm984, %v972, 0
  %991 = vmatprep.subr.mxu0 0.0
  %992 = vmatpush1.msra.mxu0 %v973
  %993 = vmatprep.subr.mxu0 0.0
  %994 = vmatpush1.msra.mxu0 %v974
  %995 = vmatprep.subr.mxu0 0.0
  %996 = vmatpush1.msra.mxu0 %v975
  %997 = vmatprep.subr.mxu0 0.0
  %998 = vmatpush1.msra.mxu0 %v976
  %999 = vmatprep.subr.mxu0 0.0
  %1000 = vmatpush1.msra.mxu0 0.0
  %1001 = vmatprep.subr.mxu0 0.0
  %1002 = vmatpush1.msra.mxu0 0.0
  %1003 = vmatprep.subr.mxu0 0.0
  %1004 = vmatpush1.msra.mxu0 0.0
  %1005 = vmatprep.subr.mxu0 0.0
  %1006 = vmatpush1.msra.mxu0 0.0
  %1007 = vmatprep.subr.mxu0 0.0
  %1008 = vmatpush1.msra.mxu0 0.0
  %1009 = vmatprep.subr.mxu0 0.0
  %1010 = vmatpush1.msra.mxu0 0.0
  %1011 = vmatprep.subr.mxu0 0.0
  %1012 = vmatpush1.msra.mxu0 0.0
  %1013 = vmatprep.subr.mxu0 0.0
  %1014 = vmatpush1.msra.mxu0 0.0
  %1015 = vmatprep.subr.mxu0 0.0
  %1016 = vmatpush1.msra.mxu0 0.0
  %1017 = vmatprep.subr.mxu0 0.0
  %1018 = vmatpush1.msra.mxu0 0.0
  %1019 = vmatprep.subr.mxu0 0.0
  %1020 = vmatpush1.msra.mxu0 0.0
  %1021 = vmatprep.subr.mxu0 0.0
  %1022 = vmatpush1.msra.mxu0 0.0
  %1023 = vmatprep.subr.mxu0 0.0
  %1024 = vmatpush1.msra.mxu0 0.0
  %1025 = vmatprep.subr.mxu0 0.0
  %1026 = vmatpush1.msra.mxu0 0.0
  %1027 = vmatprep.subr.mxu0 0.0
  %1028 = vmatpush1.msra.mxu0 0.0
  %1029 = vmatprep.subr.mxu0 0.0
  %1030 = vmatpush1.msra.mxu0 0.0
  %1031 = vmatprep.subr.mxu0 0.0
  %1032 = vmatpush1.msra.mxu0 0.0
  %1033 = vmatprep.subr.mxu0 0.0
  %1034 = vmatpush1.msra.mxu0 0.0
  %1035 = vmatprep.subr.mxu0 0.0
  %1036 = vmatpush1.msra.mxu0 0.0
  %1037 = vmatprep.subr.mxu0 0.0
  %1038 = vmatpush1.msra.mxu0 0.0
  %1039 = vmatprep.subr.mxu0 0.0
  %1040 = vmatpush1.msra.mxu0 0.0
  %1041 = vmatprep.subr.mxu0 0.0
  %1042 = vmatpush1.msra.mxu0 0.0
  %1043 = vmatprep.subr.mxu0 0.0
  %1044 = vmatpush1.msra.mxu0 0.0
  %1045 = vmatprep.subr.mxu0 0.0
  %1046 = vmatpush1.msra.mxu0 0.0
  %1047 = vmatprep.subr.mxu0 0.0
  %1048 = vmatpush1.msra.mxu0 0.0
  %1049 = vmatprep.subr.mxu0 0.0
  %1050 = vmatpush1.msra.mxu0 0.0
  %1051 = vmatprep.subr.mxu0 0.0
  %1052 = vmatpush1.msra.mxu0 0.0
  %1053 = vmatprep.subr.mxu0 0.0
  %1054 = vmatpush1.msra.mxu0 0.0
  %1055 = vmatprep.mubr.f32.mxu0 0.0
  %1056 = vmatmul.mubr.f32.gmra.mrb[0].mxu0 %v986
  %v1057 = vpop.f32.mrb[0].mxu0
  %v1058 = vadd.f32 %v982, %v1057
  %v1059 = vpop.f32.mrb[0].mxu0
  %1060 = vmatprep.mubr.f32.mxu0 0.0
  %1061 = vmatmul.mubr.f32.gmra.mrb[0].mxu0 %v989
  %v1062 = vpop.f32.mrb[0].mxu0
  %v1063 = vadd.f32 %v982, %v1062
  %v1064 = vpop.f32.mrb[0].mxu0
  %1065 = vdwg.mxu0
  %v1066 = vmax.f32 %v1058, 0.0
  %v1067 = vmax.f32 %v1063, 0.0
  %v1068 = vld [vmem:[%s6] sm:$0xff]
  %v1069 = vld [vmem:[%s6 + $0x8] sm:$0xff]
  %v1070 = vld [vmem:[%s6 + $0x10] sm:$0xff]
  %v1071 = vld [vmem:[%s6 + $0x18] sm:$0xff]
  %v1072 = vld [vmem:[%s7] sm:$0x1]
  %v1074 = vlaneseq
  %v1075 = vshrl.u32 %v1074, 7
  %v1076 = vsub.s32 0, %v1075
  %v1077 = vrot.slane %v1072, %v1076
  %v1080 = vsel %vm984, %v1066, 0
  %v1083 = vsel %vm984, %v1067, 0
  %1085 = vmatprep.subr.mxu0 0.0
  %1086 = vmatpush1.msra.mxu0 %v1068
  %1087 = vmatprep.subr.mxu0 0.0
  %1088 = vmatpush1.msra.mxu0 %v1069
  %1089 = vmatprep.subr.mxu0 0.0
  %1090 = vmatpush1.msra.mxu0 %v1070
  %1091 = vmatprep.subr.mxu0 0.0
  %1092 = vmatpush1.msra.mxu0 %v1071
  %1093 = vmatprep.subr.mxu0 0.0
  %1094 = vmatpush1.msra.mxu0 0.0
  %1095 = vmatprep.subr.mxu0 0.0
  %1096 = vmatpush1.msra.mxu0 0.0
  %1097 = vmatprep.subr.mxu0 0.0
  %1098 = vmatpush1.msra.mxu0 0.0
  %1099 = vmatprep.subr.mxu0 0.0
  %1100 = vmatpush1.msra.mxu0 0.0
  %1101 = vmatprep.subr.mxu0 0.0
  %1102 = vmatpush1.msra.mxu0 0.0
  %1103 = vmatprep.subr.mxu0 0.0
  %1104 = vmatpush1.msra.mxu0 0.0
  %1105 = vmatprep.subr.mxu0 0.0
  %1106 = vmatpush1.msra.mxu0 0.0
  %1107 = vmatprep.subr.mxu0 0.0
  %1108 = vmatpush1.msra.mxu0 0.0
  %1109 = vmatprep.subr.mxu0 0.0
  %1110 = vmatpush1.msra.mxu0 0.0
  %1111 = vmatprep.subr.mxu0 0.0
  %1112 = vmatpush1.msra.mxu0 0.0
  %1113 = vmatprep.subr.mxu0 0.0
  %1114 = vmatpush1.msra.mxu0 0.0
  %1115 = vmatprep.subr.mxu0 0.0
  %1116 = vmatpush1.msra.mxu0 0.0
  %1117 = vmatprep.subr.mxu0 0.0
  %1118 = vmatpush1.msra.mxu0 0.0
  %1119 = vmatprep.subr.mxu0 0.0
  %1120 = vmatpush1.msra.mxu0 0.0
  %1121 = vmatprep.subr.mxu0 0.0
  %1122 = vmatpush1.msra.mxu0 0.0
  %1123 = vmatprep.subr.mxu0 0.0
  %1124 = vmatpush1.msra.mxu0 0.0
  %1125 = vmatprep.subr.mxu0 0.0
  %1126 = vmatpush1.msra.mxu0 0.0
  %1127 = vmatprep.subr.mxu0 0.0
  %1128 = vmatpush1.msra.mxu0 0.0
  %1129 = vmatprep.subr.mxu0 0.0
  %1130 = vmatpush1.msra.mxu0 0.0
  %1131 = vmatprep.subr.mxu0 0.0
  %1132 = vmatpush1.msra.mxu0 0.0
  %1133 = vmatprep.subr.mxu0 0.0
  %1134 = vmatpush1.msra.mxu0 0.0
  %1135 = vmatprep.subr.mxu0 0.0
  %1136 = vmatpush1.msra.mxu0 0.0
  %1137 = vmatprep.subr.mxu0 0.0
  %1138 = vmatpush1.msra.mxu0 0.0
  %1139 = vmatprep.subr.mxu0 0.0
  %1140 = vmatpush1.msra.mxu0 0.0
  %1141 = vmatprep.subr.mxu0 0.0
  %1142 = vmatpush1.msra.mxu0 0.0
  %1143 = vmatprep.subr.mxu0 0.0
  %1144 = vmatpush1.msra.mxu0 0.0
  %1145 = vmatprep.subr.mxu0 0.0
  %1146 = vmatpush1.msra.mxu0 0.0
  %1147 = vmatprep.subr.mxu0 0.0
  %1148 = vmatpush1.msra.mxu0 0.0
  %1149 = vmatprep.mubr.f32.mxu0 0.0
  %1150 = vmatmul.mubr.f32.gmra.mrb[0].mxu0 %v1080
  %v1151 = vpop.f32.mrb[0].mxu0
  %v1152 = vadd.f32 %v1077, %v1151
  %v1153 = vpop.f32.mrb[0].mxu0
  %1154 = vmatprep.mubr.f32.mxu0 0.0
  %1155 = vmatmul.mubr.f32.gmra.mrb[0].mxu0 %v1083
  %v1156 = vpop.f32.mrb[0].mxu0
  %v1157 = vadd.f32 %v1077, %v1156
  %v1158 = vpop.f32.mrb[0].mxu0
  %1159 = vdwg.mxu0
  %v1160 = vmax.f32 %v1152, 0.0
  %v1161 = vmax.f32 %v1157, 0.0
  %v1162 = vld [vmem:[%s1] sm:$0x3]
  %v1163 = vsel %vm97, 0, 7
  %1164 = vset.pattern.permute.xlu0 0
  %1165 = vperm.xlu0 %1164, %v1162
  %v1166 = vpop.permute.xlu0 %1165
  %vm1167 = vcmp.lt.s32.totalorder %v1163, %v1166
  %v1168 = vsel %vm97, 1, 6
  %vm1169 = vcmp.lt.s32.totalorder %v1168, %v1166
  %v1170 = vsel %vm97, 2, 5
  %vm1171 = vcmp.lt.s32.totalorder %v1170, %v1166
  %v1172 = vsel %vm97, 3, 4
  %vm1173 = vcmp.lt.s32.totalorder %v1172, %v1166
  %v1174 = vsel %vm97, 4, 3
  %vm1175 = vcmp.lt.s32.totalorder %v1174, %v1166
  %v1176 = vsel %vm97, 5, 2
  %vm1177 = vcmp.lt.s32.totalorder %v1176, %v1166
  %v1178 = vsel %vm97, 6, 1
  %vm1179 = vcmp.lt.s32.totalorder %v1178, %v1166
  %v1180 = vsel %vm97, 7, 0
  %vm1181 = vcmp.lt.s32.totalorder %v1180, %v1166
  %v1182 = vld [vmem:[%s10] sm:$0xff]
  %v1183 = vld [vmem:[%s10 + $0x8] sm:$0xff]
  %v1184 = vld [vmem:[%s10 + $0x10] sm:$0xff]
  %v1185 = vld [vmem:[%s10 + $0x18] sm:$0xff]
  %v1186 = vld [vmem:[%s10 + $0x20] sm:$0xff]
  %v1187 = vld [vmem:[%s10 + $0x28] sm:$0xff]
  %v1188 = vld [vmem:[%s10 + $0x30] sm:$0xff]
  %v1189 = vld [vmem:[%s10 + $0x38] sm:$0xff]
  %v1190 = vld [vmem:[%s11] sm:$0xff]
  %v1191 = vld [vmem:[%s11 + $0x8] sm:$0xff]
  %v1192 = vld [vmem:[%s11 + $0x10] sm:$0xff]
  %v1193 = vld [vmem:[%s11 + $0x18] sm:$0xff]
  %v1194 = vld [vmem:[%s11 + $0x20] sm:$0xff]
  %v1195 = vld [vmem:[%s11 + $0x28] sm:$0xff]
  %v1196 = vld [vmem:[%s11 + $0x30] sm:$0xff]
  %v1197 = vld [vmem:[%s11 + $0x38] sm:$0xff]
  %v1199 = vsel %vm984, %v1160, 0
  %v1202 = vsel %vm984, %v1161, 0
  %1204 = vmatprep.subr.mxu0 %v1191
  %1205 = vmatpush1.msra.mxu0 %v1190
  %1206 = vmatprep.subr.mxu0 %v1193
  %1207 = vmatpush1.msra.mxu0 %v1192
  %1208 = vmatprep.subr.mxu0 %v1195
  %1209 = vmatpush1.msra.mxu0 %v1194
  %1210 = vmatprep.subr.mxu0 %v1197
  %1211 = vmatpush1.msra.mxu0 %v1196
  %1212 = vmatprep.subr.mxu0 0.0
  %1213 = vmatpush1.msra.mxu0 0.0
  %1214 = vmatprep.subr.mxu0 0.0
  %1215 = vmatpush1.msra.mxu0 0.0
  %1216 = vmatprep.subr.mxu0 0.0
  %1217 = vmatpush1.msra.mxu0 0.0
  %1218 = vmatprep.subr.mxu0 0.0
  %1219 = vmatpush1.msra.mxu0 0.0
  %1220 = vmatprep.subr.mxu0 0.0
  %1221 = vmatpush1.msra.mxu0 0.0
  %1222 = vmatprep.subr.mxu0 0.0
  %1223 = vmatpush1.msra.mxu0 0.0
  %1224 = vmatprep.subr.mxu0 0.0
  %1225 = vmatpush1.msra.mxu0 0.0
  %1226 = vmatprep.subr.mxu0 0.0
  %1227 = vmatpush1.msra.mxu0 0.0
  %1228 = vmatprep.subr.mxu0 0.0
  %1229 = vmatpush1.msra.mxu0 0.0
  %1230 = vmatprep.subr.mxu0 0.0
  %1231 = vmatpush1.msra.mxu0 0.0
  %1232 = vmatprep.subr.mxu0 0.0
  %1233 = vmatpush1.msra.mxu0 0.0
  %1234 = vmatprep.subr.mxu0 0.0
  %1235 = vmatpush1.msra.mxu0 0.0
  %1236 = vmatprep.subr.mxu0 0.0
  %1237 = vmatpush1.msra.mxu0 0.0
  %1238 = vmatprep.subr.mxu0 0.0
  %1239 = vmatpush1.msra.mxu0 0.0
  %1240 = vmatprep.subr.mxu0 0.0
  %1241 = vmatpush1.msra.mxu0 0.0
  %1242 = vmatprep.subr.mxu0 0.0
  %1243 = vmatpush1.msra.mxu0 0.0
  %1244 = vmatprep.subr.mxu0 0.0
  %1245 = vmatpush1.msra.mxu0 0.0
  %1246 = vmatprep.subr.mxu0 0.0
  %1247 = vmatpush1.msra.mxu0 0.0
  %1248 = vmatprep.subr.mxu0 0.0
  %1249 = vmatpush1.msra.mxu0 0.0
  %1250 = vmatprep.subr.mxu0 0.0
  %1251 = vmatpush1.msra.mxu0 0.0
  %1252 = vmatprep.subr.mxu0 0.0
  %1253 = vmatpush1.msra.mxu0 0.0
  %1254 = vmatprep.subr.mxu0 0.0
  %1255 = vmatpush1.msra.mxu0 0.0
  %1256 = vmatprep.subr.mxu0 0.0
  %1257 = vmatpush1.msra.mxu0 0.0
  %1258 = vmatprep.subr.mxu0 0.0
  %1259 = vmatpush1.msra.mxu0 0.0
  %1260 = vmatprep.subr.mxu0 0.0
  %1261 = vmatpush1.msra.mxu0 0.0
  %1262 = vmatprep.subr.mxu0 0.0
  %1263 = vmatpush1.msra.mxu0 0.0
  %1264 = vmatprep.subr.mxu0 0.0
  %1265 = vmatpush1.msra.mxu0 0.0
  %1266 = vmatprep.subr.mxu0 0.0
  %1267 = vmatpush1.msra.mxu0 0.0
  %1268 = vmatprep.mubr.f32.mxu0 0.0
  %1269 = vmatmul.mubr.f32.gmra.mrb[0].mxu0 %v1199
  %v1270 = vpop.f32.mrb[0].mxu0
  %v1271 = vadd.f32 0.0, %v1270
  %v1272 = vpop.f32.mrb[0].mxu0
  %v1273 = vadd.f32 0.0, %v1272
  %1274 = vmatprep.mubr.f32.mxu0 0.0
  %1275 = vmatmul.mubr.f32.gmra.mrb[0].mxu0 %v1202
  %v1276 = vpop.f32.mrb[0].mxu0
  %v1277 = vadd.f32 0.0, %v1276
  %v1278 = vpop.f32.mrb[0].mxu0
  %v1279 = vadd.f32 0.0, %v1278
  %1280 = vdwg.mxu0
  %1281 = vmatprep.subr.mxu0 %v1183
  %1282 = vmatpush1.msra.mxu0 %v1182
  %1283 = vmatprep.subr.mxu0 %v1185
  %1284 = vmatpush1.msra.mxu0 %v1184
  %1285 = vmatprep.subr.mxu0 %v1187
  %1286 = vmatpush1.msra.mxu0 %v1186
  %1287 = vmatprep.subr.mxu0 %v1189
  %1288 = vmatpush1.msra.mxu0 %v1188
  %1289 = vmatprep.subr.mxu0 0.0
  %1290 = vmatpush1.msra.mxu0 0.0
  %1291 = vmatprep.subr.mxu0 0.0
  %1292 = vmatpush1.msra.mxu0 0.0
  %1293 = vmatprep.subr.mxu0 0.0
  %1294 = vmatpush1.msra.mxu0 0.0
  %1295 = vmatprep.subr.mxu0 0.0
  %1296 = vmatpush1.msra.mxu0 0.0
  %1297 = vmatprep.subr.mxu0 0.0
  %1298 = vmatpush1.msra.mxu0 0.0
  %1299 = vmatprep.subr.mxu0 0.0
  %1300 = vmatpush1.msra.mxu0 0.0
  %1301 = vmatprep.subr.mxu0 0.0
  %1302 = vmatpush1.msra.mxu0 0.0
  %1303 = vmatprep.subr.mxu0 0.0
  %1304 = vmatpush1.msra.mxu0 0.0
  %1305 = vmatprep.subr.mxu0 0.0
  %1306 = vmatpush1.msra.mxu0 0.0
  %1307 = vmatprep.subr.mxu0 0.0
  %1308 = vmatpush1.msra.mxu0 0.0
  %1309 = vmatprep.subr.mxu0 0.0
  %1310 = vmatpush1.msra.mxu0 0.0
  %1311 = vmatprep.subr.mxu0 0.0
  %1312 = vmatpush1.msra.mxu0 0.0
  %1313 = vmatprep.subr.mxu0 0.0
  %1314 = vmatpush1.msra.mxu0 0.0
  %1315 = vmatprep.subr.mxu0 0.0
  %1316 = vmatpush1.msra.mxu0 0.0
  %1317 = vmatprep.subr.mxu0 0.0
  %1318 = vmatpush1.msra.mxu0 0.0
  %1319 = vmatprep.subr.mxu0 0.0
  %1320 = vmatpush1.msra.mxu0 0.0
  %1321 = vmatprep.subr.mxu0 0.0
  %1322 = vmatpush1.msra.mxu0 0.0
  %1323 = vmatprep.subr.mxu0 0.0
  %1324 = vmatpush1.msra.mxu0 0.0
  %1325 = vmatprep.subr.mxu0 0.0
  %1326 = vmatpush1.msra.mxu0 0.0
  %1327 = vmatprep.subr.mxu0 0.0
  %1328 = vmatpush1.msra.mxu0 0.0
  %1329 = vmatprep.subr.mxu0 0.0
  %1330 = vmatpush1.msra.mxu0 0.0
  %1331 = vmatprep.subr.mxu0 0.0
  %1332 = vmatpush1.msra.mxu0 0.0
  %1333 = vmatprep.subr.mxu0 0.0
  %1334 = vmatpush1.msra.mxu0 0.0
  %1335 = vmatprep.subr.mxu0 0.0
  %1336 = vmatpush1.msra.mxu0 0.0
  %1337 = vmatprep.subr.mxu0 0.0
  %1338 = vmatpush1.msra.mxu0 0.0
  %1339 = vmatprep.subr.mxu0 0.0
  %1340 = vmatpush1.msra.mxu0 0.0
  %1341 = vmatprep.subr.mxu0 0.0
  %1342 = vmatpush1.msra.mxu0 0.0
  %1343 = vmatprep.subr.mxu0 0.0
  %1344 = vmatpush1.msra.mxu0 0.0
  %1345 = vmatprep.mubr.f32.mxu0 0.0
  %1346 = vmatmul.mubr.f32.gmra.mrb[0].mxu0 %v986
  %v1347 = vpop.f32.mrb[0].mxu0
  %v1348 = vadd.f32 %v1271, %v1347
  %v1349 = vpop.f32.mrb[0].mxu0
  %v1350 = vadd.f32 %v1273, %v1349
  %1351 = vmatprep.mubr.f32.mxu0 0.0
  %1352 = vmatmul.mubr.f32.gmra.mrb[0].mxu0 %v989
  %v1353 = vpop.f32.mrb[0].mxu0
  %v1354 = vadd.f32 %v1277, %v1353
  %v1355 = vpop.f32.mrb[0].mxu0
  %v1356 = vadd.f32 %v1279, %v1355
  %1357 = vdwg.mxu0
  %v1358 = vld [vmem:[%s12] sm:$0xff]
  %v1359 = vld [vmem:[%s12 + $0x8] sm:$0xff]
  %v1360 = vld [vmem:[%s12 + $0x10] sm:$0xff]
  %v1361 = vld [vmem:[%s12 + $0x18] sm:$0xff]
  %v1362 = vld [vmem:[%s12 + $0x20] sm:$0xff]
  %v1363 = vld [vmem:[%s12 + $0x28] sm:$0xff]
  %v1364 = vld [vmem:[%s12 + $0x30] sm:$0xff]
  %v1365 = vld [vmem:[%s12 + $0x38] sm:$0xff]
  %v1366 = vld [vmem:[%s12 + $0x40] sm:$0xff]
  %v1367 = vld [vmem:[%s12 + $0x48] sm:$0xff]
  %v1368 = vld [vmem:[%s12 + $0x50] sm:$0xff]
  %v1369 = vld [vmem:[%s12 + $0x58] sm:$0xff]
  %v1370 = vld [vmem:[%s12 + $0x60] sm:$0xff]
  %v1371 = vld [vmem:[%s12 + $0x68] sm:$0xff]
  %v1372 = vld [vmem:[%s12 + $0x70] sm:$0xff]
  %v1373 = vld [vmem:[%s12 + $0x78] sm:$0xff]
  %v1374 = vld [vmem:[%s12 + $0x80] sm:$0xff]
  %v1375 = vld [vmem:[%s12 + $0x88] sm:$0xff]
  %v1376 = vld [vmem:[%s12 + $0x90] sm:$0xff]
  %v1377 = vld [vmem:[%s12 + $0x98] sm:$0xff]
  %v1378 = vld [vmem:[%s12 + $0xa0] sm:$0xff]
  %v1379 = vld [vmem:[%s12 + $0xa8] sm:$0xff]
  %v1380 = vld [vmem:[%s12 + $0xb0] sm:$0xff]
  %v1381 = vld [vmem:[%s12 + $0xb8] sm:$0xff]
  %v1382 = vld [vmem:[%s12 + $0xc0] sm:$0xff]
  %v1383 = vld [vmem:[%s12 + $0xc8] sm:$0xff]
  %v1384 = vld [vmem:[%s12 + $0xd0] sm:$0xff]
  %v1385 = vld [vmem:[%s12 + $0xd8] sm:$0xff]
  %v1386 = vld [vmem:[%s12 + $0xe0] sm:$0xff]
  %v1387 = vld [vmem:[%s12 + $0xe8] sm:$0xff]
  %v1388 = vld [vmem:[%s12 + $0xf0] sm:$0xff]
  %v1389 = vld [vmem:[%s12 + $0xf8] sm:$0xff]
  %v1390 = vld [vmem:[%s12 + $0x100] sm:$0xff]
  %v1391 = vld [vmem:[%s12 + $0x108] sm:$0xff]
  %v1392 = vld [vmem:[%s12 + $0x110] sm:$0xff]
  %v1393 = vld [vmem:[%s12 + $0x118] sm:$0xff]
  %v1394 = vld [vmem:[%s12 + $0x120] sm:$0xff]
  %v1395 = vld [vmem:[%s12 + $0x128] sm:$0xff]
  %v1396 = vld [vmem:[%s12 + $0x130] sm:$0xff]
  %v1397 = vld [vmem:[%s12 + $0x138] sm:$0xff]
  %v1398 = vld [vmem:[%s12 + $0x140] sm:$0xff]
  %v1399 = vld [vmem:[%s12 + $0x148] sm:$0xff]
  %v1400 = vld [vmem:[%s12 + $0x150] sm:$0xff]
  %v1401 = vld [vmem:[%s12 + $0x158] sm:$0xff]
  %v1402 = vld [vmem:[%s12 + $0x160] sm:$0xff]
  %v1403 = vld [vmem:[%s12 + $0x168] sm:$0xff]
  %v1404 = vld [vmem:[%s12 + $0x170] sm:$0xff]
  %v1405 = vld [vmem:[%s12 + $0x178] sm:$0xff]
  %v1406 = vld [vmem:[%s12 + $0x180] sm:$0xff]
  %v1407 = vld [vmem:[%s12 + $0x188] sm:$0xff]
  %v1408 = vld [vmem:[%s12 + $0x190] sm:$0xff]
  %v1409 = vld [vmem:[%s12 + $0x198] sm:$0xff]
  %v1410 = vld [vmem:[%s12 + $0x1a0] sm:$0xff]
  %v1411 = vld [vmem:[%s12 + $0x1a8] sm:$0xff]
  %v1412 = vld [vmem:[%s12 + $0x1b0] sm:$0xff]
  %v1413 = vld [vmem:[%s12 + $0x1b8] sm:$0xff]
  %v1414 = vld [vmem:[%s12 + $0x1c0] sm:$0xff]
  %v1415 = vld [vmem:[%s12 + $0x1c8] sm:$0xff]
  %v1416 = vld [vmem:[%s12 + $0x1d0] sm:$0xff]
  %v1417 = vld [vmem:[%s12 + $0x1d8] sm:$0xff]
  %v1418 = vld [vmem:[%s12 + $0x1e0] sm:$0xff]
  %v1419 = vld [vmem:[%s12 + $0x1e8] sm:$0xff]
  %v1420 = vld [vmem:[%s12 + $0x1f0] sm:$0xff]
  %v1421 = vld [vmem:[%s12 + $0x1f8] sm:$0xff]
  %v1422 = vld [vmem:[%s12 + $0x200] sm:$0xff]
  %v1423 = vld [vmem:[%s12 + $0x208] sm:$0xff]
  %v1424 = vld [vmem:[%s12 + $0x210] sm:$0xff]
  %v1425 = vld [vmem:[%s12 + $0x218] sm:$0xff]
  %v1426 = vld [vmem:[%s12 + $0x220] sm:$0xff]
  %v1427 = vld [vmem:[%s12 + $0x228] sm:$0xff]
  %v1428 = vld [vmem:[%s12 + $0x230] sm:$0xff]
  %v1429 = vld [vmem:[%s12 + $0x238] sm:$0xff]
  %v1430 = vld [vmem:[%s12 + $0x240] sm:$0xff]
  %v1431 = vld [vmem:[%s12 + $0x248] sm:$0xff]
  %v1432 = vld [vmem:[%s12 + $0x250] sm:$0xf]
  %v1433 = vld [vmem:[%s12 + $0x258] sm:$0xf]
  %vm1434 = vcmask 359424
  %v1436 = vsel %vm1434, %v963, 0
  %v1439 = vsel %vm1434, %v968, 0
  %vm1441 = vcmask 1043456
  %v1443 = vsel %vm1441, %v1432, 0
  %v1446 = vsel %vm1441, %v1433, 0
  %1448 = vmatprep.subr.mxu0 %v1359
  %1449 = vmatpush1.msra.mxu0 %v1358
  %1450 = vmatprep.subr.mxu0 %v1361
  %1451 = vmatpush1.msra.mxu0 %v1360
  %1452 = vmatprep.subr.mxu0 %v1363
  %1453 = vmatpush1.msra.mxu0 %v1362
  %1454 = vmatprep.subr.mxu0 %v1365
  %1455 = vmatpush1.msra.mxu0 %v1364
  %1456 = vmatprep.subr.mxu0 %v1367
  %1457 = vmatpush1.msra.mxu0 %v1366
  %1458 = vmatprep.subr.mxu0 %v1369
  %1459 = vmatpush1.msra.mxu0 %v1368
  %1460 = vmatprep.subr.mxu0 %v1371
  %1461 = vmatpush1.msra.mxu0 %v1370
  %1462 = vmatprep.subr.mxu0 %v1373
  %1463 = vmatpush1.msra.mxu0 %v1372
  %1464 = vmatprep.subr.mxu0 %v1375
  %1465 = vmatpush1.msra.mxu0 %v1374
  %1466 = vmatprep.subr.mxu0 %v1377
  %1467 = vmatpush1.msra.mxu0 %v1376
  %1468 = vmatprep.subr.mxu0 %v1379
  %1469 = vmatpush1.msra.mxu0 %v1378
  %1470 = vmatprep.subr.mxu0 %v1381
  %1471 = vmatpush1.msra.mxu0 %v1380
  %1472 = vmatprep.subr.mxu0 %v1383
  %1473 = vmatpush1.msra.mxu0 %v1382
  %1474 = vmatprep.subr.mxu0 %v1385
  %1475 = vmatpush1.msra.mxu0 %v1384
  %1476 = vmatprep.subr.mxu0 %v1387
  %1477 = vmatpush1.msra.mxu0 %v1386
  %1478 = vmatprep.subr.mxu0 %v1389
  %1479 = vmatpush1.msra.mxu0 %v1388
  %1480 = vmatprep.subr.mxu0 %v1391
  %1481 = vmatpush1.msra.mxu0 %v1390
  %1482 = vmatprep.subr.mxu0 %v1393
  %1483 = vmatpush1.msra.mxu0 %v1392
  %1484 = vmatprep.subr.mxu0 %v1395
  %1485 = vmatpush1.msra.mxu0 %v1394
  %1486 = vmatprep.subr.mxu0 %v1397
  %1487 = vmatpush1.msra.mxu0 %v1396
  %1488 = vmatprep.subr.mxu0 %v1399
  %1489 = vmatpush1.msra.mxu0 %v1398
  %1490 = vmatprep.subr.mxu0 %v1401
  %1491 = vmatpush1.msra.mxu0 %v1400
  %1492 = vmatprep.subr.mxu0 %v1403
  %1493 = vmatpush1.msra.mxu0 %v1402
  %1494 = vmatprep.subr.mxu0 %v1405
  %1495 = vmatpush1.msra.mxu0 %v1404
  %1496 = vmatprep.subr.mxu0 %v1407
  %1497 = vmatpush1.msra.mxu0 %v1406
  %1498 = vmatprep.subr.mxu0 %v1409
  %1499 = vmatpush1.msra.mxu0 %v1408
  %1500 = vmatprep.subr.mxu0 %v1411
  %1501 = vmatpush1.msra.mxu0 %v1410
  %1502 = vmatprep.subr.mxu0 %v1413
  %1503 = vmatpush1.msra.mxu0 %v1412
  %1504 = vmatprep.subr.mxu0 %v1415
  %1505 = vmatpush1.msra.mxu0 %v1414
  %1506 = vmatprep.subr.mxu0 %v1417
  %1507 = vmatpush1.msra.mxu0 %v1416
  %1508 = vmatprep.subr.mxu0 %v1419
  %1509 = vmatpush1.msra.mxu0 %v1418
  %1510 = vmatprep.subr.mxu0 %v1421
  %1511 = vmatpush1.msra.mxu0 %v1420
  %1512 = vmatprep.mubr.f32.mxu0 %v813
  %1513 = vmatmul.mubr.f32.gmra.mrb[0].mxu0 %v811
  %v1514 = vpop.f32.mrb[0].mxu0
  %v1515 = vadd.f32 0.0, %v1514
  %v1516 = vpop.f32.mrb[0].mxu0
  %v1517 = vadd.f32 0.0, %v1516
  %1518 = vmatprep.mubr.f32.mxu0 %v819
  %1519 = vmatmul.mubr.f32.gmra.mrb[0].mxu0 %v817
  %v1520 = vpop.f32.mrb[0].mxu0
  %v1521 = vadd.f32 0.0, %v1520
  %v1522 = vpop.f32.mrb[0].mxu0
  %v1523 = vadd.f32 0.0, %v1522
  %1524 = vdwg.mxu0
  %1525 = vmatprep.subr.mxu0 %v1423
  %1526 = vmatpush1.msra.mxu0 %v1422
  %1527 = vmatprep.subr.mxu0 %v1425
  %1528 = vmatpush1.msra.mxu0 %v1424
  %1529 = vmatprep.subr.mxu0 %v1427
  %1530 = vmatpush1.msra.mxu0 %v1426
  %1531 = vmatprep.subr.mxu0 %v1429
  %1532 = vmatpush1.msra.mxu0 %v1428
  %1533 = vmatprep.subr.mxu0 %v1431
  %1534 = vmatpush1.msra.mxu0 %v1430
  %1535 = vmatprep.subr.mxu0 %v1446
  %1536 = vmatpush1.msra.mxu0 %v1443
  %1537 = vmatprep.subr.mxu0 0.0
  %1538 = vmatpush1.msra.mxu0 0.0
  %1539 = vmatprep.subr.mxu0 0.0
  %1540 = vmatpush1.msra.mxu0 0.0
  %1541 = vmatprep.subr.mxu0 0.0
  %1542 = vmatpush1.msra.mxu0 0.0
  %1543 = vmatprep.subr.mxu0 0.0
  %1544 = vmatpush1.msra.mxu0 0.0
  %1545 = vmatprep.subr.mxu0 0.0
  %1546 = vmatpush1.msra.mxu0 0.0
  %1547 = vmatprep.subr.mxu0 0.0
  %1548 = vmatpush1.msra.mxu0 0.0
  %1549 = vmatprep.subr.mxu0 0.0
  %1550 = vmatpush1.msra.mxu0 0.0
  %1551 = vmatprep.subr.mxu0 0.0
  %1552 = vmatpush1.msra.mxu0 0.0
  %1553 = vmatprep.subr.mxu0 0.0
  %1554 = vmatpush1.msra.mxu0 0.0
  %1555 = vmatprep.subr.mxu0 0.0
  %1556 = vmatpush1.msra.mxu0 0.0
  %1557 = vmatprep.subr.mxu0 0.0
  %1558 = vmatpush1.msra.mxu0 0.0
  %1559 = vmatprep.subr.mxu0 0.0
  %1560 = vmatpush1.msra.mxu0 0.0
  %1561 = vmatprep.subr.mxu0 0.0
  %1562 = vmatpush1.msra.mxu0 0.0
  %1563 = vmatprep.subr.mxu0 0.0
  %1564 = vmatpush1.msra.mxu0 0.0
  %1565 = vmatprep.subr.mxu0 0.0
  %1566 = vmatpush1.msra.mxu0 0.0
  %1567 = vmatprep.subr.mxu0 0.0
  %1568 = vmatpush1.msra.mxu0 0.0
  %1569 = vmatprep.subr.mxu0 0.0
  %1570 = vmatpush1.msra.mxu0 0.0
  %1571 = vmatprep.subr.mxu0 0.0
  %1572 = vmatpush1.msra.mxu0 0.0
  %1573 = vmatprep.subr.mxu0 0.0
  %1574 = vmatpush1.msra.mxu0 0.0
  %1575 = vmatprep.subr.mxu0 0.0
  %1576 = vmatpush1.msra.mxu0 0.0
  %1577 = vmatprep.subr.mxu0 0.0
  %1578 = vmatpush1.msra.mxu0 0.0
  %1579 = vmatprep.subr.mxu0 0.0
  %1580 = vmatpush1.msra.mxu0 0.0
  %1581 = vmatprep.subr.mxu0 0.0
  %1582 = vmatpush1.msra.mxu0 0.0
  %1583 = vmatprep.subr.mxu0 0.0
  %1584 = vmatpush1.msra.mxu0 0.0
  %1585 = vmatprep.subr.mxu0 0.0
  %1586 = vmatpush1.msra.mxu0 0.0
  %1587 = vmatprep.subr.mxu0 0.0
  %1588 = vmatpush1.msra.mxu0 0.0
  %1589 = vmatprep.mubr.f32.mxu0 0.0
  %1590 = vmatmul.mubr.f32.gmra.mrb[0].mxu0 %v1436
  %v1591 = vpop.f32.mrb[0].mxu0
  %v1592 = vadd.f32 %v1515, %v1591
  %v1593 = vpop.f32.mrb[0].mxu0
  %v1594 = vadd.f32 %v1517, %v1593
  %1595 = vmatprep.mubr.f32.mxu0 0.0
  %1596 = vmatmul.mubr.f32.gmra.mrb[0].mxu0 %v1439
  %v1597 = vpop.f32.mrb[0].mxu0
  %v1598 = vadd.f32 %v1521, %v1597
  %v1599 = vpop.f32.mrb[0].mxu0
  %v1600 = vadd.f32 %v1523, %v1599
  %1601 = vdwg.mxu0
  %v1602 = vadd.f32 %v1348, %v1592
  %v1603 = vadd.f32 %v1350, %v1594
  %v1604 = vadd.f32 %v1354, %v1598
  %v1605 = vadd.f32 %v1356, %v1600
  %v1606 = vld [vmem:[%s14] sm:$0x3]
  %v1608 = vlaneseq
  %v1609 = vshrl.u32 %v1608, 7
  %v1610 = vsub.s32 0, %v1609
  %v1611 = vrot.slane %v1606, %v1610
  %v1612 = vlaneseq
  %v1613 = vshrl.u32 %v1612, 7
  %v1614 = vsub.s32 1, %v1613
  %v1615 = vrot.slane %v1606, %v1614
  %v1618 = vadd.f32 %v1602, %v1611
  %v1619 = vadd.f32 %v1603, %v1615
  %v1620 = vadd.f32 %v1604, %v1611
  %v1621 = vadd.f32 %v1605, %v1615
  %v1622 = vld [vmem:[%s13] sm:$0xff]
  %v1623 = vld [vmem:[%s13 + $0x8] sm:$0xff]
  %v1624 = vld [vmem:[%s13 + $0x10] sm:$0xff]
  %v1625 = vld [vmem:[%s13 + $0x18] sm:$0xff]
  %v1626 = vld [vmem:[%s13 + $0x20] sm:$0xff]
  %v1627 = vld [vmem:[%s13 + $0x28] sm:$0xff]
  %v1628 = vld [vmem:[%s13 + $0x30] sm:$0xff]
  %v1629 = vld [vmem:[%s13 + $0x38] sm:$0xff]
  %v1630 = vld [vmem:[%s13 + $0x40] sm:$0xff]
  %v1631 = vld [vmem:[%s13 + $0x48] sm:$0xff]
  %v1632 = vld [vmem:[%s13 + $0x50] sm:$0xff]
  %v1633 = vld [vmem:[%s13 + $0x58] sm:$0xff]
  %v1634 = vld [vmem:[%s13 + $0x60] sm:$0xff]
  %v1635 = vld [vmem:[%s13 + $0x68] sm:$0xff]
  %v1636 = vld [vmem:[%s13 + $0x70] sm:$0xff]
  %v1637 = vld [vmem:[%s13 + $0x78] sm:$0xff]
  %v1640 = vrot.slane %v1620, 6
  %v1641 = vrot.slane %v1621, 6
  %v1644 = vsel %vm95, %v1618, %v1640
  %v1645 = vsel %vm96, %v1619, %v1641
  %v1647 = vsel %vm350, 0.0, 0
  %1649 = vmatprep.subr.mxu0 %v1623
  %1650 = vmatpush1.msra.mxu0 %v1622
  %1651 = vmatprep.subr.mxu0 %v1625
  %1652 = vmatpush1.msra.mxu0 %v1624
  %1653 = vmatprep.subr.mxu0 %v1627
  %1654 = vmatpush1.msra.mxu0 %v1626
  %1655 = vmatprep.subr.mxu0 %v1629
  %1656 = vmatpush1.msra.mxu0 %v1628
  %1657 = vmatprep.subr.mxu0 %v1631
  %1658 = vmatpush1.msra.mxu0 %v1630
  %1659 = vmatprep.subr.mxu0 %v1633
  %1660 = vmatpush1.msra.mxu0 %v1632
  %1661 = vmatprep.subr.mxu0 %v1635
  %1662 = vmatpush1.msra.mxu0 %v1634
  %1663 = vmatprep.subr.mxu0 %v1637
  %1664 = vmatpush1.msra.mxu0 %v1636
  %1665 = vmatprep.subr.mxu0 0.0
  %1666 = vmatpush1.msra.mxu0 0.0
  %1667 = vmatprep.subr.mxu0 0.0
  %1668 = vmatpush1.msra.mxu0 0.0
  %1669 = vmatprep.subr.mxu0 0.0
  %1670 = vmatpush1.msra.mxu0 0.0
  %1671 = vmatprep.subr.mxu0 0.0
  %1672 = vmatpush1.msra.mxu0 0.0
  %1673 = vmatprep.subr.mxu0 0.0
  %1674 = vmatpush1.msra.mxu0 0.0
  %1675 = vmatprep.subr.mxu0 0.0
  %1676 = vmatpush1.msra.mxu0 0.0
  %1677 = vmatprep.subr.mxu0 0.0
  %1678 = vmatpush1.msra.mxu0 0.0
  %1679 = vmatprep.subr.mxu0 0.0
  %1680 = vmatpush1.msra.mxu0 0.0
  %1681 = vmatprep.subr.mxu0 0.0
  %1682 = vmatpush1.msra.mxu0 0.0
  %1683 = vmatprep.subr.mxu0 0.0
  %1684 = vmatpush1.msra.mxu0 0.0
  %1685 = vmatprep.subr.mxu0 0.0
  %1686 = vmatpush1.msra.mxu0 0.0
  %1687 = vmatprep.subr.mxu0 0.0
  %1688 = vmatpush1.msra.mxu0 0.0
  %1689 = vmatprep.subr.mxu0 0.0
  %1690 = vmatpush1.msra.mxu0 0.0
  %1691 = vmatprep.subr.mxu0 0.0
  %1692 = vmatpush1.msra.mxu0 0.0
  %1693 = vmatprep.subr.mxu0 0.0
  %1694 = vmatpush1.msra.mxu0 0.0
  %1695 = vmatprep.subr.mxu0 0.0
  %1696 = vmatpush1.msra.mxu0 0.0
  %1697 = vmatprep.subr.mxu0 0.0
  %1698 = vmatpush1.msra.mxu0 0.0
  %1699 = vmatprep.subr.mxu0 0.0
  %1700 = vmatpush1.msra.mxu0 0.0
  %1701 = vmatprep.subr.mxu0 0.0
  %1702 = vmatpush1.msra.mxu0 0.0
  %1703 = vmatprep.subr.mxu0 0.0
  %1704 = vmatpush1.msra.mxu0 0.0
  %1705 = vmatprep.subr.mxu0 0.0
  %1706 = vmatpush1.msra.mxu0 0.0
  %1707 = vmatprep.subr.mxu0 0.0
  %1708 = vmatpush1.msra.mxu0 0.0
  %1709 = vmatprep.subr.mxu0 0.0
  %1710 = vmatpush1.msra.mxu0 0.0
  %1711 = vmatprep.subr.mxu0 0.0
  %1712 = vmatpush1.msra.mxu0 0.0
  %1713 = vmatprep.mubr.f32.mxu0 0.0
  %1714 = vmatmul.mubr.f32.gmra.mrb[0].mxu0 %v1647
  %v1715 = vpop.f32.mrb[0].mxu0
  %v1716 = vadd.f32 0.0, %v1715
  %v1717 = vpop.f32.mrb[0].mxu0
  %v1718 = vadd.f32 0.0, %v1717
  %1719 = vdwg.mxu0
  %v1720 = vadd.f32 %v1644, %v1716
  %v1721 = vadd.f32 %v1645, %v1718
  %v1722 = vxor.u32 %v1720, 2147483648
  %v1723 = vmul.f32 %v1722, 1.442695
  %v1724 = vpow.pop %v1723
  %v1725 = vadd.f32 %v1724, 1.0
  %v1726 = vrcp.pop %v1725
  %v1727 = vmul.f32 1.0, %v1726
  %v1728 = vtanh.pop %v1721
  %v1729 = vxor.u32 %v1721, 2147483648
  %v1730 = vmul.f32 %v1729, 1.442695
  %v1731 = vpow.pop %v1730
  %v1732 = vadd.f32 %v1731, 1.0
  %v1733 = vrcp.pop %v1732
  %v1734 = vmul.f32 1.0, %v1733
  %v1735 = vmul.f32 %v1727, 0.0
  %v1736 = vmul.f32 %v1727, %v1728
  %1738 = vrot.lane.b32.xlu0 %v1736, 64
  %v1739 = vpop.permute.xlu0 %1738
  %v1741 = vadd.f32 %v1735, %v1739
  %v1742 = vtanh.pop %v1741
  %v1743 = vmul.f32 %v1734, %v1742
  %1745 = vrot.lane.b32.xlu0 %v1741, 64
  %v1746 = vpop.permute.xlu0 %1745
  %v1748 = vsel %vm1167, %v1746, 0.0
  %1750 = vrot.lane.b32.xlu0 %v1743, 64
  %v1751 = vpop.permute.xlu0 %1750
  %v1753 = vsel %vm1167, %v1751, 0.0
  %v1754 = vrot.slane %v1620, 2
  %v1755 = vrot.slane %v1621, 2
  %v1758 = vsel %vm95, %v1618, %v1754
  %v1759 = vsel %vm96, %v1619, %v1755
  %v1761 = vsel %vm350, %v1753, 0
  %1763 = vmatprep.subr.mxu0 %v1623
  %1764 = vmatpush1.msra.mxu0 %v1622
  %1765 = vmatprep.subr.mxu0 %v1625
  %1766 = vmatpush1.msra.mxu0 %v1624
  %1767 = vmatprep.subr.mxu0 %v1627
  %1768 = vmatpush1.msra.mxu0 %v1626
  %1769 = vmatprep.subr.mxu0 %v1629
  %1770 = vmatpush1.msra.mxu0 %v1628
  %1771 = vmatprep.subr.mxu0 %v1631
  %1772 = vmatpush1.msra.mxu0 %v1630
  %1773 = vmatprep.subr.mxu0 %v1633
  %1774 = vmatpush1.msra.mxu0 %v1632
  %1775 = vmatprep.subr.mxu0 %v1635
  %1776 = vmatpush1.msra.mxu0 %v1634
  %1777 = vmatprep.subr.mxu0 %v1637
  %1778 = vmatpush1.msra.mxu0 %v1636
  %1779 = vmatprep.subr.mxu0 0.0
  %1780 = vmatpush1.msra.mxu0 0.0
  %1781 = vmatprep.subr.mxu0 0.0
  %1782 = vmatpush1.msra.mxu0 0.0
  %1783 = vmatprep.subr.mxu0 0.0
  %1784 = vmatpush1.msra.mxu0 0.0
  %1785 = vmatprep.subr.mxu0 0.0
  %1786 = vmatpush1.msra.mxu0 0.0
  %1787 = vmatprep.subr.mxu0 0.0
  %1788 = vmatpush1.msra.mxu0 0.0
  %1789 = vmatprep.subr.mxu0 0.0
  %1790 = vmatpush1.msra.mxu0 0.0
  %1791 = vmatprep.subr.mxu0 0.0
  %1792 = vmatpush1.msra.mxu0 0.0
  %1793 = vmatprep.subr.mxu0 0.0
  %1794 = vmatpush1.msra.mxu0 0.0
  %1795 = vmatprep.subr.mxu0 0.0
  %1796 = vmatpush1.msra.mxu0 0.0
  %1797 = vmatprep.subr.mxu0 0.0
  %1798 = vmatpush1.msra.mxu0 0.0
  %1799 = vmatprep.subr.mxu0 0.0
  %1800 = vmatpush1.msra.mxu0 0.0
  %1801 = vmatprep.subr.mxu0 0.0
  %1802 = vmatpush1.msra.mxu0 0.0
  %1803 = vmatprep.subr.mxu0 0.0
  %1804 = vmatpush1.msra.mxu0 0.0
  %1805 = vmatprep.subr.mxu0 0.0
  %1806 = vmatpush1.msra.mxu0 0.0
  %1807 = vmatprep.subr.mxu0 0.0
  %1808 = vmatpush1.msra.mxu0 0.0
  %1809 = vmatprep.subr.mxu0 0.0
  %1810 = vmatpush1.msra.mxu0 0.0
  %1811 = vmatprep.subr.mxu0 0.0
  %1812 = vmatpush1.msra.mxu0 0.0
  %1813 = vmatprep.subr.mxu0 0.0
  %1814 = vmatpush1.msra.mxu0 0.0
  %1815 = vmatprep.subr.mxu0 0.0
  %1816 = vmatpush1.msra.mxu0 0.0
  %1817 = vmatprep.subr.mxu0 0.0
  %1818 = vmatpush1.msra.mxu0 0.0
  %1819 = vmatprep.subr.mxu0 0.0
  %1820 = vmatpush1.msra.mxu0 0.0
  %1821 = vmatprep.subr.mxu0 0.0
  %1822 = vmatpush1.msra.mxu0 0.0
  %1823 = vmatprep.subr.mxu0 0.0
  %1824 = vmatpush1.msra.mxu0 0.0
  %1825 = vmatprep.subr.mxu0 0.0
  %1826 = vmatpush1.msra.mxu0 0.0
  %1827 = vmatprep.mubr.f32.mxu0 0.0
  %1828 = vmatmul.mubr.f32.gmra.mrb[0].mxu0 %v1761
  %v1829 = vpop.f32.mrb[0].mxu0
  %v1830 = vadd.f32 0.0, %v1829
  %v1831 = vpop.f32.mrb[0].mxu0
  %v1832 = vadd.f32 0.0, %v1831
  %1833 = vdwg.mxu0
  %v1836 = vrot.slane %v1830, 6
  %v1837 = vrot.slane %v1832, 6
  %v1840 = vadd.f32 %v1758, %v1836
  %v1841 = vadd.f32 %v1759, %v1837
  %v1842 = vxor.u32 %v1840, 2147483648
  %v1843 = vmul.f32 %v1842, 1.442695
  %v1844 = vpow.pop %v1843
  %v1845 = vadd.f32 %v1844, 1.0
  %v1846 = vrcp.pop %v1845
  %v1847 = vmul.f32 1.0, %v1846
  %v1848 = vtanh.pop %v1841
  %v1849 = vxor.u32 %v1841, 2147483648
  %v1850 = vmul.f32 %v1849, 1.442695
  %v1851 = vpow.pop %v1850
  %v1852 = vadd.f32 %v1851, 1.0
  %v1853 = vrcp.pop %v1852
  %v1854 = vmul.f32 1.0, %v1853
  %v1856 = vrot.slane %v1748, 6
  %1857 = vrot.lane.b32.xlu0 %v1856, 64
  %v1858 = vpop.permute.xlu0 %1857
  %v1860 = vmul.f32 %v1847, %v1858
  %v1861 = vmul.f32 %v1847, %v1848
  %1863 = vrot.lane.b32.xlu0 %v1861, 64
  %v1864 = vpop.permute.xlu0 %1863
  %v1866 = vadd.f32 %v1860, %v1864
  %v1867 = vtanh.pop %v1866
  %v1868 = vmul.f32 %v1854, %v1867
  %v1870 = vrot.slane %v1866, 2
  %1871 = vrot.lane.b32.xlu0 %v1870, 64
  %v1872 = vpop.permute.xlu0 %1871
  %v1874 = vsel %vm1169, %v1872, %v1748
  %v1876 = vrot.slane %v1868, 2
  %1877 = vrot.lane.b32.xlu0 %v1876, 64
  %v1878 = vpop.permute.xlu0 %1877
  %v1880 = vsel %vm1169, %v1878, %v1753
  %v1881 = vsel %vm1169, %v1878, 0.0
  %v1883 = vsel %vm350, %v1880, 0
  %1885 = vmatprep.subr.mxu0 %v1623
  %1886 = vmatpush1.msra.mxu0 %v1622
  %1887 = vmatprep.subr.mxu0 %v1625
  %1888 = vmatpush1.msra.mxu0 %v1624
  %1889 = vmatprep.subr.mxu0 %v1627
  %1890 = vmatpush1.msra.mxu0 %v1626
  %1891 = vmatprep.subr.mxu0 %v1629
  %1892 = vmatpush1.msra.mxu0 %v1628
  %1893 = vmatprep.subr.mxu0 %v1631
  %1894 = vmatpush1.msra.mxu0 %v1630
  %1895 = vmatprep.subr.mxu0 %v1633
  %1896 = vmatpush1.msra.mxu0 %v1632
  %1897 = vmatprep.subr.mxu0 %v1635
  %1898 = vmatpush1.msra.mxu0 %v1634
  %1899 = vmatprep.subr.mxu0 %v1637
  %1900 = vmatpush1.msra.mxu0 %v1636
  %1901 = vmatprep.subr.mxu0 0.0
  %1902 = vmatpush1.msra.mxu0 0.0
  %1903 = vmatprep.subr.mxu0 0.0
  %1904 = vmatpush1.msra.mxu0 0.0
  %1905 = vmatprep.subr.mxu0 0.0
  %1906 = vmatpush1.msra.mxu0 0.0
  %1907 = vmatprep.subr.mxu0 0.0
  %1908 = vmatpush1.msra.mxu0 0.0
  %1909 = vmatprep.subr.mxu0 0.0
  %1910 = vmatpush1.msra.mxu0 0.0
  %1911 = vmatprep.subr.mxu0 0.0
  %1912 = vmatpush1.msra.mxu0 0.0
  %1913 = vmatprep.subr.mxu0 0.0
  %1914 = vmatpush1.msra.mxu0 0.0
  %1915 = vmatprep.subr.mxu0 0.0
  %1916 = vmatpush1.msra.mxu0 0.0
  %1917 = vmatprep.subr.mxu0 0.0
  %1918 = vmatpush1.msra.mxu0 0.0
  %1919 = vmatprep.subr.mxu0 0.0
  %1920 = vmatpush1.msra.mxu0 0.0
  %1921 = vmatprep.subr.mxu0 0.0
  %1922 = vmatpush1.msra.mxu0 0.0
  %1923 = vmatprep.subr.mxu0 0.0
  %1924 = vmatpush1.msra.mxu0 0.0
  %1925 = vmatprep.subr.mxu0 0.0
  %1926 = vmatpush1.msra.mxu0 0.0
  %1927 = vmatprep.subr.mxu0 0.0
  %1928 = vmatpush1.msra.mxu0 0.0
  %1929 = vmatprep.subr.mxu0 0.0
  %1930 = vmatpush1.msra.mxu0 0.0
  %1931 = vmatprep.subr.mxu0 0.0
  %1932 = vmatpush1.msra.mxu0 0.0
  %1933 = vmatprep.subr.mxu0 0.0
  %1934 = vmatpush1.msra.mxu0 0.0
  %1935 = vmatprep.subr.mxu0 0.0
  %1936 = vmatpush1.msra.mxu0 0.0
  %1937 = vmatprep.subr.mxu0 0.0
  %1938 = vmatpush1.msra.mxu0 0.0
  %1939 = vmatprep.subr.mxu0 0.0
  %1940 = vmatpush1.msra.mxu0 0.0
  %1941 = vmatprep.subr.mxu0 0.0
  %1942 = vmatpush1.msra.mxu0 0.0
  %1943 = vmatprep.subr.mxu0 0.0
  %1944 = vmatpush1.msra.mxu0 0.0
  %1945 = vmatprep.subr.mxu0 0.0
  %1946 = vmatpush1.msra.mxu0 0.0
  %1947 = vmatprep.subr.mxu0 0.0
  %1948 = vmatpush1.msra.mxu0 0.0
  %1949 = vmatprep.mubr.f32.mxu0 0.0
  %1950 = vmatmul.mubr.f32.gmra.mrb[0].mxu0 %v1883
  %v1951 = vpop.f32.mrb[0].mxu0
  %v1952 = vadd.f32 0.0, %v1951
  %v1953 = vpop.f32.mrb[0].mxu0
  %v1954 = vadd.f32 0.0, %v1953
  %1955 = vdwg.mxu0
  %v1958 = vrot.slane %v1952, 4
  %v1959 = vrot.slane %v1954, 4
  %v1962 = vadd.f32 %v1644, %v1958
  %v1963 = vadd.f32 %v1645, %v1959
  %v1964 = vxor.u32 %v1962, 2147483648
  %v1965 = vmul.f32 %v1964, 1.442695
  %v1966 = vpow.pop %v1965
  %v1967 = vadd.f32 %v1966, 1.0
  %v1968 = vrcp.pop %v1967
  %v1969 = vmul.f32 1.0, %v1968
  %v1970 = vtanh.pop %v1963
  %v1971 = vxor.u32 %v1963, 2147483648
  %v1972 = vmul.f32 %v1971, 1.442695
  %v1973 = vpow.pop %v1972
  %v1974 = vadd.f32 %v1973, 1.0
  %v1975 = vrcp.pop %v1974
  %v1976 = vmul.f32 1.0, %v1975
  %v1978 = vrot.slane %v1874, 4
  %1979 = vrot.lane.b32.xlu0 %v1978, 64
  %v1980 = vpop.permute.xlu0 %1979
  %v1982 = vmul.f32 %v1969, %v1980
  %v1983 = vmul.f32 %v1969, %v1970
  %1985 = vrot.lane.b32.xlu0 %v1983, 64
  %v1986 = vpop.permute.xlu0 %1985
  %v1988 = vadd.f32 %v1982, %v1986
  %v1989 = vtanh.pop %v1988
  %v1990 = vmul.f32 %v1976, %v1989
  %v1992 = vrot.slane %v1988, 4
  %1993 = vrot.lane.b32.xlu0 %v1992, 64
  %v1994 = vpop.permute.xlu0 %1993
  %v1996 = vsel %vm1171, %v1994, %v1874
  %v1998 = vrot.slane %v1990, 4
  %1999 = vrot.lane.b32.xlu0 %v1998, 64
  %v2000 = vpop.permute.xlu0 %1999
  %v2002 = vsel %vm1171, %v2000, %v1880
  %v2003 = vsel %vm1171, %v2000, 0.0
  %v2005 = vsel %vm350, %v2002, 0
  %2007 = vmatprep.subr.mxu0 %v1623
  %2008 = vmatpush1.msra.mxu0 %v1622
  %2009 = vmatprep.subr.mxu0 %v1625
  %2010 = vmatpush1.msra.mxu0 %v1624
  %2011 = vmatprep.subr.mxu0 %v1627
  %2012 = vmatpush1.msra.mxu0 %v1626
  %2013 = vmatprep.subr.mxu0 %v1629
  %2014 = vmatpush1.msra.mxu0 %v1628
  %2015 = vmatprep.subr.mxu0 %v1631
  %2016 = vmatpush1.msra.mxu0 %v1630
  %2017 = vmatprep.subr.mxu0 %v1633
  %2018 = vmatpush1.msra.mxu0 %v1632
  %2019 = vmatprep.subr.mxu0 %v1635
  %2020 = vmatpush1.msra.mxu0 %v1634
  %2021 = vmatprep.subr.mxu0 %v1637
  %2022 = vmatpush1.msra.mxu0 %v1636
  %2023 = vmatprep.subr.mxu0 0.0
  %2024 = vmatpush1.msra.mxu0 0.0
  %2025 = vmatprep.subr.mxu0 0.0
  %2026 = vmatpush1.msra.mxu0 0.0
  %2027 = vmatprep.subr.mxu0 0.0
  %2028 = vmatpush1.msra.mxu0 0.0
  %2029 = vmatprep.subr.mxu0 0.0
  %2030 = vmatpush1.msra.mxu0 0.0
  %2031 = vmatprep.subr.mxu0 0.0
  %2032 = vmatpush1.msra.mxu0 0.0
  %2033 = vmatprep.subr.mxu0 0.0
  %2034 = vmatpush1.msra.mxu0 0.0
  %2035 = vmatprep.subr.mxu0 0.0
  %2036 = vmatpush1.msra.mxu0 0.0
  %2037 = vmatprep.subr.mxu0 0.0
  %2038 = vmatpush1.msra.mxu0 0.0
  %2039 = vmatprep.subr.mxu0 0.0
  %2040 = vmatpush1.msra.mxu0 0.0
  %2041 = vmatprep.subr.mxu0 0.0
  %2042 = vmatpush1.msra.mxu0 0.0
  %2043 = vmatprep.subr.mxu0 0.0
  %2044 = vmatpush1.msra.mxu0 0.0
  %2045 = vmatprep.subr.mxu0 0.0
  %2046 = vmatpush1.msra.mxu0 0.0
  %2047 = vmatprep.subr.mxu0 0.0
  %2048 = vmatpush1.msra.mxu0 0.0
  %2049 = vmatprep.subr.mxu0 0.0
  %2050 = vmatpush1.msra.mxu0 0.0
  %2051 = vmatprep.subr.mxu0 0.0
  %2052 = vmatpush1.msra.mxu0 0.0
  %2053 = vmatprep.subr.mxu0 0.0
  %2054 = vmatpush1.msra.mxu0 0.0
  %2055 = vmatprep.subr.mxu0 0.0
  %2056 = vmatpush1.msra.mxu0 0.0
  %2057 = vmatprep.subr.mxu0 0.0
  %2058 = vmatpush1.msra.mxu0 0.0
  %2059 = vmatprep.subr.mxu0 0.0
  %2060 = vmatpush1.msra.mxu0 0.0
  %2061 = vmatprep.subr.mxu0 0.0
  %2062 = vmatpush1.msra.mxu0 0.0
  %2063 = vmatprep.subr.mxu0 0.0
  %2064 = vmatpush1.msra.mxu0 0.0
  %2065 = vmatprep.subr.mxu0 0.0
  %2066 = vmatpush1.msra.mxu0 0.0
  %2067 = vmatprep.subr.mxu0 0.0
  %2068 = vmatpush1.msra.mxu0 0.0
  %2069 = vmatprep.subr.mxu0 0.0
  %2070 = vmatpush1.msra.mxu0 0.0
  %2071 = vmatprep.mubr.f32.mxu0 0.0
  %2072 = vmatmul.mubr.f32.gmra.mrb[0].mxu0 %v2005
  %v2073 = vpop.f32.mrb[0].mxu0
  %v2074 = vadd.f32 0.0, %v2073
  %v2075 = vpop.f32.mrb[0].mxu0
  %v2076 = vadd.f32 0.0, %v2075
  %2077 = vdwg.mxu0
  %v2080 = vrot.slane %v2074, 2
  %v2081 = vrot.slane %v2076, 2
  %v2084 = vadd.f32 %v1758, %v2080
  %v2085 = vadd.f32 %v1759, %v2081
  %v2086 = vxor.u32 %v2084, 2147483648
  %v2087 = vmul.f32 %v2086, 1.442695
  %v2088 = vpow.pop %v2087
  %v2089 = vadd.f32 %v2088, 1.0
  %v2090 = vrcp.pop %v2089
  %v2091 = vmul.f32 1.0, %v2090
  %v2092 = vtanh.pop %v2085
  %v2093 = vxor.u32 %v2085, 2147483648
  %v2094 = vmul.f32 %v2093, 1.442695
  %v2095 = vpow.pop %v2094
  %v2096 = vadd.f32 %v2095, 1.0
  %v2097 = vrcp.pop %v2096
  %v2098 = vmul.f32 1.0, %v2097
  %v2100 = vrot.slane %v1996, 2
  %2101 = vrot.lane.b32.xlu0 %v2100, 64
  %v2102 = vpop.permute.xlu0 %2101
  %v2104 = vmul.f32 %v2091, %v2102
  %v2105 = vmul.f32 %v2091, %v2092
  %2107 = vrot.lane.b32.xlu0 %v2105, 64
  %v2108 = vpop.permute.xlu0 %2107
  %v2110 = vadd.f32 %v2104, %v2108
  %v2111 = vtanh.pop %v2110
  %v2112 = vmul.f32 %v2098, %v2111
  %v2114 = vrot.slane %v2110, 6
  %2115 = vrot.lane.b32.xlu0 %v2114, 64
  %v2116 = vpop.permute.xlu0 %2115
  %v2118 = vsel %vm1173, %v2116, %v1996
  %v2120 = vrot.slane %v2112, 6
  %2121 = vrot.lane.b32.xlu0 %v2120, 64
  %v2122 = vpop.permute.xlu0 %2121
  %v2124 = vsel %vm1173, %v2122, %v2002
  %v2125 = vsel %vm1173, %v2122, 0.0
  %v2128 = vrot.slane %v1618, 6
  %v2129 = vrot.slane %v1619, 6
  %v2132 = vsel %vm95, %v1620, %v2128
  %v2133 = vsel %vm96, %v1621, %v2129
  %v2135 = vsel %vm350, %v2124, 0
  %2137 = vmatprep.subr.mxu0 %v1623
  %2138 = vmatpush1.msra.mxu0 %v1622
  %2139 = vmatprep.subr.mxu0 %v1625
  %2140 = vmatpush1.msra.mxu0 %v1624
  %2141 = vmatprep.subr.mxu0 %v1627
  %2142 = vmatpush1.msra.mxu0 %v1626
  %2143 = vmatprep.subr.mxu0 %v1629
  %2144 = vmatpush1.msra.mxu0 %v1628
  %2145 = vmatprep.subr.mxu0 %v1631
  %2146 = vmatpush1.msra.mxu0 %v1630
  %2147 = vmatprep.subr.mxu0 %v1633
  %2148 = vmatpush1.msra.mxu0 %v1632
  %2149 = vmatprep.subr.mxu0 %v1635
  %2150 = vmatpush1.msra.mxu0 %v1634
  %2151 = vmatprep.subr.mxu0 %v1637
  %2152 = vmatpush1.msra.mxu0 %v1636
  %2153 = vmatprep.subr.mxu0 0.0
  %2154 = vmatpush1.msra.mxu0 0.0
  %2155 = vmatprep.subr.mxu0 0.0
  %2156 = vmatpush1.msra.mxu0 0.0
  %2157 = vmatprep.subr.mxu0 0.0
  %2158 = vmatpush1.msra.mxu0 0.0
  %2159 = vmatprep.subr.mxu0 0.0
  %2160 = vmatpush1.msra.mxu0 0.0
  %2161 = vmatprep.subr.mxu0 0.0
  %2162 = vmatpush1.msra.mxu0 0.0
  %2163 = vmatprep.subr.mxu0 0.0
  %2164 = vmatpush1.msra.mxu0 0.0
  %2165 = vmatprep.subr.mxu0 0.0
  %2166 = vmatpush1.msra.mxu0 0.0
  %2167 = vmatprep.subr.mxu0 0.0
  %2168 = vmatpush1.msra.mxu0 0.0
  %2169 = vmatprep.subr.mxu0 0.0
  %2170 = vmatpush1.msra.mxu0 0.0
  %2171 = vmatprep.subr.mxu0 0.0
  %2172 = vmatpush1.msra.mxu0 0.0
  %2173 = vmatprep.subr.mxu0 0.0
  %2174 = vmatpush1.msra.mxu0 0.0
  %2175 = vmatprep.subr.mxu0 0.0
  %2176 = vmatpush1.msra.mxu0 0.0
  %2177 = vmatprep.subr.mxu0 0.0
  %2178 = vmatpush1.msra.mxu0 0.0
  %2179 = vmatprep.subr.mxu0 0.0
  %2180 = vmatpush1.msra.mxu0 0.0
  %2181 = vmatprep.subr.mxu0 0.0
  %2182 = vmatpush1.msra.mxu0 0.0
  %2183 = vmatprep.subr.mxu0 0.0
  %2184 = vmatpush1.msra.mxu0 0.0
  %2185 = vmatprep.subr.mxu0 0.0
  %2186 = vmatpush1.msra.mxu0 0.0
  %2187 = vmatprep.subr.mxu0 0.0
  %2188 = vmatpush1.msra.mxu0 0.0
  %2189 = vmatprep.subr.mxu0 0.0
  %2190 = vmatpush1.msra.mxu0 0.0
  %2191 = vmatprep.subr.mxu0 0.0
  %2192 = vmatpush1.msra.mxu0 0.0
  %2193 = vmatprep.subr.mxu0 0.0
  %2194 = vmatpush1.msra.mxu0 0.0
  %2195 = vmatprep.subr.mxu0 0.0
  %2196 = vmatpush1.msra.mxu0 0.0
  %2197 = vmatprep.subr.mxu0 0.0
  %2198 = vmatpush1.msra.mxu0 0.0
  %2199 = vmatprep.subr.mxu0 0.0
  %2200 = vmatpush1.msra.mxu0 0.0
  %2201 = vmatprep.mubr.f32.mxu0 0.0
  %2202 = vmatmul.mubr.f32.gmra.mrb[0].mxu0 %v2135
  %v2203 = vpop.f32.mrb[0].mxu0
  %v2204 = vadd.f32 0.0, %v2203
  %v2205 = vpop.f32.mrb[0].mxu0
  %v2206 = vadd.f32 0.0, %v2205
  %2207 = vdwg.mxu0
  %v2208 = vadd.f32 %v2132, %v2204
  %v2209 = vadd.f32 %v2133, %v2206
  %v2210 = vxor.u32 %v2208, 2147483648
  %v2211 = vmul.f32 %v2210, 1.442695
  %v2212 = vpow.pop %v2211
  %v2213 = vadd.f32 %v2212, 1.0
  %v2214 = vrcp.pop %v2213
  %v2215 = vmul.f32 1.0, %v2214
  %v2216 = vtanh.pop %v2209
  %v2217 = vxor.u32 %v2209, 2147483648
  %v2218 = vmul.f32 %v2217, 1.442695
  %v2219 = vpow.pop %v2218
  %v2220 = vadd.f32 %v2219, 1.0
  %v2221 = vrcp.pop %v2220
  %v2222 = vmul.f32 1.0, %v2221
  %2224 = vrot.lane.b32.xlu0 %v2118, 64
  %v2225 = vpop.permute.xlu0 %2224
  %v2227 = vmul.f32 %v2215, %v2225
  %v2228 = vmul.f32 %v2215, %v2216
  %2230 = vrot.lane.b32.xlu0 %v2228, 64
  %v2231 = vpop.permute.xlu0 %2230
  %v2233 = vadd.f32 %v2227, %v2231
  %v2234 = vtanh.pop %v2233
  %v2235 = vmul.f32 %v2222, %v2234
  %2237 = vrot.lane.b32.xlu0 %v2233, 64
  %v2238 = vpop.permute.xlu0 %2237
  %v2240 = vsel %vm1175, %v2238, %v2118
  %2242 = vrot.lane.b32.xlu0 %v2235, 64
  %v2243 = vpop.permute.xlu0 %2242
  %v2245 = vsel %vm1175, %v2243, %v2124
  %v2246 = vsel %vm1175, %v2243, 0.0
  %v2247 = vrot.slane %v1618, 2
  %v2248 = vrot.slane %v1619, 2
  %v2251 = vsel %vm95, %v1620, %v2247
  %v2252 = vsel %vm96, %v1621, %v2248
  %v2254 = vsel %vm350, %v2245, 0
  %2256 = vmatprep.subr.mxu0 %v1623
  %2257 = vmatpush1.msra.mxu0 %v1622
  %2258 = vmatprep.subr.mxu0 %v1625
  %2259 = vmatpush1.msra.mxu0 %v1624
  %2260 = vmatprep.subr.mxu0 %v1627
  %2261 = vmatpush1.msra.mxu0 %v1626
  %2262 = vmatprep.subr.mxu0 %v1629
  %2263 = vmatpush1.msra.mxu0 %v1628
  %2264 = vmatprep.subr.mxu0 %v1631
  %2265 = vmatpush1.msra.mxu0 %v1630
  %2266 = vmatprep.subr.mxu0 %v1633
  %2267 = vmatpush1.msra.mxu0 %v1632
  %2268 = vmatprep.subr.mxu0 %v1635
  %2269 = vmatpush1.msra.mxu0 %v1634
  %2270 = vmatprep.subr.mxu0 %v1637
  %2271 = vmatpush1.msra.mxu0 %v1636
  %2272 = vmatprep.subr.mxu0 0.0
  %2273 = vmatpush1.msra.mxu0 0.0
  %2274 = vmatprep.subr.mxu0 0.0
  %2275 = vmatpush1.msra.mxu0 0.0
  %2276 = vmatprep.subr.mxu0 0.0
  %2277 = vmatpush1.msra.mxu0 0.0
  %2278 = vmatprep.subr.mxu0 0.0
  %2279 = vmatpush1.msra.mxu0 0.0
  %2280 = vmatprep.subr.mxu0 0.0
  %2281 = vmatpush1.msra.mxu0 0.0
  %2282 = vmatprep.subr.mxu0 0.0
  %2283 = vmatpush1.msra.mxu0 0.0
  %2284 = vmatprep.subr.mxu0 0.0
  %2285 = vmatpush1.msra.mxu0 0.0
  %2286 = vmatprep.subr.mxu0 0.0
  %2287 = vmatpush1.msra.mxu0 0.0
  %2288 = vmatprep.subr.mxu0 0.0
  %2289 = vmatpush1.msra.mxu0 0.0
  %2290 = vmatprep.subr.mxu0 0.0
  %2291 = vmatpush1.msra.mxu0 0.0
  %2292 = vmatprep.subr.mxu0 0.0
  %2293 = vmatpush1.msra.mxu0 0.0
  %2294 = vmatprep.subr.mxu0 0.0
  %2295 = vmatpush1.msra.mxu0 0.0
  %2296 = vmatprep.subr.mxu0 0.0
  %2297 = vmatpush1.msra.mxu0 0.0
  %2298 = vmatprep.subr.mxu0 0.0
  %2299 = vmatpush1.msra.mxu0 0.0
  %2300 = vmatprep.subr.mxu0 0.0
  %2301 = vmatpush1.msra.mxu0 0.0
  %2302 = vmatprep.subr.mxu0 0.0
  %2303 = vmatpush1.msra.mxu0 0.0
  %2304 = vmatprep.subr.mxu0 0.0
  %2305 = vmatpush1.msra.mxu0 0.0
  %2306 = vmatprep.subr.mxu0 0.0
  %2307 = vmatpush1.msra.mxu0 0.0
  %2308 = vmatprep.subr.mxu0 0.0
  %2309 = vmatpush1.msra.mxu0 0.0
  %2310 = vmatprep.subr.mxu0 0.0
  %2311 = vmatpush1.msra.mxu0 0.0
  %2312 = vmatprep.subr.mxu0 0.0
  %2313 = vmatpush1.msra.mxu0 0.0
  %2314 = vmatprep.subr.mxu0 0.0
  %2315 = vmatpush1.msra.mxu0 0.0
  %2316 = vmatprep.subr.mxu0 0.0
  %2317 = vmatpush1.msra.mxu0 0.0
  %2318 = vmatprep.subr.mxu0 0.0
  %2319 = vmatpush1.msra.mxu0 0.0
  %2320 = vmatprep.mubr.f32.mxu0 0.0
  %2321 = vmatmul.mubr.f32.gmra.mrb[0].mxu0 %v2254
  %v2322 = vpop.f32.mrb[0].mxu0
  %v2323 = vadd.f32 0.0, %v2322
  %v2324 = vpop.f32.mrb[0].mxu0
  %v2325 = vadd.f32 0.0, %v2324
  %2326 = vdwg.mxu0
  %v2329 = vrot.slane %v2323, 6
  %v2330 = vrot.slane %v2325, 6
  %v2333 = vadd.f32 %v2251, %v2329
  %v2334 = vadd.f32 %v2252, %v2330
  %v2335 = vxor.u32 %v2333, 2147483648
  %v2336 = vmul.f32 %v2335, 1.442695
  %v2337 = vpow.pop %v2336
  %v2338 = vadd.f32 %v2337, 1.0
  %v2339 = vrcp.pop %v2338
  %v2340 = vmul.f32 1.0, %v2339
  %v2341 = vtanh.pop %v2334
  %v2342 = vxor.u32 %v2334, 2147483648
  %v2343 = vmul.f32 %v2342, 1.442695
  %v2344 = vpow.pop %v2343
  %v2345 = vadd.f32 %v2344, 1.0
  %v2346 = vrcp.pop %v2345
  %v2347 = vmul.f32 1.0, %v2346
  %v2349 = vrot.slane %v2240, 6
  %2350 = vrot.lane.b32.xlu0 %v2349, 64
  %v2351 = vpop.permute.xlu0 %2350
  %v2353 = vmul.f32 %v2340, %v2351
  %v2354 = vmul.f32 %v2340, %v2341
  %2356 = vrot.lane.b32.xlu0 %v2354, 64
  %v2357 = vpop.permute.xlu0 %2356
  %v2359 = vadd.f32 %v2353, %v2357
  %v2360 = vtanh.pop %v2359
  %v2361 = vmul.f32 %v2347, %v2360
  %v2363 = vrot.slane %v2359, 2
  %2364 = vrot.lane.b32.xlu0 %v2363, 64
  %v2365 = vpop.permute.xlu0 %2364
  %v2367 = vsel %vm1177, %v2365, %v2240
  %v2369 = vrot.slane %v2361, 2
  %2370 = vrot.lane.b32.xlu0 %v2369, 64
  %v2371 = vpop.permute.xlu0 %2370
  %v2373 = vsel %vm1177, %v2371, %v2245
  %v2374 = vsel %vm1177, %v2371, 0.0
  %v2376 = vsel %vm350, %v2373, 0
  %2378 = vmatprep.subr.mxu0 %v1623
  %2379 = vmatpush1.msra.mxu0 %v1622
  %2380 = vmatprep.subr.mxu0 %v1625
  %2381 = vmatpush1.msra.mxu0 %v1624
  %2382 = vmatprep.subr.mxu0 %v1627
  %2383 = vmatpush1.msra.mxu0 %v1626
  %2384 = vmatprep.subr.mxu0 %v1629
  %2385 = vmatpush1.msra.mxu0 %v1628
  %2386 = vmatprep.subr.mxu0 %v1631
  %2387 = vmatpush1.msra.mxu0 %v1630
  %2388 = vmatprep.subr.mxu0 %v1633
  %2389 = vmatpush1.msra.mxu0 %v1632
  %2390 = vmatprep.subr.mxu0 %v1635
  %2391 = vmatpush1.msra.mxu0 %v1634
  %2392 = vmatprep.subr.mxu0 %v1637
  %2393 = vmatpush1.msra.mxu0 %v1636
  %2394 = vmatprep.subr.mxu0 0.0
  %2395 = vmatpush1.msra.mxu0 0.0
  %2396 = vmatprep.subr.mxu0 0.0
  %2397 = vmatpush1.msra.mxu0 0.0
  %2398 = vmatprep.subr.mxu0 0.0
  %2399 = vmatpush1.msra.mxu0 0.0
  %2400 = vmatprep.subr.mxu0 0.0
  %2401 = vmatpush1.msra.mxu0 0.0
  %2402 = vmatprep.subr.mxu0 0.0
  %2403 = vmatpush1.msra.mxu0 0.0
  %2404 = vmatprep.subr.mxu0 0.0
  %2405 = vmatpush1.msra.mxu0 0.0
  %2406 = vmatprep.subr.mxu0 0.0
  %2407 = vmatpush1.msra.mxu0 0.0
  %2408 = vmatprep.subr.mxu0 0.0
  %2409 = vmatpush1.msra.mxu0 0.0
  %2410 = vmatprep.subr.mxu0 0.0
  %2411 = vmatpush1.msra.mxu0 0.0
  %2412 = vmatprep.subr.mxu0 0.0
  %2413 = vmatpush1.msra.mxu0 0.0
  %2414 = vmatprep.subr.mxu0 0.0
  %2415 = vmatpush1.msra.mxu0 0.0
  %2416 = vmatprep.subr.mxu0 0.0
  %2417 = vmatpush1.msra.mxu0 0.0
  %2418 = vmatprep.subr.mxu0 0.0
  %2419 = vmatpush1.msra.mxu0 0.0
  %2420 = vmatprep.subr.mxu0 0.0
  %2421 = vmatpush1.msra.mxu0 0.0
  %2422 = vmatprep.subr.mxu0 0.0
  %2423 = vmatpush1.msra.mxu0 0.0
  %2424 = vmatprep.subr.mxu0 0.0
  %2425 = vmatpush1.msra.mxu0 0.0
  %2426 = vmatprep.subr.mxu0 0.0
  %2427 = vmatpush1.msra.mxu0 0.0
  %2428 = vmatprep.subr.mxu0 0.0
  %2429 = vmatpush1.msra.mxu0 0.0
  %2430 = vmatprep.subr.mxu0 0.0
  %2431 = vmatpush1.msra.mxu0 0.0
  %2432 = vmatprep.subr.mxu0 0.0
  %2433 = vmatpush1.msra.mxu0 0.0
  %2434 = vmatprep.subr.mxu0 0.0
  %2435 = vmatpush1.msra.mxu0 0.0
  %2436 = vmatprep.subr.mxu0 0.0
  %2437 = vmatpush1.msra.mxu0 0.0
  %2438 = vmatprep.subr.mxu0 0.0
  %2439 = vmatpush1.msra.mxu0 0.0
  %2440 = vmatprep.subr.mxu0 0.0
  %2441 = vmatpush1.msra.mxu0 0.0
  %2442 = vmatprep.mubr.f32.mxu0 0.0
  %2443 = vmatmul.mubr.f32.gmra.mrb[0].mxu0 %v2376
  %v2444 = vpop.f32.mrb[0].mxu0
  %v2445 = vadd.f32 0.0, %v2444
  %v2446 = vpop.f32.mrb[0].mxu0
  %v2447 = vadd.f32 0.0, %v2446
  %2448 = vdwg.mxu0
  %v2451 = vrot.slane %v2445, 4
  %v2452 = vrot.slane %v2447, 4
  %v2455 = vadd.f32 %v2132, %v2451
  %v2456 = vadd.f32 %v2133, %v2452
  %v2457 = vxor.u32 %v2455, 2147483648
  %v2458 = vmul.f32 %v2457, 1.442695
  %v2459 = vpow.pop %v2458
  %v2460 = vadd.f32 %v2459, 1.0
  %v2461 = vrcp.pop %v2460
  %v2462 = vmul.f32 1.0, %v2461
  %v2463 = vtanh.pop %v2456
  %v2464 = vxor.u32 %v2456, 2147483648
  %v2465 = vmul.f32 %v2464, 1.442695
  %v2466 = vpow.pop %v2465
  %v2467 = vadd.f32 %v2466, 1.0
  %v2468 = vrcp.pop %v2467
  %v2469 = vmul.f32 1.0, %v2468
  %v2471 = vrot.slane %v2367, 4
  %2472 = vrot.lane.b32.xlu0 %v2471, 64
  %v2473 = vpop.permute.xlu0 %2472
  %v2475 = vmul.f32 %v2462, %v2473
  %v2476 = vmul.f32 %v2462, %v2463
  %2478 = vrot.lane.b32.xlu0 %v2476, 64
  %v2479 = vpop.permute.xlu0 %2478
  %v2481 = vadd.f32 %v2475, %v2479
  %v2482 = vtanh.pop %v2481
  %v2483 = vmul.f32 %v2469, %v2482
  %v2485 = vrot.slane %v2481, 4
  %2486 = vrot.lane.b32.xlu0 %v2485, 64
  %v2487 = vpop.permute.xlu0 %2486
  %v2489 = vsel %vm1179, %v2487, %v2367
  %v2491 = vrot.slane %v2483, 4
  %2492 = vrot.lane.b32.xlu0 %v2491, 64
  %v2493 = vpop.permute.xlu0 %2492
  %v2495 = vsel %vm1179, %v2493, %v2373
  %v2496 = vsel %vm1179, %v2493, 0.0
  %v2498 = vsel %vm350, %v2495, 0
  %2500 = vmatprep.subr.mxu0 %v1623
  %2501 = vmatpush1.msra.mxu0 %v1622
  %2502 = vmatprep.subr.mxu0 %v1625
  %2503 = vmatpush1.msra.mxu0 %v1624
  %2504 = vmatprep.subr.mxu0 %v1627
  %2505 = vmatpush1.msra.mxu0 %v1626
  %2506 = vmatprep.subr.mxu0 %v1629
  %2507 = vmatpush1.msra.mxu0 %v1628
  %2508 = vmatprep.subr.mxu0 %v1631
  %2509 = vmatpush1.msra.mxu0 %v1630
  %2510 = vmatprep.subr.mxu0 %v1633
  %2511 = vmatpush1.msra.mxu0 %v1632
  %2512 = vmatprep.subr.mxu0 %v1635
  %2513 = vmatpush1.msra.mxu0 %v1634
  %2514 = vmatprep.subr.mxu0 %v1637
  %2515 = vmatpush1.msra.mxu0 %v1636
  %2516 = vmatprep.subr.mxu0 0.0
  %2517 = vmatpush1.msra.mxu0 0.0
  %2518 = vmatprep.subr.mxu0 0.0
  %2519 = vmatpush1.msra.mxu0 0.0
  %2520 = vmatprep.subr.mxu0 0.0
  %2521 = vmatpush1.msra.mxu0 0.0
  %2522 = vmatprep.subr.mxu0 0.0
  %2523 = vmatpush1.msra.mxu0 0.0
  %2524 = vmatprep.subr.mxu0 0.0
  %2525 = vmatpush1.msra.mxu0 0.0
  %2526 = vmatprep.subr.mxu0 0.0
  %2527 = vmatpush1.msra.mxu0 0.0
  %2528 = vmatprep.subr.mxu0 0.0
  %2529 = vmatpush1.msra.mxu0 0.0
  %2530 = vmatprep.subr.mxu0 0.0
  %2531 = vmatpush1.msra.mxu0 0.0
  %2532 = vmatprep.subr.mxu0 0.0
  %2533 = vmatpush1.msra.mxu0 0.0
  %2534 = vmatprep.subr.mxu0 0.0
  %2535 = vmatpush1.msra.mxu0 0.0
  %2536 = vmatprep.subr.mxu0 0.0
  %2537 = vmatpush1.msra.mxu0 0.0
  %2538 = vmatprep.subr.mxu0 0.0
  %2539 = vmatpush1.msra.mxu0 0.0
  %2540 = vmatprep.subr.mxu0 0.0
  %2541 = vmatpush1.msra.mxu0 0.0
  %2542 = vmatprep.subr.mxu0 0.0
  %2543 = vmatpush1.msra.mxu0 0.0
  %2544 = vmatprep.subr.mxu0 0.0
  %2545 = vmatpush1.msra.mxu0 0.0
  %2546 = vmatprep.subr.mxu0 0.0
  %2547 = vmatpush1.msra.mxu0 0.0
  %2548 = vmatprep.subr.mxu0 0.0
  %2549 = vmatpush1.msra.mxu0 0.0
  %2550 = vmatprep.subr.mxu0 0.0
  %2551 = vmatpush1.msra.mxu0 0.0
  %2552 = vmatprep.subr.mxu0 0.0
  %2553 = vmatpush1.msra.mxu0 0.0
  %2554 = vmatprep.subr.mxu0 0.0
  %2555 = vmatpush1.msra.mxu0 0.0
  %2556 = vmatprep.subr.mxu0 0.0
  %2557 = vmatpush1.msra.mxu0 0.0
  %2558 = vmatprep.subr.mxu0 0.0
  %2559 = vmatpush1.msra.mxu0 0.0
  %2560 = vmatprep.subr.mxu0 0.0
  %2561 = vmatpush1.msra.mxu0 0.0
  %2562 = vmatprep.subr.mxu0 0.0
  %2563 = vmatpush1.msra.mxu0 0.0
  %2564 = vmatprep.mubr.f32.mxu0 0.0
  %2565 = vmatmul.mubr.f32.gmra.mrb[0].mxu0 %v2498
  %v2566 = vpop.f32.mrb[0].mxu0
  %v2567 = vadd.f32 0.0, %v2566
  %v2568 = vpop.f32.mrb[0].mxu0
  %v2569 = vadd.f32 0.0, %v2568
  %2570 = vdwg.mxu0
  %v2573 = vrot.slane %v2567, 2
  %v2574 = vrot.slane %v2569, 2
  %v2577 = vadd.f32 %v2251, %v2573
  %v2578 = vadd.f32 %v2252, %v2574
  %v2579 = vxor.u32 %v2577, 2147483648
  %v2580 = vmul.f32 %v2579, 1.442695
  %v2581 = vpow.pop %v2580
  %v2582 = vadd.f32 %v2581, 1.0
  %v2583 = vrcp.pop %v2582
  %v2584 = vmul.f32 1.0, %v2583
  %v2585 = vtanh.pop %v2578
  %v2586 = vxor.u32 %v2578, 2147483648
  %v2587 = vmul.f32 %v2586, 1.442695
  %v2588 = vpow.pop %v2587
  %v2589 = vadd.f32 %v2588, 1.0
  %v2590 = vrcp.pop %v2589
  %v2591 = vmul.f32 1.0, %v2590
  %v2593 = vrot.slane %v2489, 2
  %2594 = vrot.lane.b32.xlu0 %v2593, 64
  %v2595 = vpop.permute.xlu0 %2594
  %v2597 = vmul.f32 %v2584, %v2595
  %v2598 = vmul.f32 %v2584, %v2585
  %2600 = vrot.lane.b32.xlu0 %v2598, 64
  %v2601 = vpop.permute.xlu0 %2600
  %v2603 = vadd.f32 %v2597, %v2601
  %v2604 = vtanh.pop %v2603
  %v2605 = vmul.f32 %v2591, %v2604
  %v2607 = vrot.slane %v2605, 6
  %2608 = vrot.lane.b32.xlu0 %v2607, 64
  %v2609 = vpop.permute.xlu0 %2608
  %v2611 = vsel %vm1181, %v2609, 0.0
  %v2612 = vsel %vm97, %v1753, %v2611
  %v2613 = vsel %vm97, %v1881, %v2496
  %v2614 = vsel %vm97, %v2003, %v2374
  %v2615 = vsel %vm97, %v2125, %v2246
  %v2616 = vsel %vm97, %v2246, %v2125
  %v2617 = vsel %vm97, %v2374, %v2003
  %v2618 = vsel %vm97, %v2496, %v1881
  %v2619 = vsel %vm97, %v2611, %v1753
  %v2620 = vld [vmem:[%s15] sm:$0xff]
  %v2621 = vld [vmem:[%s15 + $0x8] sm:$0xff]
  %v2622 = vld [vmem:[%s15 + $0x10] sm:$0xff]
  %v2623 = vld [vmem:[%s15 + $0x18] sm:$0xff]
  %v2624 = vld [vmem:[%s15 + $0x20] sm:$0xff]
  %v2625 = vld [vmem:[%s15 + $0x28] sm:$0xff]
  %v2626 = vld [vmem:[%s15 + $0x30] sm:$0xff]
  %v2627 = vld [vmem:[%s15 + $0x38] sm:$0xff]
  %v2628 = vld [vmem:[%s15 + $0x40] sm:$0xff]
  %v2629 = vld [vmem:[%s15 + $0x48] sm:$0xff]
  %v2630 = vld [vmem:[%s15 + $0x50] sm:$0xff]
  %v2631 = vld [vmem:[%s15 + $0x58] sm:$0xff]
  %v2632 = vld [vmem:[%s15 + $0x60] sm:$0xff]
  %v2633 = vld [vmem:[%s15 + $0x68] sm:$0xff]
  %v2634 = vld [vmem:[%s15 + $0x70] sm:$0xff]
  %v2635 = vld [vmem:[%s15 + $0x78] sm:$0xff]
  %v2636 = vld [vmem:[%s17] sm:$0x3]
  %v2638 = vlaneseq
  %v2639 = vshrl.u32 %v2638, 7
  %v2640 = vsub.s32 0, %v2639
  %v2641 = vrot.slane %v2636, %v2640
  %v2642 = vlaneseq
  %v2643 = vshrl.u32 %v2642, 7
  %v2644 = vsub.s32 1, %v2643
  %v2645 = vrot.slane %v2636, %v2644
  %v2649 = vsel %vm350, %v2612, 0
  %2651 = vmatprep.subr.mxu0 %v2621
  %2652 = vmatpush1.msra.mxu0 %v2620
  %2653 = vmatprep.subr.mxu0 %v2623
  %2654 = vmatpush1.msra.mxu0 %v2622
  %2655 = vmatprep.subr.mxu0 %v2625
  %2656 = vmatpush1.msra.mxu0 %v2624
  %2657 = vmatprep.subr.mxu0 %v2627
  %2658 = vmatpush1.msra.mxu0 %v2626
  %2659 = vmatprep.subr.mxu0 %v2629
  %2660 = vmatpush1.msra.mxu0 %v2628
  %2661 = vmatprep.subr.mxu0 %v2631
  %2662 = vmatpush1.msra.mxu0 %v2630
  %2663 = vmatprep.subr.mxu0 %v2633
  %2664 = vmatpush1.msra.mxu0 %v2632
  %2665 = vmatprep.subr.mxu0 %v2635
  %2666 = vmatpush1.msra.mxu0 %v2634
  %2667 = vmatprep.subr.mxu0 0.0
  %2668 = vmatpush1.msra.mxu0 0.0
  %2669 = vmatprep.subr.mxu0 0.0
  %2670 = vmatpush1.msra.mxu0 0.0
  %2671 = vmatprep.subr.mxu0 0.0
  %2672 = vmatpush1.msra.mxu0 0.0
  %2673 = vmatprep.subr.mxu0 0.0
  %2674 = vmatpush1.msra.mxu0 0.0
  %2675 = vmatprep.subr.mxu0 0.0
  %2676 = vmatpush1.msra.mxu0 0.0
  %2677 = vmatprep.subr.mxu0 0.0
  %2678 = vmatpush1.msra.mxu0 0.0
  %2679 = vmatprep.subr.mxu0 0.0
  %2680 = vmatpush1.msra.mxu0 0.0
  %2681 = vmatprep.subr.mxu0 0.0
  %2682 = vmatpush1.msra.mxu0 0.0
  %2683 = vmatprep.subr.mxu0 0.0
  %2684 = vmatpush1.msra.mxu0 0.0
  %2685 = vmatprep.subr.mxu0 0.0
  %2686 = vmatpush1.msra.mxu0 0.0
  %2687 = vmatprep.subr.mxu0 0.0
  %2688 = vmatpush1.msra.mxu0 0.0
  %2689 = vmatprep.subr.mxu0 0.0
  %2690 = vmatpush1.msra.mxu0 0.0
  %2691 = vmatprep.subr.mxu0 0.0
  %2692 = vmatpush1.msra.mxu0 0.0
  %2693 = vmatprep.subr.mxu0 0.0
  %2694 = vmatpush1.msra.mxu0 0.0
  %2695 = vmatprep.subr.mxu0 0.0
  %2696 = vmatpush1.msra.mxu0 0.0
  %2697 = vmatprep.subr.mxu0 0.0
  %2698 = vmatpush1.msra.mxu0 0.0
  %2699 = vmatprep.subr.mxu0 0.0
  %2700 = vmatpush1.msra.mxu0 0.0
  %2701 = vmatprep.subr.mxu0 0.0
  %2702 = vmatpush1.msra.mxu0 0.0
  %2703 = vmatprep.subr.mxu0 0.0
  %2704 = vmatpush1.msra.mxu0 0.0
  %2705 = vmatprep.subr.mxu0 0.0
  %2706 = vmatpush1.msra.mxu0 0.0
  %2707 = vmatprep.subr.mxu0 0.0
  %2708 = vmatpush1.msra.mxu0 0.0
  %2709 = vmatprep.subr.mxu0 0.0
  %2710 = vmatpush1.msra.mxu0 0.0
  %2711 = vmatprep.subr.mxu0 0.0
  %2712 = vmatpush1.msra.mxu0 0.0
  %2713 = vmatprep.subr.mxu0 0.0
  %2714 = vmatpush1.msra.mxu0 0.0
  %2715 = vmatprep.mubr.f32.mxu0 0.0
  %2716 = vmatmul.mubr.f32.gmra.mrb[0].mxu0 %v2649
  %v2717 = vpop.f32.mrb[0].mxu0
  %v2718 = vadd.f32 %v2641, %v2717
  %v2719 = vpop.f32.mrb[0].mxu0
  %v2720 = vadd.f32 %v2645, %v2719
  %2721 = vdwg.mxu0
  %v2723 = vsel %vm350, %v2613, 0
  %2725 = vmatprep.subr.mxu0 %v2621
  %2726 = vmatpush1.msra.mxu0 %v2620
  %2727 = vmatprep.subr.mxu0 %v2623
  %2728 = vmatpush1.msra.mxu0 %v2622
  %2729 = vmatprep.subr.mxu0 %v2625
  %2730 = vmatpush1.msra.mxu0 %v2624
  %2731 = vmatprep.subr.mxu0 %v2627
  %2732 = vmatpush1.msra.mxu0 %v2626
  %2733 = vmatprep.subr.mxu0 %v2629
  %2734 = vmatpush1.msra.mxu0 %v2628
  %2735 = vmatprep.subr.mxu0 %v2631
  %2736 = vmatpush1.msra.mxu0 %v2630
  %2737 = vmatprep.subr.mxu0 %v2633
  %2738 = vmatpush1.msra.mxu0 %v2632
  %2739 = vmatprep.subr.mxu0 %v2635
  %2740 = vmatpush1.msra.mxu0 %v2634
  %2741 = vmatprep.subr.mxu0 0.0
  %2742 = vmatpush1.msra.mxu0 0.0
  %2743 = vmatprep.subr.mxu0 0.0
  %2744 = vmatpush1.msra.mxu0 0.0
  %2745 = vmatprep.subr.mxu0 0.0
  %2746 = vmatpush1.msra.mxu0 0.0
  %2747 = vmatprep.subr.mxu0 0.0
  %2748 = vmatpush1.msra.mxu0 0.0
  %2749 = vmatprep.subr.mxu0 0.0
  %2750 = vmatpush1.msra.mxu0 0.0
  %2751 = vmatprep.subr.mxu0 0.0
  %2752 = vmatpush1.msra.mxu0 0.0
  %2753 = vmatprep.subr.mxu0 0.0
  %2754 = vmatpush1.msra.mxu0 0.0
  %2755 = vmatprep.subr.mxu0 0.0
  %2756 = vmatpush1.msra.mxu0 0.0
  %2757 = vmatprep.subr.mxu0 0.0
  %2758 = vmatpush1.msra.mxu0 0.0
  %2759 = vmatprep.subr.mxu0 0.0
  %2760 = vmatpush1.msra.mxu0 0.0
  %2761 = vmatprep.subr.mxu0 0.0
  %2762 = vmatpush1.msra.mxu0 0.0
  %2763 = vmatprep.subr.mxu0 0.0
  %2764 = vmatpush1.msra.mxu0 0.0
  %2765 = vmatprep.subr.mxu0 0.0
  %2766 = vmatpush1.msra.mxu0 0.0
  %2767 = vmatprep.subr.mxu0 0.0
  %2768 = vmatpush1.msra.mxu0 0.0
  %2769 = vmatprep.subr.mxu0 0.0
  %2770 = vmatpush1.msra.mxu0 0.0
  %2771 = vmatprep.subr.mxu0 0.0
  %2772 = vmatpush1.msra.mxu0 0.0
  %2773 = vmatprep.subr.mxu0 0.0
  %2774 = vmatpush1.msra.mxu0 0.0
  %2775 = vmatprep.subr.mxu0 0.0
  %2776 = vmatpush1.msra.mxu0 0.0
  %2777 = vmatprep.subr.mxu0 0.0
  %2778 = vmatpush1.msra.mxu0 0.0
  %2779 = vmatprep.subr.mxu0 0.0
  %2780 = vmatpush1.msra.mxu0 0.0
  %2781 = vmatprep.subr.mxu0 0.0
  %2782 = vmatpush1.msra.mxu0 0.0
  %2783 = vmatprep.subr.mxu0 0.0
  %2784 = vmatpush1.msra.mxu0 0.0
  %2785 = vmatprep.subr.mxu0 0.0
  %2786 = vmatpush1.msra.mxu0 0.0
  %2787 = vmatprep.subr.mxu0 0.0
  %2788 = vmatpush1.msra.mxu0 0.0
  %2789 = vmatprep.mubr.f32.mxu0 0.0
  %2790 = vmatmul.mubr.f32.gmra.mrb[0].mxu0 %v2723
  %v2791 = vpop.f32.mrb[0].mxu0
  %v2792 = vadd.f32 %v2641, %v2791
  %v2793 = vpop.f32.mrb[0].mxu0
  %v2794 = vadd.f32 %v2645, %v2793
  %2795 = vdwg.mxu0
  %v2797 = vsel %vm350, %v2614, 0
  %2799 = vmatprep.subr.mxu0 %v2621
  %2800 = vmatpush1.msra.mxu0 %v2620
  %2801 = vmatprep.subr.mxu0 %v2623
  %2802 = vmatpush1.msra.mxu0 %v2622
  %2803 = vmatprep.subr.mxu0 %v2625
  %2804 = vmatpush1.msra.mxu0 %v2624
  %2805 = vmatprep.subr.mxu0 %v2627
  %2806 = vmatpush1.msra.mxu0 %v2626
  %2807 = vmatprep.subr.mxu0 %v2629
  %2808 = vmatpush1.msra.mxu0 %v2628
  %2809 = vmatprep.subr.mxu0 %v2631
  %2810 = vmatpush1.msra.mxu0 %v2630
  %2811 = vmatprep.subr.mxu0 %v2633
  %2812 = vmatpush1.msra.mxu0 %v2632
  %2813 = vmatprep.subr.mxu0 %v2635
  %2814 = vmatpush1.msra.mxu0 %v2634
  %2815 = vmatprep.subr.mxu0 0.0
  %2816 = vmatpush1.msra.mxu0 0.0
  %2817 = vmatprep.subr.mxu0 0.0
  %2818 = vmatpush1.msra.mxu0 0.0
  %2819 = vmatprep.subr.mxu0 0.0
  %2820 = vmatpush1.msra.mxu0 0.0
  %2821 = vmatprep.subr.mxu0 0.0
  %2822 = vmatpush1.msra.mxu0 0.0
  %2823 = vmatprep.subr.mxu0 0.0
  %2824 = vmatpush1.msra.mxu0 0.0
  %2825 = vmatprep.subr.mxu0 0.0
  %2826 = vmatpush1.msra.mxu0 0.0
  %2827 = vmatprep.subr.mxu0 0.0
  %2828 = vmatpush1.msra.mxu0 0.0
  %2829 = vmatprep.subr.mxu0 0.0
  %2830 = vmatpush1.msra.mxu0 0.0
  %2831 = vmatprep.subr.mxu0 0.0
  %2832 = vmatpush1.msra.mxu0 0.0
  %2833 = vmatprep.subr.mxu0 0.0
  %2834 = vmatpush1.msra.mxu0 0.0
  %2835 = vmatprep.subr.mxu0 0.0
  %2836 = vmatpush1.msra.mxu0 0.0
  %2837 = vmatprep.subr.mxu0 0.0
  %2838 = vmatpush1.msra.mxu0 0.0
  %2839 = vmatprep.subr.mxu0 0.0
  %2840 = vmatpush1.msra.mxu0 0.0
  %2841 = vmatprep.subr.mxu0 0.0
  %2842 = vmatpush1.msra.mxu0 0.0
  %2843 = vmatprep.subr.mxu0 0.0
  %2844 = vmatpush1.msra.mxu0 0.0
  %2845 = vmatprep.subr.mxu0 0.0
  %2846 = vmatpush1.msra.mxu0 0.0
  %2847 = vmatprep.subr.mxu0 0.0
  %2848 = vmatpush1.msra.mxu0 0.0
  %2849 = vmatprep.subr.mxu0 0.0
  %2850 = vmatpush1.msra.mxu0 0.0
  %2851 = vmatprep.subr.mxu0 0.0
  %2852 = vmatpush1.msra.mxu0 0.0
  %2853 = vmatprep.subr.mxu0 0.0
  %2854 = vmatpush1.msra.mxu0 0.0
  %2855 = vmatprep.subr.mxu0 0.0
  %2856 = vmatpush1.msra.mxu0 0.0
  %2857 = vmatprep.subr.mxu0 0.0
  %2858 = vmatpush1.msra.mxu0 0.0
  %2859 = vmatprep.subr.mxu0 0.0
  %2860 = vmatpush1.msra.mxu0 0.0
  %2861 = vmatprep.subr.mxu0 0.0
  %2862 = vmatpush1.msra.mxu0 0.0
  %2863 = vmatprep.mubr.f32.mxu0 0.0
  %2864 = vmatmul.mubr.f32.gmra.mrb[0].mxu0 %v2797
  %v2865 = vpop.f32.mrb[0].mxu0
  %v2866 = vadd.f32 %v2641, %v2865
  %v2867 = vpop.f32.mrb[0].mxu0
  %v2868 = vadd.f32 %v2645, %v2867
  %2869 = vdwg.mxu0
  %v2871 = vsel %vm350, %v2615, 0
  %2873 = vmatprep.subr.mxu0 %v2621
  %2874 = vmatpush1.msra.mxu0 %v2620
  %2875 = vmatprep.subr.mxu0 %v2623
  %2876 = vmatpush1.msra.mxu0 %v2622
  %2877 = vmatprep.subr.mxu0 %v2625
  %2878 = vmatpush1.msra.mxu0 %v2624
  %2879 = vmatprep.subr.mxu0 %v2627
  %2880 = vmatpush1.msra.mxu0 %v2626
  %2881 = vmatprep.subr.mxu0 %v2629
  %2882 = vmatpush1.msra.mxu0 %v2628
  %2883 = vmatprep.subr.mxu0 %v2631
  %2884 = vmatpush1.msra.mxu0 %v2630
  %2885 = vmatprep.subr.mxu0 %v2633
  %2886 = vmatpush1.msra.mxu0 %v2632
  %2887 = vmatprep.subr.mxu0 %v2635
  %2888 = vmatpush1.msra.mxu0 %v2634
  %2889 = vmatprep.subr.mxu0 0.0
  %2890 = vmatpush1.msra.mxu0 0.0
  %2891 = vmatprep.subr.mxu0 0.0
  %2892 = vmatpush1.msra.mxu0 0.0
  %2893 = vmatprep.subr.mxu0 0.0
  %2894 = vmatpush1.msra.mxu0 0.0
  %2895 = vmatprep.subr.mxu0 0.0
  %2896 = vmatpush1.msra.mxu0 0.0
  %2897 = vmatprep.subr.mxu0 0.0
  %2898 = vmatpush1.msra.mxu0 0.0
  %2899 = vmatprep.subr.mxu0 0.0
  %2900 = vmatpush1.msra.mxu0 0.0
  %2901 = vmatprep.subr.mxu0 0.0
  %2902 = vmatpush1.msra.mxu0 0.0
  %2903 = vmatprep.subr.mxu0 0.0
  %2904 = vmatpush1.msra.mxu0 0.0
  %2905 = vmatprep.subr.mxu0 0.0
  %2906 = vmatpush1.msra.mxu0 0.0
  %2907 = vmatprep.subr.mxu0 0.0
  %2908 = vmatpush1.msra.mxu0 0.0
  %2909 = vmatprep.subr.mxu0 0.0
  %2910 = vmatpush1.msra.mxu0 0.0
  %2911 = vmatprep.subr.mxu0 0.0
  %2912 = vmatpush1.msra.mxu0 0.0
  %2913 = vmatprep.subr.mxu0 0.0
  %2914 = vmatpush1.msra.mxu0 0.0
  %2915 = vmatprep.subr.mxu0 0.0
  %2916 = vmatpush1.msra.mxu0 0.0
  %2917 = vmatprep.subr.mxu0 0.0
  %2918 = vmatpush1.msra.mxu0 0.0
  %2919 = vmatprep.subr.mxu0 0.0
  %2920 = vmatpush1.msra.mxu0 0.0
  %2921 = vmatprep.subr.mxu0 0.0
  %2922 = vmatpush1.msra.mxu0 0.0
  %2923 = vmatprep.subr.mxu0 0.0
  %2924 = vmatpush1.msra.mxu0 0.0
  %2925 = vmatprep.subr.mxu0 0.0
  %2926 = vmatpush1.msra.mxu0 0.0
  %2927 = vmatprep.subr.mxu0 0.0
  %2928 = vmatpush1.msra.mxu0 0.0
  %2929 = vmatprep.subr.mxu0 0.0
  %2930 = vmatpush1.msra.mxu0 0.0
  %2931 = vmatprep.subr.mxu0 0.0
  %2932 = vmatpush1.msra.mxu0 0.0
  %2933 = vmatprep.subr.mxu0 0.0
  %2934 = vmatpush1.msra.mxu0 0.0
  %2935 = vmatprep.subr.mxu0 0.0
  %2936 = vmatpush1.msra.mxu0 0.0
  %2937 = vmatprep.mubr.f32.mxu0 0.0
  %2938 = vmatmul.mubr.f32.gmra.mrb[0].mxu0 %v2871
  %v2939 = vpop.f32.mrb[0].mxu0
  %v2940 = vadd.f32 %v2641, %v2939
  %v2941 = vpop.f32.mrb[0].mxu0
  %v2942 = vadd.f32 %v2645, %v2941
  %2943 = vdwg.mxu0
  %v2945 = vsel %vm350, %v2616, 0
  %2947 = vmatprep.subr.mxu0 %v2621
  %2948 = vmatpush1.msra.mxu0 %v2620
  %2949 = vmatprep.subr.mxu0 %v2623
  %2950 = vmatpush1.msra.mxu0 %v2622
  %2951 = vmatprep.subr.mxu0 %v2625
  %2952 = vmatpush1.msra.mxu0 %v2624
  %2953 = vmatprep.subr.mxu0 %v2627
  %2954 = vmatpush1.msra.mxu0 %v2626
  %2955 = vmatprep.subr.mxu0 %v2629
  %2956 = vmatpush1.msra.mxu0 %v2628
  %2957 = vmatprep.subr.mxu0 %v2631
  %2958 = vmatpush1.msra.mxu0 %v2630
  %2959 = vmatprep.subr.mxu0 %v2633
  %2960 = vmatpush1.msra.mxu0 %v2632
  %2961 = vmatprep.subr.mxu0 %v2635
  %2962 = vmatpush1.msra.mxu0 %v2634
  %2963 = vmatprep.subr.mxu0 0.0
  %2964 = vmatpush1.msra.mxu0 0.0
  %2965 = vmatprep.subr.mxu0 0.0
  %2966 = vmatpush1.msra.mxu0 0.0
  %2967 = vmatprep.subr.mxu0 0.0
  %2968 = vmatpush1.msra.mxu0 0.0
  %2969 = vmatprep.subr.mxu0 0.0
  %2970 = vmatpush1.msra.mxu0 0.0
  %2971 = vmatprep.subr.mxu0 0.0
  %2972 = vmatpush1.msra.mxu0 0.0
  %2973 = vmatprep.subr.mxu0 0.0
  %2974 = vmatpush1.msra.mxu0 0.0
  %2975 = vmatprep.subr.mxu0 0.0
  %2976 = vmatpush1.msra.mxu0 0.0
  %2977 = vmatprep.subr.mxu0 0.0
  %2978 = vmatpush1.msra.mxu0 0.0
  %2979 = vmatprep.subr.mxu0 0.0
  %2980 = vmatpush1.msra.mxu0 0.0
  %2981 = vmatprep.subr.mxu0 0.0
  %2982 = vmatpush1.msra.mxu0 0.0
  %2983 = vmatprep.subr.mxu0 0.0
  %2984 = vmatpush1.msra.mxu0 0.0
  %2985 = vmatprep.subr.mxu0 0.0
  %2986 = vmatpush1.msra.mxu0 0.0
  %2987 = vmatprep.subr.mxu0 0.0
  %2988 = vmatpush1.msra.mxu0 0.0
  %2989 = vmatprep.subr.mxu0 0.0
  %2990 = vmatpush1.msra.mxu0 0.0
  %2991 = vmatprep.subr.mxu0 0.0
  %2992 = vmatpush1.msra.mxu0 0.0
  %2993 = vmatprep.subr.mxu0 0.0
  %2994 = vmatpush1.msra.mxu0 0.0
  %2995 = vmatprep.subr.mxu0 0.0
  %2996 = vmatpush1.msra.mxu0 0.0
  %2997 = vmatprep.subr.mxu0 0.0
  %2998 = vmatpush1.msra.mxu0 0.0
  %2999 = vmatprep.subr.mxu0 0.0
  %3000 = vmatpush1.msra.mxu0 0.0
  %3001 = vmatprep.subr.mxu0 0.0
  %3002 = vmatpush1.msra.mxu0 0.0
  %3003 = vmatprep.subr.mxu0 0.0
  %3004 = vmatpush1.msra.mxu0 0.0
  %3005 = vmatprep.subr.mxu0 0.0
  %3006 = vmatpush1.msra.mxu0 0.0
  %3007 = vmatprep.subr.mxu0 0.0
  %3008 = vmatpush1.msra.mxu0 0.0
  %3009 = vmatprep.subr.mxu0 0.0
  %3010 = vmatpush1.msra.mxu0 0.0
  %3011 = vmatprep.mubr.f32.mxu0 0.0
  %3012 = vmatmul.mubr.f32.gmra.mrb[0].mxu0 %v2945
  %v3013 = vpop.f32.mrb[0].mxu0
  %v3014 = vadd.f32 %v2641, %v3013
  %v3015 = vpop.f32.mrb[0].mxu0
  %v3016 = vadd.f32 %v2645, %v3015
  %3017 = vdwg.mxu0
  %v3019 = vsel %vm350, %v2617, 0
  %3021 = vmatprep.subr.mxu0 %v2621
  %3022 = vmatpush1.msra.mxu0 %v2620
  %3023 = vmatprep.subr.mxu0 %v2623
  %3024 = vmatpush1.msra.mxu0 %v2622
  %3025 = vmatprep.subr.mxu0 %v2625
  %3026 = vmatpush1.msra.mxu0 %v2624
  %3027 = vmatprep.subr.mxu0 %v2627
  %3028 = vmatpush1.msra.mxu0 %v2626
  %3029 = vmatprep.subr.mxu0 %v2629
  %3030 = vmatpush1.msra.mxu0 %v2628
  %3031 = vmatprep.subr.mxu0 %v2631
  %3032 = vmatpush1.msra.mxu0 %v2630
  %3033 = vmatprep.subr.mxu0 %v2633
  %3034 = vmatpush1.msra.mxu0 %v2632
  %3035 = vmatprep.subr.mxu0 %v2635
  %3036 = vmatpush1.msra.mxu0 %v2634
  %3037 = vmatprep.subr.mxu0 0.0
  %3038 = vmatpush1.msra.mxu0 0.0
  %3039 = vmatprep.subr.mxu0 0.0
  %3040 = vmatpush1.msra.mxu0 0.0
  %3041 = vmatprep.subr.mxu0 0.0
  %3042 = vmatpush1.msra.mxu0 0.0
  %3043 = vmatprep.subr.mxu0 0.0
  %3044 = vmatpush1.msra.mxu0 0.0
  %3045 = vmatprep.subr.mxu0 0.0
  %3046 = vmatpush1.msra.mxu0 0.0
  %3047 = vmatprep.subr.mxu0 0.0
  %3048 = vmatpush1.msra.mxu0 0.0
  %3049 = vmatprep.subr.mxu0 0.0
  %3050 = vmatpush1.msra.mxu0 0.0
  %3051 = vmatprep.subr.mxu0 0.0
  %3052 = vmatpush1.msra.mxu0 0.0
  %3053 = vmatprep.subr.mxu0 0.0
  %3054 = vmatpush1.msra.mxu0 0.0
  %3055 = vmatprep.subr.mxu0 0.0
  %3056 = vmatpush1.msra.mxu0 0.0
  %3057 = vmatprep.subr.mxu0 0.0
  %3058 = vmatpush1.msra.mxu0 0.0
  %3059 = vmatprep.subr.mxu0 0.0
  %3060 = vmatpush1.msra.mxu0 0.0
  %3061 = vmatprep.subr.mxu0 0.0
  %3062 = vmatpush1.msra.mxu0 0.0
  %3063 = vmatprep.subr.mxu0 0.0
  %3064 = vmatpush1.msra.mxu0 0.0
  %3065 = vmatprep.subr.mxu0 0.0
  %3066 = vmatpush1.msra.mxu0 0.0
  %3067 = vmatprep.subr.mxu0 0.0
  %3068 = vmatpush1.msra.mxu0 0.0
  %3069 = vmatprep.subr.mxu0 0.0
  %3070 = vmatpush1.msra.mxu0 0.0
  %3071 = vmatprep.subr.mxu0 0.0
  %3072 = vmatpush1.msra.mxu0 0.0
  %3073 = vmatprep.subr.mxu0 0.0
  %3074 = vmatpush1.msra.mxu0 0.0
  %3075 = vmatprep.subr.mxu0 0.0
  %3076 = vmatpush1.msra.mxu0 0.0
  %3077 = vmatprep.subr.mxu0 0.0
  %3078 = vmatpush1.msra.mxu0 0.0
  %3079 = vmatprep.subr.mxu0 0.0
  %3080 = vmatpush1.msra.mxu0 0.0
  %3081 = vmatprep.subr.mxu0 0.0
  %3082 = vmatpush1.msra.mxu0 0.0
  %3083 = vmatprep.subr.mxu0 0.0
  %3084 = vmatpush1.msra.mxu0 0.0
  %3085 = vmatprep.mubr.f32.mxu0 0.0
  %3086 = vmatmul.mubr.f32.gmra.mrb[0].mxu0 %v3019
  %v3087 = vpop.f32.mrb[0].mxu0
  %v3088 = vadd.f32 %v2641, %v3087
  %v3089 = vpop.f32.mrb[0].mxu0
  %v3090 = vadd.f32 %v2645, %v3089
  %3091 = vdwg.mxu0
  %v3093 = vsel %vm350, %v2618, 0
  %3095 = vmatprep.subr.mxu0 %v2621
  %3096 = vmatpush1.msra.mxu0 %v2620
  %3097 = vmatprep.subr.mxu0 %v2623
  %3098 = vmatpush1.msra.mxu0 %v2622
  %3099 = vmatprep.subr.mxu0 %v2625
  %3100 = vmatpush1.msra.mxu0 %v2624
  %3101 = vmatprep.subr.mxu0 %v2627
  %3102 = vmatpush1.msra.mxu0 %v2626
  %3103 = vmatprep.subr.mxu0 %v2629
  %3104 = vmatpush1.msra.mxu0 %v2628
  %3105 = vmatprep.subr.mxu0 %v2631
  %3106 = vmatpush1.msra.mxu0 %v2630
  %3107 = vmatprep.subr.mxu0 %v2633
  %3108 = vmatpush1.msra.mxu0 %v2632
  %3109 = vmatprep.subr.mxu0 %v2635
  %3110 = vmatpush1.msra.mxu0 %v2634
  %3111 = vmatprep.subr.mxu0 0.0
  %3112 = vmatpush1.msra.mxu0 0.0
  %3113 = vmatprep.subr.mxu0 0.0
  %3114 = vmatpush1.msra.mxu0 0.0
  %3115 = vmatprep.subr.mxu0 0.0
  %3116 = vmatpush1.msra.mxu0 0.0
  %3117 = vmatprep.subr.mxu0 0.0
  %3118 = vmatpush1.msra.mxu0 0.0
  %3119 = vmatprep.subr.mxu0 0.0
  %3120 = vmatpush1.msra.mxu0 0.0
  %3121 = vmatprep.subr.mxu0 0.0
  %3122 = vmatpush1.msra.mxu0 0.0
  %3123 = vmatprep.subr.mxu0 0.0
  %3124 = vmatpush1.msra.mxu0 0.0
  %3125 = vmatprep.subr.mxu0 0.0
  %3126 = vmatpush1.msra.mxu0 0.0
  %3127 = vmatprep.subr.mxu0 0.0
  %3128 = vmatpush1.msra.mxu0 0.0
  %3129 = vmatprep.subr.mxu0 0.0
  %3130 = vmatpush1.msra.mxu0 0.0
  %3131 = vmatprep.subr.mxu0 0.0
  %3132 = vmatpush1.msra.mxu0 0.0
  %3133 = vmatprep.subr.mxu0 0.0
  %3134 = vmatpush1.msra.mxu0 0.0
  %3135 = vmatprep.subr.mxu0 0.0
  %3136 = vmatpush1.msra.mxu0 0.0
  %3137 = vmatprep.subr.mxu0 0.0
  %3138 = vmatpush1.msra.mxu0 0.0
  %3139 = vmatprep.subr.mxu0 0.0
  %3140 = vmatpush1.msra.mxu0 0.0
  %3141 = vmatprep.subr.mxu0 0.0
  %3142 = vmatpush1.msra.mxu0 0.0
  %3143 = vmatprep.subr.mxu0 0.0
  %3144 = vmatpush1.msra.mxu0 0.0
  %3145 = vmatprep.subr.mxu0 0.0
  %3146 = vmatpush1.msra.mxu0 0.0
  %3147 = vmatprep.subr.mxu0 0.0
  %3148 = vmatpush1.msra.mxu0 0.0
  %3149 = vmatprep.subr.mxu0 0.0
  %3150 = vmatpush1.msra.mxu0 0.0
  %3151 = vmatprep.subr.mxu0 0.0
  %3152 = vmatpush1.msra.mxu0 0.0
  %3153 = vmatprep.subr.mxu0 0.0
  %3154 = vmatpush1.msra.mxu0 0.0
  %3155 = vmatprep.subr.mxu0 0.0
  %3156 = vmatpush1.msra.mxu0 0.0
  %3157 = vmatprep.subr.mxu0 0.0
  %3158 = vmatpush1.msra.mxu0 0.0
  %3159 = vmatprep.mubr.f32.mxu0 0.0
  %3160 = vmatmul.mubr.f32.gmra.mrb[0].mxu0 %v3093
  %v3161 = vpop.f32.mrb[0].mxu0
  %v3162 = vadd.f32 %v2641, %v3161
  %v3163 = vpop.f32.mrb[0].mxu0
  %v3164 = vadd.f32 %v2645, %v3163
  %3165 = vdwg.mxu0
  %v3167 = vsel %vm350, %v2619, 0
  %3169 = vmatprep.subr.mxu0 %v2621
  %3170 = vmatpush1.msra.mxu0 %v2620
  %3171 = vmatprep.subr.mxu0 %v2623
  %3172 = vmatpush1.msra.mxu0 %v2622
  %3173 = vmatprep.subr.mxu0 %v2625
  %3174 = vmatpush1.msra.mxu0 %v2624
  %3175 = vmatprep.subr.mxu0 %v2627
  %3176 = vmatpush1.msra.mxu0 %v2626
  %3177 = vmatprep.subr.mxu0 %v2629
  %3178 = vmatpush1.msra.mxu0 %v2628
  %3179 = vmatprep.subr.mxu0 %v2631
  %3180 = vmatpush1.msra.mxu0 %v2630
  %3181 = vmatprep.subr.mxu0 %v2633
  %3182 = vmatpush1.msra.mxu0 %v2632
  %3183 = vmatprep.subr.mxu0 %v2635
  %3184 = vmatpush1.msra.mxu0 %v2634
  %3185 = vmatprep.subr.mxu0 0.0
  %3186 = vmatpush1.msra.mxu0 0.0
  %3187 = vmatprep.subr.mxu0 0.0
  %3188 = vmatpush1.msra.mxu0 0.0
  %3189 = vmatprep.subr.mxu0 0.0
  %3190 = vmatpush1.msra.mxu0 0.0
  %3191 = vmatprep.subr.mxu0 0.0
  %3192 = vmatpush1.msra.mxu0 0.0
  %3193 = vmatprep.subr.mxu0 0.0
  %3194 = vmatpush1.msra.mxu0 0.0
  %3195 = vmatprep.subr.mxu0 0.0
  %3196 = vmatpush1.msra.mxu0 0.0
  %3197 = vmatprep.subr.mxu0 0.0
  %3198 = vmatpush1.msra.mxu0 0.0
  %3199 = vmatprep.subr.mxu0 0.0
  %3200 = vmatpush1.msra.mxu0 0.0
  %3201 = vmatprep.subr.mxu0 0.0
  %3202 = vmatpush1.msra.mxu0 0.0
  %3203 = vmatprep.subr.mxu0 0.0
  %3204 = vmatpush1.msra.mxu0 0.0
  %3205 = vmatprep.subr.mxu0 0.0
  %3206 = vmatpush1.msra.mxu0 0.0
  %3207 = vmatprep.subr.mxu0 0.0
  %3208 = vmatpush1.msra.mxu0 0.0
  %3209 = vmatprep.subr.mxu0 0.0
  %3210 = vmatpush1.msra.mxu0 0.0
  %3211 = vmatprep.subr.mxu0 0.0
  %3212 = vmatpush1.msra.mxu0 0.0
  %3213 = vmatprep.subr.mxu0 0.0
  %3214 = vmatpush1.msra.mxu0 0.0
  %3215 = vmatprep.subr.mxu0 0.0
  %3216 = vmatpush1.msra.mxu0 0.0
  %3217 = vmatprep.subr.mxu0 0.0
  %3218 = vmatpush1.msra.mxu0 0.0
  %3219 = vmatprep.subr.mxu0 0.0
  %3220 = vmatpush1.msra.mxu0 0.0
  %3221 = vmatprep.subr.mxu0 0.0
  %3222 = vmatpush1.msra.mxu0 0.0
  %3223 = vmatprep.subr.mxu0 0.0
  %3224 = vmatpush1.msra.mxu0 0.0
  %3225 = vmatprep.subr.mxu0 0.0
  %3226 = vmatpush1.msra.mxu0 0.0
  %3227 = vmatprep.subr.mxu0 0.0
  %3228 = vmatpush1.msra.mxu0 0.0
  %3229 = vmatprep.subr.mxu0 0.0
  %3230 = vmatpush1.msra.mxu0 0.0
  %3231 = vmatprep.subr.mxu0 0.0
  %3232 = vmatpush1.msra.mxu0 0.0
  %3233 = vmatprep.mubr.f32.mxu0 0.0
  %3234 = vmatmul.mubr.f32.gmra.mrb[0].mxu0 %v3167
  %v3235 = vpop.f32.mrb[0].mxu0
  %v3236 = vadd.f32 %v2641, %v3235
  %v3237 = vpop.f32.mrb[0].mxu0
  %v3238 = vadd.f32 %v2645, %v3237
  %3239 = vdwg.mxu0
  %v3240 = vld [vmem:[%s16] sm:$0xff]
  %v3241 = vld [vmem:[%s16 + $0x8] sm:$0xff]
  %v3242 = vld [vmem:[%s16 + $0x10] sm:$0xff]
  %v3243 = vld [vmem:[%s16 + $0x18] sm:$0xff]
  %v3244 = vld [vmem:[%s16 + $0x20] sm:$0xff]
  %v3245 = vld [vmem:[%s16 + $0x28] sm:$0xff]
  %v3246 = vld [vmem:[%s16 + $0x30] sm:$0xff]
  %v3247 = vld [vmem:[%s16 + $0x38] sm:$0xff]
  %v3248 = vld [vmem:[%s16 + $0x40] sm:$0xff]
  %v3249 = vld [vmem:[%s16 + $0x48] sm:$0xff]
  %v3250 = vld [vmem:[%s16 + $0x50] sm:$0xff]
  %v3251 = vld [vmem:[%s16 + $0x58] sm:$0xff]
  %v3252 = vld [vmem:[%s16 + $0x60] sm:$0xff]
  %v3253 = vld [vmem:[%s16 + $0x68] sm:$0xff]
  %v3254 = vld [vmem:[%s16 + $0x70] sm:$0xff]
  %v3255 = vld [vmem:[%s16 + $0x78] sm:$0xff]
  %v3256 = vsel %vm95, %v2718, %v3236
  %v3257 = vsel %vm96, %v2720, %v3238
  %3258 = vmatprep.subr.mxu0 %v3241
  %3259 = vmatpush1.msra.mxu0 %v3240
  %3260 = vmatprep.subr.mxu0 %v3243
  %3261 = vmatpush1.msra.mxu0 %v3242
  %3262 = vmatprep.subr.mxu0 %v3245
  %3263 = vmatpush1.msra.mxu0 %v3244
  %3264 = vmatprep.subr.mxu0 %v3247
  %3265 = vmatpush1.msra.mxu0 %v3246
  %3266 = vmatprep.subr.mxu0 %v3249
  %3267 = vmatpush1.msra.mxu0 %v3248
  %3268 = vmatprep.subr.mxu0 %v3251
  %3269 = vmatpush1.msra.mxu0 %v3250
  %3270 = vmatprep.subr.mxu0 %v3253
  %3271 = vmatpush1.msra.mxu0 %v3252
  %3272 = vmatprep.subr.mxu0 %v3255
  %3273 = vmatpush1.msra.mxu0 %v3254
  %3274 = vmatprep.subr.mxu0 0.0
  %3275 = vmatpush1.msra.mxu0 0.0
  %3276 = vmatprep.subr.mxu0 0.0
  %3277 = vmatpush1.msra.mxu0 0.0
  %3278 = vmatprep.subr.mxu0 0.0
  %3279 = vmatpush1.msra.mxu0 0.0
  %3280 = vmatprep.subr.mxu0 0.0
  %3281 = vmatpush1.msra.mxu0 0.0
  %3282 = vmatprep.subr.mxu0 0.0
  %3283 = vmatpush1.msra.mxu0 0.0
  %3284 = vmatprep.subr.mxu0 0.0
  %3285 = vmatpush1.msra.mxu0 0.0
  %3286 = vmatprep.subr.mxu0 0.0
  %3287 = vmatpush1.msra.mxu0 0.0
  %3288 = vmatprep.subr.mxu0 0.0
  %3289 = vmatpush1.msra.mxu0 0.0
  %3290 = vmatprep.subr.mxu0 0.0
  %3291 = vmatpush1.msra.mxu0 0.0
  %3292 = vmatprep.subr.mxu0 0.0
  %3293 = vmatpush1.msra.mxu0 0.0
  %3294 = vmatprep.subr.mxu0 0.0
  %3295 = vmatpush1.msra.mxu0 0.0
  %3296 = vmatprep.subr.mxu0 0.0
  %3297 = vmatpush1.msra.mxu0 0.0
  %3298 = vmatprep.subr.mxu0 0.0
  %3299 = vmatpush1.msra.mxu0 0.0
  %3300 = vmatprep.subr.mxu0 0.0
  %3301 = vmatpush1.msra.mxu0 0.0
  %3302 = vmatprep.subr.mxu0 0.0
  %3303 = vmatpush1.msra.mxu0 0.0
  %3304 = vmatprep.subr.mxu0 0.0
  %3305 = vmatpush1.msra.mxu0 0.0
  %3306 = vmatprep.subr.mxu0 0.0
  %3307 = vmatpush1.msra.mxu0 0.0
  %3308 = vmatprep.subr.mxu0 0.0
  %3309 = vmatpush1.msra.mxu0 0.0
  %3310 = vmatprep.subr.mxu0 0.0
  %3311 = vmatpush1.msra.mxu0 0.0
  %3312 = vmatprep.subr.mxu0 0.0
  %3313 = vmatpush1.msra.mxu0 0.0
  %3314 = vmatprep.subr.mxu0 0.0
  %3315 = vmatpush1.msra.mxu0 0.0
  %3316 = vmatprep.subr.mxu0 0.0
  %3317 = vmatpush1.msra.mxu0 0.0
  %3318 = vmatprep.subr.mxu0 0.0
  %3319 = vmatpush1.msra.mxu0 0.0
  %3320 = vmatprep.subr.mxu0 0.0
  %3321 = vmatpush1.msra.mxu0 0.0
  %3322 = vmatprep.mubr.f32.mxu0 0.0
  %3323 = vmatmul.mubr.f32.gmra.mrb[0].mxu0 %v1647
  %v3324 = vpop.f32.mrb[0].mxu0
  %v3325 = vadd.f32 0.0, %v3324
  %v3326 = vpop.f32.mrb[0].mxu0
  %v3327 = vadd.f32 0.0, %v3326
  %3328 = vdwg.mxu0
  %v3329 = vadd.f32 %v3256, %v3325
  %v3330 = vadd.f32 %v3257, %v3327
  %v3331 = vxor.u32 %v3329, 2147483648
  %v3332 = vmul.f32 %v3331, 1.442695
  %v3333 = vpow.pop %v3332
  %v3334 = vadd.f32 %v3333, 1.0
  %v3335 = vrcp.pop %v3334
  %v3336 = vmul.f32 1.0, %v3335
  %v3337 = vtanh.pop %v3330
  %v3338 = vxor.u32 %v3330, 2147483648
  %v3339 = vmul.f32 %v3338, 1.442695
  %v3340 = vpow.pop %v3339
  %v3341 = vadd.f32 %v3340, 1.0
  %v3342 = vrcp.pop %v3341
  %v3343 = vmul.f32 1.0, %v3342
  %v3344 = vmul.f32 %v3336, 0.0
  %v3345 = vmul.f32 %v3336, %v3337
  %3347 = vrot.lane.b32.xlu0 %v3345, 64
  %v3348 = vpop.permute.xlu0 %3347
  %v3350 = vadd.f32 %v3344, %v3348
  %v3351 = vtanh.pop %v3350
  %v3352 = vmul.f32 %v3343, %v3351
  %3354 = vrot.lane.b32.xlu0 %v3350, 64
  %v3355 = vpop.permute.xlu0 %3354
  %v3357 = vsel %vm1167, %v3355, 0.0
  %3359 = vrot.lane.b32.xlu0 %v3352, 64
  %v3360 = vpop.permute.xlu0 %3359
  %v3362 = vsel %vm1167, %v3360, 0.0
  %v3363 = vsel %vm95, %v2792, %v3162
  %v3364 = vsel %vm96, %v2794, %v3164
  %v3366 = vsel %vm350, %v3362, 0
  %3368 = vmatprep.subr.mxu0 %v3241
  %3369 = vmatpush1.msra.mxu0 %v3240
  %3370 = vmatprep.subr.mxu0 %v3243
  %3371 = vmatpush1.msra.mxu0 %v3242
  %3372 = vmatprep.subr.mxu0 %v3245
  %3373 = vmatpush1.msra.mxu0 %v3244
  %3374 = vmatprep.subr.mxu0 %v3247
  %3375 = vmatpush1.msra.mxu0 %v3246
  %3376 = vmatprep.subr.mxu0 %v3249
  %3377 = vmatpush1.msra.mxu0 %v3248
  %3378 = vmatprep.subr.mxu0 %v3251
  %3379 = vmatpush1.msra.mxu0 %v3250
  %3380 = vmatprep.subr.mxu0 %v3253
  %3381 = vmatpush1.msra.mxu0 %v3252
  %3382 = vmatprep.subr.mxu0 %v3255
  %3383 = vmatpush1.msra.mxu0 %v3254
  %3384 = vmatprep.subr.mxu0 0.0
  %3385 = vmatpush1.msra.mxu0 0.0
  %3386 = vmatprep.subr.mxu0 0.0
  %3387 = vmatpush1.msra.mxu0 0.0
  %3388 = vmatprep.subr.mxu0 0.0
  %3389 = vmatpush1.msra.mxu0 0.0
  %3390 = vmatprep.subr.mxu0 0.0
  %3391 = vmatpush1.msra.mxu0 0.0
  %3392 = vmatprep.subr.mxu0 0.0
  %3393 = vmatpush1.msra.mxu0 0.0
  %3394 = vmatprep.subr.mxu0 0.0
  %3395 = vmatpush1.msra.mxu0 0.0
  %3396 = vmatprep.subr.mxu0 0.0
  %3397 = vmatpush1.msra.mxu0 0.0
  %3398 = vmatprep.subr.mxu0 0.0
  %3399 = vmatpush1.msra.mxu0 0.0
  %3400 = vmatprep.subr.mxu0 0.0
  %3401 = vmatpush1.msra.mxu0 0.0
  %3402 = vmatprep.subr.mxu0 0.0
  %3403 = vmatpush1.msra.mxu0 0.0
  %3404 = vmatprep.subr.mxu0 0.0
  %3405 = vmatpush1.msra.mxu0 0.0
  %3406 = vmatprep.subr.mxu0 0.0
  %3407 = vmatpush1.msra.mxu0 0.0
  %3408 = vmatprep.subr.mxu0 0.0
  %3409 = vmatpush1.msra.mxu0 0.0
  %3410 = vmatprep.subr.mxu0 0.0
  %3411 = vmatpush1.msra.mxu0 0.0
  %3412 = vmatprep.subr.mxu0 0.0
  %3413 = vmatpush1.msra.mxu0 0.0
  %3414 = vmatprep.subr.mxu0 0.0
  %3415 = vmatpush1.msra.mxu0 0.0
  %3416 = vmatprep.subr.mxu0 0.0
  %3417 = vmatpush1.msra.mxu0 0.0
  %3418 = vmatprep.subr.mxu0 0.0
  %3419 = vmatpush1.msra.mxu0 0.0
  %3420 = vmatprep.subr.mxu0 0.0
  %3421 = vmatpush1.msra.mxu0 0.0
  %3422 = vmatprep.subr.mxu0 0.0
  %3423 = vmatpush1.msra.mxu0 0.0
  %3424 = vmatprep.subr.mxu0 0.0
  %3425 = vmatpush1.msra.mxu0 0.0
  %3426 = vmatprep.subr.mxu0 0.0
  %3427 = vmatpush1.msra.mxu0 0.0
  %3428 = vmatprep.subr.mxu0 0.0
  %3429 = vmatpush1.msra.mxu0 0.0
  %3430 = vmatprep.subr.mxu0 0.0
  %3431 = vmatpush1.msra.mxu0 0.0
  %3432 = vmatprep.mubr.f32.mxu0 0.0
  %3433 = vmatmul.mubr.f32.gmra.mrb[0].mxu0 %v3366
  %v3434 = vpop.f32.mrb[0].mxu0
  %v3435 = vadd.f32 0.0, %v3434
  %v3436 = vpop.f32.mrb[0].mxu0
  %v3437 = vadd.f32 0.0, %v3436
  %3438 = vdwg.mxu0
  %v3439 = vadd.f32 %v3363, %v3435
  %v3440 = vadd.f32 %v3364, %v3437
  %v3441 = vxor.u32 %v3439, 2147483648
  %v3442 = vmul.f32 %v3441, 1.442695
  %v3443 = vpow.pop %v3442
  %v3444 = vadd.f32 %v3443, 1.0
  %v3445 = vrcp.pop %v3444
  %v3446 = vmul.f32 1.0, %v3445
  %v3447 = vtanh.pop %v3440
  %v3448 = vxor.u32 %v3440, 2147483648
  %v3449 = vmul.f32 %v3448, 1.442695
  %v3450 = vpow.pop %v3449
  %v3451 = vadd.f32 %v3450, 1.0
  %v3452 = vrcp.pop %v3451
  %v3453 = vmul.f32 1.0, %v3452
  %3455 = vrot.lane.b32.xlu0 %v3357, 64
  %v3456 = vpop.permute.xlu0 %3455
  %v3458 = vmul.f32 %v3446, %v3456
  %v3459 = vmul.f32 %v3446, %v3447
  %3461 = vrot.lane.b32.xlu0 %v3459, 64
  %v3462 = vpop.permute.xlu0 %3461
  %v3464 = vadd.f32 %v3458, %v3462
  %v3465 = vtanh.pop %v3464
  %v3466 = vmul.f32 %v3453, %v3465
  %3468 = vrot.lane.b32.xlu0 %v3464, 64
  %v3469 = vpop.permute.xlu0 %3468
  %v3471 = vsel %vm1169, %v3469, %v3357
  %3473 = vrot.lane.b32.xlu0 %v3466, 64
  %v3474 = vpop.permute.xlu0 %3473
  %v3476 = vsel %vm1169, %v3474, %v3362
  %v3477 = vsel %vm1169, %v3474, 0.0
  %v3478 = vsel %vm95, %v2866, %v3088
  %v3479 = vsel %vm96, %v2868, %v3090
  %v3481 = vsel %vm350, %v3476, 0
  %3483 = vmatprep.subr.mxu0 %v3241
  %3484 = vmatpush1.msra.mxu0 %v3240
  %3485 = vmatprep.subr.mxu0 %v3243
  %3486 = vmatpush1.msra.mxu0 %v3242
  %3487 = vmatprep.subr.mxu0 %v3245
  %3488 = vmatpush1.msra.mxu0 %v3244
  %3489 = vmatprep.subr.mxu0 %v3247
  %3490 = vmatpush1.msra.mxu0 %v3246
  %3491 = vmatprep.subr.mxu0 %v3249
  %3492 = vmatpush1.msra.mxu0 %v3248
  %3493 = vmatprep.subr.mxu0 %v3251
  %3494 = vmatpush1.msra.mxu0 %v3250
  %3495 = vmatprep.subr.mxu0 %v3253
  %3496 = vmatpush1.msra.mxu0 %v3252
  %3497 = vmatprep.subr.mxu0 %v3255
  %3498 = vmatpush1.msra.mxu0 %v3254
  %3499 = vmatprep.subr.mxu0 0.0
  %3500 = vmatpush1.msra.mxu0 0.0
  %3501 = vmatprep.subr.mxu0 0.0
  %3502 = vmatpush1.msra.mxu0 0.0
  %3503 = vmatprep.subr.mxu0 0.0
  %3504 = vmatpush1.msra.mxu0 0.0
  %3505 = vmatprep.subr.mxu0 0.0
  %3506 = vmatpush1.msra.mxu0 0.0
  %3507 = vmatprep.subr.mxu0 0.0
  %3508 = vmatpush1.msra.mxu0 0.0
  %3509 = vmatprep.subr.mxu0 0.0
  %3510 = vmatpush1.msra.mxu0 0.0
  %3511 = vmatprep.subr.mxu0 0.0
  %3512 = vmatpush1.msra.mxu0 0.0
  %3513 = vmatprep.subr.mxu0 0.0
  %3514 = vmatpush1.msra.mxu0 0.0
  %3515 = vmatprep.subr.mxu0 0.0
  %3516 = vmatpush1.msra.mxu0 0.0
  %3517 = vmatprep.subr.mxu0 0.0
  %3518 = vmatpush1.msra.mxu0 0.0
  %3519 = vmatprep.subr.mxu0 0.0
  %3520 = vmatpush1.msra.mxu0 0.0
  %3521 = vmatprep.subr.mxu0 0.0
  %3522 = vmatpush1.msra.mxu0 0.0
  %3523 = vmatprep.subr.mxu0 0.0
  %3524 = vmatpush1.msra.mxu0 0.0
  %3525 = vmatprep.subr.mxu0 0.0
  %3526 = vmatpush1.msra.mxu0 0.0
  %3527 = vmatprep.subr.mxu0 0.0
  %3528 = vmatpush1.msra.mxu0 0.0
  %3529 = vmatprep.subr.mxu0 0.0
  %3530 = vmatpush1.msra.mxu0 0.0
  %3531 = vmatprep.subr.mxu0 0.0
  %3532 = vmatpush1.msra.mxu0 0.0
  %3533 = vmatprep.subr.mxu0 0.0
  %3534 = vmatpush1.msra.mxu0 0.0
  %3535 = vmatprep.subr.mxu0 0.0
  %3536 = vmatpush1.msra.mxu0 0.0
  %3537 = vmatprep.subr.mxu0 0.0
  %3538 = vmatpush1.msra.mxu0 0.0
  %3539 = vmatprep.subr.mxu0 0.0
  %3540 = vmatpush1.msra.mxu0 0.0
  %3541 = vmatprep.subr.mxu0 0.0
  %3542 = vmatpush1.msra.mxu0 0.0
  %3543 = vmatprep.subr.mxu0 0.0
  %3544 = vmatpush1.msra.mxu0 0.0
  %3545 = vmatprep.subr.mxu0 0.0
  %3546 = vmatpush1.msra.mxu0 0.0
  %3547 = vmatprep.mubr.f32.mxu0 0.0
  %3548 = vmatmul.mubr.f32.gmra.mrb[0].mxu0 %v3481
  %v3549 = vpop.f32.mrb[0].mxu0
  %v3550 = vadd.f32 0.0, %v3549
  %v3551 = vpop.f32.mrb[0].mxu0
  %v3552 = vadd.f32 0.0, %v3551
  %3553 = vdwg.mxu0
  %v3554 = vadd.f32 %v3478, %v3550
  %v3555 = vadd.f32 %v3479, %v3552
  %v3556 = vxor.u32 %v3554, 2147483648
  %v3557 = vmul.f32 %v3556, 1.442695
  %v3558 = vpow.pop %v3557
  %v3559 = vadd.f32 %v3558, 1.0
  %v3560 = vrcp.pop %v3559
  %v3561 = vmul.f32 1.0, %v3560
  %v3562 = vtanh.pop %v3555
  %v3563 = vxor.u32 %v3555, 2147483648
  %v3564 = vmul.f32 %v3563, 1.442695
  %v3565 = vpow.pop %v3564
  %v3566 = vadd.f32 %v3565, 1.0
  %v3567 = vrcp.pop %v3566
  %v3568 = vmul.f32 1.0, %v3567
  %3570 = vrot.lane.b32.xlu0 %v3471, 64
  %v3571 = vpop.permute.xlu0 %3570
  %v3573 = vmul.f32 %v3561, %v3571
  %v3574 = vmul.f32 %v3561, %v3562
  %3576 = vrot.lane.b32.xlu0 %v3574, 64
  %v3577 = vpop.permute.xlu0 %3576
  %v3579 = vadd.f32 %v3573, %v3577
  %v3580 = vtanh.pop %v3579
  %v3581 = vmul.f32 %v3568, %v3580
  %3583 = vrot.lane.b32.xlu0 %v3579, 64
  %v3584 = vpop.permute.xlu0 %3583
  %v3586 = vsel %vm1171, %v3584, %v3471
  %3588 = vrot.lane.b32.xlu0 %v3581, 64
  %v3589 = vpop.permute.xlu0 %3588
  %v3591 = vsel %vm1171, %v3589, %v3476
  %v3592 = vsel %vm1171, %v3589, 0.0
  %v3593 = vsel %vm95, %v2940, %v3014
  %v3594 = vsel %vm96, %v2942, %v3016
  %v3596 = vsel %vm350, %v3591, 0
  %3598 = vmatprep.subr.mxu0 %v3241
  %3599 = vmatpush1.msra.mxu0 %v3240
  %3600 = vmatprep.subr.mxu0 %v3243
  %3601 = vmatpush1.msra.mxu0 %v3242
  %3602 = vmatprep.subr.mxu0 %v3245
  %3603 = vmatpush1.msra.mxu0 %v3244
  %3604 = vmatprep.subr.mxu0 %v3247
  %3605 = vmatpush1.msra.mxu0 %v3246
  %3606 = vmatprep.subr.mxu0 %v3249
  %3607 = vmatpush1.msra.mxu0 %v3248
  %3608 = vmatprep.subr.mxu0 %v3251
  %3609 = vmatpush1.msra.mxu0 %v3250
  %3610 = vmatprep.subr.mxu0 %v3253
  %3611 = vmatpush1.msra.mxu0 %v3252
  %3612 = vmatprep.subr.mxu0 %v3255
  %3613 = vmatpush1.msra.mxu0 %v3254
  %3614 = vmatprep.subr.mxu0 0.0
  %3615 = vmatpush1.msra.mxu0 0.0
  %3616 = vmatprep.subr.mxu0 0.0
  %3617 = vmatpush1.msra.mxu0 0.0
  %3618 = vmatprep.subr.mxu0 0.0
  %3619 = vmatpush1.msra.mxu0 0.0
  %3620 = vmatprep.subr.mxu0 0.0
  %3621 = vmatpush1.msra.mxu0 0.0
  %3622 = vmatprep.subr.mxu0 0.0
  %3623 = vmatpush1.msra.mxu0 0.0
  %3624 = vmatprep.subr.mxu0 0.0
  %3625 = vmatpush1.msra.mxu0 0.0
  %3626 = vmatprep.subr.mxu0 0.0
  %3627 = vmatpush1.msra.mxu0 0.0
  %3628 = vmatprep.subr.mxu0 0.0
  %3629 = vmatpush1.msra.mxu0 0.0
  %3630 = vmatprep.subr.mxu0 0.0
  %3631 = vmatpush1.msra.mxu0 0.0
  %3632 = vmatprep.subr.mxu0 0.0
  %3633 = vmatpush1.msra.mxu0 0.0
  %3634 = vmatprep.subr.mxu0 0.0
  %3635 = vmatpush1.msra.mxu0 0.0
  %3636 = vmatprep.subr.mxu0 0.0
  %3637 = vmatpush1.msra.mxu0 0.0
  %3638 = vmatprep.subr.mxu0 0.0
  %3639 = vmatpush1.msra.mxu0 0.0
  %3640 = vmatprep.subr.mxu0 0.0
  %3641 = vmatpush1.msra.mxu0 0.0
  %3642 = vmatprep.subr.mxu0 0.0
  %3643 = vmatpush1.msra.mxu0 0.0
  %3644 = vmatprep.subr.mxu0 0.0
  %3645 = vmatpush1.msra.mxu0 0.0
  %3646 = vmatprep.subr.mxu0 0.0
  %3647 = vmatpush1.msra.mxu0 0.0
  %3648 = vmatprep.subr.mxu0 0.0
  %3649 = vmatpush1.msra.mxu0 0.0
  %3650 = vmatprep.subr.mxu0 0.0
  %3651 = vmatpush1.msra.mxu0 0.0
  %3652 = vmatprep.subr.mxu0 0.0
  %3653 = vmatpush1.msra.mxu0 0.0
  %3654 = vmatprep.subr.mxu0 0.0
  %3655 = vmatpush1.msra.mxu0 0.0
  %3656 = vmatprep.subr.mxu0 0.0
  %3657 = vmatpush1.msra.mxu0 0.0
  %3658 = vmatprep.subr.mxu0 0.0
  %3659 = vmatpush1.msra.mxu0 0.0
  %3660 = vmatprep.subr.mxu0 0.0
  %3661 = vmatpush1.msra.mxu0 0.0
  %3662 = vmatprep.mubr.f32.mxu0 0.0
  %3663 = vmatmul.mubr.f32.gmra.mrb[0].mxu0 %v3596
  %v3664 = vpop.f32.mrb[0].mxu0
  %v3665 = vadd.f32 0.0, %v3664
  %v3666 = vpop.f32.mrb[0].mxu0
  %v3667 = vadd.f32 0.0, %v3666
  %3668 = vdwg.mxu0
  %v3669 = vadd.f32 %v3593, %v3665
  %v3670 = vadd.f32 %v3594, %v3667
  %v3671 = vxor.u32 %v3669, 2147483648
  %v3672 = vmul.f32 %v3671, 1.442695
  %v3673 = vpow.pop %v3672
  %v3674 = vadd.f32 %v3673, 1.0
  %v3675 = vrcp.pop %v3674
  %v3676 = vmul.f32 1.0, %v3675
  %v3677 = vtanh.pop %v3670
  %v3678 = vxor.u32 %v3670, 2147483648
  %v3679 = vmul.f32 %v3678, 1.442695
  %v3680 = vpow.pop %v3679
  %v3681 = vadd.f32 %v3680, 1.0
  %v3682 = vrcp.pop %v3681
  %v3683 = vmul.f32 1.0, %v3682
  %3685 = vrot.lane.b32.xlu0 %v3586, 64
  %v3686 = vpop.permute.xlu0 %3685
  %v3688 = vmul.f32 %v3676, %v3686
  %v3689 = vmul.f32 %v3676, %v3677
  %3691 = vrot.lane.b32.xlu0 %v3689, 64
  %v3692 = vpop.permute.xlu0 %3691
  %v3694 = vadd.f32 %v3688, %v3692
  %v3695 = vtanh.pop %v3694
  %v3696 = vmul.f32 %v3683, %v3695
  %3698 = vrot.lane.b32.xlu0 %v3694, 64
  %v3699 = vpop.permute.xlu0 %3698
  %v3701 = vsel %vm1173, %v3699, %v3586
  %3703 = vrot.lane.b32.xlu0 %v3696, 64
  %v3704 = vpop.permute.xlu0 %3703
  %v3706 = vsel %vm1173, %v3704, %v3591
  %v3707 = vsel %vm1173, %v3704, 0.0
  %v3708 = vsel %vm95, %v3014, %v2940
  %v3709 = vsel %vm96, %v3016, %v2942
  %v3711 = vsel %vm350, %v3706, 0
  %3713 = vmatprep.subr.mxu0 %v3241
  %3714 = vmatpush1.msra.mxu0 %v3240
  %3715 = vmatprep.subr.mxu0 %v3243
  %3716 = vmatpush1.msra.mxu0 %v3242
  %3717 = vmatprep.subr.mxu0 %v3245
  %3718 = vmatpush1.msra.mxu0 %v3244
  %3719 = vmatprep.subr.mxu0 %v3247
  %3720 = vmatpush1.msra.mxu0 %v3246
  %3721 = vmatprep.subr.mxu0 %v3249
  %3722 = vmatpush1.msra.mxu0 %v3248
  %3723 = vmatprep.subr.mxu0 %v3251
  %3724 = vmatpush1.msra.mxu0 %v3250
  %3725 = vmatprep.subr.mxu0 %v3253
  %3726 = vmatpush1.msra.mxu0 %v3252
  %3727 = vmatprep.subr.mxu0 %v3255
  %3728 = vmatpush1.msra.mxu0 %v3254
  %3729 = vmatprep.subr.mxu0 0.0
  %3730 = vmatpush1.msra.mxu0 0.0
  %3731 = vmatprep.subr.mxu0 0.0
  %3732 = vmatpush1.msra.mxu0 0.0
  %3733 = vmatprep.subr.mxu0 0.0
  %3734 = vmatpush1.msra.mxu0 0.0
  %3735 = vmatprep.subr.mxu0 0.0
  %3736 = vmatpush1.msra.mxu0 0.0
  %3737 = vmatprep.subr.mxu0 0.0
  %3738 = vmatpush1.msra.mxu0 0.0
  %3739 = vmatprep.subr.mxu0 0.0
  %3740 = vmatpush1.msra.mxu0 0.0
  %3741 = vmatprep.subr.mxu0 0.0
  %3742 = vmatpush1.msra.mxu0 0.0
  %3743 = vmatprep.subr.mxu0 0.0
  %3744 = vmatpush1.msra.mxu0 0.0
  %3745 = vmatprep.subr.mxu0 0.0
  %3746 = vmatpush1.msra.mxu0 0.0
  %3747 = vmatprep.subr.mxu0 0.0
  %3748 = vmatpush1.msra.mxu0 0.0
  %3749 = vmatprep.subr.mxu0 0.0
  %3750 = vmatpush1.msra.mxu0 0.0
  %3751 = vmatprep.subr.mxu0 0.0
  %3752 = vmatpush1.msra.mxu0 0.0
  %3753 = vmatprep.subr.mxu0 0.0
  %3754 = vmatpush1.msra.mxu0 0.0
  %3755 = vmatprep.subr.mxu0 0.0
  %3756 = vmatpush1.msra.mxu0 0.0
  %3757 = vmatprep.subr.mxu0 0.0
  %3758 = vmatpush1.msra.mxu0 0.0
  %3759 = vmatprep.subr.mxu0 0.0
  %3760 = vmatpush1.msra.mxu0 0.0
  %3761 = vmatprep.subr.mxu0 0.0
  %3762 = vmatpush1.msra.mxu0 0.0
  %3763 = vmatprep.subr.mxu0 0.0
  %3764 = vmatpush1.msra.mxu0 0.0
  %3765 = vmatprep.subr.mxu0 0.0
  %3766 = vmatpush1.msra.mxu0 0.0
  %3767 = vmatprep.subr.mxu0 0.0
  %3768 = vmatpush1.msra.mxu0 0.0
  %3769 = vmatprep.subr.mxu0 0.0
  %3770 = vmatpush1.msra.mxu0 0.0
  %3771 = vmatprep.subr.mxu0 0.0
  %3772 = vmatpush1.msra.mxu0 0.0
  %3773 = vmatprep.subr.mxu0 0.0
  %3774 = vmatpush1.msra.mxu0 0.0
  %3775 = vmatprep.subr.mxu0 0.0
  %3776 = vmatpush1.msra.mxu0 0.0
  %3777 = vmatprep.mubr.f32.mxu0 0.0
  %3778 = vmatmul.mubr.f32.gmra.mrb[0].mxu0 %v3711
  %v3779 = vpop.f32.mrb[0].mxu0
  %v3780 = vadd.f32 0.0, %v3779
  %v3781 = vpop.f32.mrb[0].mxu0
  %v3782 = vadd.f32 0.0, %v3781
  %3783 = vdwg.mxu0
  %v3784 = vadd.f32 %v3708, %v3780
  %v3785 = vadd.f32 %v3709, %v3782
  %v3786 = vxor.u32 %v3784, 2147483648
  %v3787 = vmul.f32 %v3786, 1.442695
  %v3788 = vpow.pop %v3787
  %v3789 = vadd.f32 %v3788, 1.0
  %v3790 = vrcp.pop %v3789
  %v3791 = vmul.f32 1.0, %v3790
  %v3792 = vtanh.pop %v3785
  %v3793 = vxor.u32 %v3785, 2147483648
  %v3794 = vmul.f32 %v3793, 1.442695
  %v3795 = vpow.pop %v3794
  %v3796 = vadd.f32 %v3795, 1.0
  %v3797 = vrcp.pop %v3796
  %v3798 = vmul.f32 1.0, %v3797
  %3800 = vrot.lane.b32.xlu0 %v3701, 64
  %v3801 = vpop.permute.xlu0 %3800
  %v3803 = vmul.f32 %v3791, %v3801
  %v3804 = vmul.f32 %v3791, %v3792
  %3806 = vrot.lane.b32.xlu0 %v3804, 64
  %v3807 = vpop.permute.xlu0 %3806
  %v3809 = vadd.f32 %v3803, %v3807
  %v3810 = vtanh.pop %v3809
  %v3811 = vmul.f32 %v3798, %v3810
  %3813 = vrot.lane.b32.xlu0 %v3809, 64
  %v3814 = vpop.permute.xlu0 %3813
  %v3816 = vsel %vm1175, %v3814, %v3701
  %3818 = vrot.lane.b32.xlu0 %v3811, 64
  %v3819 = vpop.permute.xlu0 %3818
  %v3821 = vsel %vm1175, %v3819, %v3706
  %v3822 = vsel %vm1175, %v3819, 0.0
  %v3823 = vsel %vm95, %v3088, %v2866
  %v3824 = vsel %vm96, %v3090, %v2868
  %v3826 = vsel %vm350, %v3821, 0
  %3828 = vmatprep.subr.mxu0 %v3241
  %3829 = vmatpush1.msra.mxu0 %v3240
  %3830 = vmatprep.subr.mxu0 %v3243
  %3831 = vmatpush1.msra.mxu0 %v3242
  %3832 = vmatprep.subr.mxu0 %v3245
  %3833 = vmatpush1.msra.mxu0 %v3244
  %3834 = vmatprep.subr.mxu0 %v3247
  %3835 = vmatpush1.msra.mxu0 %v3246
  %3836 = vmatprep.subr.mxu0 %v3249
  %3837 = vmatpush1.msra.mxu0 %v3248
  %3838 = vmatprep.subr.mxu0 %v3251
  %3839 = vmatpush1.msra.mxu0 %v3250
  %3840 = vmatprep.subr.mxu0 %v3253
  %3841 = vmatpush1.msra.mxu0 %v3252
  %3842 = vmatprep.subr.mxu0 %v3255
  %3843 = vmatpush1.msra.mxu0 %v3254
  %3844 = vmatprep.subr.mxu0 0.0
  %3845 = vmatpush1.msra.mxu0 0.0
  %3846 = vmatprep.subr.mxu0 0.0
  %3847 = vmatpush1.msra.mxu0 0.0
  %3848 = vmatprep.subr.mxu0 0.0
  %3849 = vmatpush1.msra.mxu0 0.0
  %3850 = vmatprep.subr.mxu0 0.0
  %3851 = vmatpush1.msra.mxu0 0.0
  %3852 = vmatprep.subr.mxu0 0.0
  %3853 = vmatpush1.msra.mxu0 0.0
  %3854 = vmatprep.subr.mxu0 0.0
  %3855 = vmatpush1.msra.mxu0 0.0
  %3856 = vmatprep.subr.mxu0 0.0
  %3857 = vmatpush1.msra.mxu0 0.0
  %3858 = vmatprep.subr.mxu0 0.0
  %3859 = vmatpush1.msra.mxu0 0.0
  %3860 = vmatprep.subr.mxu0 0.0
  %3861 = vmatpush1.msra.mxu0 0.0
  %3862 = vmatprep.subr.mxu0 0.0
  %3863 = vmatpush1.msra.mxu0 0.0
  %3864 = vmatprep.subr.mxu0 0.0
  %3865 = vmatpush1.msra.mxu0 0.0
  %3866 = vmatprep.subr.mxu0 0.0
  %3867 = vmatpush1.msra.mxu0 0.0
  %3868 = vmatprep.subr.mxu0 0.0
  %3869 = vmatpush1.msra.mxu0 0.0
  %3870 = vmatprep.subr.mxu0 0.0
  %3871 = vmatpush1.msra.mxu0 0.0
  %3872 = vmatprep.subr.mxu0 0.0
  %3873 = vmatpush1.msra.mxu0 0.0
  %3874 = vmatprep.subr.mxu0 0.0
  %3875 = vmatpush1.msra.mxu0 0.0
  %3876 = vmatprep.subr.mxu0 0.0
  %3877 = vmatpush1.msra.mxu0 0.0
  %3878 = vmatprep.subr.mxu0 0.0
  %3879 = vmatpush1.msra.mxu0 0.0
  %3880 = vmatprep.subr.mxu0 0.0
  %3881 = vmatpush1.msra.mxu0 0.0
  %3882 = vmatprep.subr.mxu0 0.0
  %3883 = vmatpush1.msra.mxu0 0.0
  %3884 = vmatprep.subr.mxu0 0.0
  %3885 = vmatpush1.msra.mxu0 0.0
  %3886 = vmatprep.subr.mxu0 0.0
  %3887 = vmatpush1.msra.mxu0 0.0
  %3888 = vmatprep.subr.mxu0 0.0
  %3889 = vmatpush1.msra.mxu0 0.0
  %3890 = vmatprep.subr.mxu0 0.0
  %3891 = vmatpush1.msra.mxu0 0.0
  %3892 = vmatprep.mubr.f32.mxu0 0.0
  %3893 = vmatmul.mubr.f32.gmra.mrb[0].mxu0 %v3826
  %v3894 = vpop.f32.mrb[0].mxu0
  %v3895 = vadd.f32 0.0, %v3894
  %v3896 = vpop.f32.mrb[0].mxu0
  %v3897 = vadd.f32 0.0, %v3896
  %3898 = vdwg.mxu0
  %v3899 = vadd.f32 %v3823, %v3895
  %v3900 = vadd.f32 %v3824, %v3897
  %v3901 = vxor.u32 %v3899, 2147483648
  %v3902 = vmul.f32 %v3901, 1.442695
  %v3903 = vpow.pop %v3902
  %v3904 = vadd.f32 %v3903, 1.0
  %v3905 = vrcp.pop %v3904
  %v3906 = vmul.f32 1.0, %v3905
  %v3907 = vtanh.pop %v3900
  %v3908 = vxor.u32 %v3900, 2147483648
  %v3909 = vmul.f32 %v3908, 1.442695
  %v3910 = vpow.pop %v3909
  %v3911 = vadd.f32 %v3910, 1.0
  %v3912 = vrcp.pop %v3911
  %v3913 = vmul.f32 1.0, %v3912
  %3915 = vrot.lane.b32.xlu0 %v3816, 64
  %v3916 = vpop.permute.xlu0 %3915
  %v3918 = vmul.f32 %v3906, %v3916
  %v3919 = vmul.f32 %v3906, %v3907
  %3921 = vrot.lane.b32.xlu0 %v3919, 64
  %v3922 = vpop.permute.xlu0 %3921
  %v3924 = vadd.f32 %v3918, %v3922
  %v3925 = vtanh.pop %v3924
  %v3926 = vmul.f32 %v3913, %v3925
  %3928 = vrot.lane.b32.xlu0 %v3924, 64
  %v3929 = vpop.permute.xlu0 %3928
  %v3931 = vsel %vm1177, %v3929, %v3816
  %3933 = vrot.lane.b32.xlu0 %v3926, 64
  %v3934 = vpop.permute.xlu0 %3933
  %v3936 = vsel %vm1177, %v3934, %v3821
  %v3937 = vsel %vm1177, %v3934, 0.0
  %v3938 = vsel %vm95, %v3162, %v2792
  %v3939 = vsel %vm96, %v3164, %v2794
  %v3941 = vsel %vm350, %v3936, 0
  %3943 = vmatprep.subr.mxu0 %v3241
  %3944 = vmatpush1.msra.mxu0 %v3240
  %3945 = vmatprep.subr.mxu0 %v3243
  %3946 = vmatpush1.msra.mxu0 %v3242
  %3947 = vmatprep.subr.mxu0 %v3245
  %3948 = vmatpush1.msra.mxu0 %v3244
  %3949 = vmatprep.subr.mxu0 %v3247
  %3950 = vmatpush1.msra.mxu0 %v3246
  %3951 = vmatprep.subr.mxu0 %v3249
  %3952 = vmatpush1.msra.mxu0 %v3248
  %3953 = vmatprep.subr.mxu0 %v3251
  %3954 = vmatpush1.msra.mxu0 %v3250
  %3955 = vmatprep.subr.mxu0 %v3253
  %3956 = vmatpush1.msra.mxu0 %v3252
  %3957 = vmatprep.subr.mxu0 %v3255
  %3958 = vmatpush1.msra.mxu0 %v3254
  %3959 = vmatprep.subr.mxu0 0.0
  %3960 = vmatpush1.msra.mxu0 0.0
  %3961 = vmatprep.subr.mxu0 0.0
  %3962 = vmatpush1.msra.mxu0 0.0
  %3963 = vmatprep.subr.mxu0 0.0
  %3964 = vmatpush1.msra.mxu0 0.0
  %3965 = vmatprep.subr.mxu0 0.0
  %3966 = vmatpush1.msra.mxu0 0.0
  %3967 = vmatprep.subr.mxu0 0.0
  %3968 = vmatpush1.msra.mxu0 0.0
  %3969 = vmatprep.subr.mxu0 0.0
  %3970 = vmatpush1.msra.mxu0 0.0
  %3971 = vmatprep.subr.mxu0 0.0
  %3972 = vmatpush1.msra.mxu0 0.0
  %3973 = vmatprep.subr.mxu0 0.0
  %3974 = vmatpush1.msra.mxu0 0.0
  %3975 = vmatprep.subr.mxu0 0.0
  %3976 = vmatpush1.msra.mxu0 0.0
  %3977 = vmatprep.subr.mxu0 0.0
  %3978 = vmatpush1.msra.mxu0 0.0
  %3979 = vmatprep.subr.mxu0 0.0
  %3980 = vmatpush1.msra.mxu0 0.0
  %3981 = vmatprep.subr.mxu0 0.0
  %3982 = vmatpush1.msra.mxu0 0.0
  %3983 = vmatprep.subr.mxu0 0.0
  %3984 = vmatpush1.msra.mxu0 0.0
  %3985 = vmatprep.subr.mxu0 0.0
  %3986 = vmatpush1.msra.mxu0 0.0
  %3987 = vmatprep.subr.mxu0 0.0
  %3988 = vmatpush1.msra.mxu0 0.0
  %3989 = vmatprep.subr.mxu0 0.0
  %3990 = vmatpush1.msra.mxu0 0.0
  %3991 = vmatprep.subr.mxu0 0.0
  %3992 = vmatpush1.msra.mxu0 0.0
  %3993 = vmatprep.subr.mxu0 0.0
  %3994 = vmatpush1.msra.mxu0 0.0
  %3995 = vmatprep.subr.mxu0 0.0
  %3996 = vmatpush1.msra.mxu0 0.0
  %3997 = vmatprep.subr.mxu0 0.0
  %3998 = vmatpush1.msra.mxu0 0.0
  %3999 = vmatprep.subr.mxu0 0.0
  %4000 = vmatpush1.msra.mxu0 0.0
  %4001 = vmatprep.subr.mxu0 0.0
  %4002 = vmatpush1.msra.mxu0 0.0
  %4003 = vmatprep.subr.mxu0 0.0
  %4004 = vmatpush1.msra.mxu0 0.0
  %4005 = vmatprep.subr.mxu0 0.0
  %4006 = vmatpush1.msra.mxu0 0.0
  %4007 = vmatprep.mubr.f32.mxu0 0.0
  %4008 = vmatmul.mubr.f32.gmra.mrb[0].mxu0 %v3941
  %v4009 = vpop.f32.mrb[0].mxu0
  %v4010 = vadd.f32 0.0, %v4009
  %v4011 = vpop.f32.mrb[0].mxu0
  %v4012 = vadd.f32 0.0, %v4011
  %4013 = vdwg.mxu0
  %v4014 = vadd.f32 %v3938, %v4010
  %v4015 = vadd.f32 %v3939, %v4012
  %v4016 = vxor.u32 %v4014, 2147483648
  %v4017 = vmul.f32 %v4016, 1.442695
  %v4018 = vpow.pop %v4017
  %v4019 = vadd.f32 %v4018, 1.0
  %v4020 = vrcp.pop %v4019
  %v4021 = vmul.f32 1.0, %v4020
  %v4022 = vtanh.pop %v4015
  %v4023 = vxor.u32 %v4015, 2147483648
  %v4024 = vmul.f32 %v4023, 1.442695
  %v4025 = vpow.pop %v4024
  %v4026 = vadd.f32 %v4025, 1.0
  %v4027 = vrcp.pop %v4026
  %v4028 = vmul.f32 1.0, %v4027
  %4030 = vrot.lane.b32.xlu0 %v3931, 64
  %v4031 = vpop.permute.xlu0 %4030
  %v4033 = vmul.f32 %v4021, %v4031
  %v4034 = vmul.f32 %v4021, %v4022
  %4036 = vrot.lane.b32.xlu0 %v4034, 64
  %v4037 = vpop.permute.xlu0 %4036
  %v4039 = vadd.f32 %v4033, %v4037
  %v4040 = vtanh.pop %v4039
  %v4041 = vmul.f32 %v4028, %v4040
  %4043 = vrot.lane.b32.xlu0 %v4039, 64
  %v4044 = vpop.permute.xlu0 %4043
  %v4046 = vsel %vm1179, %v4044, %v3931
  %4048 = vrot.lane.b32.xlu0 %v4041, 64
  %v4049 = vpop.permute.xlu0 %4048
  %v4051 = vsel %vm1179, %v4049, %v3936
  %v4052 = vsel %vm1179, %v4049, 0.0
  %v4053 = vsel %vm95, %v3236, %v2718
  %v4054 = vsel %vm96, %v3238, %v2720
  %v4056 = vsel %vm350, %v4051, 0
  %4058 = vmatprep.subr.mxu0 %v3241
  %4059 = vmatpush1.msra.mxu0 %v3240
  %4060 = vmatprep.subr.mxu0 %v3243
  %4061 = vmatpush1.msra.mxu0 %v3242
  %4062 = vmatprep.subr.mxu0 %v3245
  %4063 = vmatpush1.msra.mxu0 %v3244
  %4064 = vmatprep.subr.mxu0 %v3247
  %4065 = vmatpush1.msra.mxu0 %v3246
  %4066 = vmatprep.subr.mxu0 %v3249
  %4067 = vmatpush1.msra.mxu0 %v3248
  %4068 = vmatprep.subr.mxu0 %v3251
  %4069 = vmatpush1.msra.mxu0 %v3250
  %4070 = vmatprep.subr.mxu0 %v3253
  %4071 = vmatpush1.msra.mxu0 %v3252
  %4072 = vmatprep.subr.mxu0 %v3255
  %4073 = vmatpush1.msra.mxu0 %v3254
  %4074 = vmatprep.subr.mxu0 0.0
  %4075 = vmatpush1.msra.mxu0 0.0
  %4076 = vmatprep.subr.mxu0 0.0
  %4077 = vmatpush1.msra.mxu0 0.0
  %4078 = vmatprep.subr.mxu0 0.0
  %4079 = vmatpush1.msra.mxu0 0.0
  %4080 = vmatprep.subr.mxu0 0.0
  %4081 = vmatpush1.msra.mxu0 0.0
  %4082 = vmatprep.subr.mxu0 0.0
  %4083 = vmatpush1.msra.mxu0 0.0
  %4084 = vmatprep.subr.mxu0 0.0
  %4085 = vmatpush1.msra.mxu0 0.0
  %4086 = vmatprep.subr.mxu0 0.0
  %4087 = vmatpush1.msra.mxu0 0.0
  %4088 = vmatprep.subr.mxu0 0.0
  %4089 = vmatpush1.msra.mxu0 0.0
  %4090 = vmatprep.subr.mxu0 0.0
  %4091 = vmatpush1.msra.mxu0 0.0
  %4092 = vmatprep.subr.mxu0 0.0
  %4093 = vmatpush1.msra.mxu0 0.0
  %4094 = vmatprep.subr.mxu0 0.0
  %4095 = vmatpush1.msra.mxu0 0.0
  %4096 = vmatprep.subr.mxu0 0.0
  %4097 = vmatpush1.msra.mxu0 0.0
  %4098 = vmatprep.subr.mxu0 0.0
  %4099 = vmatpush1.msra.mxu0 0.0
  %4100 = vmatprep.subr.mxu0 0.0
  %4101 = vmatpush1.msra.mxu0 0.0
  %4102 = vmatprep.subr.mxu0 0.0
  %4103 = vmatpush1.msra.mxu0 0.0
  %4104 = vmatprep.subr.mxu0 0.0
  %4105 = vmatpush1.msra.mxu0 0.0
  %4106 = vmatprep.subr.mxu0 0.0
  %4107 = vmatpush1.msra.mxu0 0.0
  %4108 = vmatprep.subr.mxu0 0.0
  %4109 = vmatpush1.msra.mxu0 0.0
  %4110 = vmatprep.subr.mxu0 0.0
  %4111 = vmatpush1.msra.mxu0 0.0
  %4112 = vmatprep.subr.mxu0 0.0
  %4113 = vmatpush1.msra.mxu0 0.0
  %4114 = vmatprep.subr.mxu0 0.0
  %4115 = vmatpush1.msra.mxu0 0.0
  %4116 = vmatprep.subr.mxu0 0.0
  %4117 = vmatpush1.msra.mxu0 0.0
  %4118 = vmatprep.subr.mxu0 0.0
  %4119 = vmatpush1.msra.mxu0 0.0
  %4120 = vmatprep.subr.mxu0 0.0
  %4121 = vmatpush1.msra.mxu0 0.0
  %4122 = vmatprep.mubr.f32.mxu0 0.0
  %4123 = vmatmul.mubr.f32.gmra.mrb[0].mxu0 %v4056
  %v4124 = vpop.f32.mrb[0].mxu0
  %v4125 = vadd.f32 0.0, %v4124
  %v4126 = vpop.f32.mrb[0].mxu0
  %v4127 = vadd.f32 0.0, %v4126
  %4128 = vdwg.mxu0
  %v4129 = vadd.f32 %v4053, %v4125
  %v4130 = vadd.f32 %v4054, %v4127
  %v4131 = vxor.u32 %v4129, 2147483648
  %v4132 = vmul.f32 %v4131, 1.442695
  %v4133 = vpow.pop %v4132
  %v4134 = vadd.f32 %v4133, 1.0
  %v4135 = vrcp.pop %v4134
  %v4136 = vmul.f32 1.0, %v4135
  %v4137 = vtanh.pop %v4130
  %v4138 = vxor.u32 %v4130, 2147483648
  %v4139 = vmul.f32 %v4138, 1.442695
  %v4140 = vpow.pop %v4139
  %v4141 = vadd.f32 %v4140, 1.0
  %v4142 = vrcp.pop %v4141
  %v4143 = vmul.f32 1.0, %v4142
  %4145 = vrot.lane.b32.xlu0 %v4046, 64
  %v4146 = vpop.permute.xlu0 %4145
  %v4148 = vmul.f32 %v4136, %v4146
  %v4149 = vmul.f32 %v4136, %v4137
  %4151 = vrot.lane.b32.xlu0 %v4149, 64
  %v4152 = vpop.permute.xlu0 %4151
  %v4154 = vadd.f32 %v4148, %v4152
  %v4155 = vtanh.pop %v4154
  %v4156 = vmul.f32 %v4143, %v4155
  %4158 = vrot.lane.b32.xlu0 %v4156, 64
  %v4159 = vpop.permute.xlu0 %4158
  %v4161 = vsel %vm1181, %v4159, 0.0
  %v4162 = vsel %vm97, %v3362, %v4161
  %v4163 = vsel %vm97, %v3477, %v4052
  %v4164 = vsel %vm97, %v3592, %v3937
  %v4165 = vsel %vm97, %v3707, %v3822
  %v4166 = vsel %vm97, %v3822, %v3707
  %v4167 = vsel %vm97, %v3937, %v3592
  %v4168 = vsel %vm97, %v4052, %v3477
  %v4169 = vsel %vm97, %v4161, %v3362
  %v4170 = vld [vmem:[%s18] sm:$0xff]
  %v4171 = vld [vmem:[%s18 + $0x8] sm:$0xff]
  %v4172 = vld [vmem:[%s18 + $0x10] sm:$0xff]
  %v4173 = vld [vmem:[%s18 + $0x18] sm:$0xff]
  %v4174 = vld [vmem:[%s18 + $0x20] sm:$0xff]
  %v4175 = vld [vmem:[%s18 + $0x28] sm:$0xff]
  %v4176 = vld [vmem:[%s18 + $0x30] sm:$0xff]
  %v4177 = vld [vmem:[%s18 + $0x38] sm:$0xff]
  %v4178 = vld [vmem:[%s18 + $0x40] sm:$0xff]
  %v4179 = vld [vmem:[%s18 + $0x48] sm:$0xff]
  %v4180 = vld [vmem:[%s18 + $0x50] sm:$0xff]
  %v4181 = vld [vmem:[%s18 + $0x58] sm:$0xff]
  %v4182 = vld [vmem:[%s18 + $0x60] sm:$0xff]
  %v4183 = vld [vmem:[%s18 + $0x68] sm:$0xff]
  %v4184 = vld [vmem:[%s18 + $0x70] sm:$0xff]
  %v4185 = vld [vmem:[%s18 + $0x78] sm:$0xff]
  %v4186 = vld [vmem:[%s20] sm:$0x3]
  %v4188 = vlaneseq
  %v4189 = vshrl.u32 %v4188, 7
  %v4190 = vsub.s32 0, %v4189
  %v4191 = vrot.slane %v4186, %v4190
  %v4192 = vlaneseq
  %v4193 = vshrl.u32 %v4192, 7
  %v4194 = vsub.s32 1, %v4193
  %v4195 = vrot.slane %v4186, %v4194
  %v4199 = vsel %vm350, %v4162, 0
  %4201 = vmatprep.subr.mxu0 %v4171
  %4202 = vmatpush1.msra.mxu0 %v4170
  %4203 = vmatprep.subr.mxu0 %v4173
  %4204 = vmatpush1.msra.mxu0 %v4172
  %4205 = vmatprep.subr.mxu0 %v4175
  %4206 = vmatpush1.msra.mxu0 %v4174
  %4207 = vmatprep.subr.mxu0 %v4177
  %4208 = vmatpush1.msra.mxu0 %v4176
  %4209 = vmatprep.subr.mxu0 %v4179
  %4210 = vmatpush1.msra.mxu0 %v4178
  %4211 = vmatprep.subr.mxu0 %v4181
  %4212 = vmatpush1.msra.mxu0 %v4180
  %4213 = vmatprep.subr.mxu0 %v4183
  %4214 = vmatpush1.msra.mxu0 %v4182
  %4215 = vmatprep.subr.mxu0 %v4185
  %4216 = vmatpush1.msra.mxu0 %v4184
  %4217 = vmatprep.subr.mxu0 0.0
  %4218 = vmatpush1.msra.mxu0 0.0
  %4219 = vmatprep.subr.mxu0 0.0
  %4220 = vmatpush1.msra.mxu0 0.0
  %4221 = vmatprep.subr.mxu0 0.0
  %4222 = vmatpush1.msra.mxu0 0.0
  %4223 = vmatprep.subr.mxu0 0.0
  %4224 = vmatpush1.msra.mxu0 0.0
  %4225 = vmatprep.subr.mxu0 0.0
  %4226 = vmatpush1.msra.mxu0 0.0
  %4227 = vmatprep.subr.mxu0 0.0
  %4228 = vmatpush1.msra.mxu0 0.0
  %4229 = vmatprep.subr.mxu0 0.0
  %4230 = vmatpush1.msra.mxu0 0.0
  %4231 = vmatprep.subr.mxu0 0.0
  %4232 = vmatpush1.msra.mxu0 0.0
  %4233 = vmatprep.subr.mxu0 0.0
  %4234 = vmatpush1.msra.mxu0 0.0
  %4235 = vmatprep.subr.mxu0 0.0
  %4236 = vmatpush1.msra.mxu0 0.0
  %4237 = vmatprep.subr.mxu0 0.0
  %4238 = vmatpush1.msra.mxu0 0.0
  %4239 = vmatprep.subr.mxu0 0.0
  %4240 = vmatpush1.msra.mxu0 0.0
  %4241 = vmatprep.subr.mxu0 0.0
  %4242 = vmatpush1.msra.mxu0 0.0
  %4243 = vmatprep.subr.mxu0 0.0
  %4244 = vmatpush1.msra.mxu0 0.0
  %4245 = vmatprep.subr.mxu0 0.0
  %4246 = vmatpush1.msra.mxu0 0.0
  %4247 = vmatprep.subr.mxu0 0.0
  %4248 = vmatpush1.msra.mxu0 0.0
  %4249 = vmatprep.subr.mxu0 0.0
  %4250 = vmatpush1.msra.mxu0 0.0
  %4251 = vmatprep.subr.mxu0 0.0
  %4252 = vmatpush1.msra.mxu0 0.0
  %4253 = vmatprep.subr.mxu0 0.0
  %4254 = vmatpush1.msra.mxu0 0.0
  %4255 = vmatprep.subr.mxu0 0.0
  %4256 = vmatpush1.msra.mxu0 0.0
  %4257 = vmatprep.subr.mxu0 0.0
  %4258 = vmatpush1.msra.mxu0 0.0
  %4259 = vmatprep.subr.mxu0 0.0
  %4260 = vmatpush1.msra.mxu0 0.0
  %4261 = vmatprep.subr.mxu0 0.0
  %4262 = vmatpush1.msra.mxu0 0.0
  %4263 = vmatprep.subr.mxu0 0.0
  %4264 = vmatpush1.msra.mxu0 0.0
  %4265 = vmatprep.mubr.f32.mxu0 0.0
  %4266 = vmatmul.mubr.f32.gmra.mrb[0].mxu0 %v4199
  %v4267 = vpop.f32.mrb[0].mxu0
  %v4268 = vadd.f32 %v4191, %v4267
  %v4269 = vpop.f32.mrb[0].mxu0
  %v4270 = vadd.f32 %v4195, %v4269
  %4271 = vdwg.mxu0
  %v4273 = vsel %vm350, %v4163, 0
  %4275 = vmatprep.subr.mxu0 %v4171
  %4276 = vmatpush1.msra.mxu0 %v4170
  %4277 = vmatprep.subr.mxu0 %v4173
  %4278 = vmatpush1.msra.mxu0 %v4172
  %4279 = vmatprep.subr.mxu0 %v4175
  %4280 = vmatpush1.msra.mxu0 %v4174
  %4281 = vmatprep.subr.mxu0 %v4177
  %4282 = vmatpush1.msra.mxu0 %v4176
  %4283 = vmatprep.subr.mxu0 %v4179
  %4284 = vmatpush1.msra.mxu0 %v4178
  %4285 = vmatprep.subr.mxu0 %v4181
  %4286 = vmatpush1.msra.mxu0 %v4180
  %4287 = vmatprep.subr.mxu0 %v4183
  %4288 = vmatpush1.msra.mxu0 %v4182
  %4289 = vmatprep.subr.mxu0 %v4185
  %4290 = vmatpush1.msra.mxu0 %v4184
  %4291 = vmatprep.subr.mxu0 0.0
  %4292 = vmatpush1.msra.mxu0 0.0
  %4293 = vmatprep.subr.mxu0 0.0
  %4294 = vmatpush1.msra.mxu0 0.0
  %4295 = vmatprep.subr.mxu0 0.0
  %4296 = vmatpush1.msra.mxu0 0.0
  %4297 = vmatprep.subr.mxu0 0.0
  %4298 = vmatpush1.msra.mxu0 0.0
  %4299 = vmatprep.subr.mxu0 0.0
  %4300 = vmatpush1.msra.mxu0 0.0
  %4301 = vmatprep.subr.mxu0 0.0
  %4302 = vmatpush1.msra.mxu0 0.0
  %4303 = vmatprep.subr.mxu0 0.0
  %4304 = vmatpush1.msra.mxu0 0.0
  %4305 = vmatprep.subr.mxu0 0.0
  %4306 = vmatpush1.msra.mxu0 0.0
  %4307 = vmatprep.subr.mxu0 0.0
  %4308 = vmatpush1.msra.mxu0 0.0
  %4309 = vmatprep.subr.mxu0 0.0
  %4310 = vmatpush1.msra.mxu0 0.0
  %4311 = vmatprep.subr.mxu0 0.0
  %4312 = vmatpush1.msra.mxu0 0.0
  %4313 = vmatprep.subr.mxu0 0.0
  %4314 = vmatpush1.msra.mxu0 0.0
  %4315 = vmatprep.subr.mxu0 0.0
  %4316 = vmatpush1.msra.mxu0 0.0
  %4317 = vmatprep.subr.mxu0 0.0
  %4318 = vmatpush1.msra.mxu0 0.0
  %4319 = vmatprep.subr.mxu0 0.0
  %4320 = vmatpush1.msra.mxu0 0.0
  %4321 = vmatprep.subr.mxu0 0.0
  %4322 = vmatpush1.msra.mxu0 0.0
  %4323 = vmatprep.subr.mxu0 0.0
  %4324 = vmatpush1.msra.mxu0 0.0
  %4325 = vmatprep.subr.mxu0 0.0
  %4326 = vmatpush1.msra.mxu0 0.0
  %4327 = vmatprep.subr.mxu0 0.0
  %4328 = vmatpush1.msra.mxu0 0.0
  %4329 = vmatprep.subr.mxu0 0.0
  %4330 = vmatpush1.msra.mxu0 0.0
  %4331 = vmatprep.subr.mxu0 0.0
  %4332 = vmatpush1.msra.mxu0 0.0
  %4333 = vmatprep.subr.mxu0 0.0
  %4334 = vmatpush1.msra.mxu0 0.0
  %4335 = vmatprep.subr.mxu0 0.0
  %4336 = vmatpush1.msra.mxu0 0.0
  %4337 = vmatprep.subr.mxu0 0.0
  %4338 = vmatpush1.msra.mxu0 0.0
  %4339 = vmatprep.mubr.f32.mxu0 0.0
  %4340 = vmatmul.mubr.f32.gmra.mrb[0].mxu0 %v4273
  %v4341 = vpop.f32.mrb[0].mxu0
  %v4342 = vadd.f32 %v4191, %v4341
  %v4343 = vpop.f32.mrb[0].mxu0
  %v4344 = vadd.f32 %v4195, %v4343
  %4345 = vdwg.mxu0
  %v4347 = vsel %vm350, %v4164, 0
  %4349 = vmatprep.subr.mxu0 %v4171
  %4350 = vmatpush1.msra.mxu0 %v4170
  %4351 = vmatprep.subr.mxu0 %v4173
  %4352 = vmatpush1.msra.mxu0 %v4172
  %4353 = vmatprep.subr.mxu0 %v4175
  %4354 = vmatpush1.msra.mxu0 %v4174
  %4355 = vmatprep.subr.mxu0 %v4177
  %4356 = vmatpush1.msra.mxu0 %v4176
  %4357 = vmatprep.subr.mxu0 %v4179
  %4358 = vmatpush1.msra.mxu0 %v4178
  %4359 = vmatprep.subr.mxu0 %v4181
  %4360 = vmatpush1.msra.mxu0 %v4180
  %4361 = vmatprep.subr.mxu0 %v4183
  %4362 = vmatpush1.msra.mxu0 %v4182
  %4363 = vmatprep.subr.mxu0 %v4185
  %4364 = vmatpush1.msra.mxu0 %v4184
  %4365 = vmatprep.subr.mxu0 0.0
  %4366 = vmatpush1.msra.mxu0 0.0
  %4367 = vmatprep.subr.mxu0 0.0
  %4368 = vmatpush1.msra.mxu0 0.0
  %4369 = vmatprep.subr.mxu0 0.0
  %4370 = vmatpush1.msra.mxu0 0.0
  %4371 = vmatprep.subr.mxu0 0.0
  %4372 = vmatpush1.msra.mxu0 0.0
  %4373 = vmatprep.subr.mxu0 0.0
  %4374 = vmatpush1.msra.mxu0 0.0
  %4375 = vmatprep.subr.mxu0 0.0
  %4376 = vmatpush1.msra.mxu0 0.0
  %4377 = vmatprep.subr.mxu0 0.0
  %4378 = vmatpush1.msra.mxu0 0.0
  %4379 = vmatprep.subr.mxu0 0.0
  %4380 = vmatpush1.msra.mxu0 0.0
  %4381 = vmatprep.subr.mxu0 0.0
  %4382 = vmatpush1.msra.mxu0 0.0
  %4383 = vmatprep.subr.mxu0 0.0
  %4384 = vmatpush1.msra.mxu0 0.0
  %4385 = vmatprep.subr.mxu0 0.0
  %4386 = vmatpush1.msra.mxu0 0.0
  %4387 = vmatprep.subr.mxu0 0.0
  %4388 = vmatpush1.msra.mxu0 0.0
  %4389 = vmatprep.subr.mxu0 0.0
  %4390 = vmatpush1.msra.mxu0 0.0
  %4391 = vmatprep.subr.mxu0 0.0
  %4392 = vmatpush1.msra.mxu0 0.0
  %4393 = vmatprep.subr.mxu0 0.0
  %4394 = vmatpush1.msra.mxu0 0.0
  %4395 = vmatprep.subr.mxu0 0.0
  %4396 = vmatpush1.msra.mxu0 0.0
  %4397 = vmatprep.subr.mxu0 0.0
  %4398 = vmatpush1.msra.mxu0 0.0
  %4399 = vmatprep.subr.mxu0 0.0
  %4400 = vmatpush1.msra.mxu0 0.0
  %4401 = vmatprep.subr.mxu0 0.0
  %4402 = vmatpush1.msra.mxu0 0.0
  %4403 = vmatprep.subr.mxu0 0.0
  %4404 = vmatpush1.msra.mxu0 0.0
  %4405 = vmatprep.subr.mxu0 0.0
  %4406 = vmatpush1.msra.mxu0 0.0
  %4407 = vmatprep.subr.mxu0 0.0
  %4408 = vmatpush1.msra.mxu0 0.0
  %4409 = vmatprep.subr.mxu0 0.0
  %4410 = vmatpush1.msra.mxu0 0.0
  %4411 = vmatprep.subr.mxu0 0.0
  %4412 = vmatpush1.msra.mxu0 0.0
  %4413 = vmatprep.mubr.f32.mxu0 0.0
  %4414 = vmatmul.mubr.f32.gmra.mrb[0].mxu0 %v4347
  %v4415 = vpop.f32.mrb[0].mxu0
  %v4416 = vadd.f32 %v4191, %v4415
  %v4417 = vpop.f32.mrb[0].mxu0
  %v4418 = vadd.f32 %v4195, %v4417
  %4419 = vdwg.mxu0
  %v4421 = vsel %vm350, %v4165, 0
  %4423 = vmatprep.subr.mxu0 %v4171
  %4424 = vmatpush1.msra.mxu0 %v4170
  %4425 = vmatprep.subr.mxu0 %v4173
  %4426 = vmatpush1.msra.mxu0 %v4172
  %4427 = vmatprep.subr.mxu0 %v4175
  %4428 = vmatpush1.msra.mxu0 %v4174
  %4429 = vmatprep.subr.mxu0 %v4177
  %4430 = vmatpush1.msra.mxu0 %v4176
  %4431 = vmatprep.subr.mxu0 %v4179
  %4432 = vmatpush1.msra.mxu0 %v4178
  %4433 = vmatprep.subr.mxu0 %v4181
  %4434 = vmatpush1.msra.mxu0 %v4180
  %4435 = vmatprep.subr.mxu0 %v4183
  %4436 = vmatpush1.msra.mxu0 %v4182
  %4437 = vmatprep.subr.mxu0 %v4185
  %4438 = vmatpush1.msra.mxu0 %v4184
  %4439 = vmatprep.subr.mxu0 0.0
  %4440 = vmatpush1.msra.mxu0 0.0
  %4441 = vmatprep.subr.mxu0 0.0
  %4442 = vmatpush1.msra.mxu0 0.0
  %4443 = vmatprep.subr.mxu0 0.0
  %4444 = vmatpush1.msra.mxu0 0.0
  %4445 = vmatprep.subr.mxu0 0.0
  %4446 = vmatpush1.msra.mxu0 0.0
  %4447 = vmatprep.subr.mxu0 0.0
  %4448 = vmatpush1.msra.mxu0 0.0
  %4449 = vmatprep.subr.mxu0 0.0
  %4450 = vmatpush1.msra.mxu0 0.0
  %4451 = vmatprep.subr.mxu0 0.0
  %4452 = vmatpush1.msra.mxu0 0.0
  %4453 = vmatprep.subr.mxu0 0.0
  %4454 = vmatpush1.msra.mxu0 0.0
  %4455 = vmatprep.subr.mxu0 0.0
  %4456 = vmatpush1.msra.mxu0 0.0
  %4457 = vmatprep.subr.mxu0 0.0
  %4458 = vmatpush1.msra.mxu0 0.0
  %4459 = vmatprep.subr.mxu0 0.0
  %4460 = vmatpush1.msra.mxu0 0.0
  %4461 = vmatprep.subr.mxu0 0.0
  %4462 = vmatpush1.msra.mxu0 0.0
  %4463 = vmatprep.subr.mxu0 0.0
  %4464 = vmatpush1.msra.mxu0 0.0
  %4465 = vmatprep.subr.mxu0 0.0
  %4466 = vmatpush1.msra.mxu0 0.0
  %4467 = vmatprep.subr.mxu0 0.0
  %4468 = vmatpush1.msra.mxu0 0.0
  %4469 = vmatprep.subr.mxu0 0.0
  %4470 = vmatpush1.msra.mxu0 0.0
  %4471 = vmatprep.subr.mxu0 0.0
  %4472 = vmatpush1.msra.mxu0 0.0
  %4473 = vmatprep.subr.mxu0 0.0
  %4474 = vmatpush1.msra.mxu0 0.0
  %4475 = vmatprep.subr.mxu0 0.0
  %4476 = vmatpush1.msra.mxu0 0.0
  %4477 = vmatprep.subr.mxu0 0.0
  %4478 = vmatpush1.msra.mxu0 0.0
  %4479 = vmatprep.subr.mxu0 0.0
  %4480 = vmatpush1.msra.mxu0 0.0
  %4481 = vmatprep.subr.mxu0 0.0
  %4482 = vmatpush1.msra.mxu0 0.0
  %4483 = vmatprep.subr.mxu0 0.0
  %4484 = vmatpush1.msra.mxu0 0.0
  %4485 = vmatprep.subr.mxu0 0.0
  %4486 = vmatpush1.msra.mxu0 0.0
  %4487 = vmatprep.mubr.f32.mxu0 0.0
  %4488 = vmatmul.mubr.f32.gmra.mrb[0].mxu0 %v4421
  %v4489 = vpop.f32.mrb[0].mxu0
  %v4490 = vadd.f32 %v4191, %v4489
  %v4491 = vpop.f32.mrb[0].mxu0
  %v4492 = vadd.f32 %v4195, %v4491
  %4493 = vdwg.mxu0
  %v4495 = vsel %vm350, %v4166, 0
  %4497 = vmatprep.subr.mxu0 %v4171
  %4498 = vmatpush1.msra.mxu0 %v4170
  %4499 = vmatprep.subr.mxu0 %v4173
  %4500 = vmatpush1.msra.mxu0 %v4172
  %4501 = vmatprep.subr.mxu0 %v4175
  %4502 = vmatpush1.msra.mxu0 %v4174
  %4503 = vmatprep.subr.mxu0 %v4177
  %4504 = vmatpush1.msra.mxu0 %v4176
  %4505 = vmatprep.subr.mxu0 %v4179
  %4506 = vmatpush1.msra.mxu0 %v4178
  %4507 = vmatprep.subr.mxu0 %v4181
  %4508 = vmatpush1.msra.mxu0 %v4180
  %4509 = vmatprep.subr.mxu0 %v4183
  %4510 = vmatpush1.msra.mxu0 %v4182
  %4511 = vmatprep.subr.mxu0 %v4185
  %4512 = vmatpush1.msra.mxu0 %v4184
  %4513 = vmatprep.subr.mxu0 0.0
  %4514 = vmatpush1.msra.mxu0 0.0
  %4515 = vmatprep.subr.mxu0 0.0
  %4516 = vmatpush1.msra.mxu0 0.0
  %4517 = vmatprep.subr.mxu0 0.0
  %4518 = vmatpush1.msra.mxu0 0.0
  %4519 = vmatprep.subr.mxu0 0.0
  %4520 = vmatpush1.msra.mxu0 0.0
  %4521 = vmatprep.subr.mxu0 0.0
  %4522 = vmatpush1.msra.mxu0 0.0
  %4523 = vmatprep.subr.mxu0 0.0
  %4524 = vmatpush1.msra.mxu0 0.0
  %4525 = vmatprep.subr.mxu0 0.0
  %4526 = vmatpush1.msra.mxu0 0.0
  %4527 = vmatprep.subr.mxu0 0.0
  %4528 = vmatpush1.msra.mxu0 0.0
  %4529 = vmatprep.subr.mxu0 0.0
  %4530 = vmatpush1.msra.mxu0 0.0
  %4531 = vmatprep.subr.mxu0 0.0
  %4532 = vmatpush1.msra.mxu0 0.0
  %4533 = vmatprep.subr.mxu0 0.0
  %4534 = vmatpush1.msra.mxu0 0.0
  %4535 = vmatprep.subr.mxu0 0.0
  %4536 = vmatpush1.msra.mxu0 0.0
  %4537 = vmatprep.subr.mxu0 0.0
  %4538 = vmatpush1.msra.mxu0 0.0
  %4539 = vmatprep.subr.mxu0 0.0
  %4540 = vmatpush1.msra.mxu0 0.0
  %4541 = vmatprep.subr.mxu0 0.0
  %4542 = vmatpush1.msra.mxu0 0.0
  %4543 = vmatprep.subr.mxu0 0.0
  %4544 = vmatpush1.msra.mxu0 0.0
  %4545 = vmatprep.subr.mxu0 0.0
  %4546 = vmatpush1.msra.mxu0 0.0
  %4547 = vmatprep.subr.mxu0 0.0
  %4548 = vmatpush1.msra.mxu0 0.0
  %4549 = vmatprep.subr.mxu0 0.0
  %4550 = vmatpush1.msra.mxu0 0.0
  %4551 = vmatprep.subr.mxu0 0.0
  %4552 = vmatpush1.msra.mxu0 0.0
  %4553 = vmatprep.subr.mxu0 0.0
  %4554 = vmatpush1.msra.mxu0 0.0
  %4555 = vmatprep.subr.mxu0 0.0
  %4556 = vmatpush1.msra.mxu0 0.0
  %4557 = vmatprep.subr.mxu0 0.0
  %4558 = vmatpush1.msra.mxu0 0.0
  %4559 = vmatprep.subr.mxu0 0.0
  %4560 = vmatpush1.msra.mxu0 0.0
  %4561 = vmatprep.mubr.f32.mxu0 0.0
  %4562 = vmatmul.mubr.f32.gmra.mrb[0].mxu0 %v4495
  %v4563 = vpop.f32.mrb[0].mxu0
  %v4564 = vadd.f32 %v4191, %v4563
  %v4565 = vpop.f32.mrb[0].mxu0
  %v4566 = vadd.f32 %v4195, %v4565
  %4567 = vdwg.mxu0
  %v4569 = vsel %vm350, %v4167, 0
  %4571 = vmatprep.subr.mxu0 %v4171
  %4572 = vmatpush1.msra.mxu0 %v4170
  %4573 = vmatprep.subr.mxu0 %v4173
  %4574 = vmatpush1.msra.mxu0 %v4172
  %4575 = vmatprep.subr.mxu0 %v4175
  %4576 = vmatpush1.msra.mxu0 %v4174
  %4577 = vmatprep.subr.mxu0 %v4177
  %4578 = vmatpush1.msra.mxu0 %v4176
  %4579 = vmatprep.subr.mxu0 %v4179
  %4580 = vmatpush1.msra.mxu0 %v4178
  %4581 = vmatprep.subr.mxu0 %v4181
  %4582 = vmatpush1.msra.mxu0 %v4180
  %4583 = vmatprep.subr.mxu0 %v4183
  %4584 = vmatpush1.msra.mxu0 %v4182
  %4585 = vmatprep.subr.mxu0 %v4185
  %4586 = vmatpush1.msra.mxu0 %v4184
  %4587 = vmatprep.subr.mxu0 0.0
  %4588 = vmatpush1.msra.mxu0 0.0
  %4589 = vmatprep.subr.mxu0 0.0
  %4590 = vmatpush1.msra.mxu0 0.0
  %4591 = vmatprep.subr.mxu0 0.0
  %4592 = vmatpush1.msra.mxu0 0.0
  %4593 = vmatprep.subr.mxu0 0.0
  %4594 = vmatpush1.msra.mxu0 0.0
  %4595 = vmatprep.subr.mxu0 0.0
  %4596 = vmatpush1.msra.mxu0 0.0
  %4597 = vmatprep.subr.mxu0 0.0
  %4598 = vmatpush1.msra.mxu0 0.0
  %4599 = vmatprep.subr.mxu0 0.0
  %4600 = vmatpush1.msra.mxu0 0.0
  %4601 = vmatprep.subr.mxu0 0.0
  %4602 = vmatpush1.msra.mxu0 0.0
  %4603 = vmatprep.subr.mxu0 0.0
  %4604 = vmatpush1.msra.mxu0 0.0
  %4605 = vmatprep.subr.mxu0 0.0
  %4606 = vmatpush1.msra.mxu0 0.0
  %4607 = vmatprep.subr.mxu0 0.0
  %4608 = vmatpush1.msra.mxu0 0.0
  %4609 = vmatprep.subr.mxu0 0.0
  %4610 = vmatpush1.msra.mxu0 0.0
  %4611 = vmatprep.subr.mxu0 0.0
  %4612 = vmatpush1.msra.mxu0 0.0
  %4613 = vmatprep.subr.mxu0 0.0
  %4614 = vmatpush1.msra.mxu0 0.0
  %4615 = vmatprep.subr.mxu0 0.0
  %4616 = vmatpush1.msra.mxu0 0.0
  %4617 = vmatprep.subr.mxu0 0.0
  %4618 = vmatpush1.msra.mxu0 0.0
  %4619 = vmatprep.subr.mxu0 0.0
  %4620 = vmatpush1.msra.mxu0 0.0
  %4621 = vmatprep.subr.mxu0 0.0
  %4622 = vmatpush1.msra.mxu0 0.0
  %4623 = vmatprep.subr.mxu0 0.0
  %4624 = vmatpush1.msra.mxu0 0.0
  %4625 = vmatprep.subr.mxu0 0.0
  %4626 = vmatpush1.msra.mxu0 0.0
  %4627 = vmatprep.subr.mxu0 0.0
  %4628 = vmatpush1.msra.mxu0 0.0
  %4629 = vmatprep.subr.mxu0 0.0
  %4630 = vmatpush1.msra.mxu0 0.0
  %4631 = vmatprep.subr.mxu0 0.0
  %4632 = vmatpush1.msra.mxu0 0.0
  %4633 = vmatprep.subr.mxu0 0.0
  %4634 = vmatpush1.msra.mxu0 0.0
  %4635 = vmatprep.mubr.f32.mxu0 0.0
  %4636 = vmatmul.mubr.f32.gmra.mrb[0].mxu0 %v4569
  %v4637 = vpop.f32.mrb[0].mxu0
  %v4638 = vadd.f32 %v4191, %v4637
  %v4639 = vpop.f32.mrb[0].mxu0
  %v4640 = vadd.f32 %v4195, %v4639
  %4641 = vdwg.mxu0
  %v4643 = vsel %vm350, %v4168, 0
  %4645 = vmatprep.subr.mxu0 %v4171
  %4646 = vmatpush1.msra.mxu0 %v4170
  %4647 = vmatprep.subr.mxu0 %v4173
  %4648 = vmatpush1.msra.mxu0 %v4172
  %4649 = vmatprep.subr.mxu0 %v4175
  %4650 = vmatpush1.msra.mxu0 %v4174
  %4651 = vmatprep.subr.mxu0 %v4177
  %4652 = vmatpush1.msra.mxu0 %v4176
  %4653 = vmatprep.subr.mxu0 %v4179
  %4654 = vmatpush1.msra.mxu0 %v4178
  %4655 = vmatprep.subr.mxu0 %v4181
  %4656 = vmatpush1.msra.mxu0 %v4180
  %4657 = vmatprep.subr.mxu0 %v4183
  %4658 = vmatpush1.msra.mxu0 %v4182
  %4659 = vmatprep.subr.mxu0 %v4185
  %4660 = vmatpush1.msra.mxu0 %v4184
  %4661 = vmatprep.subr.mxu0 0.0
  %4662 = vmatpush1.msra.mxu0 0.0
  %4663 = vmatprep.subr.mxu0 0.0
  %4664 = vmatpush1.msra.mxu0 0.0
  %4665 = vmatprep.subr.mxu0 0.0
  %4666 = vmatpush1.msra.mxu0 0.0
  %4667 = vmatprep.subr.mxu0 0.0
  %4668 = vmatpush1.msra.mxu0 0.0
  %4669 = vmatprep.subr.mxu0 0.0
  %4670 = vmatpush1.msra.mxu0 0.0
  %4671 = vmatprep.subr.mxu0 0.0
  %4672 = vmatpush1.msra.mxu0 0.0
  %4673 = vmatprep.subr.mxu0 0.0
  %4674 = vmatpush1.msra.mxu0 0.0
  %4675 = vmatprep.subr.mxu0 0.0
  %4676 = vmatpush1.msra.mxu0 0.0
  %4677 = vmatprep.subr.mxu0 0.0
  %4678 = vmatpush1.msra.mxu0 0.0
  %4679 = vmatprep.subr.mxu0 0.0
  %4680 = vmatpush1.msra.mxu0 0.0
  %4681 = vmatprep.subr.mxu0 0.0
  %4682 = vmatpush1.msra.mxu0 0.0
  %4683 = vmatprep.subr.mxu0 0.0
  %4684 = vmatpush1.msra.mxu0 0.0
  %4685 = vmatprep.subr.mxu0 0.0
  %4686 = vmatpush1.msra.mxu0 0.0
  %4687 = vmatprep.subr.mxu0 0.0
  %4688 = vmatpush1.msra.mxu0 0.0
  %4689 = vmatprep.subr.mxu0 0.0
  %4690 = vmatpush1.msra.mxu0 0.0
  %4691 = vmatprep.subr.mxu0 0.0
  %4692 = vmatpush1.msra.mxu0 0.0
  %4693 = vmatprep.subr.mxu0 0.0
  %4694 = vmatpush1.msra.mxu0 0.0
  %4695 = vmatprep.subr.mxu0 0.0
  %4696 = vmatpush1.msra.mxu0 0.0
  %4697 = vmatprep.subr.mxu0 0.0
  %4698 = vmatpush1.msra.mxu0 0.0
  %4699 = vmatprep.subr.mxu0 0.0
  %4700 = vmatpush1.msra.mxu0 0.0
  %4701 = vmatprep.subr.mxu0 0.0
  %4702 = vmatpush1.msra.mxu0 0.0
  %4703 = vmatprep.subr.mxu0 0.0
  %4704 = vmatpush1.msra.mxu0 0.0
  %4705 = vmatprep.subr.mxu0 0.0
  %4706 = vmatpush1.msra.mxu0 0.0
  %4707 = vmatprep.subr.mxu0 0.0
  %4708 = vmatpush1.msra.mxu0 0.0
  %4709 = vmatprep.mubr.f32.mxu0 0.0
  %4710 = vmatmul.mubr.f32.gmra.mrb[0].mxu0 %v4643
  %v4711 = vpop.f32.mrb[0].mxu0
  %v4712 = vadd.f32 %v4191, %v4711
  %v4713 = vpop.f32.mrb[0].mxu0
  %v4714 = vadd.f32 %v4195, %v4713
  %4715 = vdwg.mxu0
  %v4717 = vsel %vm350, %v4169, 0
  %4719 = vmatprep.subr.mxu0 %v4171
  %4720 = vmatpush1.msra.mxu0 %v4170
  %4721 = vmatprep.subr.mxu0 %v4173
  %4722 = vmatpush1.msra.mxu0 %v4172
  %4723 = vmatprep.subr.mxu0 %v4175
  %4724 = vmatpush1.msra.mxu0 %v4174
  %4725 = vmatprep.subr.mxu0 %v4177
  %4726 = vmatpush1.msra.mxu0 %v4176
  %4727 = vmatprep.subr.mxu0 %v4179
  %4728 = vmatpush1.msra.mxu0 %v4178
  %4729 = vmatprep.subr.mxu0 %v4181
  %4730 = vmatpush1.msra.mxu0 %v4180
  %4731 = vmatprep.subr.mxu0 %v4183
  %4732 = vmatpush1.msra.mxu0 %v4182
  %4733 = vmatprep.subr.mxu0 %v4185
  %4734 = vmatpush1.msra.mxu0 %v4184
  %4735 = vmatprep.subr.mxu0 0.0
  %4736 = vmatpush1.msra.mxu0 0.0
  %4737 = vmatprep.subr.mxu0 0.0
  %4738 = vmatpush1.msra.mxu0 0.0
  %4739 = vmatprep.subr.mxu0 0.0
  %4740 = vmatpush1.msra.mxu0 0.0
  %4741 = vmatprep.subr.mxu0 0.0
  %4742 = vmatpush1.msra.mxu0 0.0
  %4743 = vmatprep.subr.mxu0 0.0
  %4744 = vmatpush1.msra.mxu0 0.0
  %4745 = vmatprep.subr.mxu0 0.0
  %4746 = vmatpush1.msra.mxu0 0.0
  %4747 = vmatprep.subr.mxu0 0.0
  %4748 = vmatpush1.msra.mxu0 0.0
  %4749 = vmatprep.subr.mxu0 0.0
  %4750 = vmatpush1.msra.mxu0 0.0
  %4751 = vmatprep.subr.mxu0 0.0
  %4752 = vmatpush1.msra.mxu0 0.0
  %4753 = vmatprep.subr.mxu0 0.0
  %4754 = vmatpush1.msra.mxu0 0.0
  %4755 = vmatprep.subr.mxu0 0.0
  %4756 = vmatpush1.msra.mxu0 0.0
  %4757 = vmatprep.subr.mxu0 0.0
  %4758 = vmatpush1.msra.mxu0 0.0
  %4759 = vmatprep.subr.mxu0 0.0
  %4760 = vmatpush1.msra.mxu0 0.0
  %4761 = vmatprep.subr.mxu0 0.0
  %4762 = vmatpush1.msra.mxu0 0.0
  %4763 = vmatprep.subr.mxu0 0.0
  %4764 = vmatpush1.msra.mxu0 0.0
  %4765 = vmatprep.subr.mxu0 0.0
  %4766 = vmatpush1.msra.mxu0 0.0
  %4767 = vmatprep.subr.mxu0 0.0
  %4768 = vmatpush1.msra.mxu0 0.0
  %4769 = vmatprep.subr.mxu0 0.0
  %4770 = vmatpush1.msra.mxu0 0.0
  %4771 = vmatprep.subr.mxu0 0.0
  %4772 = vmatpush1.msra.mxu0 0.0
  %4773 = vmatprep.subr.mxu0 0.0
  %4774 = vmatpush1.msra.mxu0 0.0
  %4775 = vmatprep.subr.mxu0 0.0
  %4776 = vmatpush1.msra.mxu0 0.0
  %4777 = vmatprep.subr.mxu0 0.0
  %4778 = vmatpush1.msra.mxu0 0.0
  %4779 = vmatprep.subr.mxu0 0.0
  %4780 = vmatpush1.msra.mxu0 0.0
  %4781 = vmatprep.subr.mxu0 0.0
  %4782 = vmatpush1.msra.mxu0 0.0
  %4783 = vmatprep.mubr.f32.mxu0 0.0
  %4784 = vmatmul.mubr.f32.gmra.mrb[0].mxu0 %v4717
  %v4785 = vpop.f32.mrb[0].mxu0
  %v4786 = vadd.f32 %v4191, %v4785
  %v4787 = vpop.f32.mrb[0].mxu0
  %v4788 = vadd.f32 %v4195, %v4787
  %4789 = vdwg.mxu0
  %v4790 = vld [vmem:[%s19] sm:$0xff]
  %v4791 = vld [vmem:[%s19 + $0x8] sm:$0xff]
  %v4792 = vld [vmem:[%s19 + $0x10] sm:$0xff]
  %v4793 = vld [vmem:[%s19 + $0x18] sm:$0xff]
  %v4794 = vld [vmem:[%s19 + $0x20] sm:$0xff]
  %v4795 = vld [vmem:[%s19 + $0x28] sm:$0xff]
  %v4796 = vld [vmem:[%s19 + $0x30] sm:$0xff]
  %v4797 = vld [vmem:[%s19 + $0x38] sm:$0xff]
  %v4798 = vld [vmem:[%s19 + $0x40] sm:$0xff]
  %v4799 = vld [vmem:[%s19 + $0x48] sm:$0xff]
  %v4800 = vld [vmem:[%s19 + $0x50] sm:$0xff]
  %v4801 = vld [vmem:[%s19 + $0x58] sm:$0xff]
  %v4802 = vld [vmem:[%s19 + $0x60] sm:$0xff]
  %v4803 = vld [vmem:[%s19 + $0x68] sm:$0xff]
  %v4804 = vld [vmem:[%s19 + $0x70] sm:$0xff]
  %v4805 = vld [vmem:[%s19 + $0x78] sm:$0xff]
  %v4806 = vsel %vm95, %v4268, %v4786
  %v4807 = vsel %vm96, %v4270, %v4788
  %4808 = vmatprep.subr.mxu0 %v4791
  %4809 = vmatpush1.msra.mxu0 %v4790
  %4810 = vmatprep.subr.mxu0 %v4793
  %4811 = vmatpush1.msra.mxu0 %v4792
  %4812 = vmatprep.subr.mxu0 %v4795
  %4813 = vmatpush1.msra.mxu0 %v4794
  %4814 = vmatprep.subr.mxu0 %v4797
  %4815 = vmatpush1.msra.mxu0 %v4796
  %4816 = vmatprep.subr.mxu0 %v4799
  %4817 = vmatpush1.msra.mxu0 %v4798
  %4818 = vmatprep.subr.mxu0 %v4801
  %4819 = vmatpush1.msra.mxu0 %v4800
  %4820 = vmatprep.subr.mxu0 %v4803
  %4821 = vmatpush1.msra.mxu0 %v4802
  %4822 = vmatprep.subr.mxu0 %v4805
  %4823 = vmatpush1.msra.mxu0 %v4804
  %4824 = vmatprep.subr.mxu0 0.0
  %4825 = vmatpush1.msra.mxu0 0.0
  %4826 = vmatprep.subr.mxu0 0.0
  %4827 = vmatpush1.msra.mxu0 0.0
  %4828 = vmatprep.subr.mxu0 0.0
  %4829 = vmatpush1.msra.mxu0 0.0
  %4830 = vmatprep.subr.mxu0 0.0
  %4831 = vmatpush1.msra.mxu0 0.0
  %4832 = vmatprep.subr.mxu0 0.0
  %4833 = vmatpush1.msra.mxu0 0.0
  %4834 = vmatprep.subr.mxu0 0.0
  %4835 = vmatpush1.msra.mxu0 0.0
  %4836 = vmatprep.subr.mxu0 0.0
  %4837 = vmatpush1.msra.mxu0 0.0
  %4838 = vmatprep.subr.mxu0 0.0
  %4839 = vmatpush1.msra.mxu0 0.0
  %4840 = vmatprep.subr.mxu0 0.0
  %4841 = vmatpush1.msra.mxu0 0.0
  %4842 = vmatprep.subr.mxu0 0.0
  %4843 = vmatpush1.msra.mxu0 0.0
  %4844 = vmatprep.subr.mxu0 0.0
  %4845 = vmatpush1.msra.mxu0 0.0
  %4846 = vmatprep.subr.mxu0 0.0
  %4847 = vmatpush1.msra.mxu0 0.0
  %4848 = vmatprep.subr.mxu0 0.0
  %4849 = vmatpush1.msra.mxu0 0.0
  %4850 = vmatprep.subr.mxu0 0.0
  %4851 = vmatpush1.msra.mxu0 0.0
  %4852 = vmatprep.subr.mxu0 0.0
  %4853 = vmatpush1.msra.mxu0 0.0
  %4854 = vmatprep.subr.mxu0 0.0
  %4855 = vmatpush1.msra.mxu0 0.0
  %4856 = vmatprep.subr.mxu0 0.0
  %4857 = vmatpush1.msra.mxu0 0.0
  %4858 = vmatprep.subr.mxu0 0.0
  %4859 = vmatpush1.msra.mxu0 0.0
  %4860 = vmatprep.subr.mxu0 0.0
  %4861 = vmatpush1.msra.mxu0 0.0
  %4862 = vmatprep.subr.mxu0 0.0
  %4863 = vmatpush1.msra.mxu0 0.0
  %4864 = vmatprep.subr.mxu0 0.0
  %4865 = vmatpush1.msra.mxu0 0.0
  %4866 = vmatprep.subr.mxu0 0.0
  %4867 = vmatpush1.msra.mxu0 0.0
  %4868 = vmatprep.subr.mxu0 0.0
  %4869 = vmatpush1.msra.mxu0 0.0
  %4870 = vmatprep.subr.mxu0 0.0
  %4871 = vmatpush1.msra.mxu0 0.0
  %4872 = vmatprep.mubr.f32.mxu0 0.0
  %4873 = vmatmul.mubr.f32.gmra.mrb[0].mxu0 %v1647
  %v4874 = vpop.f32.mrb[0].mxu0
  %v4875 = vadd.f32 0.0, %v4874
  %v4876 = vpop.f32.mrb[0].mxu0
  %v4877 = vadd.f32 0.0, %v4876
  %4878 = vdwg.mxu0
  %v4879 = vadd.f32 %v4806, %v4875
  %v4880 = vadd.f32 %v4807, %v4877
  %v4881 = vxor.u32 %v4879, 2147483648
  %v4882 = vmul.f32 %v4881, 1.442695
  %v4883 = vpow.pop %v4882
  %v4884 = vadd.f32 %v4883, 1.0
  %v4885 = vrcp.pop %v4884
  %v4886 = vmul.f32 1.0, %v4885
  %v4887 = vtanh.pop %v4880
  %v4888 = vxor.u32 %v4880, 2147483648
  %v4889 = vmul.f32 %v4888, 1.442695
  %v4890 = vpow.pop %v4889
  %v4891 = vadd.f32 %v4890, 1.0
  %v4892 = vrcp.pop %v4891
  %v4893 = vmul.f32 1.0, %v4892
  %v4894 = vmul.f32 %v4886, 0.0
  %v4895 = vmul.f32 %v4886, %v4887
  %4897 = vrot.lane.b32.xlu0 %v4895, 64
  %v4898 = vpop.permute.xlu0 %4897
  %v4900 = vadd.f32 %v4894, %v4898
  %v4901 = vtanh.pop %v4900
  %v4902 = vmul.f32 %v4893, %v4901
  %4904 = vrot.lane.b32.xlu0 %v4900, 64
  %v4905 = vpop.permute.xlu0 %4904
  %v4907 = vsel %vm1167, %v4905, 0.0
  %4909 = vrot.lane.b32.xlu0 %v4902, 64
  %v4910 = vpop.permute.xlu0 %4909
  %v4912 = vsel %vm1167, %v4910, 0.0
  %v4913 = vsel %vm95, %v4342, %v4712
  %v4914 = vsel %vm96, %v4344, %v4714
  %v4916 = vsel %vm350, %v4912, 0
  %4918 = vmatprep.subr.mxu0 %v4791
  %4919 = vmatpush1.msra.mxu0 %v4790
  %4920 = vmatprep.subr.mxu0 %v4793
  %4921 = vmatpush1.msra.mxu0 %v4792
  %4922 = vmatprep.subr.mxu0 %v4795
  %4923 = vmatpush1.msra.mxu0 %v4794
  %4924 = vmatprep.subr.mxu0 %v4797
  %4925 = vmatpush1.msra.mxu0 %v4796
  %4926 = vmatprep.subr.mxu0 %v4799
  %4927 = vmatpush1.msra.mxu0 %v4798
  %4928 = vmatprep.subr.mxu0 %v4801
  %4929 = vmatpush1.msra.mxu0 %v4800
  %4930 = vmatprep.subr.mxu0 %v4803
  %4931 = vmatpush1.msra.mxu0 %v4802
  %4932 = vmatprep.subr.mxu0 %v4805
  %4933 = vmatpush1.msra.mxu0 %v4804
  %4934 = vmatprep.subr.mxu0 0.0
  %4935 = vmatpush1.msra.mxu0 0.0
  %4936 = vmatprep.subr.mxu0 0.0
  %4937 = vmatpush1.msra.mxu0 0.0
  %4938 = vmatprep.subr.mxu0 0.0
  %4939 = vmatpush1.msra.mxu0 0.0
  %4940 = vmatprep.subr.mxu0 0.0
  %4941 = vmatpush1.msra.mxu0 0.0
  %4942 = vmatprep.subr.mxu0 0.0
  %4943 = vmatpush1.msra.mxu0 0.0
  %4944 = vmatprep.subr.mxu0 0.0
  %4945 = vmatpush1.msra.mxu0 0.0
  %4946 = vmatprep.subr.mxu0 0.0
  %4947 = vmatpush1.msra.mxu0 0.0
  %4948 = vmatprep.subr.mxu0 0.0
  %4949 = vmatpush1.msra.mxu0 0.0
  %4950 = vmatprep.subr.mxu0 0.0
  %4951 = vmatpush1.msra.mxu0 0.0
  %4952 = vmatprep.subr.mxu0 0.0
  %4953 = vmatpush1.msra.mxu0 0.0
  %4954 = vmatprep.subr.mxu0 0.0
  %4955 = vmatpush1.msra.mxu0 0.0
  %4956 = vmatprep.subr.mxu0 0.0
  %4957 = vmatpush1.msra.mxu0 0.0
  %4958 = vmatprep.subr.mxu0 0.0
  %4959 = vmatpush1.msra.mxu0 0.0
  %4960 = vmatprep.subr.mxu0 0.0
  %4961 = vmatpush1.msra.mxu0 0.0
  %4962 = vmatprep.subr.mxu0 0.0
  %4963 = vmatpush1.msra.mxu0 0.0
  %4964 = vmatprep.subr.mxu0 0.0
  %4965 = vmatpush1.msra.mxu0 0.0
  %4966 = vmatprep.subr.mxu0 0.0
  %4967 = vmatpush1.msra.mxu0 0.0
  %4968 = vmatprep.subr.mxu0 0.0
  %4969 = vmatpush1.msra.mxu0 0.0
  %4970 = vmatprep.subr.mxu0 0.0
  %4971 = vmatpush1.msra.mxu0 0.0
  %4972 = vmatprep.subr.mxu0 0.0
  %4973 = vmatpush1.msra.mxu0 0.0
  %4974 = vmatprep.subr.mxu0 0.0
  %4975 = vmatpush1.msra.mxu0 0.0
  %4976 = vmatprep.subr.mxu0 0.0
  %4977 = vmatpush1.msra.mxu0 0.0
  %4978 = vmatprep.subr.mxu0 0.0
  %4979 = vmatpush1.msra.mxu0 0.0
  %4980 = vmatprep.subr.mxu0 0.0
  %4981 = vmatpush1.msra.mxu0 0.0
  %4982 = vmatprep.mubr.f32.mxu0 0.0
  %4983 = vmatmul.mubr.f32.gmra.mrb[0].mxu0 %v4916
  %v4984 = vpop.f32.mrb[0].mxu0
  %v4985 = vadd.f32 0.0, %v4984
  %v4986 = vpop.f32.mrb[0].mxu0
  %v4987 = vadd.f32 0.0, %v4986
  %4988 = vdwg.mxu0
  %v4989 = vadd.f32 %v4913, %v4985
  %v4990 = vadd.f32 %v4914, %v4987
  %v4991 = vxor.u32 %v4989, 2147483648
  %v4992 = vmul.f32 %v4991, 1.442695
  %v4993 = vpow.pop %v4992
  %v4994 = vadd.f32 %v4993, 1.0
  %v4995 = vrcp.pop %v4994
  %v4996 = vmul.f32 1.0, %v4995
  %v4997 = vtanh.pop %v4990
  %v4998 = vxor.u32 %v4990, 2147483648
  %v4999 = vmul.f32 %v4998, 1.442695
  %v5000 = vpow.pop %v4999
  %v5001 = vadd.f32 %v5000, 1.0
  %v5002 = vrcp.pop %v5001
  %v5003 = vmul.f32 1.0, %v5002
  %5005 = vrot.lane.b32.xlu0 %v4907, 64
  %v5006 = vpop.permute.xlu0 %5005
  %v5008 = vmul.f32 %v4996, %v5006
  %v5009 = vmul.f32 %v4996, %v4997
  %5011 = vrot.lane.b32.xlu0 %v5009, 64
  %v5012 = vpop.permute.xlu0 %5011
  %v5014 = vadd.f32 %v5008, %v5012
  %v5015 = vtanh.pop %v5014
  %v5016 = vmul.f32 %v5003, %v5015
  %5018 = vrot.lane.b32.xlu0 %v5014, 64
  %v5019 = vpop.permute.xlu0 %5018
  %v5021 = vsel %vm1169, %v5019, %v4907
  %5023 = vrot.lane.b32.xlu0 %v5016, 64
  %v5024 = vpop.permute.xlu0 %5023
  %v5026 = vsel %vm1169, %v5024, %v4912
  %v5027 = vsel %vm1169, %v5024, 0.0
  %v5028 = vsel %vm95, %v4416, %v4638
  %v5029 = vsel %vm96, %v4418, %v4640
  %v5031 = vsel %vm350, %v5026, 0
  %5033 = vmatprep.subr.mxu0 %v4791
  %5034 = vmatpush1.msra.mxu0 %v4790
  %5035 = vmatprep.subr.mxu0 %v4793
  %5036 = vmatpush1.msra.mxu0 %v4792
  %5037 = vmatprep.subr.mxu0 %v4795
  %5038 = vmatpush1.msra.mxu0 %v4794
  %5039 = vmatprep.subr.mxu0 %v4797
  %5040 = vmatpush1.msra.mxu0 %v4796
  %5041 = vmatprep.subr.mxu0 %v4799
  %5042 = vmatpush1.msra.mxu0 %v4798
  %5043 = vmatprep.subr.mxu0 %v4801
  %5044 = vmatpush1.msra.mxu0 %v4800
  %5045 = vmatprep.subr.mxu0 %v4803
  %5046 = vmatpush1.msra.mxu0 %v4802
  %5047 = vmatprep.subr.mxu0 %v4805
  %5048 = vmatpush1.msra.mxu0 %v4804
  %5049 = vmatprep.subr.mxu0 0.0
  %5050 = vmatpush1.msra.mxu0 0.0
  %5051 = vmatprep.subr.mxu0 0.0
  %5052 = vmatpush1.msra.mxu0 0.0
  %5053 = vmatprep.subr.mxu0 0.0
  %5054 = vmatpush1.msra.mxu0 0.0
  %5055 = vmatprep.subr.mxu0 0.0
  %5056 = vmatpush1.msra.mxu0 0.0
  %5057 = vmatprep.subr.mxu0 0.0
  %5058 = vmatpush1.msra.mxu0 0.0
  %5059 = vmatprep.subr.mxu0 0.0
  %5060 = vmatpush1.msra.mxu0 0.0
  %5061 = vmatprep.subr.mxu0 0.0
  %5062 = vmatpush1.msra.mxu0 0.0
  %5063 = vmatprep.subr.mxu0 0.0
  %5064 = vmatpush1.msra.mxu0 0.0
  %5065 = vmatprep.subr.mxu0 0.0
  %5066 = vmatpush1.msra.mxu0 0.0
  %5067 = vmatprep.subr.mxu0 0.0
  %5068 = vmatpush1.msra.mxu0 0.0
  %5069 = vmatprep.subr.mxu0 0.0
  %5070 = vmatpush1.msra.mxu0 0.0
  %5071 = vmatprep.subr.mxu0 0.0
  %5072 = vmatpush1.msra.mxu0 0.0
  %5073 = vmatprep.subr.mxu0 0.0
  %5074 = vmatpush1.msra.mxu0 0.0
  %5075 = vmatprep.subr.mxu0 0.0
  %5076 = vmatpush1.msra.mxu0 0.0
  %5077 = vmatprep.subr.mxu0 0.0
  %5078 = vmatpush1.msra.mxu0 0.0
  %5079 = vmatprep.subr.mxu0 0.0
  %5080 = vmatpush1.msra.mxu0 0.0
  %5081 = vmatprep.subr.mxu0 0.0
  %5082 = vmatpush1.msra.mxu0 0.0
  %5083 = vmatprep.subr.mxu0 0.0
  %5084 = vmatpush1.msra.mxu0 0.0
  %5085 = vmatprep.subr.mxu0 0.0
  %5086 = vmatpush1.msra.mxu0 0.0
  %5087 = vmatprep.subr.mxu0 0.0
  %5088 = vmatpush1.msra.mxu0 0.0
  %5089 = vmatprep.subr.mxu0 0.0
  %5090 = vmatpush1.msra.mxu0 0.0
  %5091 = vmatprep.subr.mxu0 0.0
  %5092 = vmatpush1.msra.mxu0 0.0
  %5093 = vmatprep.subr.mxu0 0.0
  %5094 = vmatpush1.msra.mxu0 0.0
  %5095 = vmatprep.subr.mxu0 0.0
  %5096 = vmatpush1.msra.mxu0 0.0
  %5097 = vmatprep.mubr.f32.mxu0 0.0
  %5098 = vmatmul.mubr.f32.gmra.mrb[0].mxu0 %v5031
  %v5099 = vpop.f32.mrb[0].mxu0
  %v5100 = vadd.f32 0.0, %v5099
  %v5101 = vpop.f32.mrb[0].mxu0
  %v5102 = vadd.f32 0.0, %v5101
  %5103 = vdwg.mxu0
  %v5104 = vadd.f32 %v5028, %v5100
  %v5105 = vadd.f32 %v5029, %v5102
  %v5106 = vxor.u32 %v5104, 2147483648
  %v5107 = vmul.f32 %v5106, 1.442695
  %v5108 = vpow.pop %v5107
  %v5109 = vadd.f32 %v5108, 1.0
  %v5110 = vrcp.pop %v5109
  %v5111 = vmul.f32 1.0, %v5110
  %v5112 = vtanh.pop %v5105
  %v5113 = vxor.u32 %v5105, 2147483648
  %v5114 = vmul.f32 %v5113, 1.442695
  %v5115 = vpow.pop %v5114
  %v5116 = vadd.f32 %v5115, 1.0
  %v5117 = vrcp.pop %v5116
  %v5118 = vmul.f32 1.0, %v5117
  %5120 = vrot.lane.b32.xlu0 %v5021, 64
  %v5121 = vpop.permute.xlu0 %5120
  %v5123 = vmul.f32 %v5111, %v5121
  %v5124 = vmul.f32 %v5111, %v5112
  %5126 = vrot.lane.b32.xlu0 %v5124, 64
  %v5127 = vpop.permute.xlu0 %5126
  %v5129 = vadd.f32 %v5123, %v5127
  %v5130 = vtanh.pop %v5129
  %v5131 = vmul.f32 %v5118, %v5130
  %5133 = vrot.lane.b32.xlu0 %v5129, 64
  %v5134 = vpop.permute.xlu0 %5133
  %v5136 = vsel %vm1171, %v5134, %v5021
  %5138 = vrot.lane.b32.xlu0 %v5131, 64
  %v5139 = vpop.permute.xlu0 %5138
  %v5141 = vsel %vm1171, %v5139, %v5026
  %v5142 = vsel %vm1171, %v5139, 0.0
  %v5143 = vsel %vm95, %v4490, %v4564
  %v5144 = vsel %vm96, %v4492, %v4566
  %v5146 = vsel %vm350, %v5141, 0
  %5148 = vmatprep.subr.mxu0 %v4791
  %5149 = vmatpush1.msra.mxu0 %v4790
  %5150 = vmatprep.subr.mxu0 %v4793
  %5151 = vmatpush1.msra.mxu0 %v4792
  %5152 = vmatprep.subr.mxu0 %v4795
  %5153 = vmatpush1.msra.mxu0 %v4794
  %5154 = vmatprep.subr.mxu0 %v4797
  %5155 = vmatpush1.msra.mxu0 %v4796
  %5156 = vmatprep.subr.mxu0 %v4799
  %5157 = vmatpush1.msra.mxu0 %v4798
  %5158 = vmatprep.subr.mxu0 %v4801
  %5159 = vmatpush1.msra.mxu0 %v4800
  %5160 = vmatprep.subr.mxu0 %v4803
  %5161 = vmatpush1.msra.mxu0 %v4802
  %5162 = vmatprep.subr.mxu0 %v4805
  %5163 = vmatpush1.msra.mxu0 %v4804
  %5164 = vmatprep.subr.mxu0 0.0
  %5165 = vmatpush1.msra.mxu0 0.0
  %5166 = vmatprep.subr.mxu0 0.0
  %5167 = vmatpush1.msra.mxu0 0.0
  %5168 = vmatprep.subr.mxu0 0.0
  %5169 = vmatpush1.msra.mxu0 0.0
  %5170 = vmatprep.subr.mxu0 0.0
  %5171 = vmatpush1.msra.mxu0 0.0
  %5172 = vmatprep.subr.mxu0 0.0
  %5173 = vmatpush1.msra.mxu0 0.0
  %5174 = vmatprep.subr.mxu0 0.0
  %5175 = vmatpush1.msra.mxu0 0.0
  %5176 = vmatprep.subr.mxu0 0.0
  %5177 = vmatpush1.msra.mxu0 0.0
  %5178 = vmatprep.subr.mxu0 0.0
  %5179 = vmatpush1.msra.mxu0 0.0
  %5180 = vmatprep.subr.mxu0 0.0
  %5181 = vmatpush1.msra.mxu0 0.0
  %5182 = vmatprep.subr.mxu0 0.0
  %5183 = vmatpush1.msra.mxu0 0.0
  %5184 = vmatprep.subr.mxu0 0.0
  %5185 = vmatpush1.msra.mxu0 0.0
  %5186 = vmatprep.subr.mxu0 0.0
  %5187 = vmatpush1.msra.mxu0 0.0
  %5188 = vmatprep.subr.mxu0 0.0
  %5189 = vmatpush1.msra.mxu0 0.0
  %5190 = vmatprep.subr.mxu0 0.0
  %5191 = vmatpush1.msra.mxu0 0.0
  %5192 = vmatprep.subr.mxu0 0.0
  %5193 = vmatpush1.msra.mxu0 0.0
  %5194 = vmatprep.subr.mxu0 0.0
  %5195 = vmatpush1.msra.mxu0 0.0
  %5196 = vmatprep.subr.mxu0 0.0
  %5197 = vmatpush1.msra.mxu0 0.0
  %5198 = vmatprep.subr.mxu0 0.0
  %5199 = vmatpush1.msra.mxu0 0.0
  %5200 = vmatprep.subr.mxu0 0.0
  %5201 = vmatpush1.msra.mxu0 0.0
  %5202 = vmatprep.subr.mxu0 0.0
  %5203 = vmatpush1.msra.mxu0 0.0
  %5204 = vmatprep.subr.mxu0 0.0
  %5205 = vmatpush1.msra.mxu0 0.0
  %5206 = vmatprep.subr.mxu0 0.0
  %5207 = vmatpush1.msra.mxu0 0.0
  %5208 = vmatprep.subr.mxu0 0.0
  %5209 = vmatpush1.msra.mxu0 0.0
  %5210 = vmatprep.subr.mxu0 0.0
  %5211 = vmatpush1.msra.mxu0 0.0
  %5212 = vmatprep.mubr.f32.mxu0 0.0
  %5213 = vmatmul.mubr.f32.gmra.mrb[0].mxu0 %v5146
  %v5214 = vpop.f32.mrb[0].mxu0
  %v5215 = vadd.f32 0.0, %v5214
  %v5216 = vpop.f32.mrb[0].mxu0
  %v5217 = vadd.f32 0.0, %v5216
  %5218 = vdwg.mxu0
  %v5219 = vadd.f32 %v5143, %v5215
  %v5220 = vadd.f32 %v5144, %v5217
  %v5221 = vxor.u32 %v5219, 2147483648
  %v5222 = vmul.f32 %v5221, 1.442695
  %v5223 = vpow.pop %v5222
  %v5224 = vadd.f32 %v5223, 1.0
  %v5225 = vrcp.pop %v5224
  %v5226 = vmul.f32 1.0, %v5225
  %v5227 = vtanh.pop %v5220
  %v5228 = vxor.u32 %v5220, 2147483648
  %v5229 = vmul.f32 %v5228, 1.442695
  %v5230 = vpow.pop %v5229
  %v5231 = vadd.f32 %v5230, 1.0
  %v5232 = vrcp.pop %v5231
  %v5233 = vmul.f32 1.0, %v5232
  %5235 = vrot.lane.b32.xlu0 %v5136, 64
  %v5236 = vpop.permute.xlu0 %5235
  %v5238 = vmul.f32 %v5226, %v5236
  %v5239 = vmul.f32 %v5226, %v5227
  %5241 = vrot.lane.b32.xlu0 %v5239, 64
  %v5242 = vpop.permute.xlu0 %5241
  %v5244 = vadd.f32 %v5238, %v5242
  %v5245 = vtanh.pop %v5244
  %v5246 = vmul.f32 %v5233, %v5245
  %5248 = vrot.lane.b32.xlu0 %v5244, 64
  %v5249 = vpop.permute.xlu0 %5248
  %v5251 = vsel %vm1173, %v5249, %v5136
  %5253 = vrot.lane.b32.xlu0 %v5246, 64
  %v5254 = vpop.permute.xlu0 %5253
  %v5256 = vsel %vm1173, %v5254, %v5141
  %v5257 = vsel %vm1173, %v5254, 0.0
  %v5258 = vsel %vm95, %v4564, %v4490
  %v5259 = vsel %vm96, %v4566, %v4492
  %v5261 = vsel %vm350, %v5256, 0
  %5263 = vmatprep.subr.mxu0 %v4791
  %5264 = vmatpush1.msra.mxu0 %v4790
  %5265 = vmatprep.subr.mxu0 %v4793
  %5266 = vmatpush1.msra.mxu0 %v4792
  %5267 = vmatprep.subr.mxu0 %v4795
  %5268 = vmatpush1.msra.mxu0 %v4794
  %5269 = vmatprep.subr.mxu0 %v4797
  %5270 = vmatpush1.msra.mxu0 %v4796
  %5271 = vmatprep.subr.mxu0 %v4799
  %5272 = vmatpush1.msra.mxu0 %v4798
  %5273 = vmatprep.subr.mxu0 %v4801
  %5274 = vmatpush1.msra.mxu0 %v4800
  %5275 = vmatprep.subr.mxu0 %v4803
  %5276 = vmatpush1.msra.mxu0 %v4802
  %5277 = vmatprep.subr.mxu0 %v4805
  %5278 = vmatpush1.msra.mxu0 %v4804
  %5279 = vmatprep.subr.mxu0 0.0
  %5280 = vmatpush1.msra.mxu0 0.0
  %5281 = vmatprep.subr.mxu0 0.0
  %5282 = vmatpush1.msra.mxu0 0.0
  %5283 = vmatprep.subr.mxu0 0.0
  %5284 = vmatpush1.msra.mxu0 0.0
  %5285 = vmatprep.subr.mxu0 0.0
  %5286 = vmatpush1.msra.mxu0 0.0
  %5287 = vmatprep.subr.mxu0 0.0
  %5288 = vmatpush1.msra.mxu0 0.0
  %5289 = vmatprep.subr.mxu0 0.0
  %5290 = vmatpush1.msra.mxu0 0.0
  %5291 = vmatprep.subr.mxu0 0.0
  %5292 = vmatpush1.msra.mxu0 0.0
  %5293 = vmatprep.subr.mxu0 0.0
  %5294 = vmatpush1.msra.mxu0 0.0
  %5295 = vmatprep.subr.mxu0 0.0
  %5296 = vmatpush1.msra.mxu0 0.0
  %5297 = vmatprep.subr.mxu0 0.0
  %5298 = vmatpush1.msra.mxu0 0.0
  %5299 = vmatprep.subr.mxu0 0.0
  %5300 = vmatpush1.msra.mxu0 0.0
  %5301 = vmatprep.subr.mxu0 0.0
  %5302 = vmatpush1.msra.mxu0 0.0
  %5303 = vmatprep.subr.mxu0 0.0
  %5304 = vmatpush1.msra.mxu0 0.0
  %5305 = vmatprep.subr.mxu0 0.0
  %5306 = vmatpush1.msra.mxu0 0.0
  %5307 = vmatprep.subr.mxu0 0.0
  %5308 = vmatpush1.msra.mxu0 0.0
  %5309 = vmatprep.subr.mxu0 0.0
  %5310 = vmatpush1.msra.mxu0 0.0
  %5311 = vmatprep.subr.mxu0 0.0
  %5312 = vmatpush1.msra.mxu0 0.0
  %5313 = vmatprep.subr.mxu0 0.0
  %5314 = vmatpush1.msra.mxu0 0.0
  %5315 = vmatprep.subr.mxu0 0.0
  %5316 = vmatpush1.msra.mxu0 0.0
  %5317 = vmatprep.subr.mxu0 0.0
  %5318 = vmatpush1.msra.mxu0 0.0
  %5319 = vmatprep.subr.mxu0 0.0
  %5320 = vmatpush1.msra.mxu0 0.0
  %5321 = vmatprep.subr.mxu0 0.0
  %5322 = vmatpush1.msra.mxu0 0.0
  %5323 = vmatprep.subr.mxu0 0.0
  %5324 = vmatpush1.msra.mxu0 0.0
  %5325 = vmatprep.subr.mxu0 0.0
  %5326 = vmatpush1.msra.mxu0 0.0
  %5327 = vmatprep.mubr.f32.mxu0 0.0
  %5328 = vmatmul.mubr.f32.gmra.mrb[0].mxu0 %v5261
  %v5329 = vpop.f32.mrb[0].mxu0
  %v5330 = vadd.f32 0.0, %v5329
  %v5331 = vpop.f32.mrb[0].mxu0
  %v5332 = vadd.f32 0.0, %v5331
  %5333 = vdwg.mxu0
  %v5334 = vadd.f32 %v5258, %v5330
  %v5335 = vadd.f32 %v5259, %v5332
  %v5336 = vxor.u32 %v5334, 2147483648
  %v5337 = vmul.f32 %v5336, 1.442695
  %v5338 = vpow.pop %v5337
  %v5339 = vadd.f32 %v5338, 1.0
  %v5340 = vrcp.pop %v5339
  %v5341 = vmul.f32 1.0, %v5340
  %v5342 = vtanh.pop %v5335
  %v5343 = vxor.u32 %v5335, 2147483648
  %v5344 = vmul.f32 %v5343, 1.442695
  %v5345 = vpow.pop %v5344
  %v5346 = vadd.f32 %v5345, 1.0
  %v5347 = vrcp.pop %v5346
  %v5348 = vmul.f32 1.0, %v5347
  %5350 = vrot.lane.b32.xlu0 %v5251, 64
  %v5351 = vpop.permute.xlu0 %5350
  %v5353 = vmul.f32 %v5341, %v5351
  %v5354 = vmul.f32 %v5341, %v5342
  %5356 = vrot.lane.b32.xlu0 %v5354, 64
  %v5357 = vpop.permute.xlu0 %5356
  %v5359 = vadd.f32 %v5353, %v5357
  %v5360 = vtanh.pop %v5359
  %v5361 = vmul.f32 %v5348, %v5360
  %5363 = vrot.lane.b32.xlu0 %v5359, 64
  %v5364 = vpop.permute.xlu0 %5363
  %v5366 = vsel %vm1175, %v5364, %v5251
  %5368 = vrot.lane.b32.xlu0 %v5361, 64
  %v5369 = vpop.permute.xlu0 %5368
  %v5371 = vsel %vm1175, %v5369, %v5256
  %v5372 = vsel %vm1175, %v5369, 0.0
  %v5373 = vsel %vm95, %v4638, %v4416
  %v5374 = vsel %vm96, %v4640, %v4418
  %v5376 = vsel %vm350, %v5371, 0
  %5378 = vmatprep.subr.mxu0 %v4791
  %5379 = vmatpush1.msra.mxu0 %v4790
  %5380 = vmatprep.subr.mxu0 %v4793
  %5381 = vmatpush1.msra.mxu0 %v4792
  %5382 = vmatprep.subr.mxu0 %v4795
  %5383 = vmatpush1.msra.mxu0 %v4794
  %5384 = vmatprep.subr.mxu0 %v4797
  %5385 = vmatpush1.msra.mxu0 %v4796
  %5386 = vmatprep.subr.mxu0 %v4799
  %5387 = vmatpush1.msra.mxu0 %v4798
  %5388 = vmatprep.subr.mxu0 %v4801
  %5389 = vmatpush1.msra.mxu0 %v4800
  %5390 = vmatprep.subr.mxu0 %v4803
  %5391 = vmatpush1.msra.mxu0 %v4802
  %5392 = vmatprep.subr.mxu0 %v4805
  %5393 = vmatpush1.msra.mxu0 %v4804
  %5394 = vmatprep.subr.mxu0 0.0
  %5395 = vmatpush1.msra.mxu0 0.0
  %5396 = vmatprep.subr.mxu0 0.0
  %5397 = vmatpush1.msra.mxu0 0.0
  %5398 = vmatprep.subr.mxu0 0.0
  %5399 = vmatpush1.msra.mxu0 0.0
  %5400 = vmatprep.subr.mxu0 0.0
  %5401 = vmatpush1.msra.mxu0 0.0
  %5402 = vmatprep.subr.mxu0 0.0
  %5403 = vmatpush1.msra.mxu0 0.0
  %5404 = vmatprep.subr.mxu0 0.0
  %5405 = vmatpush1.msra.mxu0 0.0
  %5406 = vmatprep.subr.mxu0 0.0
  %5407 = vmatpush1.msra.mxu0 0.0
  %5408 = vmatprep.subr.mxu0 0.0
  %5409 = vmatpush1.msra.mxu0 0.0
  %5410 = vmatprep.subr.mxu0 0.0
  %5411 = vmatpush1.msra.mxu0 0.0
  %5412 = vmatprep.subr.mxu0 0.0
  %5413 = vmatpush1.msra.mxu0 0.0
  %5414 = vmatprep.subr.mxu0 0.0
  %5415 = vmatpush1.msra.mxu0 0.0
  %5416 = vmatprep.subr.mxu0 0.0
  %5417 = vmatpush1.msra.mxu0 0.0
  %5418 = vmatprep.subr.mxu0 0.0
  %5419 = vmatpush1.msra.mxu0 0.0
  %5420 = vmatprep.subr.mxu0 0.0
  %5421 = vmatpush1.msra.mxu0 0.0
  %5422 = vmatprep.subr.mxu0 0.0
  %5423 = vmatpush1.msra.mxu0 0.0
  %5424 = vmatprep.subr.mxu0 0.0
  %5425 = vmatpush1.msra.mxu0 0.0
  %5426 = vmatprep.subr.mxu0 0.0
  %5427 = vmatpush1.msra.mxu0 0.0
  %5428 = vmatprep.subr.mxu0 0.0
  %5429 = vmatpush1.msra.mxu0 0.0
  %5430 = vmatprep.subr.mxu0 0.0
  %5431 = vmatpush1.msra.mxu0 0.0
  %5432 = vmatprep.subr.mxu0 0.0
  %5433 = vmatpush1.msra.mxu0 0.0
  %5434 = vmatprep.subr.mxu0 0.0
  %5435 = vmatpush1.msra.mxu0 0.0
  %5436 = vmatprep.subr.mxu0 0.0
  %5437 = vmatpush1.msra.mxu0 0.0
  %5438 = vmatprep.subr.mxu0 0.0
  %5439 = vmatpush1.msra.mxu0 0.0
  %5440 = vmatprep.subr.mxu0 0.0
  %5441 = vmatpush1.msra.mxu0 0.0
  %5442 = vmatprep.mubr.f32.mxu0 0.0
  %5443 = vmatmul.mubr.f32.gmra.mrb[0].mxu0 %v5376
  %v5444 = vpop.f32.mrb[0].mxu0
  %v5445 = vadd.f32 0.0, %v5444
  %v5446 = vpop.f32.mrb[0].mxu0
  %v5447 = vadd.f32 0.0, %v5446
  %5448 = vdwg.mxu0
  %v5449 = vadd.f32 %v5373, %v5445
  %v5450 = vadd.f32 %v5374, %v5447
  %v5451 = vxor.u32 %v5449, 2147483648
  %v5452 = vmul.f32 %v5451, 1.442695
  %v5453 = vpow.pop %v5452
  %v5454 = vadd.f32 %v5453, 1.0
  %v5455 = vrcp.pop %v5454
  %v5456 = vmul.f32 1.0, %v5455
  %v5457 = vtanh.pop %v5450
  %v5458 = vxor.u32 %v5450, 2147483648
  %v5459 = vmul.f32 %v5458, 1.442695
  %v5460 = vpow.pop %v5459
  %v5461 = vadd.f32 %v5460, 1.0
  %v5462 = vrcp.pop %v5461
  %v5463 = vmul.f32 1.0, %v5462
  %5465 = vrot.lane.b32.xlu0 %v5366, 64
  %v5466 = vpop.permute.xlu0 %5465
  %v5468 = vmul.f32 %v5456, %v5466
  %v5469 = vmul.f32 %v5456, %v5457
  %5471 = vrot.lane.b32.xlu0 %v5469, 64
  %v5472 = vpop.permute.xlu0 %5471
  %v5474 = vadd.f32 %v5468, %v5472
  %v5475 = vtanh.pop %v5474
  %v5476 = vmul.f32 %v5463, %v5475
  %5478 = vrot.lane.b32.xlu0 %v5474, 64
  %v5479 = vpop.permute.xlu0 %5478
  %v5481 = vsel %vm1177, %v5479, %v5366
  %5483 = vrot.lane.b32.xlu0 %v5476, 64
  %v5484 = vpop.permute.xlu0 %5483
  %v5486 = vsel %vm1177, %v5484, %v5371
  %v5487 = vsel %vm1177, %v5484, 0.0
  %v5488 = vsel %vm95, %v4712, %v4342
  %v5489 = vsel %vm96, %v4714, %v4344
  %v5491 = vsel %vm350, %v5486, 0
  %5493 = vmatprep.subr.mxu0 %v4791
  %5494 = vmatpush1.msra.mxu0 %v4790
  %5495 = vmatprep.subr.mxu0 %v4793
  %5496 = vmatpush1.msra.mxu0 %v4792
  %5497 = vmatprep.subr.mxu0 %v4795
  %5498 = vmatpush1.msra.mxu0 %v4794
  %5499 = vmatprep.subr.mxu0 %v4797
  %5500 = vmatpush1.msra.mxu0 %v4796
  %5501 = vmatprep.subr.mxu0 %v4799
  %5502 = vmatpush1.msra.mxu0 %v4798
  %5503 = vmatprep.subr.mxu0 %v4801
  %5504 = vmatpush1.msra.mxu0 %v4800
  %5505 = vmatprep.subr.mxu0 %v4803
  %5506 = vmatpush1.msra.mxu0 %v4802
  %5507 = vmatprep.subr.mxu0 %v4805
  %5508 = vmatpush1.msra.mxu0 %v4804
  %5509 = vmatprep.subr.mxu0 0.0
  %5510 = vmatpush1.msra.mxu0 0.0
  %5511 = vmatprep.subr.mxu0 0.0
  %5512 = vmatpush1.msra.mxu0 0.0
  %5513 = vmatprep.subr.mxu0 0.0
  %5514 = vmatpush1.msra.mxu0 0.0
  %5515 = vmatprep.subr.mxu0 0.0
  %5516 = vmatpush1.msra.mxu0 0.0
  %5517 = vmatprep.subr.mxu0 0.0
  %5518 = vmatpush1.msra.mxu0 0.0
  %5519 = vmatprep.subr.mxu0 0.0
  %5520 = vmatpush1.msra.mxu0 0.0
  %5521 = vmatprep.subr.mxu0 0.0
  %5522 = vmatpush1.msra.mxu0 0.0
  %5523 = vmatprep.subr.mxu0 0.0
  %5524 = vmatpush1.msra.mxu0 0.0
  %5525 = vmatprep.subr.mxu0 0.0
  %5526 = vmatpush1.msra.mxu0 0.0
  %5527 = vmatprep.subr.mxu0 0.0
  %5528 = vmatpush1.msra.mxu0 0.0
  %5529 = vmatprep.subr.mxu0 0.0
  %5530 = vmatpush1.msra.mxu0 0.0
  %5531 = vmatprep.subr.mxu0 0.0
  %5532 = vmatpush1.msra.mxu0 0.0
  %5533 = vmatprep.subr.mxu0 0.0
  %5534 = vmatpush1.msra.mxu0 0.0
  %5535 = vmatprep.subr.mxu0 0.0
  %5536 = vmatpush1.msra.mxu0 0.0
  %5537 = vmatprep.subr.mxu0 0.0
  %5538 = vmatpush1.msra.mxu0 0.0
  %5539 = vmatprep.subr.mxu0 0.0
  %5540 = vmatpush1.msra.mxu0 0.0
  %5541 = vmatprep.subr.mxu0 0.0
  %5542 = vmatpush1.msra.mxu0 0.0
  %5543 = vmatprep.subr.mxu0 0.0
  %5544 = vmatpush1.msra.mxu0 0.0
  %5545 = vmatprep.subr.mxu0 0.0
  %5546 = vmatpush1.msra.mxu0 0.0
  %5547 = vmatprep.subr.mxu0 0.0
  %5548 = vmatpush1.msra.mxu0 0.0
  %5549 = vmatprep.subr.mxu0 0.0
  %5550 = vmatpush1.msra.mxu0 0.0
  %5551 = vmatprep.subr.mxu0 0.0
  %5552 = vmatpush1.msra.mxu0 0.0
  %5553 = vmatprep.subr.mxu0 0.0
  %5554 = vmatpush1.msra.mxu0 0.0
  %5555 = vmatprep.subr.mxu0 0.0
  %5556 = vmatpush1.msra.mxu0 0.0
  %5557 = vmatprep.mubr.f32.mxu0 0.0
  %5558 = vmatmul.mubr.f32.gmra.mrb[0].mxu0 %v5491
  %v5559 = vpop.f32.mrb[0].mxu0
  %v5560 = vadd.f32 0.0, %v5559
  %v5561 = vpop.f32.mrb[0].mxu0
  %v5562 = vadd.f32 0.0, %v5561
  %5563 = vdwg.mxu0
  %v5564 = vadd.f32 %v5488, %v5560
  %v5565 = vadd.f32 %v5489, %v5562
  %v5566 = vxor.u32 %v5564, 2147483648
  %v5567 = vmul.f32 %v5566, 1.442695
  %v5568 = vpow.pop %v5567
  %v5569 = vadd.f32 %v5568, 1.0
  %v5570 = vrcp.pop %v5569
  %v5571 = vmul.f32 1.0, %v5570
  %v5572 = vtanh.pop %v5565
  %v5573 = vxor.u32 %v5565, 2147483648
  %v5574 = vmul.f32 %v5573, 1.442695
  %v5575 = vpow.pop %v5574
  %v5576 = vadd.f32 %v5575, 1.0
  %v5577 = vrcp.pop %v5576
  %v5578 = vmul.f32 1.0, %v5577
  %5580 = vrot.lane.b32.xlu0 %v5481, 64
  %v5581 = vpop.permute.xlu0 %5580
  %v5583 = vmul.f32 %v5571, %v5581
  %v5584 = vmul.f32 %v5571, %v5572
  %5586 = vrot.lane.b32.xlu0 %v5584, 64
  %v5587 = vpop.permute.xlu0 %5586
  %v5589 = vadd.f32 %v5583, %v5587
  %v5590 = vtanh.pop %v5589
  %v5591 = vmul.f32 %v5578, %v5590
  %5593 = vrot.lane.b32.xlu0 %v5589, 64
  %v5594 = vpop.permute.xlu0 %5593
  %v5596 = vsel %vm1179, %v5594, %v5481
  %5598 = vrot.lane.b32.xlu0 %v5591, 64
  %v5599 = vpop.permute.xlu0 %5598
  %v5601 = vsel %vm1179, %v5599, %v5486
  %v5602 = vsel %vm1179, %v5599, 0.0
  %v5603 = vsel %vm95, %v4786, %v4268
  %v5604 = vsel %vm96, %v4788, %v4270
  %v5606 = vsel %vm350, %v5601, 0
  %5608 = vmatprep.subr.mxu0 %v4791
  %5609 = vmatpush1.msra.mxu0 %v4790
  %5610 = vmatprep.subr.mxu0 %v4793
  %5611 = vmatpush1.msra.mxu0 %v4792
  %5612 = vmatprep.subr.mxu0 %v4795
  %5613 = vmatpush1.msra.mxu0 %v4794
  %5614 = vmatprep.subr.mxu0 %v4797
  %5615 = vmatpush1.msra.mxu0 %v4796
  %5616 = vmatprep.subr.mxu0 %v4799
  %5617 = vmatpush1.msra.mxu0 %v4798
  %5618 = vmatprep.subr.mxu0 %v4801
  %5619 = vmatpush1.msra.mxu0 %v4800
  %5620 = vmatprep.subr.mxu0 %v4803
  %5621 = vmatpush1.msra.mxu0 %v4802
  %5622 = vmatprep.subr.mxu0 %v4805
  %5623 = vmatpush1.msra.mxu0 %v4804
  %5624 = vmatprep.subr.mxu0 0.0
  %5625 = vmatpush1.msra.mxu0 0.0
  %5626 = vmatprep.subr.mxu0 0.0
  %5627 = vmatpush1.msra.mxu0 0.0
  %5628 = vmatprep.subr.mxu0 0.0
  %5629 = vmatpush1.msra.mxu0 0.0
  %5630 = vmatprep.subr.mxu0 0.0
  %5631 = vmatpush1.msra.mxu0 0.0
  %5632 = vmatprep.subr.mxu0 0.0
  %5633 = vmatpush1.msra.mxu0 0.0
  %5634 = vmatprep.subr.mxu0 0.0
  %5635 = vmatpush1.msra.mxu0 0.0
  %5636 = vmatprep.subr.mxu0 0.0
  %5637 = vmatpush1.msra.mxu0 0.0
  %5638 = vmatprep.subr.mxu0 0.0
  %5639 = vmatpush1.msra.mxu0 0.0
  %5640 = vmatprep.subr.mxu0 0.0
  %5641 = vmatpush1.msra.mxu0 0.0
  %5642 = vmatprep.subr.mxu0 0.0
  %5643 = vmatpush1.msra.mxu0 0.0
  %5644 = vmatprep.subr.mxu0 0.0
  %5645 = vmatpush1.msra.mxu0 0.0
  %5646 = vmatprep.subr.mxu0 0.0
  %5647 = vmatpush1.msra.mxu0 0.0
  %5648 = vmatprep.subr.mxu0 0.0
  %5649 = vmatpush1.msra.mxu0 0.0
  %5650 = vmatprep.subr.mxu0 0.0
  %5651 = vmatpush1.msra.mxu0 0.0
  %5652 = vmatprep.subr.mxu0 0.0
  %5653 = vmatpush1.msra.mxu0 0.0
  %5654 = vmatprep.subr.mxu0 0.0
  %5655 = vmatpush1.msra.mxu0 0.0
  %5656 = vmatprep.subr.mxu0 0.0
  %5657 = vmatpush1.msra.mxu0 0.0
  %5658 = vmatprep.subr.mxu0 0.0
  %5659 = vmatpush1.msra.mxu0 0.0
  %5660 = vmatprep.subr.mxu0 0.0
  %5661 = vmatpush1.msra.mxu0 0.0
  %5662 = vmatprep.subr.mxu0 0.0
  %5663 = vmatpush1.msra.mxu0 0.0
  %5664 = vmatprep.subr.mxu0 0.0
  %5665 = vmatpush1.msra.mxu0 0.0
  %5666 = vmatprep.subr.mxu0 0.0
  %5667 = vmatpush1.msra.mxu0 0.0
  %5668 = vmatprep.subr.mxu0 0.0
  %5669 = vmatpush1.msra.mxu0 0.0
  %5670 = vmatprep.subr.mxu0 0.0
  %5671 = vmatpush1.msra.mxu0 0.0
  %5672 = vmatprep.mubr.f32.mxu0 0.0
  %5673 = vmatmul.mubr.f32.gmra.mrb[0].mxu0 %v5606
  %v5674 = vpop.f32.mrb[0].mxu0
  %v5675 = vadd.f32 0.0, %v5674
  %v5676 = vpop.f32.mrb[0].mxu0
  %v5677 = vadd.f32 0.0, %v5676
  %5678 = vdwg.mxu0
  %v5679 = vadd.f32 %v5603, %v5675
  %v5680 = vadd.f32 %v5604, %v5677
  %v5681 = vxor.u32 %v5679, 2147483648
  %v5682 = vmul.f32 %v5681, 1.442695
  %v5683 = vpow.pop %v5682
  %v5684 = vadd.f32 %v5683, 1.0
  %v5685 = vrcp.pop %v5684
  %v5686 = vmul.f32 1.0, %v5685
  %v5687 = vtanh.pop %v5680
  %v5688 = vxor.u32 %v5680, 2147483648
  %v5689 = vmul.f32 %v5688, 1.442695
  %v5690 = vpow.pop %v5689
  %v5691 = vadd.f32 %v5690, 1.0
  %v5692 = vrcp.pop %v5691
  %v5693 = vmul.f32 1.0, %v5692
  %5695 = vrot.lane.b32.xlu0 %v5596, 64
  %v5696 = vpop.permute.xlu0 %5695
  %v5698 = vmul.f32 %v5686, %v5696
  %v5699 = vmul.f32 %v5686, %v5687
  %5701 = vrot.lane.b32.xlu0 %v5699, 64
  %v5702 = vpop.permute.xlu0 %5701
  %v5704 = vadd.f32 %v5698, %v5702
  %v5705 = vtanh.pop %v5704
  %v5706 = vmul.f32 %v5693, %v5705
  %5708 = vrot.lane.b32.xlu0 %v5706, 64
  %v5709 = vpop.permute.xlu0 %5708
  %v5711 = vsel %vm1181, %v5709, 0.0
  %v5712 = vsel %vm97, %v4912, %v5711
  %v5713 = vsel %vm97, %v5027, %v5602
  %v5714 = vsel %vm97, %v5142, %v5487
  %v5715 = vsel %vm97, %v5257, %v5372
  %v5716 = vsel %vm97, %v5372, %v5257
  %v5717 = vsel %vm97, %v5487, %v5142
  %v5718 = vsel %vm97, %v5602, %v5027
  %v5719 = vsel %vm97, %v5711, %v4912
  %5722 = vrot.lane.b32.xlu0 %v811, 64
  %v5723 = vpop.permute.xlu0 %5722
  %5724 = vrot.lane.b32.xlu0 %v813, 64
  %v5725 = vpop.permute.xlu0 %5724
  %5726 = vrot.lane.b32.xlu0 %v963, 64
  %v5727 = vpop.permute.xlu0 %5726
  %v5728 = vsel %vm350, %v5723, %v5725
  %v5729 = vsel %vm350, %v5725, %v5727
  %v5731 = vsel %vm350, %v5712, %v5723
  %v5733 = vcombine.low %v5731, %v5728
  %v5735 = vunpack.c.l.s4 1983009808
  %v5736 = vunpack.c.0.s8 %v5735
  %v5737 = vlaneseq
  %v5738 = vshrl.u32 %v5737, 7
  %v5739 = vsub.s32 %v5736, %v5738
  %v5740 = vrot.slane %v5733, %v5739
  %v5742 = vunpack.c.l.s4 1983009808
  %v5743 = vunpack.c.0.s8 %v5742
  %v5744 = vlaneseq
  %v5745 = vshrl.u32 %v5744, 7
  %v5746 = vsub.s32 %v5743, %v5745
  %v5747 = vrot.slane %v5729, %v5746
  %v5748 = vcombine.low %v5740, %v5747
  %vm5750 = vcmask 1041408
  %vm5751 = vcmask 1043458
  %vm5752 = vmor %vm5751, %vm5750
  %vm5753 = vcmask 881668
  %vm5754 = vmor %vm5753, %vm5752
  %5755 = vst.msk [vmem:[%s21] sm:$0x3f] %vm5754, %v5748
  %v5756 = vrot.slane %v811, 2
  %v5757 = vrot.slane %v813, 2
  %v5758 = vrot.slane %v963, 2
  %5759 = vrot.lane.b32.xlu0 %v5756, 64
  %v5760 = vpop.permute.xlu0 %5759
  %5761 = vrot.lane.b32.xlu0 %v5757, 64
  %v5762 = vpop.permute.xlu0 %5761
  %5763 = vrot.lane.b32.xlu0 %v5758, 64
  %v5764 = vpop.permute.xlu0 %5763
  %v5765 = vsel %vm350, %v5760, %v5762
  %v5766 = vsel %vm350, %v5762, %v5764
  %v5768 = vsel %vm350, %v5713, %v5760
  %v5770 = vcombine.low %v5768, %v5765
  %v5772 = vunpack.c.l.s4 1983009808
  %v5773 = vunpack.c.0.s8 %v5772
  %v5774 = vlaneseq
  %v5775 = vshrl.u32 %v5774, 7
  %v5776 = vsub.s32 %v5773, %v5775
  %v5777 = vrot.slane %v5770, %v5776
  %v5779 = vunpack.c.l.s4 1983009808
  %v5780 = vunpack.c.0.s8 %v5779
  %v5781 = vlaneseq
  %v5782 = vshrl.u32 %v5781, 7
  %v5783 = vsub.s32 %v5780, %v5782
  %v5784 = vrot.slane %v5766, %v5783
  %v5785 = vcombine.low %v5777, %v5784
  %s5787 = scalar_lea.vmem %s21, 6
  %5788 = vst.msk [vmem:[%s5787] sm:$0x3f] %vm5754, %v5785
  %v5789 = vrot.slane %v811, 4
  %v5790 = vrot.slane %v813, 4
  %v5791 = vrot.slane %v963, 4
  %5792 = vrot.lane.b32.xlu0 %v5789, 64
  %v5793 = vpop.permute.xlu0 %5792
  %5794 = vrot.lane.b32.xlu0 %v5790, 64
  %v5795 = vpop.permute.xlu0 %5794
  %5796 = vrot.lane.b32.xlu0 %v5791, 64
  %v5797 = vpop.permute.xlu0 %5796
  %v5798 = vsel %vm350, %v5793, %v5795
  %v5799 = vsel %vm350, %v5795, %v5797
  %v5801 = vsel %vm350, %v5714, %v5793
  %v5803 = vcombine.low %v5801, %v5798
  %v5805 = vunpack.c.l.s4 1983009808
  %v5806 = vunpack.c.0.s8 %v5805
  %v5807 = vlaneseq
  %v5808 = vshrl.u32 %v5807, 7
  %v5809 = vsub.s32 %v5806, %v5808
  %v5810 = vrot.slane %v5803, %v5809
  %v5812 = vunpack.c.l.s4 1983009808
  %v5813 = vunpack.c.0.s8 %v5812
  %v5814 = vlaneseq
  %v5815 = vshrl.u32 %v5814, 7
  %v5816 = vsub.s32 %v5813, %v5815
  %v5817 = vrot.slane %v5799, %v5816
  %v5818 = vcombine.low %v5810, %v5817
  %s5820 = scalar_lea.vmem %s21, 12
  %5821 = vst.msk [vmem:[%s5820] sm:$0x3f] %vm5754, %v5818
  %v5822 = vrot.slane %v811, 6
  %v5823 = vrot.slane %v813, 6
  %v5824 = vrot.slane %v963, 6
  %5825 = vrot.lane.b32.xlu0 %v5822, 64
  %v5826 = vpop.permute.xlu0 %5825
  %5827 = vrot.lane.b32.xlu0 %v5823, 64
  %v5828 = vpop.permute.xlu0 %5827
  %5829 = vrot.lane.b32.xlu0 %v5824, 64
  %v5830 = vpop.permute.xlu0 %5829
  %v5831 = vsel %vm350, %v5826, %v5828
  %v5832 = vsel %vm350, %v5828, %v5830
  %v5834 = vsel %vm350, %v5715, %v5826
  %v5836 = vcombine.low %v5834, %v5831
  %v5838 = vunpack.c.l.s4 1983009808
  %v5839 = vunpack.c.0.s8 %v5838
  %v5840 = vlaneseq
  %v5841 = vshrl.u32 %v5840, 7
  %v5842 = vsub.s32 %v5839, %v5841
  %v5843 = vrot.slane %v5836, %v5842
  %v5845 = vunpack.c.l.s4 1983009808
  %v5846 = vunpack.c.0.s8 %v5845
  %v5847 = vlaneseq
  %v5848 = vshrl.u32 %v5847, 7
  %v5849 = vsub.s32 %v5846, %v5848
  %v5850 = vrot.slane %v5832, %v5849
  %v5851 = vcombine.low %v5843, %v5850
  %s5853 = scalar_lea.vmem %s21, 18
  %5854 = vst.msk [vmem:[%s5853] sm:$0x3f] %vm5754, %v5851
  %5857 = vrot.lane.b32.xlu0 %v817, 64
  %v5858 = vpop.permute.xlu0 %5857
  %5859 = vrot.lane.b32.xlu0 %v819, 64
  %v5860 = vpop.permute.xlu0 %5859
  %5861 = vrot.lane.b32.xlu0 %v968, 64
  %v5862 = vpop.permute.xlu0 %5861
  %v5863 = vsel %vm350, %v5858, %v5860
  %v5864 = vsel %vm350, %v5860, %v5862
  %v5866 = vsel %vm350, %v5716, %v5858
  %v5868 = vcombine.low %v5866, %v5863
  %v5870 = vunpack.c.l.s4 1983009808
  %v5871 = vunpack.c.0.s8 %v5870
  %v5872 = vlaneseq
  %v5873 = vshrl.u32 %v5872, 7
  %v5874 = vsub.s32 %v5871, %v5873
  %v5875 = vrot.slane %v5868, %v5874
  %v5877 = vunpack.c.l.s4 1983009808
  %v5878 = vunpack.c.0.s8 %v5877
  %v5879 = vlaneseq
  %v5880 = vshrl.u32 %v5879, 7
  %v5881 = vsub.s32 %v5878, %v5880
  %v5882 = vrot.slane %v5864, %v5881
  %v5883 = vcombine.low %v5875, %v5882
  %s5885 = scalar_lea.vmem %s21, 24
  %5886 = vst.msk [vmem:[%s5885] sm:$0x3f] %vm5754, %v5883
  %v5887 = vrot.slane %v817, 2
  %v5888 = vrot.slane %v819, 2
  %v5889 = vrot.slane %v968, 2
  %5890 = vrot.lane.b32.xlu0 %v5887, 64
  %v5891 = vpop.permute.xlu0 %5890
  %5892 = vrot.lane.b32.xlu0 %v5888, 64
  %v5893 = vpop.permute.xlu0 %5892
  %5894 = vrot.lane.b32.xlu0 %v5889, 64
  %v5895 = vpop.permute.xlu0 %5894
  %v5896 = vsel %vm350, %v5891, %v5893
  %v5897 = vsel %vm350, %v5893, %v5895
  %v5899 = vsel %vm350, %v5717, %v5891
  %v5901 = vcombine.low %v5899, %v5896
  %v5903 = vunpack.c.l.s4 1983009808
  %v5904 = vunpack.c.0.s8 %v5903
  %v5905 = vlaneseq
  %v5906 = vshrl.u32 %v5905, 7
  %v5907 = vsub.s32 %v5904, %v5906
  %v5908 = vrot.slane %v5901, %v5907
  %v5910 = vunpack.c.l.s4 1983009808
  %v5911 = vunpack.c.0.s8 %v5910
  %v5912 = vlaneseq
  %v5913 = vshrl.u32 %v5912, 7
  %v5914 = vsub.s32 %v5911, %v5913
  %v5915 = vrot.slane %v5897, %v5914
  %v5916 = vcombine.low %v5908, %v5915
  %s5918 = scalar_lea.vmem %s21, 30
  %5919 = vst.msk [vmem:[%s5918] sm:$0x3f] %vm5754, %v5916
  %v5920 = vrot.slane %v817, 4
  %v5921 = vrot.slane %v819, 4
  %v5922 = vrot.slane %v968, 4
  %5923 = vrot.lane.b32.xlu0 %v5920, 64
  %v5924 = vpop.permute.xlu0 %5923
  %5925 = vrot.lane.b32.xlu0 %v5921, 64
  %v5926 = vpop.permute.xlu0 %5925
  %5927 = vrot.lane.b32.xlu0 %v5922, 64
  %v5928 = vpop.permute.xlu0 %5927
  %v5929 = vsel %vm350, %v5924, %v5926
  %v5930 = vsel %vm350, %v5926, %v5928
  %v5932 = vsel %vm350, %v5718, %v5924
  %v5934 = vcombine.low %v5932, %v5929
  %v5936 = vunpack.c.l.s4 1983009808
  %v5937 = vunpack.c.0.s8 %v5936
  %v5938 = vlaneseq
  %v5939 = vshrl.u32 %v5938, 7
  %v5940 = vsub.s32 %v5937, %v5939
  %v5941 = vrot.slane %v5934, %v5940
  %v5943 = vunpack.c.l.s4 1983009808
  %v5944 = vunpack.c.0.s8 %v5943
  %v5945 = vlaneseq
  %v5946 = vshrl.u32 %v5945, 7
  %v5947 = vsub.s32 %v5944, %v5946
  %v5948 = vrot.slane %v5930, %v5947
  %v5949 = vcombine.low %v5941, %v5948
  %s5951 = scalar_lea.vmem %s21, 36
  %5952 = vst.msk [vmem:[%s5951] sm:$0x3f] %vm5754, %v5949
  %v5953 = vrot.slane %v817, 6
  %v5954 = vrot.slane %v819, 6
  %v5955 = vrot.slane %v968, 6
  %5956 = vrot.lane.b32.xlu0 %v5953, 64
  %v5957 = vpop.permute.xlu0 %5956
  %5958 = vrot.lane.b32.xlu0 %v5954, 64
  %v5959 = vpop.permute.xlu0 %5958
  %5960 = vrot.lane.b32.xlu0 %v5955, 64
  %v5961 = vpop.permute.xlu0 %5960
  %v5962 = vsel %vm350, %v5957, %v5959
  %v5963 = vsel %vm350, %v5959, %v5961
  %v5965 = vsel %vm350, %v5719, %v5957
  %v5967 = vcombine.low %v5965, %v5962
  %v5969 = vunpack.c.l.s4 1983009808
  %v5970 = vunpack.c.0.s8 %v5969
  %v5971 = vlaneseq
  %v5972 = vshrl.u32 %v5971, 7
  %v5973 = vsub.s32 %v5970, %v5972
  %v5974 = vrot.slane %v5967, %v5973
  %v5976 = vunpack.c.l.s4 1983009808
  %v5977 = vunpack.c.0.s8 %v5976
  %v5978 = vlaneseq
  %v5979 = vshrl.u32 %v5978, 7
  %v5980 = vsub.s32 %v5977, %v5979
  %v5981 = vrot.slane %v5963, %v5980
  %v5982 = vcombine.low %v5974, %v5981
  %s5984 = scalar_lea.vmem %s21, 42
  %5985 = vst.msk [vmem:[%s5984] sm:$0x3f] %vm5754, %v5982
  // Predicated region
  $region86: #{encoder_forward.1} parent=0 // pred_check
    _
  $region87: #{encoder_forward.1} parent=0 // pred_check_branch
    %5987 = sbr.rel (0) target = $region89
  $region88: #{encoder_forward.1} parent=0 // pred_region
    _
  $region89: #{encoder_forward.1} parent=0 // pred_fallthru
    _
  // Predicated region
  $region90: #{encoder_forward.1} parent=0 // pred_check
    _
  $region91: #{encoder_forward.1} parent=0 // pred_check_branch
    %5989 = sbr.rel (0) target = $region93
  $region92: #{encoder_forward.1} parent=0 // pred_region
    _
  $region93: #{encoder_forward.1} parent=0 // pred_fallthru
    _

</llo_original>
